<compile_context>
chip_gen: v7x
topology: tpu7x:2x2x1
jax: 0.10.0
libtpu: 0.0.40
codegen_flags: <defaults>
</compile_context>

<pallas_src>
import jax
import jax.numpy as jnp
from jax.experimental import pallas as pl
from jax.experimental.pallas import tpu as pltpu

TB = 8               # images per grid step (fills a sublane tile)
S_IN = 1024          # 32*32 flattened input spatial
SXP = 1152           # zero-padded input lanes (>= 1024 and >= 132 + M1)
M1 = 896             # conv1 output lanes kept (7*128; valid lanes <= 891)
LA1 = 863            # pool1 shifted-max width on the sparse 32-grid
ND1 = 256            # dense pool1 grid width (lane = 16*ph + pw, valid <= 221)
M2 = 160             # conv2 output lanes on the dense 16-grid (valid <= 153)
LA2 = 139            # pool2 sparse width (lane = 32*qh + 2*qw, valid <= 136)
K1 = 25 * 3 * TB     # 600  (kron-expanded conv1 im2col depth)
K2 = 25 * 6 * TB     # 1200 (kron-expanded conv2 im2col depth)


# ------------------------------ fused kernel -------------------------------

def _cnn_kernel(x_ref, w1_ref, b1_ref, cs1_ref, w2_ref, b2_ref,
                wf1_ref, bf1_ref, wf2_ref, bf2_ref, wf3_ref, bf3_ref,
                out_ref,
                p1_scr, o1_scr, a1_scr, p2_scr, o2_scr):
    # ---- conv1 (3->6, k5): in-kernel im2col (25 shifted slices) + 1 bf16 matmul
    for i in range(5):
        for j in range(5):
            k = i * 5 + j
            s = 32 * i + j
            p1_scr[k * 24:(k + 1) * 24, :] = x_ref[0, :, s:s + M1]
    o1 = jnp.dot(w1_ref[...], p1_scr[...].astype(jnp.bfloat16),
                 preferred_element_type=jnp.float32)
    o1_scr[...] = jnp.maximum(o1 + b1_ref[...], 0.0)             # bias + ReLU (f32)

    # ---- pool1 (2x2/2) fused: max of 4 lane-shifted copies on the sparse
    #      32-wide grid (pooled pixel (ph,pw) at lane 64ph+2pw), then compact
    #      to a dense 16-wide grid (lane 16ph+pw) with a 0/1 selection matmul.
    a1s = jnp.maximum(
        jnp.maximum(o1_scr[:, 0:LA1], o1_scr[:, 1:LA1 + 1]),
        jnp.maximum(o1_scr[:, 32:32 + LA1], o1_scr[:, 33:33 + LA1]))
    a1_scr[...] = jnp.dot(a1s.astype(jnp.bfloat16), cs1_ref[...],
                          preferred_element_type=jnp.float32
                          ).astype(jnp.bfloat16)                  # (48, ND1)

    # ---- conv2 (6->16, k5) on the dense grid: tap shift = 16*i + j
    for i in range(5):
        for j in range(5):
            k = i * 5 + j
            s = 16 * i + j
            p2_scr[k * 48:(k + 1) * 48, :] = a1_scr[:, s:s + M2]  # bf16, aligned
    o2 = jnp.dot(w2_ref[...], p2_scr[...], preferred_element_type=jnp.float32)
    o2_scr[...] = jnp.maximum(o2 + b2_ref[...], 0.0)

    # ---- pool2 fused: pooled pixel (qh,qw) lives at sparse lane 32qh+2qw
    a2 = jnp.maximum(
        jnp.maximum(o2_scr[:, 0:LA2], o2_scr[:, 1:LA2 + 1]),
        jnp.maximum(o2_scr[:, 16:16 + LA2], o2_scr[:, 17:17 + LA2]))  # (128, LA2)

    # ---- fc1: per-channel contraction against weights zero-expanded onto the
    #      small sparse pool2 grid (16, LA2=139, 120) -- bf16 operands.
    acc = jnp.zeros((TB, 120), jnp.float32)
    for c in range(16):
        acc = acc + jnp.dot(a2[c * TB:(c + 1) * TB, :].astype(jnp.bfloat16),
                            wf1_ref[c], preferred_element_type=jnp.float32)
    h1 = jnp.maximum(acc + bf1_ref[...], 0.0)                     # (TB, 120)
    h2 = jnp.maximum(
        jnp.dot(h1.astype(jnp.bfloat16), wf2_ref[...],
                preferred_element_type=jnp.float32) + bf2_ref[...], 0.0)  # (TB, 84)
    out_ref[...] = (jnp.dot(h2.astype(jnp.bfloat16), wf3_ref[...],
                            preferred_element_type=jnp.float32)
                    + bf3_ref[...])                               # (TB, 128)


# --------------------------- wrapper / weight prep -------------------------

def _pack_params(params):
    """One-time layout/dtype transforms (plain XLA, outside the kernel)."""
    f32, bf16 = jnp.float32, jnp.bfloat16
    eye = jnp.eye(TB, dtype=f32)

    # conv weights -> block-diagonal (per-image) im2col matmul weights (bf16).
    w1k = jnp.transpose(params["conv1_w"], (2, 3, 1, 0)).reshape(25, 3, 6)
    w1big = jnp.einsum("kcf,bd->fbkcd", w1k, eye).reshape(6 * TB, K1).astype(bf16)
    b1e = jnp.repeat(params["conv1_b"], TB).reshape(6 * TB, 1).astype(f32)

    # pool1 compaction: sparse lane 64*ph + 2*pw -> dense lane 16*ph + pw.
    ph = jnp.arange(14)
    pw = jnp.arange(14)
    rows = (64 * ph[:, None] + 2 * pw[None, :]).reshape(-1)
    cols = (16 * ph[:, None] + pw[None, :]).reshape(-1)
    cs1 = jnp.zeros((LA1, ND1), f32).at[rows, cols].set(1.0).astype(bf16)

    w2k = jnp.transpose(params["conv2_w"], (2, 3, 1, 0)).reshape(25, 6, 16)
    w2big = jnp.einsum("kcf,bd->fbkcd", w2k, eye).reshape(16 * TB, K2).astype(bf16)
    b2e = jnp.repeat(params["conv2_b"], TB).reshape(16 * TB, 1).astype(f32)

    # fc1: scatter (c, qh, qw) onto the sparse pool2 lanes (32*qh + 2*qw).
    wt = params["fc1_w"].reshape(120, 16, 5, 5).transpose(1, 2, 3, 0)
    wt = wt.reshape(16, 25, 120)
    pos = jnp.array([32 * qh + 2 * qw for qh in range(5) for qw in range(5)],
                    dtype=jnp.int32)
    wf1 = jnp.zeros((16, LA2, 120), f32).at[:, pos, :].set(wt).astype(bf16)
    bf1 = params["fc1_b"].reshape(1, 120).astype(f32)

    wf2 = params["fc2_w"].T.astype(bf16)                           # (120, 84)
    bf2 = params["fc2_b"].reshape(1, 84).astype(f32)
    # fc3 padded to a 128-lane slab (lane-dense output store).
    wf3 = jnp.zeros((84, 128), f32).at[:, :10].set(params["fc3_w"].T).astype(bf16)
    bf3 = jnp.zeros((1, 128), f32).at[:, :10].set(params["fc3_b"])
    return (w1big, b1e, cs1, w2big, b2e, wf1, bf1, wf2, bf2, wf3, bf3)


def cnn_cifar_forward(x_nchw, params):
    N = x_nchw.shape[0]
    G = (N + TB - 1) // TB
    n_pad = G * TB
    x = x_nchw.astype(jnp.float32)
    if n_pad != N:
        x = jnp.pad(x, ((0, n_pad - N), (0, 0), (0, 0), (0, 0)))
    # (G, 3*TB, SXP): row = ci*TB + b_local, lane = 32*h + w, zero lane padding.
    xg = x.reshape(G, TB, 3, S_IN).transpose(0, 2, 1, 3).reshape(G, 3 * TB, S_IN)
    xg = jnp.pad(xg, ((0, 0), (0, 0), (0, SXP - S_IN)))
    packed = _pack_params(params)

    in_specs = [
        pl.BlockSpec((1, 3 * TB, SXP), lambda g: (g, 0, 0)),       # image tile
        pl.BlockSpec((6 * TB, K1), lambda g: (0, 0)),              # conv1 W (bf16)
        pl.BlockSpec((6 * TB, 1), lambda g: (0, 0)),               # conv1 b
        pl.BlockSpec((LA1, ND1), lambda g: (0, 0)),                # pool1 compaction
        pl.BlockSpec((16 * TB, K2), lambda g: (0, 0)),             # conv2 W (bf16)
        pl.BlockSpec((16 * TB, 1), lambda g: (0, 0)),              # conv2 b
        pl.BlockSpec((16, LA2, 120), lambda g: (0, 0, 0)),         # fc1 W (bf16, exp)
        pl.BlockSpec((1, 120), lambda g: (0, 0)),                  # fc1 b
        pl.BlockSpec((120, 84), lambda g: (0, 0)),                 # fc2 W (bf16)
        pl.BlockSpec((1, 84), lambda g: (0, 0)),                   # fc2 b
        pl.BlockSpec((84, 128), lambda g: (0, 0)),                 # fc3 W (bf16, pad)
        pl.BlockSpec((1, 128), lambda g: (0, 0)),                  # fc3 b (pad)
    ]
    scratch_shapes = [
        pltpu.VMEM((K1, M1), jnp.float32),         # conv1 im2col patches
        pltpu.VMEM((6 * TB, M1), jnp.float32),     # conv1+relu output
        pltpu.VMEM((6 * TB, ND1), jnp.bfloat16),   # pool1 output (dense 16-grid)
        pltpu.VMEM((K2, M2), jnp.bfloat16),        # conv2 im2col patches (bf16)
        pltpu.VMEM((16 * TB, M2), jnp.float32),    # conv2+relu output
    ]
    # Actual matmul shapes issued per 8-image grid step (conv1 + compaction +
    # conv2 + fc1 + fc2 + fc3), as requested by the perf review.
    macs_per_step = (6 * TB * K1 * M1 + 6 * TB * LA1 * ND1 + 16 * TB * K2 * M2
                     + 16 * TB * LA2 * 120 + TB * 120 * 84 + TB * 84 * 128)
    flops = 2 * macs_per_step * G
    bytes_accessed = int(xg.size * 4
                         + sum(int(p.size) * p.dtype.itemsize for p in packed)
                         + n_pad * 128 * 4)

    out = pl.pallas_call(
        _cnn_kernel,
        out_shape=jax.ShapeDtypeStruct((n_pad, 128), jnp.float32),
        grid=(G,),
        in_specs=in_specs,
        out_specs=pl.BlockSpec((TB, 128), lambda g: (g, 0)),
        scratch_shapes=scratch_shapes,
        compiler_params=pltpu.CompilerParams(
            dimension_semantics=("parallel",),
            vmem_limit_bytes=32 * 1024 * 1024),
        cost_estimate=pl.CostEstimate(
            flops=flops, transcendentals=0, bytes_accessed=bytes_accessed),
    )(xg, *packed)
    return out[:N, :10]


# ------------------------------ init & demo --------------------------------

def init_params(key):
    """Deterministic init mimicking PyTorch's default U(-1/sqrt(fan_in), +)."""
    def u(k, shape, fan_in):
        bound = 1.0 / (fan_in ** 0.5)
        return jax.random.uniform(k, shape, jnp.float32, -bound, bound)

    ks = jax.random.split(key, 10)
    return {
        "conv1_w": u(ks[0], (6, 3, 5, 5), 3 * 5 * 5),
        "conv1_b": u(ks[1], (6,), 3 * 5 * 5),
        "conv2_w": u(ks[2], (16, 6, 5, 5), 6 * 5 * 5),
        "conv2_b": u(ks[3], (16,), 6 * 5 * 5),
        "fc1_w":   u(ks[4], (120, 400), 400),
        "fc1_b":   u(ks[5], (120,), 400),
        "fc2_w":   u(ks[6], (84, 120), 120),
        "fc2_b":   u(ks[7], (84,), 120),
        "fc3_w":   u(ks[8], (10, 84), 84),
        "fc3_b":   u(ks[9], (10,), 84),
    }


if __name__ == "__main__":
    key = jax.random.PRNGKey(0)
    k_param, k_x = jax.random.split(key)
    params = init_params(k_param)
    # CIFAR-shaped input: fc1 (16*5*5) pins spatial dims to 3x32x32.
    x = jax.random.normal(k_x, (4, 3, 32, 32), dtype=jnp.float32)

    out = jax.jit(cnn_cifar_forward)(x, params)
    out = jax.block_until_ready(out)
    assert out.shape == (4, 10), out.shape
    assert out.dtype == jnp.float32
    print("KERNEL_OK")
</pallas_src>

<mosaic_0001>
module attributes {stable_mosaic.version = 11 : i64} {
  func.func @_cnn_kernel(%arg0: i32, %arg1: memref<1x24x1152xf32, #tpu.memory_space<vmem>>, %arg2: memref<48x600xbf16, #tpu.memory_space<vmem>>, %arg3: memref<48x1xf32, #tpu.memory_space<vmem>>, %arg4: memref<863x256xbf16, #tpu.memory_space<vmem>>, %arg5: memref<128x1200xbf16, #tpu.memory_space<vmem>>, %arg6: memref<128x1xf32, #tpu.memory_space<vmem>>, %arg7: memref<16x139x120xbf16, #tpu.memory_space<vmem>>, %arg8: memref<1x120xf32, #tpu.memory_space<vmem>>, %arg9: memref<120x84xbf16, #tpu.memory_space<vmem>>, %arg10: memref<1x84xf32, #tpu.memory_space<vmem>>, %arg11: memref<84x128xbf16, #tpu.memory_space<vmem>>, %arg12: memref<1x128xf32, #tpu.memory_space<vmem>>, %arg13: memref<8x128xf32, #tpu.memory_space<vmem>>, %arg14: memref<600x896xf32, #tpu.memory_space<vmem>>, %arg15: memref<48x896xf32, #tpu.memory_space<vmem>>, %arg16: memref<48x256xbf16, #tpu.memory_space<vmem>>, %arg17: memref<1200x160xbf16, #tpu.memory_space<vmem>>, %arg18: memref<128x160xf32, #tpu.memory_space<vmem>>) attributes {dimension_semantics = [#tpu.dimension_semantics<parallel>], iteration_bounds = array<i64: 1>, scalar_prefetch = 0 : i64, scratch_operands = 5 : i64, tpu.core_type = #tpu.core_type<tc>, window_params = [{transform_indices = @transform_0, window_bounds = array<i64: 1, 24, 1152>}, {pipeline_mode = #tpu.pipeline_mode<synchronous>, transform_indices = @transform_1, window_bounds = array<i64: 48, 600>}, {pipeline_mode = #tpu.pipeline_mode<synchronous>, transform_indices = @transform_2, window_bounds = array<i64: 48, 1>}, {pipeline_mode = #tpu.pipeline_mode<synchronous>, transform_indices = @transform_3, window_bounds = array<i64: 863, 256>}, {pipeline_mode = #tpu.pipeline_mode<synchronous>, transform_indices = @transform_4, window_bounds = array<i64: 128, 1200>}, {pipeline_mode = #tpu.pipeline_mode<synchronous>, transform_indices = @transform_5, window_bounds = array<i64: 128, 1>}, {pipeline_mode = #tpu.pipeline_mode<synchronous>, transform_indices = @transform_6, window_bounds = array<i64: 16, 139, 120>}, {pipeline_mode = #tpu.pipeline_mode<synchronous>, transform_indices = @transform_7, window_bounds = array<i64: 1, 120>}, {pipeline_mode = #tpu.pipeline_mode<synchronous>, transform_indices = @transform_8, window_bounds = array<i64: 120, 84>}, {pipeline_mode = #tpu.pipeline_mode<synchronous>, transform_indices = @transform_9, window_bounds = array<i64: 1, 84>}, {pipeline_mode = #tpu.pipeline_mode<synchronous>, transform_indices = @transform_10, window_bounds = array<i64: 84, 128>}, {pipeline_mode = #tpu.pipeline_mode<synchronous>, transform_indices = @transform_11, window_bounds = array<i64: 1, 128>}, {transform_indices = @transform_12, window_bounds = array<i64: 8, 128>}]} {
    %c0 = arith.constant 0 : index
    %c0_0 = arith.constant 0 : index
    %c0_1 = arith.constant 0 : index
    %0 = vector.load %arg1[%c0, %c0_0, %c0_1] : memref<1x24x1152xf32, #tpu.memory_space<vmem>>, vector<1x24x896xf32>
    %1 = vector.shape_cast %0 : vector<1x24x896xf32> to vector<24x896xf32>
    %c0_2 = arith.constant 0 : index
    %c0_3 = arith.constant 0 : index
    %2 = vector.load %arg14[%c0_2, %c0_3] : memref<600x896xf32, #tpu.memory_space<vmem>>, vector<24x896xf32>
    tpu.vector_store %arg14[%c0_2, %c0_3], %1 {strides = array<i32>} : memref<600x896xf32, #tpu.memory_space<vmem>>, vector<24x896xf32>,
    %c0_4 = arith.constant 0 : index
    %c0_5 = arith.constant 0 : index
    %c1 = arith.constant 1 : index
    %3 = vector.load %arg1[%c0_4, %c0_5, %c1] : memref<1x24x1152xf32, #tpu.memory_space<vmem>>, vector<1x24x896xf32>
    %4 = vector.shape_cast %3 : vector<1x24x896xf32> to vector<24x896xf32>
    %c24 = arith.constant 24 : index
    %c0_6 = arith.constant 0 : index
    %5 = vector.load %arg14[%c24, %c0_6] : memref<600x896xf32, #tpu.memory_space<vmem>>, vector<24x896xf32>
    tpu.vector_store %arg14[%c24, %c0_6], %4 {strides = array<i32>} : memref<600x896xf32, #tpu.memory_space<vmem>>, vector<24x896xf32>,
    %c0_7 = arith.constant 0 : index
    %c0_8 = arith.constant 0 : index
    %c2 = arith.constant 2 : index
    %6 = vector.load %arg1[%c0_7, %c0_8, %c2] : memref<1x24x1152xf32, #tpu.memory_space<vmem>>, vector<1x24x896xf32>
    %7 = vector.shape_cast %6 : vector<1x24x896xf32> to vector<24x896xf32>
    %c48 = arith.constant 48 : index
    %c0_9 = arith.constant 0 : index
    %8 = vector.load %arg14[%c48, %c0_9] : memref<600x896xf32, #tpu.memory_space<vmem>>, vector<24x896xf32>
    tpu.vector_store %arg14[%c48, %c0_9], %7 {strides = array<i32>} : memref<600x896xf32, #tpu.memory_space<vmem>>, vector<24x896xf32>,
    %c0_10 = arith.constant 0 : index
    %c0_11 = arith.constant 0 : index
    %c3 = arith.constant 3 : index
    %9 = vector.load %arg1[%c0_10, %c0_11, %c3] : memref<1x24x1152xf32, #tpu.memory_space<vmem>>, vector<1x24x896xf32>
    %10 = vector.shape_cast %9 : vector<1x24x896xf32> to vector<24x896xf32>
    %c72 = arith.constant 72 : index
    %c0_12 = arith.constant 0 : index
    %11 = vector.load %arg14[%c72, %c0_12] : memref<600x896xf32, #tpu.memory_space<vmem>>, vector<24x896xf32>
    tpu.vector_store %arg14[%c72, %c0_12], %10 {strides = array<i32>} : memref<600x896xf32, #tpu.memory_space<vmem>>, vector<24x896xf32>,
    %c0_13 = arith.constant 0 : index
    %c0_14 = arith.constant 0 : index
    %c4 = arith.constant 4 : index
    %12 = vector.load %arg1[%c0_13, %c0_14, %c4] : memref<1x24x1152xf32, #tpu.memory_space<vmem>>, vector<1x24x896xf32>
    %13 = vector.shape_cast %12 : vector<1x24x896xf32> to vector<24x896xf32>
    %c96 = arith.constant 96 : index
    %c0_15 = arith.constant 0 : index
    %14 = vector.load %arg14[%c96, %c0_15] : memref<600x896xf32, #tpu.memory_space<vmem>>, vector<24x896xf32>
    tpu.vector_store %arg14[%c96, %c0_15], %13 {strides = array<i32>} : memref<600x896xf32, #tpu.memory_space<vmem>>, vector<24x896xf32>,
    %c0_16 = arith.constant 0 : index
    %c0_17 = arith.constant 0 : index
    %c32 = arith.constant 32 : index
    %15 = vector.load %arg1[%c0_16, %c0_17, %c32] : memref<1x24x1152xf32, #tpu.memory_space<vmem>>, vector<1x24x896xf32>
    %16 = vector.shape_cast %15 : vector<1x24x896xf32> to vector<24x896xf32>
    %c120 = arith.constant 120 : index
    %c0_18 = arith.constant 0 : index
    %17 = vector.load %arg14[%c120, %c0_18] : memref<600x896xf32, #tpu.memory_space<vmem>>, vector<24x896xf32>
    tpu.vector_store %arg14[%c120, %c0_18], %16 {strides = array<i32>} : memref<600x896xf32, #tpu.memory_space<vmem>>, vector<24x896xf32>,
    %c0_19 = arith.constant 0 : index
    %c0_20 = arith.constant 0 : index
    %c33 = arith.constant 33 : index
    %18 = vector.load %arg1[%c0_19, %c0_20, %c33] : memref<1x24x1152xf32, #tpu.memory_space<vmem>>, vector<1x24x896xf32>
    %19 = vector.shape_cast %18 : vector<1x24x896xf32> to vector<24x896xf32>
    %c144 = arith.constant 144 : index
    %c0_21 = arith.constant 0 : index
    %20 = vector.load %arg14[%c144, %c0_21] : memref<600x896xf32, #tpu.memory_space<vmem>>, vector<24x896xf32>
    tpu.vector_store %arg14[%c144, %c0_21], %19 {strides = array<i32>} : memref<600x896xf32, #tpu.memory_space<vmem>>, vector<24x896xf32>,
    %c0_22 = arith.constant 0 : index
    %c0_23 = arith.constant 0 : index
    %c34 = arith.constant 34 : index
    %21 = vector.load %arg1[%c0_22, %c0_23, %c34] : memref<1x24x1152xf32, #tpu.memory_space<vmem>>, vector<1x24x896xf32>
    %22 = vector.shape_cast %21 : vector<1x24x896xf32> to vector<24x896xf32>
    %c168 = arith.constant 168 : index
    %c0_24 = arith.constant 0 : index
    %23 = vector.load %arg14[%c168, %c0_24] : memref<600x896xf32, #tpu.memory_space<vmem>>, vector<24x896xf32>
    tpu.vector_store %arg14[%c168, %c0_24], %22 {strides = array<i32>} : memref<600x896xf32, #tpu.memory_space<vmem>>, vector<24x896xf32>,
    %c0_25 = arith.constant 0 : index
    %c0_26 = arith.constant 0 : index
    %c35 = arith.constant 35 : index
    %24 = vector.load %arg1[%c0_25, %c0_26, %c35] : memref<1x24x1152xf32, #tpu.memory_space<vmem>>, vector<1x24x896xf32>
    %25 = vector.shape_cast %24 : vector<1x24x896xf32> to vector<24x896xf32>
    %c192 = arith.constant 192 : index
    %c0_27 = arith.constant 0 : index
    %26 = vector.load %arg14[%c192, %c0_27] : memref<600x896xf32, #tpu.memory_space<vmem>>, vector<24x896xf32>
    tpu.vector_store %arg14[%c192, %c0_27], %25 {strides = array<i32>} : memref<600x896xf32, #tpu.memory_space<vmem>>, vector<24x896xf32>,
    %c0_28 = arith.constant 0 : index
    %c0_29 = arith.constant 0 : index
    %c36 = arith.constant 36 : index
    %27 = vector.load %arg1[%c0_28, %c0_29, %c36] : memref<1x24x1152xf32, #tpu.memory_space<vmem>>, vector<1x24x896xf32>
    %28 = vector.shape_cast %27 : vector<1x24x896xf32> to vector<24x896xf32>
    %c216 = arith.constant 216 : index
    %c0_30 = arith.constant 0 : index
    %29 = vector.load %arg14[%c216, %c0_30] : memref<600x896xf32, #tpu.memory_space<vmem>>, vector<24x896xf32>
    tpu.vector_store %arg14[%c216, %c0_30], %28 {strides = array<i32>} : memref<600x896xf32, #tpu.memory_space<vmem>>, vector<24x896xf32>,
    %c0_31 = arith.constant 0 : index
    %c0_32 = arith.constant 0 : index
    %c64 = arith.constant 64 : index
    %30 = vector.load %arg1[%c0_31, %c0_32, %c64] : memref<1x24x1152xf32, #tpu.memory_space<vmem>>, vector<1x24x896xf32>
    %31 = vector.shape_cast %30 : vector<1x24x896xf32> to vector<24x896xf32>
    %c240 = arith.constant 240 : index
    %c0_33 = arith.constant 0 : index
    %32 = vector.load %arg14[%c240, %c0_33] : memref<600x896xf32, #tpu.memory_space<vmem>>, vector<24x896xf32>
    tpu.vector_store %arg14[%c240, %c0_33], %31 {strides = array<i32>} : memref<600x896xf32, #tpu.memory_space<vmem>>, vector<24x896xf32>,
    %c0_34 = arith.constant 0 : index
    %c0_35 = arith.constant 0 : index
    %c65 = arith.constant 65 : index
    %33 = vector.load %arg1[%c0_34, %c0_35, %c65] : memref<1x24x1152xf32, #tpu.memory_space<vmem>>, vector<1x24x896xf32>
    %34 = vector.shape_cast %33 : vector<1x24x896xf32> to vector<24x896xf32>
    %c264 = arith.constant 264 : index
    %c0_36 = arith.constant 0 : index
    %35 = vector.load %arg14[%c264, %c0_36] : memref<600x896xf32, #tpu.memory_space<vmem>>, vector<24x896xf32>
    tpu.vector_store %arg14[%c264, %c0_36], %34 {strides = array<i32>} : memref<600x896xf32, #tpu.memory_space<vmem>>, vector<24x896xf32>,
    %c0_37 = arith.constant 0 : index
    %c0_38 = arith.constant 0 : index
    %c66 = arith.constant 66 : index
    %36 = vector.load %arg1[%c0_37, %c0_38, %c66] : memref<1x24x1152xf32, #tpu.memory_space<vmem>>, vector<1x24x896xf32>
    %37 = vector.shape_cast %36 : vector<1x24x896xf32> to vector<24x896xf32>
    %c288 = arith.constant 288 : index
    %c0_39 = arith.constant 0 : index
    %38 = vector.load %arg14[%c288, %c0_39] : memref<600x896xf32, #tpu.memory_space<vmem>>, vector<24x896xf32>
    tpu.vector_store %arg14[%c288, %c0_39], %37 {strides = array<i32>} : memref<600x896xf32, #tpu.memory_space<vmem>>, vector<24x896xf32>,
    %c0_40 = arith.constant 0 : index
    %c0_41 = arith.constant 0 : index
    %c67 = arith.constant 67 : index
    %39 = vector.load %arg1[%c0_40, %c0_41, %c67] : memref<1x24x1152xf32, #tpu.memory_space<vmem>>, vector<1x24x896xf32>
    %40 = vector.shape_cast %39 : vector<1x24x896xf32> to vector<24x896xf32>
    %c312 = arith.constant 312 : index
    %c0_42 = arith.constant 0 : index
    %41 = vector.load %arg14[%c312, %c0_42] : memref<600x896xf32, #tpu.memory_space<vmem>>, vector<24x896xf32>
    tpu.vector_store %arg14[%c312, %c0_42], %40 {strides = array<i32>} : memref<600x896xf32, #tpu.memory_space<vmem>>, vector<24x896xf32>,
    %c0_43 = arith.constant 0 : index
    %c0_44 = arith.constant 0 : index
    %c68 = arith.constant 68 : index
    %42 = vector.load %arg1[%c0_43, %c0_44, %c68] : memref<1x24x1152xf32, #tpu.memory_space<vmem>>, vector<1x24x896xf32>
    %43 = vector.shape_cast %42 : vector<1x24x896xf32> to vector<24x896xf32>
    %c336 = arith.constant 336 : index
    %c0_45 = arith.constant 0 : index
    %44 = vector.load %arg14[%c336, %c0_45] : memref<600x896xf32, #tpu.memory_space<vmem>>, vector<24x896xf32>
    tpu.vector_store %arg14[%c336, %c0_45], %43 {strides = array<i32>} : memref<600x896xf32, #tpu.memory_space<vmem>>, vector<24x896xf32>,
    %c0_46 = arith.constant 0 : index
    %c0_47 = arith.constant 0 : index
    %c96_48 = arith.constant 96 : index
    %45 = vector.load %arg1[%c0_46, %c0_47, %c96_48] : memref<1x24x1152xf32, #tpu.memory_space<vmem>>, vector<1x24x896xf32>
    %46 = vector.shape_cast %45 : vector<1x24x896xf32> to vector<24x896xf32>
    %c360 = arith.constant 360 : index
    %c0_49 = arith.constant 0 : index
    %47 = vector.load %arg14[%c360, %c0_49] : memref<600x896xf32, #tpu.memory_space<vmem>>, vector<24x896xf32>
    tpu.vector_store %arg14[%c360, %c0_49], %46 {strides = array<i32>} : memref<600x896xf32, #tpu.memory_space<vmem>>, vector<24x896xf32>,
    %c0_50 = arith.constant 0 : index
    %c0_51 = arith.constant 0 : index
    %c97 = arith.constant 97 : index
    %48 = vector.load %arg1[%c0_50, %c0_51, %c97] : memref<1x24x1152xf32, #tpu.memory_space<vmem>>, vector<1x24x896xf32>
    %49 = vector.shape_cast %48 : vector<1x24x896xf32> to vector<24x896xf32>
    %c384 = arith.constant 384 : index
    %c0_52 = arith.constant 0 : index
    %50 = vector.load %arg14[%c384, %c0_52] : memref<600x896xf32, #tpu.memory_space<vmem>>, vector<24x896xf32>
    tpu.vector_store %arg14[%c384, %c0_52], %49 {strides = array<i32>} : memref<600x896xf32, #tpu.memory_space<vmem>>, vector<24x896xf32>,
    %c0_53 = arith.constant 0 : index
    %c0_54 = arith.constant 0 : index
    %c98 = arith.constant 98 : index
    %51 = vector.load %arg1[%c0_53, %c0_54, %c98] : memref<1x24x1152xf32, #tpu.memory_space<vmem>>, vector<1x24x896xf32>
    %52 = vector.shape_cast %51 : vector<1x24x896xf32> to vector<24x896xf32>
    %c408 = arith.constant 408 : index
    %c0_55 = arith.constant 0 : index
    %53 = vector.load %arg14[%c408, %c0_55] : memref<600x896xf32, #tpu.memory_space<vmem>>, vector<24x896xf32>
    tpu.vector_store %arg14[%c408, %c0_55], %52 {strides = array<i32>} : memref<600x896xf32, #tpu.memory_space<vmem>>, vector<24x896xf32>,
    %c0_56 = arith.constant 0 : index
    %c0_57 = arith.constant 0 : index
    %c99 = arith.constant 99 : index
    %54 = vector.load %arg1[%c0_56, %c0_57, %c99] : memref<1x24x1152xf32, #tpu.memory_space<vmem>>, vector<1x24x896xf32>
    %55 = vector.shape_cast %54 : vector<1x24x896xf32> to vector<24x896xf32>
    %c432 = arith.constant 432 : index
    %c0_58 = arith.constant 0 : index
    %56 = vector.load %arg14[%c432, %c0_58] : memref<600x896xf32, #tpu.memory_space<vmem>>, vector<24x896xf32>
    tpu.vector_store %arg14[%c432, %c0_58], %55 {strides = array<i32>} : memref<600x896xf32, #tpu.memory_space<vmem>>, vector<24x896xf32>,
    %c0_59 = arith.constant 0 : index
    %c0_60 = arith.constant 0 : index
    %c100 = arith.constant 100 : index
    %57 = vector.load %arg1[%c0_59, %c0_60, %c100] : memref<1x24x1152xf32, #tpu.memory_space<vmem>>, vector<1x24x896xf32>
    %58 = vector.shape_cast %57 : vector<1x24x896xf32> to vector<24x896xf32>
    %c456 = arith.constant 456 : index
    %c0_61 = arith.constant 0 : index
    %59 = vector.load %arg14[%c456, %c0_61] : memref<600x896xf32, #tpu.memory_space<vmem>>, vector<24x896xf32>
    tpu.vector_store %arg14[%c456, %c0_61], %58 {strides = array<i32>} : memref<600x896xf32, #tpu.memory_space<vmem>>, vector<24x896xf32>,
    %c0_62 = arith.constant 0 : index
    %c0_63 = arith.constant 0 : index
    %c128 = arith.constant 128 : index
    %60 = vector.load %arg1[%c0_62, %c0_63, %c128] : memref<1x24x1152xf32, #tpu.memory_space<vmem>>, vector<1x24x896xf32>
    %61 = vector.shape_cast %60 : vector<1x24x896xf32> to vector<24x896xf32>
    %c480 = arith.constant 480 : index
    %c0_64 = arith.constant 0 : index
    %62 = vector.load %arg14[%c480, %c0_64] : memref<600x896xf32, #tpu.memory_space<vmem>>, vector<24x896xf32>
    tpu.vector_store %arg14[%c480, %c0_64], %61 {strides = array<i32>} : memref<600x896xf32, #tpu.memory_space<vmem>>, vector<24x896xf32>,
    %c0_65 = arith.constant 0 : index
    %c0_66 = arith.constant 0 : index
    %c129 = arith.constant 129 : index
    %63 = vector.load %arg1[%c0_65, %c0_66, %c129] : memref<1x24x1152xf32, #tpu.memory_space<vmem>>, vector<1x24x896xf32>
    %64 = vector.shape_cast %63 : vector<1x24x896xf32> to vector<24x896xf32>
    %c504 = arith.constant 504 : index
    %c0_67 = arith.constant 0 : index
    %65 = vector.load %arg14[%c504, %c0_67] : memref<600x896xf32, #tpu.memory_space<vmem>>, vector<24x896xf32>
    tpu.vector_store %arg14[%c504, %c0_67], %64 {strides = array<i32>} : memref<600x896xf32, #tpu.memory_space<vmem>>, vector<24x896xf32>,
    %c0_68 = arith.constant 0 : index
    %c0_69 = arith.constant 0 : index
    %c130 = arith.constant 130 : index
    %66 = vector.load %arg1[%c0_68, %c0_69, %c130] : memref<1x24x1152xf32, #tpu.memory_space<vmem>>, vector<1x24x896xf32>
    %67 = vector.shape_cast %66 : vector<1x24x896xf32> to vector<24x896xf32>
    %c528 = arith.constant 528 : index
    %c0_70 = arith.constant 0 : index
    %68 = vector.load %arg14[%c528, %c0_70] : memref<600x896xf32, #tpu.memory_space<vmem>>, vector<24x896xf32>
    tpu.vector_store %arg14[%c528, %c0_70], %67 {strides = array<i32>} : memref<600x896xf32, #tpu.memory_space<vmem>>, vector<24x896xf32>,
    %c0_71 = arith.constant 0 : index
    %c0_72 = arith.constant 0 : index
    %c131 = arith.constant 131 : index
    %69 = vector.load %arg1[%c0_71, %c0_72, %c131] : memref<1x24x1152xf32, #tpu.memory_space<vmem>>, vector<1x24x896xf32>
    %70 = vector.shape_cast %69 : vector<1x24x896xf32> to vector<24x896xf32>
    %c552 = arith.constant 552 : index
    %c0_73 = arith.constant 0 : index
    %71 = vector.load %arg14[%c552, %c0_73] : memref<600x896xf32, #tpu.memory_space<vmem>>, vector<24x896xf32>
    tpu.vector_store %arg14[%c552, %c0_73], %70 {strides = array<i32>} : memref<600x896xf32, #tpu.memory_space<vmem>>, vector<24x896xf32>,
    %c0_74 = arith.constant 0 : index
    %c0_75 = arith.constant 0 : index
    %c132 = arith.constant 132 : index
    %72 = vector.load %arg1[%c0_74, %c0_75, %c132] : memref<1x24x1152xf32, #tpu.memory_space<vmem>>, vector<1x24x896xf32>
    %73 = vector.shape_cast %72 : vector<1x24x896xf32> to vector<24x896xf32>
    %c576 = arith.constant 576 : index
    %c0_76 = arith.constant 0 : index
    %74 = vector.load %arg14[%c576, %c0_76] : memref<600x896xf32, #tpu.memory_space<vmem>>, vector<24x896xf32>
    tpu.vector_store %arg14[%c576, %c0_76], %73 {strides = array<i32>} : memref<600x896xf32, #tpu.memory_space<vmem>>, vector<24x896xf32>,
    %c0_77 = arith.constant 0 : index
    %c0_78 = arith.constant 0 : index
    %75 = vector.load %arg2[%c0_77, %c0_78] : memref<48x600xbf16, #tpu.memory_space<vmem>>, vector<48x600xbf16>
    %c0_79 = arith.constant 0 : index
    %c0_80 = arith.constant 0 : index
    %76 = vector.load %arg14[%c0_79, %c0_80] : memref<600x896xf32, #tpu.memory_space<vmem>>, vector<600x896xf32>
    %77 = arith.truncf %76 : vector<600x896xf32> to vector<600x896xbf16>
    %cst = arith.constant dense<0.000000e+00> : vector<48x896xf32>
    %78 = tpu.matmul %75, %77, %cst {dimension_numbers = #tpu.dot_dimension_numbers<[1], [0], [0], [1], [0, 0, 1, 1], [], []>} : vector<48x600xbf16>, vector<600x896xbf16>, vector<48x896xf32> -> vector<48x896xf32>
    %c0_81 = arith.constant 0 : index
    %c0_82 = arith.constant 0 : index
    %79 = vector.load %arg3[%c0_81, %c0_82] : memref<48x1xf32, #tpu.memory_space<vmem>>, vector<48x1xf32>
    %80 = vector.broadcast %79 : vector<48x1xf32> to vector<48x896xf32>
    %81 = arith.addf %78, %80 : vector<48x896xf32>
    %cst_83 = arith.constant 0.000000e+00 : f32
    %82 = vector.broadcast %cst_83 : f32 to vector<48x896xf32>
    %83 = arith.maximumf %81, %82 : vector<48x896xf32>
    %c0_84 = arith.constant 0 : index
    %c0_85 = arith.constant 0 : index
    %84 = vector.load %arg15[%c0_84, %c0_85] : memref<48x896xf32, #tpu.memory_space<vmem>>, vector<48x896xf32>
    tpu.vector_store %arg15[%c0_84, %c0_85], %83 {strides = array<i32>} : memref<48x896xf32, #tpu.memory_space<vmem>>, vector<48x896xf32>,
    %c0_86 = arith.constant 0 : index
    %c0_87 = arith.constant 0 : index
    %85 = vector.load %arg15[%c0_86, %c0_87] : memref<48x896xf32, #tpu.memory_space<vmem>>, vector<48x863xf32>
    %c0_88 = arith.constant 0 : index
    %c1_89 = arith.constant 1 : index
    %86 = vector.load %arg15[%c0_88, %c1_89] : memref<48x896xf32, #tpu.memory_space<vmem>>, vector<48x863xf32>
    %87 = arith.maximumf %85, %86 : vector<48x863xf32>
    %c0_90 = arith.constant 0 : index
    %c32_91 = arith.constant 32 : index
    %88 = vector.load %arg15[%c0_90, %c32_91] : memref<48x896xf32, #tpu.memory_space<vmem>>, vector<48x863xf32>
    %c0_92 = arith.constant 0 : index
    %c33_93 = arith.constant 33 : index
    %89 = vector.load %arg15[%c0_92, %c33_93] : memref<48x896xf32, #tpu.memory_space<vmem>>, vector<48x863xf32>
    %90 = arith.maximumf %88, %89 : vector<48x863xf32>
    %91 = arith.maximumf %87, %90 : vector<48x863xf32>
    %92 = arith.truncf %91 : vector<48x863xf32> to vector<48x863xbf16>
    %c0_94 = arith.constant 0 : index
    %c0_95 = arith.constant 0 : index
    %93 = vector.load %arg4[%c0_94, %c0_95] : memref<863x256xbf16, #tpu.memory_space<vmem>>, vector<863x256xbf16>
    %cst_96 = arith.constant dense<0.000000e+00> : vector<48x256xf32>
    %94 = tpu.matmul %92, %93, %cst_96 {dimension_numbers = #tpu.dot_dimension_numbers<[1], [0], [0], [1], [0, 0, 1, 1], [], []>} : vector<48x863xbf16>, vector<863x256xbf16>, vector<48x256xf32> -> vector<48x256xf32>
    %95 = arith.truncf %94 : vector<48x256xf32> to vector<48x256xbf16>
    %c0_97 = arith.constant 0 : index
    %c0_98 = arith.constant 0 : index
    %96 = vector.load %arg16[%c0_97, %c0_98] : memref<48x256xbf16, #tpu.memory_space<vmem>>, vector<48x256xbf16>
    tpu.vector_store %arg16[%c0_97, %c0_98], %95 {strides = array<i32>} : memref<48x256xbf16, #tpu.memory_space<vmem>>, vector<48x256xbf16>,
    %c0_99 = arith.constant 0 : index
    %c0_100 = arith.constant 0 : index
    %97 = vector.load %arg16[%c0_99, %c0_100] : memref<48x256xbf16, #tpu.memory_space<vmem>>, vector<48x160xbf16>
    %c0_101 = arith.constant 0 : index
    %c0_102 = arith.constant 0 : index
    %98 = vector.load %arg17[%c0_101, %c0_102] : memref<1200x160xbf16, #tpu.memory_space<vmem>>, vector<48x160xbf16>
    tpu.vector_store %arg17[%c0_101, %c0_102], %97 {strides = array<i32>} : memref<1200x160xbf16, #tpu.memory_space<vmem>>, vector<48x160xbf16>,
    %c0_103 = arith.constant 0 : index
    %c1_104 = arith.constant 1 : index
    %99 = vector.load %arg16[%c0_103, %c1_104] : memref<48x256xbf16, #tpu.memory_space<vmem>>, vector<48x160xbf16>
    %c48_105 = arith.constant 48 : index
    %c0_106 = arith.constant 0 : index
    %100 = vector.load %arg17[%c48_105, %c0_106] : memref<1200x160xbf16, #tpu.memory_space<vmem>>, vector<48x160xbf16>
    tpu.vector_store %arg17[%c48_105, %c0_106], %99 {strides = array<i32>} : memref<1200x160xbf16, #tpu.memory_space<vmem>>, vector<48x160xbf16>,
    %c0_107 = arith.constant 0 : index
    %c2_108 = arith.constant 2 : index
    %101 = vector.load %arg16[%c0_107, %c2_108] : memref<48x256xbf16, #tpu.memory_space<vmem>>, vector<48x160xbf16>
    %c96_109 = arith.constant 96 : index
    %c0_110 = arith.constant 0 : index
    %102 = vector.load %arg17[%c96_109, %c0_110] : memref<1200x160xbf16, #tpu.memory_space<vmem>>, vector<48x160xbf16>
    tpu.vector_store %arg17[%c96_109, %c0_110], %101 {strides = array<i32>} : memref<1200x160xbf16, #tpu.memory_space<vmem>>, vector<48x160xbf16>,
    %c0_111 = arith.constant 0 : index
    %c3_112 = arith.constant 3 : index
    %103 = vector.load %arg16[%c0_111, %c3_112] : memref<48x256xbf16, #tpu.memory_space<vmem>>, vector<48x160xbf16>
    %c144_113 = arith.constant 144 : index
    %c0_114 = arith.constant 0 : index
    %104 = vector.load %arg17[%c144_113, %c0_114] : memref<1200x160xbf16, #tpu.memory_space<vmem>>, vector<48x160xbf16>
    tpu.vector_store %arg17[%c144_113, %c0_114], %103 {strides = array<i32>} : memref<1200x160xbf16, #tpu.memory_space<vmem>>, vector<48x160xbf16>,
    %c0_115 = arith.constant 0 : index
    %c4_116 = arith.constant 4 : index
    %105 = vector.load %arg16[%c0_115, %c4_116] : memref<48x256xbf16, #tpu.memory_space<vmem>>, vector<48x160xbf16>
    %c192_117 = arith.constant 192 : index
    %c0_118 = arith.constant 0 : index
    %106 = vector.load %arg17[%c192_117, %c0_118] : memref<1200x160xbf16, #tpu.memory_space<vmem>>, vector<48x160xbf16>
    tpu.vector_store %arg17[%c192_117, %c0_118], %105 {strides = array<i32>} : memref<1200x160xbf16, #tpu.memory_space<vmem>>, vector<48x160xbf16>,
    %c0_119 = arith.constant 0 : index
    %c16 = arith.constant 16 : index
    %107 = vector.load %arg16[%c0_119, %c16] : memref<48x256xbf16, #tpu.memory_space<vmem>>, vector<48x160xbf16>
    %c240_120 = arith.constant 240 : index
    %c0_121 = arith.constant 0 : index
    %108 = vector.load %arg17[%c240_120, %c0_121] : memref<1200x160xbf16, #tpu.memory_space<vmem>>, vector<48x160xbf16>
    tpu.vector_store %arg17[%c240_120, %c0_121], %107 {strides = array<i32>} : memref<1200x160xbf16, #tpu.memory_space<vmem>>, vector<48x160xbf16>,
    %c0_122 = arith.constant 0 : index
    %c17 = arith.constant 17 : index
    %109 = vector.load %arg16[%c0_122, %c17] : memref<48x256xbf16, #tpu.memory_space<vmem>>, vector<48x160xbf16>
    %c288_123 = arith.constant 288 : index
    %c0_124 = arith.constant 0 : index
    %110 = vector.load %arg17[%c288_123, %c0_124] : memref<1200x160xbf16, #tpu.memory_space<vmem>>, vector<48x160xbf16>
    tpu.vector_store %arg17[%c288_123, %c0_124], %109 {strides = array<i32>} : memref<1200x160xbf16, #tpu.memory_space<vmem>>, vector<48x160xbf16>,
    %c0_125 = arith.constant 0 : index
    %c18 = arith.constant 18 : index
    %111 = vector.load %arg16[%c0_125, %c18] : memref<48x256xbf16, #tpu.memory_space<vmem>>, vector<48x160xbf16>
    %c336_126 = arith.constant 336 : index
    %c0_127 = arith.constant 0 : index
    %112 = vector.load %arg17[%c336_126, %c0_127] : memref<1200x160xbf16, #tpu.memory_space<vmem>>, vector<48x160xbf16>
    tpu.vector_store %arg17[%c336_126, %c0_127], %111 {strides = array<i32>} : memref<1200x160xbf16, #tpu.memory_space<vmem>>, vector<48x160xbf16>,
    %c0_128 = arith.constant 0 : index
    %c19 = arith.constant 19 : index
    %113 = vector.load %arg16[%c0_128, %c19] : memref<48x256xbf16, #tpu.memory_space<vmem>>, vector<48x160xbf16>
    %c384_129 = arith.constant 384 : index
    %c0_130 = arith.constant 0 : index
    %114 = vector.load %arg17[%c384_129, %c0_130] : memref<1200x160xbf16, #tpu.memory_space<vmem>>, vector<48x160xbf16>
    tpu.vector_store %arg17[%c384_129, %c0_130], %113 {strides = array<i32>} : memref<1200x160xbf16, #tpu.memory_space<vmem>>, vector<48x160xbf16>,
    %c0_131 = arith.constant 0 : index
    %c20 = arith.constant 20 : index
    %115 = vector.load %arg16[%c0_131, %c20] : memref<48x256xbf16, #tpu.memory_space<vmem>>, vector<48x160xbf16>
    %c432_132 = arith.constant 432 : index
    %c0_133 = arith.constant 0 : index
    %116 = vector.load %arg17[%c432_132, %c0_133] : memref<1200x160xbf16, #tpu.memory_space<vmem>>, vector<48x160xbf16>
    tpu.vector_store %arg17[%c432_132, %c0_133], %115 {strides = array<i32>} : memref<1200x160xbf16, #tpu.memory_space<vmem>>, vector<48x160xbf16>,
    %c0_134 = arith.constant 0 : index
    %c32_135 = arith.constant 32 : index
    %117 = vector.load %arg16[%c0_134, %c32_135] : memref<48x256xbf16, #tpu.memory_space<vmem>>, vector<48x160xbf16>
    %c480_136 = arith.constant 480 : index
    %c0_137 = arith.constant 0 : index
    %118 = vector.load %arg17[%c480_136, %c0_137] : memref<1200x160xbf16, #tpu.memory_space<vmem>>, vector<48x160xbf16>
    tpu.vector_store %arg17[%c480_136, %c0_137], %117 {strides = array<i32>} : memref<1200x160xbf16, #tpu.memory_space<vmem>>, vector<48x160xbf16>,
    %c0_138 = arith.constant 0 : index
    %c33_139 = arith.constant 33 : index
    %119 = vector.load %arg16[%c0_138, %c33_139] : memref<48x256xbf16, #tpu.memory_space<vmem>>, vector<48x160xbf16>
    %c528_140 = arith.constant 528 : index
    %c0_141 = arith.constant 0 : index
    %120 = vector.load %arg17[%c528_140, %c0_141] : memref<1200x160xbf16, #tpu.memory_space<vmem>>, vector<48x160xbf16>
    tpu.vector_store %arg17[%c528_140, %c0_141], %119 {strides = array<i32>} : memref<1200x160xbf16, #tpu.memory_space<vmem>>, vector<48x160xbf16>,
    %c0_142 = arith.constant 0 : index
    %c34_143 = arith.constant 34 : index
    %121 = vector.load %arg16[%c0_142, %c34_143] : memref<48x256xbf16, #tpu.memory_space<vmem>>, vector<48x160xbf16>
    %c576_144 = arith.constant 576 : index
    %c0_145 = arith.constant 0 : index
    %122 = vector.load %arg17[%c576_144, %c0_145] : memref<1200x160xbf16, #tpu.memory_space<vmem>>, vector<48x160xbf16>
    tpu.vector_store %arg17[%c576_144, %c0_145], %121 {strides = array<i32>} : memref<1200x160xbf16, #tpu.memory_space<vmem>>, vector<48x160xbf16>,
    %c0_146 = arith.constant 0 : index
    %c35_147 = arith.constant 35 : index
    %123 = vector.load %arg16[%c0_146, %c35_147] : memref<48x256xbf16, #tpu.memory_space<vmem>>, vector<48x160xbf16>
    %c624 = arith.constant 624 : index
    %c0_148 = arith.constant 0 : index
    %124 = vector.load %arg17[%c624, %c0_148] : memref<1200x160xbf16, #tpu.memory_space<vmem>>, vector<48x160xbf16>
    tpu.vector_store %arg17[%c624, %c0_148], %123 {strides = array<i32>} : memref<1200x160xbf16, #tpu.memory_space<vmem>>, vector<48x160xbf16>,
    %c0_149 = arith.constant 0 : index
    %c36_150 = arith.constant 36 : index
    %125 = vector.load %arg16[%c0_149, %c36_150] : memref<48x256xbf16, #tpu.memory_space<vmem>>, vector<48x160xbf16>
    %c672 = arith.constant 672 : index
    %c0_151 = arith.constant 0 : index
    %126 = vector.load %arg17[%c672, %c0_151] : memref<1200x160xbf16, #tpu.memory_space<vmem>>, vector<48x160xbf16>
    tpu.vector_store %arg17[%c672, %c0_151], %125 {strides = array<i32>} : memref<1200x160xbf16, #tpu.memory_space<vmem>>, vector<48x160xbf16>,
    %c0_152 = arith.constant 0 : index
    %c48_153 = arith.constant 48 : index
    %127 = vector.load %arg16[%c0_152, %c48_153] : memref<48x256xbf16, #tpu.memory_space<vmem>>, vector<48x160xbf16>
    %c720 = arith.constant 720 : index
    %c0_154 = arith.constant 0 : index
    %128 = vector.load %arg17[%c720, %c0_154] : memref<1200x160xbf16, #tpu.memory_space<vmem>>, vector<48x160xbf16>
    tpu.vector_store %arg17[%c720, %c0_154], %127 {strides = array<i32>} : memref<1200x160xbf16, #tpu.memory_space<vmem>>, vector<48x160xbf16>,
    %c0_155 = arith.constant 0 : index
    %c49 = arith.constant 49 : index
    %129 = vector.load %arg16[%c0_155, %c49] : memref<48x256xbf16, #tpu.memory_space<vmem>>, vector<48x160xbf16>
    %c768 = arith.constant 768 : index
    %c0_156 = arith.constant 0 : index
    %130 = vector.load %arg17[%c768, %c0_156] : memref<1200x160xbf16, #tpu.memory_space<vmem>>, vector<48x160xbf16>
    tpu.vector_store %arg17[%c768, %c0_156], %129 {strides = array<i32>} : memref<1200x160xbf16, #tpu.memory_space<vmem>>, vector<48x160xbf16>,
    %c0_157 = arith.constant 0 : index
    %c50 = arith.constant 50 : index
    %131 = vector.load %arg16[%c0_157, %c50] : memref<48x256xbf16, #tpu.memory_space<vmem>>, vector<48x160xbf16>
    %c816 = arith.constant 816 : index
    %c0_158 = arith.constant 0 : index
    %132 = vector.load %arg17[%c816, %c0_158] : memref<1200x160xbf16, #tpu.memory_space<vmem>>, vector<48x160xbf16>
    tpu.vector_store %arg17[%c816, %c0_158], %131 {strides = array<i32>} : memref<1200x160xbf16, #tpu.memory_space<vmem>>, vector<48x160xbf16>,
    %c0_159 = arith.constant 0 : index
    %c51 = arith.constant 51 : index
    %133 = vector.load %arg16[%c0_159, %c51] : memref<48x256xbf16, #tpu.memory_space<vmem>>, vector<48x160xbf16>
    %c864 = arith.constant 864 : index
    %c0_160 = arith.constant 0 : index
    %134 = vector.load %arg17[%c864, %c0_160] : memref<1200x160xbf16, #tpu.memory_space<vmem>>, vector<48x160xbf16>
    tpu.vector_store %arg17[%c864, %c0_160], %133 {strides = array<i32>} : memref<1200x160xbf16, #tpu.memory_space<vmem>>, vector<48x160xbf16>,
    %c0_161 = arith.constant 0 : index
    %c52 = arith.constant 52 : index
    %135 = vector.load %arg16[%c0_161, %c52] : memref<48x256xbf16, #tpu.memory_space<vmem>>, vector<48x160xbf16>
    %c912 = arith.constant 912 : index
    %c0_162 = arith.constant 0 : index
    %136 = vector.load %arg17[%c912, %c0_162] : memref<1200x160xbf16, #tpu.memory_space<vmem>>, vector<48x160xbf16>
    tpu.vector_store %arg17[%c912, %c0_162], %135 {strides = array<i32>} : memref<1200x160xbf16, #tpu.memory_space<vmem>>, vector<48x160xbf16>,
    %c0_163 = arith.constant 0 : index
    %c64_164 = arith.constant 64 : index
    %137 = vector.load %arg16[%c0_163, %c64_164] : memref<48x256xbf16, #tpu.memory_space<vmem>>, vector<48x160xbf16>
    %c960 = arith.constant 960 : index
    %c0_165 = arith.constant 0 : index
    %138 = vector.load %arg17[%c960, %c0_165] : memref<1200x160xbf16, #tpu.memory_space<vmem>>, vector<48x160xbf16>
    tpu.vector_store %arg17[%c960, %c0_165], %137 {strides = array<i32>} : memref<1200x160xbf16, #tpu.memory_space<vmem>>, vector<48x160xbf16>,
    %c0_166 = arith.constant 0 : index
    %c65_167 = arith.constant 65 : index
    %139 = vector.load %arg16[%c0_166, %c65_167] : memref<48x256xbf16, #tpu.memory_space<vmem>>, vector<48x160xbf16>
    %c1008 = arith.constant 1008 : index
    %c0_168 = arith.constant 0 : index
    %140 = vector.load %arg17[%c1008, %c0_168] : memref<1200x160xbf16, #tpu.memory_space<vmem>>, vector<48x160xbf16>
    tpu.vector_store %arg17[%c1008, %c0_168], %139 {strides = array<i32>} : memref<1200x160xbf16, #tpu.memory_space<vmem>>, vector<48x160xbf16>,
    %c0_169 = arith.constant 0 : index
    %c66_170 = arith.constant 66 : index
    %141 = vector.load %arg16[%c0_169, %c66_170] : memref<48x256xbf16, #tpu.memory_space<vmem>>, vector<48x160xbf16>
    %c1056 = arith.constant 1056 : index
    %c0_171 = arith.constant 0 : index
    %142 = vector.load %arg17[%c1056, %c0_171] : memref<1200x160xbf16, #tpu.memory_space<vmem>>, vector<48x160xbf16>
    tpu.vector_store %arg17[%c1056, %c0_171], %141 {strides = array<i32>} : memref<1200x160xbf16, #tpu.memory_space<vmem>>, vector<48x160xbf16>,
    %c0_172 = arith.constant 0 : index
    %c67_173 = arith.constant 67 : index
    %143 = vector.load %arg16[%c0_172, %c67_173] : memref<48x256xbf16, #tpu.memory_space<vmem>>, vector<48x160xbf16>
    %c1104 = arith.constant 1104 : index
    %c0_174 = arith.constant 0 : index
    %144 = vector.load %arg17[%c1104, %c0_174] : memref<1200x160xbf16, #tpu.memory_space<vmem>>, vector<48x160xbf16>
    tpu.vector_store %arg17[%c1104, %c0_174], %143 {strides = array<i32>} : memref<1200x160xbf16, #tpu.memory_space<vmem>>, vector<48x160xbf16>,
    %c0_175 = arith.constant 0 : index
    %c68_176 = arith.constant 68 : index
    %145 = vector.load %arg16[%c0_175, %c68_176] : memref<48x256xbf16, #tpu.memory_space<vmem>>, vector<48x160xbf16>
    %c1152 = arith.constant 1152 : index
    %c0_177 = arith.constant 0 : index
    %146 = vector.load %arg17[%c1152, %c0_177] : memref<1200x160xbf16, #tpu.memory_space<vmem>>, vector<48x160xbf16>
    tpu.vector_store %arg17[%c1152, %c0_177], %145 {strides = array<i32>} : memref<1200x160xbf16, #tpu.memory_space<vmem>>, vector<48x160xbf16>,
    %c0_178 = arith.constant 0 : index
    %c0_179 = arith.constant 0 : index
    %147 = vector.load %arg5[%c0_178, %c0_179] : memref<128x1200xbf16, #tpu.memory_space<vmem>>, vector<128x1200xbf16>
    %c0_180 = arith.constant 0 : index
    %c0_181 = arith.constant 0 : index
    %148 = vector.load %arg17[%c0_180, %c0_181] : memref<1200x160xbf16, #tpu.memory_space<vmem>>, vector<1200x160xbf16>
    %cst_182 = arith.constant dense<0.000000e+00> : vector<128x160xf32>
    %149 = tpu.matmul %147, %148, %cst_182 {dimension_numbers = #tpu.dot_dimension_numbers<[1], [0], [0], [1], [0, 0, 1, 1], [], []>} : vector<128x1200xbf16>, vector<1200x160xbf16>, vector<128x160xf32> -> vector<128x160xf32>
    %c0_183 = arith.constant 0 : index
    %c0_184 = arith.constant 0 : index
    %150 = vector.load %arg6[%c0_183, %c0_184] : memref<128x1xf32, #tpu.memory_space<vmem>>, vector<128x1xf32>
    %151 = vector.broadcast %150 : vector<128x1xf32> to vector<128x160xf32>
    %152 = arith.addf %149, %151 : vector<128x160xf32>
    %cst_185 = arith.constant 0.000000e+00 : f32
    %153 = vector.broadcast %cst_185 : f32 to vector<128x160xf32>
    %154 = arith.maximumf %152, %153 : vector<128x160xf32>
    %c0_186 = arith.constant 0 : index
    %c0_187 = arith.constant 0 : index
    %155 = vector.load %arg18[%c0_186, %c0_187] : memref<128x160xf32, #tpu.memory_space<vmem>>, vector<128x160xf32>
    tpu.vector_store %arg18[%c0_186, %c0_187], %154 {strides = array<i32>} : memref<128x160xf32, #tpu.memory_space<vmem>>, vector<128x160xf32>,
    %c0_188 = arith.constant 0 : index
    %c0_189 = arith.constant 0 : index
    %156 = vector.load %arg18[%c0_188, %c0_189] : memref<128x160xf32, #tpu.memory_space<vmem>>, vector<128x139xf32>
    %c0_190 = arith.constant 0 : index
    %c1_191 = arith.constant 1 : index
    %157 = vector.load %arg18[%c0_190, %c1_191] : memref<128x160xf32, #tpu.memory_space<vmem>>, vector<128x139xf32>
    %158 = arith.maximumf %156, %157 : vector<128x139xf32>
    %c0_192 = arith.constant 0 : index
    %c16_193 = arith.constant 16 : index
    %159 = vector.load %arg18[%c0_192, %c16_193] : memref<128x160xf32, #tpu.memory_space<vmem>>, vector<128x139xf32>
    %c0_194 = arith.constant 0 : index
    %c17_195 = arith.constant 17 : index
    %160 = vector.load %arg18[%c0_194, %c17_195] : memref<128x160xf32, #tpu.memory_space<vmem>>, vector<128x139xf32>
    %161 = arith.maximumf %159, %160 : vector<128x139xf32>
    %162 = arith.maximumf %158, %161 : vector<128x139xf32>
    %cst_196 = arith.constant 0.000000e+00 : f32
    %163 = vector.broadcast %cst_196 : f32 to vector<8x120xf32>
    %164 = vector.extract_strided_slice %162 {offsets = [0, 0], sizes = [8, 139], strides = [1, 1]} : vector<128x139xf32> to vector<8x139xf32>
    %165 = arith.truncf %164 : vector<8x139xf32> to vector<8x139xbf16>
    %c0_197 = arith.constant 0 : index
    %c0_198 = arith.constant 0 : index
    %c0_199 = arith.constant 0 : index
    %166 = vector.load %arg7[%c0_197, %c0_198, %c0_199] : memref<16x139x120xbf16, #tpu.memory_space<vmem>>, vector<1x139x120xbf16>
    %167 = vector.shape_cast %166 : vector<1x139x120xbf16> to vector<139x120xbf16>
    %cst_200 = arith.constant dense<0.000000e+00> : vector<8x120xf32>
    %168 = tpu.matmul %165, %167, %cst_200 {dimension_numbers = #tpu.dot_dimension_numbers<[1], [0], [0], [1], [0, 0, 1, 1], [], []>} : vector<8x139xbf16>, vector<139x120xbf16>, vector<8x120xf32> -> vector<8x120xf32>
    %169 = arith.addf %163, %168 : vector<8x120xf32>
    %170 = vector.extract_strided_slice %162 {offsets = [8, 0], sizes = [8, 139], strides = [1, 1]} : vector<128x139xf32> to vector<8x139xf32>
    %171 = arith.truncf %170 : vector<8x139xf32> to vector<8x139xbf16>
    %c1_201 = arith.constant 1 : index
    %c0_202 = arith.constant 0 : index
    %c0_203 = arith.constant 0 : index
    %172 = vector.load %arg7[%c1_201, %c0_202, %c0_203] : memref<16x139x120xbf16, #tpu.memory_space<vmem>>, vector<1x139x120xbf16>
    %173 = vector.shape_cast %172 : vector<1x139x120xbf16> to vector<139x120xbf16>
    %cst_204 = arith.constant dense<0.000000e+00> : vector<8x120xf32>
    %174 = tpu.matmul %171, %173, %cst_204 {dimension_numbers = #tpu.dot_dimension_numbers<[1], [0], [0], [1], [0, 0, 1, 1], [], []>} : vector<8x139xbf16>, vector<139x120xbf16>, vector<8x120xf32> -> vector<8x120xf32>
    %175 = arith.addf %169, %174 : vector<8x120xf32>
    %176 = vector.extract_strided_slice %162 {offsets = [16, 0], sizes = [8, 139], strides = [1, 1]} : vector<128x139xf32> to vector<8x139xf32>
    %177 = arith.truncf %176 : vector<8x139xf32> to vector<8x139xbf16>
    %c2_205 = arith.constant 2 : index
    %c0_206 = arith.constant 0 : index
    %c0_207 = arith.constant 0 : index
    %178 = vector.load %arg7[%c2_205, %c0_206, %c0_207] : memref<16x139x120xbf16, #tpu.memory_space<vmem>>, vector<1x139x120xbf16>
    %179 = vector.shape_cast %178 : vector<1x139x120xbf16> to vector<139x120xbf16>
    %cst_208 = arith.constant dense<0.000000e+00> : vector<8x120xf32>
    %180 = tpu.matmul %177, %179, %cst_208 {dimension_numbers = #tpu.dot_dimension_numbers<[1], [0], [0], [1], [0, 0, 1, 1], [], []>} : vector<8x139xbf16>, vector<139x120xbf16>, vector<8x120xf32> -> vector<8x120xf32>
    %181 = arith.addf %175, %180 : vector<8x120xf32>
    %182 = vector.extract_strided_slice %162 {offsets = [24, 0], sizes = [8, 139], strides = [1, 1]} : vector<128x139xf32> to vector<8x139xf32>
    %183 = arith.truncf %182 : vector<8x139xf32> to vector<8x139xbf16>
    %c3_209 = arith.constant 3 : index
    %c0_210 = arith.constant 0 : index
    %c0_211 = arith.constant 0 : index
    %184 = vector.load %arg7[%c3_209, %c0_210, %c0_211] : memref<16x139x120xbf16, #tpu.memory_space<vmem>>, vector<1x139x120xbf16>
    %185 = vector.shape_cast %184 : vector<1x139x120xbf16> to vector<139x120xbf16>
    %cst_212 = arith.constant dense<0.000000e+00> : vector<8x120xf32>
    %186 = tpu.matmul %183, %185, %cst_212 {dimension_numbers = #tpu.dot_dimension_numbers<[1], [0], [0], [1], [0, 0, 1, 1], [], []>} : vector<8x139xbf16>, vector<139x120xbf16>, vector<8x120xf32> -> vector<8x120xf32>
    %187 = arith.addf %181, %186 : vector<8x120xf32>
    %188 = vector.extract_strided_slice %162 {offsets = [32, 0], sizes = [8, 139], strides = [1, 1]} : vector<128x139xf32> to vector<8x139xf32>
    %189 = arith.truncf %188 : vector<8x139xf32> to vector<8x139xbf16>
    %c4_213 = arith.constant 4 : index
    %c0_214 = arith.constant 0 : index
    %c0_215 = arith.constant 0 : index
    %190 = vector.load %arg7[%c4_213, %c0_214, %c0_215] : memref<16x139x120xbf16, #tpu.memory_space<vmem>>, vector<1x139x120xbf16>
    %191 = vector.shape_cast %190 : vector<1x139x120xbf16> to vector<139x120xbf16>
    %cst_216 = arith.constant dense<0.000000e+00> : vector<8x120xf32>
    %192 = tpu.matmul %189, %191, %cst_216 {dimension_numbers = #tpu.dot_dimension_numbers<[1], [0], [0], [1], [0, 0, 1, 1], [], []>} : vector<8x139xbf16>, vector<139x120xbf16>, vector<8x120xf32> -> vector<8x120xf32>
    %193 = arith.addf %187, %192 : vector<8x120xf32>
    %194 = vector.extract_strided_slice %162 {offsets = [40, 0], sizes = [8, 139], strides = [1, 1]} : vector<128x139xf32> to vector<8x139xf32>
    %195 = arith.truncf %194 : vector<8x139xf32> to vector<8x139xbf16>
    %c5 = arith.constant 5 : index
    %c0_217 = arith.constant 0 : index
    %c0_218 = arith.constant 0 : index
    %196 = vector.load %arg7[%c5, %c0_217, %c0_218] : memref<16x139x120xbf16, #tpu.memory_space<vmem>>, vector<1x139x120xbf16>
    %197 = vector.shape_cast %196 : vector<1x139x120xbf16> to vector<139x120xbf16>
    %cst_219 = arith.constant dense<0.000000e+00> : vector<8x120xf32>
    %198 = tpu.matmul %195, %197, %cst_219 {dimension_numbers = #tpu.dot_dimension_numbers<[1], [0], [0], [1], [0, 0, 1, 1], [], []>} : vector<8x139xbf16>, vector<139x120xbf16>, vector<8x120xf32> -> vector<8x120xf32>
    %199 = arith.addf %193, %198 : vector<8x120xf32>
    %200 = vector.extract_strided_slice %162 {offsets = [48, 0], sizes = [8, 139], strides = [1, 1]} : vector<128x139xf32> to vector<8x139xf32>
    %201 = arith.truncf %200 : vector<8x139xf32> to vector<8x139xbf16>
    %c6 = arith.constant 6 : index
    %c0_220 = arith.constant 0 : index
    %c0_221 = arith.constant 0 : index
    %202 = vector.load %arg7[%c6, %c0_220, %c0_221] : memref<16x139x120xbf16, #tpu.memory_space<vmem>>, vector<1x139x120xbf16>
    %203 = vector.shape_cast %202 : vector<1x139x120xbf16> to vector<139x120xbf16>
    %cst_222 = arith.constant dense<0.000000e+00> : vector<8x120xf32>
    %204 = tpu.matmul %201, %203, %cst_222 {dimension_numbers = #tpu.dot_dimension_numbers<[1], [0], [0], [1], [0, 0, 1, 1], [], []>} : vector<8x139xbf16>, vector<139x120xbf16>, vector<8x120xf32> -> vector<8x120xf32>
    %205 = arith.addf %199, %204 : vector<8x120xf32>
    %206 = vector.extract_strided_slice %162 {offsets = [56, 0], sizes = [8, 139], strides = [1, 1]} : vector<128x139xf32> to vector<8x139xf32>
    %207 = arith.truncf %206 : vector<8x139xf32> to vector<8x139xbf16>
    %c7 = arith.constant 7 : index
    %c0_223 = arith.constant 0 : index
    %c0_224 = arith.constant 0 : index
    %208 = vector.load %arg7[%c7, %c0_223, %c0_224] : memref<16x139x120xbf16, #tpu.memory_space<vmem>>, vector<1x139x120xbf16>
    %209 = vector.shape_cast %208 : vector<1x139x120xbf16> to vector<139x120xbf16>
    %cst_225 = arith.constant dense<0.000000e+00> : vector<8x120xf32>
    %210 = tpu.matmul %207, %209, %cst_225 {dimension_numbers = #tpu.dot_dimension_numbers<[1], [0], [0], [1], [0, 0, 1, 1], [], []>} : vector<8x139xbf16>, vector<139x120xbf16>, vector<8x120xf32> -> vector<8x120xf32>
    %211 = arith.addf %205, %210 : vector<8x120xf32>
    %212 = vector.extract_strided_slice %162 {offsets = [64, 0], sizes = [8, 139], strides = [1, 1]} : vector<128x139xf32> to vector<8x139xf32>
    %213 = arith.truncf %212 : vector<8x139xf32> to vector<8x139xbf16>
    %c8 = arith.constant 8 : index
    %c0_226 = arith.constant 0 : index
    %c0_227 = arith.constant 0 : index
    %214 = vector.load %arg7[%c8, %c0_226, %c0_227] : memref<16x139x120xbf16, #tpu.memory_space<vmem>>, vector<1x139x120xbf16>
    %215 = vector.shape_cast %214 : vector<1x139x120xbf16> to vector<139x120xbf16>
    %cst_228 = arith.constant dense<0.000000e+00> : vector<8x120xf32>
    %216 = tpu.matmul %213, %215, %cst_228 {dimension_numbers = #tpu.dot_dimension_numbers<[1], [0], [0], [1], [0, 0, 1, 1], [], []>} : vector<8x139xbf16>, vector<139x120xbf16>, vector<8x120xf32> -> vector<8x120xf32>
    %217 = arith.addf %211, %216 : vector<8x120xf32>
    %218 = vector.extract_strided_slice %162 {offsets = [72, 0], sizes = [8, 139], strides = [1, 1]} : vector<128x139xf32> to vector<8x139xf32>
    %219 = arith.truncf %218 : vector<8x139xf32> to vector<8x139xbf16>
    %c9 = arith.constant 9 : index
    %c0_229 = arith.constant 0 : index
    %c0_230 = arith.constant 0 : index
    %220 = vector.load %arg7[%c9, %c0_229, %c0_230] : memref<16x139x120xbf16, #tpu.memory_space<vmem>>, vector<1x139x120xbf16>
    %221 = vector.shape_cast %220 : vector<1x139x120xbf16> to vector<139x120xbf16>
    %cst_231 = arith.constant dense<0.000000e+00> : vector<8x120xf32>
    %222 = tpu.matmul %219, %221, %cst_231 {dimension_numbers = #tpu.dot_dimension_numbers<[1], [0], [0], [1], [0, 0, 1, 1], [], []>} : vector<8x139xbf16>, vector<139x120xbf16>, vector<8x120xf32> -> vector<8x120xf32>
    %223 = arith.addf %217, %222 : vector<8x120xf32>
    %224 = vector.extract_strided_slice %162 {offsets = [80, 0], sizes = [8, 139], strides = [1, 1]} : vector<128x139xf32> to vector<8x139xf32>
    %225 = arith.truncf %224 : vector<8x139xf32> to vector<8x139xbf16>
    %c10 = arith.constant 10 : index
    %c0_232 = arith.constant 0 : index
    %c0_233 = arith.constant 0 : index
    %226 = vector.load %arg7[%c10, %c0_232, %c0_233] : memref<16x139x120xbf16, #tpu.memory_space<vmem>>, vector<1x139x120xbf16>
    %227 = vector.shape_cast %226 : vector<1x139x120xbf16> to vector<139x120xbf16>
    %cst_234 = arith.constant dense<0.000000e+00> : vector<8x120xf32>
    %228 = tpu.matmul %225, %227, %cst_234 {dimension_numbers = #tpu.dot_dimension_numbers<[1], [0], [0], [1], [0, 0, 1, 1], [], []>} : vector<8x139xbf16>, vector<139x120xbf16>, vector<8x120xf32> -> vector<8x120xf32>
    %229 = arith.addf %223, %228 : vector<8x120xf32>
    %230 = vector.extract_strided_slice %162 {offsets = [88, 0], sizes = [8, 139], strides = [1, 1]} : vector<128x139xf32> to vector<8x139xf32>
    %231 = arith.truncf %230 : vector<8x139xf32> to vector<8x139xbf16>
    %c11 = arith.constant 11 : index
    %c0_235 = arith.constant 0 : index
    %c0_236 = arith.constant 0 : index
    %232 = vector.load %arg7[%c11, %c0_235, %c0_236] : memref<16x139x120xbf16, #tpu.memory_space<vmem>>, vector<1x139x120xbf16>
    %233 = vector.shape_cast %232 : vector<1x139x120xbf16> to vector<139x120xbf16>
    %cst_237 = arith.constant dense<0.000000e+00> : vector<8x120xf32>
    %234 = tpu.matmul %231, %233, %cst_237 {dimension_numbers = #tpu.dot_dimension_numbers<[1], [0], [0], [1], [0, 0, 1, 1], [], []>} : vector<8x139xbf16>, vector<139x120xbf16>, vector<8x120xf32> -> vector<8x120xf32>
    %235 = arith.addf %229, %234 : vector<8x120xf32>
    %236 = vector.extract_strided_slice %162 {offsets = [96, 0], sizes = [8, 139], strides = [1, 1]} : vector<128x139xf32> to vector<8x139xf32>
    %237 = arith.truncf %236 : vector<8x139xf32> to vector<8x139xbf16>
    %c12 = arith.constant 12 : index
    %c0_238 = arith.constant 0 : index
    %c0_239 = arith.constant 0 : index
    %238 = vector.load %arg7[%c12, %c0_238, %c0_239] : memref<16x139x120xbf16, #tpu.memory_space<vmem>>, vector<1x139x120xbf16>
    %239 = vector.shape_cast %238 : vector<1x139x120xbf16> to vector<139x120xbf16>
    %cst_240 = arith.constant dense<0.000000e+00> : vector<8x120xf32>
    %240 = tpu.matmul %237, %239, %cst_240 {dimension_numbers = #tpu.dot_dimension_numbers<[1], [0], [0], [1], [0, 0, 1, 1], [], []>} : vector<8x139xbf16>, vector<139x120xbf16>, vector<8x120xf32> -> vector<8x120xf32>
    %241 = arith.addf %235, %240 : vector<8x120xf32>
    %242 = vector.extract_strided_slice %162 {offsets = [104, 0], sizes = [8, 139], strides = [1, 1]} : vector<128x139xf32> to vector<8x139xf32>
    %243 = arith.truncf %242 : vector<8x139xf32> to vector<8x139xbf16>
    %c13 = arith.constant 13 : index
    %c0_241 = arith.constant 0 : index
    %c0_242 = arith.constant 0 : index
    %244 = vector.load %arg7[%c13, %c0_241, %c0_242] : memref<16x139x120xbf16, #tpu.memory_space<vmem>>, vector<1x139x120xbf16>
    %245 = vector.shape_cast %244 : vector<1x139x120xbf16> to vector<139x120xbf16>
    %cst_243 = arith.constant dense<0.000000e+00> : vector<8x120xf32>
    %246 = tpu.matmul %243, %245, %cst_243 {dimension_numbers = #tpu.dot_dimension_numbers<[1], [0], [0], [1], [0, 0, 1, 1], [], []>} : vector<8x139xbf16>, vector<139x120xbf16>, vector<8x120xf32> -> vector<8x120xf32>
    %247 = arith.addf %241, %246 : vector<8x120xf32>
    %248 = vector.extract_strided_slice %162 {offsets = [112, 0], sizes = [8, 139], strides = [1, 1]} : vector<128x139xf32> to vector<8x139xf32>
    %249 = arith.truncf %248 : vector<8x139xf32> to vector<8x139xbf16>
    %c14 = arith.constant 14 : index
    %c0_244 = arith.constant 0 : index
    %c0_245 = arith.constant 0 : index
    %250 = vector.load %arg7[%c14, %c0_244, %c0_245] : memref<16x139x120xbf16, #tpu.memory_space<vmem>>, vector<1x139x120xbf16>
    %251 = vector.shape_cast %250 : vector<1x139x120xbf16> to vector<139x120xbf16>
    %cst_246 = arith.constant dense<0.000000e+00> : vector<8x120xf32>
    %252 = tpu.matmul %249, %251, %cst_246 {dimension_numbers = #tpu.dot_dimension_numbers<[1], [0], [0], [1], [0, 0, 1, 1], [], []>} : vector<8x139xbf16>, vector<139x120xbf16>, vector<8x120xf32> -> vector<8x120xf32>
    %253 = arith.addf %247, %252 : vector<8x120xf32>
    %254 = vector.extract_strided_slice %162 {offsets = [120, 0], sizes = [8, 139], strides = [1, 1]} : vector<128x139xf32> to vector<8x139xf32>
    %255 = arith.truncf %254 : vector<8x139xf32> to vector<8x139xbf16>
    %c15 = arith.constant 15 : index
    %c0_247 = arith.constant 0 : index
    %c0_248 = arith.constant 0 : index
    %256 = vector.load %arg7[%c15, %c0_247, %c0_248] : memref<16x139x120xbf16, #tpu.memory_space<vmem>>, vector<1x139x120xbf16>
    %257 = vector.shape_cast %256 : vector<1x139x120xbf16> to vector<139x120xbf16>
    %cst_249 = arith.constant dense<0.000000e+00> : vector<8x120xf32>
    %258 = tpu.matmul %255, %257, %cst_249 {dimension_numbers = #tpu.dot_dimension_numbers<[1], [0], [0], [1], [0, 0, 1, 1], [], []>} : vector<8x139xbf16>, vector<139x120xbf16>, vector<8x120xf32> -> vector<8x120xf32>
    %259 = arith.addf %253, %258 : vector<8x120xf32>
    %c0_250 = arith.constant 0 : index
    %c0_251 = arith.constant 0 : index
    %260 = vector.load %arg8[%c0_250, %c0_251] : memref<1x120xf32, #tpu.memory_space<vmem>>, vector<1x120xf32>
    %261 = vector.broadcast %260 : vector<1x120xf32> to vector<8x120xf32>
    %262 = arith.addf %259, %261 : vector<8x120xf32>
    %cst_252 = arith.constant 0.000000e+00 : f32
    %263 = vector.broadcast %cst_252 : f32 to vector<8x120xf32>
    %264 = arith.maximumf %262, %263 : vector<8x120xf32>
    %265 = arith.truncf %264 : vector<8x120xf32> to vector<8x120xbf16>
    %c0_253 = arith.constant 0 : index
    %c0_254 = arith.constant 0 : index
    %266 = vector.load %arg9[%c0_253, %c0_254] : memref<120x84xbf16, #tpu.memory_space<vmem>>, vector<120x84xbf16>
    %cst_255 = arith.constant dense<0.000000e+00> : vector<8x84xf32>
    %267 = tpu.matmul %265, %266, %cst_255 {dimension_numbers = #tpu.dot_dimension_numbers<[1], [0], [0], [1], [0, 0, 1, 1], [], []>} : vector<8x120xbf16>, vector<120x84xbf16>, vector<8x84xf32> -> vector<8x84xf32>
    %c0_256 = arith.constant 0 : index
    %c0_257 = arith.constant 0 : index
    %268 = vector.load %arg10[%c0_256, %c0_257] : memref<1x84xf32, #tpu.memory_space<vmem>>, vector<1x84xf32>
    %269 = vector.broadcast %268 : vector<1x84xf32> to vector<8x84xf32>
    %270 = arith.addf %267, %269 : vector<8x84xf32>
    %cst_258 = arith.constant 0.000000e+00 : f32
    %271 = vector.broadcast %cst_258 : f32 to vector<8x84xf32>
    %272 = arith.maximumf %270, %271 : vector<8x84xf32>
    %273 = arith.truncf %272 : vector<8x84xf32> to vector<8x84xbf16>
    %c0_259 = arith.constant 0 : index
    %c0_260 = arith.constant 0 : index
    %274 = vector.load %arg11[%c0_259, %c0_260] : memref<84x128xbf16, #tpu.memory_space<vmem>>, vector<84x128xbf16>
    %cst_261 = arith.constant dense<0.000000e+00> : vector<8x128xf32>
    %275 = tpu.matmul %273, %274, %cst_261 {dimension_numbers = #tpu.dot_dimension_numbers<[1], [0], [0], [1], [0, 0, 1, 1], [], []>} : vector<8x84xbf16>, vector<84x128xbf16>, vector<8x128xf32> -> vector<8x128xf32>
    %c0_262 = arith.constant 0 : index
    %c0_263 = arith.constant 0 : index
    %276 = vector.load %arg12[%c0_262, %c0_263] : memref<1x128xf32, #tpu.memory_space<vmem>>, vector<1x128xf32>
    %277 = vector.broadcast %276 : vector<1x128xf32> to vector<8x128xf32>
    %278 = arith.addf %275, %277 : vector<8x128xf32>
    %c0_264 = arith.constant 0 : index
    %c0_265 = arith.constant 0 : index
    %279 = vector.load %arg13[%c0_264, %c0_265] : memref<8x128xf32, #tpu.memory_space<vmem>>, vector<8x128xf32>
    tpu.vector_store %arg13[%c0_264, %c0_265], %278 {strides = array<i32>} : memref<8x128xf32, #tpu.memory_space<vmem>>, vector<8x128xf32>,
    return
  }
  func.func @transform_0(%arg0: i32) -> (i32, i32, i32) {
    %c0_i32 = arith.constant 0 : i32
    %c0_i32_0 = arith.constant 0 : i32
    %c0_i32_1 = arith.constant 0 : i32
    return %arg0, %c0_i32, %c0_i32_0 : i32, i32, i32
  }
  func.func @transform_1(%arg0: i32) -> (i32, i32) {
    %c0_i32 = arith.constant 0 : i32
    %c0_i32_0 = arith.constant 0 : i32
    %c0_i32_1 = arith.constant 0 : i32
    return %c0_i32, %c0_i32_0 : i32, i32
  }
  func.func @transform_2(%arg0: i32) -> (i32, i32) {
    %c0_i32 = arith.constant 0 : i32
    %c0_i32_0 = arith.constant 0 : i32
    %c0_i32_1 = arith.constant 0 : i32
    return %c0_i32, %c0_i32_0 : i32, i32
  }
  func.func @transform_3(%arg0: i32) -> (i32, i32) {
    %c0_i32 = arith.constant 0 : i32
    %c0_i32_0 = arith.constant 0 : i32
    %c0_i32_1 = arith.constant 0 : i32
    return %c0_i32, %c0_i32_0 : i32, i32
  }
  func.func @transform_4(%arg0: i32) -> (i32, i32) {
    %c0_i32 = arith.constant 0 : i32
    %c0_i32_0 = arith.constant 0 : i32
    %c0_i32_1 = arith.constant 0 : i32
    return %c0_i32, %c0_i32_0 : i32, i32
  }
  func.func @transform_5(%arg0: i32) -> (i32, i32) {
    %c0_i32 = arith.constant 0 : i32
    %c0_i32_0 = arith.constant 0 : i32
    %c0_i32_1 = arith.constant 0 : i32
    return %c0_i32, %c0_i32_0 : i32, i32
  }
  func.func @transform_6(%arg0: i32) -> (i32, i32, i32) {
    %c0_i32 = arith.constant 0 : i32
    %c0_i32_0 = arith.constant 0 : i32
    %c0_i32_1 = arith.constant 0 : i32
    %c0_i32_2 = arith.constant 0 : i32
    return %c0_i32, %c0_i32_0, %c0_i32_1 : i32, i32, i32
  }
  func.func @transform_7(%arg0: i32) -> (i32, i32) {
    %c0_i32 = arith.constant 0 : i32
    %c0_i32_0 = arith.constant 0 : i32
    %c0_i32_1 = arith.constant 0 : i32
    return %c0_i32, %c0_i32_0 : i32, i32
  }
  func.func @transform_8(%arg0: i32) -> (i32, i32) {
    %c0_i32 = arith.constant 0 : i32
    %c0_i32_0 = arith.constant 0 : i32
    %c0_i32_1 = arith.constant 0 : i32
    return %c0_i32, %c0_i32_0 : i32, i32
  }
  func.func @transform_9(%arg0: i32) -> (i32, i32) {
    %c0_i32 = arith.constant 0 : i32
    %c0_i32_0 = arith.constant 0 : i32
    %c0_i32_1 = arith.constant 0 : i32
    return %c0_i32, %c0_i32_0 : i32, i32
  }
  func.func @transform_10(%arg0: i32) -> (i32, i32) {
    %c0_i32 = arith.constant 0 : i32
    %c0_i32_0 = arith.constant 0 : i32
    %c0_i32_1 = arith.constant 0 : i32
    return %c0_i32, %c0_i32_0 : i32, i32
  }
  func.func @transform_11(%arg0: i32) -> (i32, i32) {
    %c0_i32 = arith.constant 0 : i32
    %c0_i32_0 = arith.constant 0 : i32
    %c0_i32_1 = arith.constant 0 : i32
    return %c0_i32, %c0_i32_0 : i32, i32
  }
  func.func @transform_12(%arg0: i32) -> (i32, i32) {
    %c0_i32 = arith.constant 0 : i32
    %c0_i32_0 = arith.constant 0 : i32
    return %arg0, %c0_i32 : i32, i32
  }
}

</mosaic_0001>

<llo_original>
// kernel: cnn_cifar_forward.1
$region0: #{cnn_cifar_forward.1}
  #allocation0 [shape = 'u32[]', space=smem, size = 0x4, offset = 0x4, fixed_abs, tag = 'smem constant byte address 0x4 - core index']
  #allocation1 [shape = 'u32[144,128]{1,0:T(1,128)}', space=vmem, size = 0x12000, scoped, tag = 'internal scratch']
  #allocation2 [shape = 'f32[600,896]{1,0:T(8,128)}', space=vmem, size = 0x20d000, scoped, tag = 'scratch operand']
  #allocation3 [shape = 'f32[48,896]{1,0:T(8,128)}', space=vmem, size = 0x2a000, scoped, tag = 'scratch operand']
  #allocation4 [shape = 'bf16[48,256]{1,0:T(16,128)(2,1)}', space=vmem, size = 0x6000, scoped, tag = 'scratch operand']
  #allocation5 [shape = 'bf16[1200,160]{1,0:T(16,128)(2,1)}', space=vmem, size = 0x96000, scoped, tag = 'scratch operand']
  #allocation6 [shape = 'f32[128,160]{1,0:T(8,128)}', space=vmem, size = 0x20000, scoped, tag = 'scratch operand']
  %s0 = inlined_call_operand.vmem [shape: f32[1,24,1152], index: 0, kind: input, shape index: {}]
  %s1 = inlined_call_operand.vmem [shape: bf16[48,600], index: 1, kind: input, shape index: {}]
  %s2 = inlined_call_operand.vmem [shape: f32[48,1], index: 2, kind: input, shape index: {}]
  %s3 = inlined_call_operand.vmem [shape: bf16[863,256], index: 3, kind: input, shape index: {}]
  %s4 = inlined_call_operand.vmem [shape: bf16[128,1200], index: 4, kind: input, shape index: {}]
  %s5 = inlined_call_operand.vmem [shape: f32[128,1], index: 5, kind: input, shape index: {}]
  %s6 = inlined_call_operand.vmem [shape: bf16[16,139,120], index: 6, kind: input, shape index: {}]
  %s7 = inlined_call_operand.vmem [shape: f32[1,120], index: 7, kind: input, shape index: {}]
  %s8 = inlined_call_operand.vmem [shape: bf16[120,84], index: 8, kind: input, shape index: {}]
  %s9 = inlined_call_operand.vmem [shape: f32[1,84], index: 9, kind: input, shape index: {}]
  %s10 = inlined_call_operand.vmem [shape: bf16[84,128], index: 10, kind: input, shape index: {}]
  %s11 = inlined_call_operand.vmem [shape: f32[1,128], index: 11, kind: input, shape index: {}]
  %s12 = inlined_call_operand.vmem [shape: f32[8,128], index: 12, kind: output, shape index: {}]
  %s13 = sld [smem:[#allocation0]]
  $region58: #{cnn_cifar_forward.1} parent=0
    _
  %s15 = ssub.s32 1, %s13
  %s16 = scalar_select 0, %s15, %s13
  // Predicated region
  $region2: #{cnn_cifar_forward.1} parent=0 // pred_check
    _
  $region3: #{cnn_cifar_forward.1} parent=0 // pred_check_branch
    %18 = sbr.rel (0) target = $region5
  $region4: #{cnn_cifar_forward.1} parent=0 // pred_region
    _
  $region5: #{cnn_cifar_forward.1} parent=0 // pred_fallthru
    _
  // Predicated region
  $region6: #{cnn_cifar_forward.1} parent=0 // pred_check
    _
  $region7: #{cnn_cifar_forward.1} parent=0 // pred_check_branch
    %20 = sbr.rel (0) target = $region9
  $region8: #{cnn_cifar_forward.1} parent=0 // pred_region
    _
  $region9: #{cnn_cifar_forward.1} parent=0 // pred_fallthru
    _
  // Predicated region
  $region10: #{cnn_cifar_forward.1} parent=0 // pred_check
    _
  $region11: #{cnn_cifar_forward.1} parent=0 // pred_check_branch
    %22 = sbr.rel (0) target = $region13
  $region12: #{cnn_cifar_forward.1} parent=0 // pred_region
    _
  $region13: #{cnn_cifar_forward.1} parent=0 // pred_fallthru
    _
  // Predicated region
  $region14: #{cnn_cifar_forward.1} parent=0 // pred_check
    _
  $region15: #{cnn_cifar_forward.1} parent=0 // pred_check_branch
    %24 = sbr.rel (0) target = $region17
  $region16: #{cnn_cifar_forward.1} parent=0 // pred_region
    _
  $region17: #{cnn_cifar_forward.1} parent=0 // pred_fallthru
    _
  // Predicated region
  $region18: #{cnn_cifar_forward.1} parent=0 // pred_check
    _
  $region19: #{cnn_cifar_forward.1} parent=0 // pred_check_branch
    %26 = sbr.rel (0) target = $region21
  $region20: #{cnn_cifar_forward.1} parent=0 // pred_region
    _
  $region21: #{cnn_cifar_forward.1} parent=0 // pred_fallthru
    _
  // Predicated region
  $region22: #{cnn_cifar_forward.1} parent=0 // pred_check
    _
  $region23: #{cnn_cifar_forward.1} parent=0 // pred_check_branch
    %28 = sbr.rel (0) target = $region25
  $region24: #{cnn_cifar_forward.1} parent=0 // pred_region
    _
  $region25: #{cnn_cifar_forward.1} parent=0 // pred_fallthru
    _
  // Predicated region
  $region26: #{cnn_cifar_forward.1} parent=0 // pred_check
    _
  $region27: #{cnn_cifar_forward.1} parent=0 // pred_check_branch
    %30 = sbr.rel (0) target = $region29
  $region28: #{cnn_cifar_forward.1} parent=0 // pred_region
    _
  $region29: #{cnn_cifar_forward.1} parent=0 // pred_fallthru
    _
  // Predicated region
  $region30: #{cnn_cifar_forward.1} parent=0 // pred_check
    _
  $region31: #{cnn_cifar_forward.1} parent=0 // pred_check_branch
    %32 = sbr.rel (0) target = $region33
  $region32: #{cnn_cifar_forward.1} parent=0 // pred_region
    _
  $region33: #{cnn_cifar_forward.1} parent=0 // pred_fallthru
    _
  // Predicated region
  $region34: #{cnn_cifar_forward.1} parent=0 // pred_check
    _
  $region35: #{cnn_cifar_forward.1} parent=0 // pred_check_branch
    %34 = sbr.rel (0) target = $region37
  $region36: #{cnn_cifar_forward.1} parent=0 // pred_region
    _
  $region37: #{cnn_cifar_forward.1} parent=0 // pred_fallthru
    _
  // Predicated region
  $region38: #{cnn_cifar_forward.1} parent=0 // pred_check
    _
  $region39: #{cnn_cifar_forward.1} parent=0 // pred_check_branch
    %36 = sbr.rel (0) target = $region41
  $region40: #{cnn_cifar_forward.1} parent=0 // pred_region
    _
  $region41: #{cnn_cifar_forward.1} parent=0 // pred_fallthru
    _
  // Predicated region
  $region42: #{cnn_cifar_forward.1} parent=0 // pred_check
    _
  $region43: #{cnn_cifar_forward.1} parent=0 // pred_check_branch
    %38 = sbr.rel (0) target = $region45
  $region44: #{cnn_cifar_forward.1} parent=0 // pred_region
    _
  $region45: #{cnn_cifar_forward.1} parent=0 // pred_fallthru
    _
  // Predicated region
  $region46: #{cnn_cifar_forward.1} parent=0 // pred_check
    _
  $region47: #{cnn_cifar_forward.1} parent=0 // pred_check_branch
    %40 = sbr.rel (0) target = $region49
  $region48: #{cnn_cifar_forward.1} parent=0 // pred_region
    _
  $region49: #{cnn_cifar_forward.1} parent=0 // pred_fallthru
    _
  %v42 = vld [vmem:[%s0] sm:$0xff]
  %v43 = vld [vmem:[%s0 + $0x8] sm:$0xff]
  %v44 = vld [vmem:[%s0 + $0x10] sm:$0xff]
  %v45 = vld [vmem:[%s0 + $0x18] sm:$0xff]
  %v46 = vld [vmem:[%s0 + $0x20] sm:$0xff]
  %v47 = vld [vmem:[%s0 + $0x28] sm:$0xff]
  %v48 = vld [vmem:[%s0 + $0x30] sm:$0xff]
  %v49 = vld [vmem:[%s0 + $0x48] sm:$0xff]
  %v50 = vld [vmem:[%s0 + $0x50] sm:$0xff]
  %v51 = vld [vmem:[%s0 + $0x58] sm:$0xff]
  %v52 = vld [vmem:[%s0 + $0x60] sm:$0xff]
  %v53 = vld [vmem:[%s0 + $0x68] sm:$0xff]
  %v54 = vld [vmem:[%s0 + $0x70] sm:$0xff]
  %v55 = vld [vmem:[%s0 + $0x78] sm:$0xff]
  %v56 = vld [vmem:[%s0 + $0x90] sm:$0xff]
  %v57 = vld [vmem:[%s0 + $0x98] sm:$0xff]
  %v58 = vld [vmem:[%s0 + $0xa0] sm:$0xff]
  %v59 = vld [vmem:[%s0 + $0xa8] sm:$0xff]
  %v60 = vld [vmem:[%s0 + $0xb0] sm:$0xff]
  %v61 = vld [vmem:[%s0 + $0xb8] sm:$0xff]
  %v62 = vld [vmem:[%s0 + $0xc0] sm:$0xff]
  %63 = vst [vmem:[#allocation2] sm:$0xff] %v42
  %64 = vst [vmem:[#allocation2 + $0x8] sm:$0xff] %v43
  %65 = vst [vmem:[#allocation2 + $0x10] sm:$0xff] %v44
  %66 = vst [vmem:[#allocation2 + $0x18] sm:$0xff] %v45
  %67 = vst [vmem:[#allocation2 + $0x20] sm:$0xff] %v46
  %68 = vst [vmem:[#allocation2 + $0x28] sm:$0xff] %v47
  %69 = vst [vmem:[#allocation2 + $0x30] sm:$0xff] %v48
  %70 = vst [vmem:[#allocation2 + $0x38] sm:$0xff] %v49
  %71 = vst [vmem:[#allocation2 + $0x40] sm:$0xff] %v50
  %72 = vst [vmem:[#allocation2 + $0x48] sm:$0xff] %v51
  %73 = vst [vmem:[#allocation2 + $0x50] sm:$0xff] %v52
  %74 = vst [vmem:[#allocation2 + $0x58] sm:$0xff] %v53
  %75 = vst [vmem:[#allocation2 + $0x60] sm:$0xff] %v54
  %76 = vst [vmem:[#allocation2 + $0x68] sm:$0xff] %v55
  %77 = vst [vmem:[#allocation2 + $0x70] sm:$0xff] %v56
  %78 = vst [vmem:[#allocation2 + $0x78] sm:$0xff] %v57
  %79 = vst [vmem:[#allocation2 + $0x80] sm:$0xff] %v58
  %80 = vst [vmem:[#allocation2 + $0x88] sm:$0xff] %v59
  %81 = vst [vmem:[#allocation2 + $0x90] sm:$0xff] %v60
  %82 = vst [vmem:[#allocation2 + $0x98] sm:$0xff] %v61
  %83 = vst [vmem:[#allocation2 + $0xa0] sm:$0xff] %v62
  %v84 = vld [vmem:[%s0] sm:$0xff]
  %v85 = vld [vmem:[%s0 + $0x8] sm:$0xff]
  %v86 = vld [vmem:[%s0 + $0x10] sm:$0xff]
  %v87 = vld [vmem:[%s0 + $0x18] sm:$0xff]
  %v88 = vld [vmem:[%s0 + $0x20] sm:$0xff]
  %v89 = vld [vmem:[%s0 + $0x28] sm:$0xff]
  %v90 = vld [vmem:[%s0 + $0x30] sm:$0xff]
  %v91 = vld [vmem:[%s0 + $0x38] sm:$0xff]
  %v92 = vld [vmem:[%s0 + $0x48] sm:$0xff]
  %v93 = vld [vmem:[%s0 + $0x50] sm:$0xff]
  %v94 = vld [vmem:[%s0 + $0x58] sm:$0xff]
  %v95 = vld [vmem:[%s0 + $0x60] sm:$0xff]
  %v96 = vld [vmem:[%s0 + $0x68] sm:$0xff]
  %v97 = vld [vmem:[%s0 + $0x70] sm:$0xff]
  %v98 = vld [vmem:[%s0 + $0x78] sm:$0xff]
  %v99 = vld [vmem:[%s0 + $0x80] sm:$0xff]
  %v100 = vld [vmem:[%s0 + $0x90] sm:$0xff]
  %v101 = vld [vmem:[%s0 + $0x98] sm:$0xff]
  %v102 = vld [vmem:[%s0 + $0xa0] sm:$0xff]
  %v103 = vld [vmem:[%s0 + $0xa8] sm:$0xff]
  %v104 = vld [vmem:[%s0 + $0xb0] sm:$0xff]
  %v105 = vld [vmem:[%s0 + $0xb8] sm:$0xff]
  %v106 = vld [vmem:[%s0 + $0xc0] sm:$0xff]
  %v107 = vld [vmem:[%s0 + $0xc8] sm:$0xff]
  %132 = vrot.lane.b32.xlu0 %v84, 127
  %v133 = vpop.permute.xlu0 %132
  %134 = vrot.lane.b32.xlu0 %v85, 127
  %v135 = vpop.permute.xlu0 %134
  %136 = vrot.lane.b32.xlu0 %v86, 127
  %v137 = vpop.permute.xlu0 %136
  %138 = vrot.lane.b32.xlu0 %v87, 127
  %v139 = vpop.permute.xlu0 %138
  %140 = vrot.lane.b32.xlu0 %v88, 127
  %v141 = vpop.permute.xlu0 %140
  %142 = vrot.lane.b32.xlu0 %v89, 127
  %v143 = vpop.permute.xlu0 %142
  %144 = vrot.lane.b32.xlu0 %v90, 127
  %v145 = vpop.permute.xlu0 %144
  %146 = vrot.lane.b32.xlu0 %v91, 127
  %v147 = vpop.permute.xlu0 %146
  %148 = vrot.lane.b32.xlu0 %v92, 127
  %v149 = vpop.permute.xlu0 %148
  %150 = vrot.lane.b32.xlu0 %v93, 127
  %v151 = vpop.permute.xlu0 %150
  %152 = vrot.lane.b32.xlu0 %v94, 127
  %v153 = vpop.permute.xlu0 %152
  %154 = vrot.lane.b32.xlu0 %v95, 127
  %v155 = vpop.permute.xlu0 %154
  %156 = vrot.lane.b32.xlu0 %v96, 127
  %v157 = vpop.permute.xlu0 %156
  %158 = vrot.lane.b32.xlu0 %v97, 127
  %v159 = vpop.permute.xlu0 %158
  %160 = vrot.lane.b32.xlu0 %v98, 127
  %v161 = vpop.permute.xlu0 %160
  %162 = vrot.lane.b32.xlu0 %v99, 127
  %v163 = vpop.permute.xlu0 %162
  %164 = vrot.lane.b32.xlu0 %v100, 127
  %v165 = vpop.permute.xlu0 %164
  %166 = vrot.lane.b32.xlu0 %v101, 127
  %v167 = vpop.permute.xlu0 %166
  %168 = vrot.lane.b32.xlu0 %v102, 127
  %v169 = vpop.permute.xlu0 %168
  %170 = vrot.lane.b32.xlu0 %v103, 127
  %v171 = vpop.permute.xlu0 %170
  %172 = vrot.lane.b32.xlu0 %v104, 127
  %v173 = vpop.permute.xlu0 %172
  %174 = vrot.lane.b32.xlu0 %v105, 127
  %v175 = vpop.permute.xlu0 %174
  %176 = vrot.lane.b32.xlu0 %v106, 127
  %v177 = vpop.permute.xlu0 %176
  %178 = vrot.lane.b32.xlu0 %v107, 127
  %v179 = vpop.permute.xlu0 %178
  %vm180 = vcmask 1039360
  %v181 = vsel %vm180, %v133, %v135
  %v182 = vsel %vm180, %v135, %v137
  %v183 = vsel %vm180, %v137, %v139
  %v184 = vsel %vm180, %v139, %v141
  %v185 = vsel %vm180, %v141, %v143
  %v186 = vsel %vm180, %v143, %v145
  %v187 = vsel %vm180, %v145, %v147
  %v188 = vsel %vm180, %v149, %v151
  %v189 = vsel %vm180, %v151, %v153
  %v190 = vsel %vm180, %v153, %v155
  %v191 = vsel %vm180, %v155, %v157
  %v192 = vsel %vm180, %v157, %v159
  %v193 = vsel %vm180, %v159, %v161
  %v194 = vsel %vm180, %v161, %v163
  %v195 = vsel %vm180, %v165, %v167
  %v196 = vsel %vm180, %v167, %v169
  %v197 = vsel %vm180, %v169, %v171
  %v198 = vsel %vm180, %v171, %v173
  %v199 = vsel %vm180, %v173, %v175
  %v200 = vsel %vm180, %v175, %v177
  %v201 = vsel %vm180, %v177, %v179
  %223 = vst [vmem:[#allocation2 + $0xa8] sm:$0xff] %v181
  %224 = vst [vmem:[#allocation2 + $0xb0] sm:$0xff] %v182
  %225 = vst [vmem:[#allocation2 + $0xb8] sm:$0xff] %v183
  %226 = vst [vmem:[#allocation2 + $0xc0] sm:$0xff] %v184
  %227 = vst [vmem:[#allocation2 + $0xc8] sm:$0xff] %v185
  %228 = vst [vmem:[#allocation2 + $0xd0] sm:$0xff] %v186
  %229 = vst [vmem:[#allocation2 + $0xd8] sm:$0xff] %v187
  %230 = vst [vmem:[#allocation2 + $0xe0] sm:$0xff] %v188
  %231 = vst [vmem:[#allocation2 + $0xe8] sm:$0xff] %v189
  %232 = vst [vmem:[#allocation2 + $0xf0] sm:$0xff] %v190
  %233 = vst [vmem:[#allocation2 + $0xf8] sm:$0xff] %v191
  %234 = vst [vmem:[#allocation2 + $0x100] sm:$0xff] %v192
  %235 = vst [vmem:[#allocation2 + $0x108] sm:$0xff] %v193
  %236 = vst [vmem:[#allocation2 + $0x110] sm:$0xff] %v194
  %237 = vst [vmem:[#allocation2 + $0x118] sm:$0xff] %v195
  %238 = vst [vmem:[#allocation2 + $0x120] sm:$0xff] %v196
  %239 = vst [vmem:[#allocation2 + $0x128] sm:$0xff] %v197
  %240 = vst [vmem:[#allocation2 + $0x130] sm:$0xff] %v198
  %241 = vst [vmem:[#allocation2 + $0x138] sm:$0xff] %v199
  %242 = vst [vmem:[#allocation2 + $0x140] sm:$0xff] %v200
  %243 = vst [vmem:[#allocation2 + $0x148] sm:$0xff] %v201
  %v244 = vld [vmem:[%s0] sm:$0xff]
  %v245 = vld [vmem:[%s0 + $0x8] sm:$0xff]
  %v246 = vld [vmem:[%s0 + $0x10] sm:$0xff]
  %v247 = vld [vmem:[%s0 + $0x18] sm:$0xff]
  %v248 = vld [vmem:[%s0 + $0x20] sm:$0xff]
  %v249 = vld [vmem:[%s0 + $0x28] sm:$0xff]
  %v250 = vld [vmem:[%s0 + $0x30] sm:$0xff]
  %v251 = vld [vmem:[%s0 + $0x38] sm:$0xff]
  %v252 = vld [vmem:[%s0 + $0x48] sm:$0xff]
  %v253 = vld [vmem:[%s0 + $0x50] sm:$0xff]
  %v254 = vld [vmem:[%s0 + $0x58] sm:$0xff]
  %v255 = vld [vmem:[%s0 + $0x60] sm:$0xff]
  %v256 = vld [vmem:[%s0 + $0x68] sm:$0xff]
  %v257 = vld [vmem:[%s0 + $0x70] sm:$0xff]
  %v258 = vld [vmem:[%s0 + $0x78] sm:$0xff]
  %v259 = vld [vmem:[%s0 + $0x80] sm:$0xff]
  %v260 = vld [vmem:[%s0 + $0x90] sm:$0xff]
  %v261 = vld [vmem:[%s0 + $0x98] sm:$0xff]
  %v262 = vld [vmem:[%s0 + $0xa0] sm:$0xff]
  %v263 = vld [vmem:[%s0 + $0xa8] sm:$0xff]
  %v264 = vld [vmem:[%s0 + $0xb0] sm:$0xff]
  %v265 = vld [vmem:[%s0 + $0xb8] sm:$0xff]
  %v266 = vld [vmem:[%s0 + $0xc0] sm:$0xff]
  %v267 = vld [vmem:[%s0 + $0xc8] sm:$0xff]
  %292 = vrot.lane.b32.xlu0 %v244, 126
  %v293 = vpop.permute.xlu0 %292
  %294 = vrot.lane.b32.xlu0 %v245, 126
  %v295 = vpop.permute.xlu0 %294
  %296 = vrot.lane.b32.xlu0 %v246, 126
  %v297 = vpop.permute.xlu0 %296
  %298 = vrot.lane.b32.xlu0 %v247, 126
  %v299 = vpop.permute.xlu0 %298
  %300 = vrot.lane.b32.xlu0 %v248, 126
  %v301 = vpop.permute.xlu0 %300
  %302 = vrot.lane.b32.xlu0 %v249, 126
  %v303 = vpop.permute.xlu0 %302
  %304 = vrot.lane.b32.xlu0 %v250, 126
  %v305 = vpop.permute.xlu0 %304
  %306 = vrot.lane.b32.xlu0 %v251, 126
  %v307 = vpop.permute.xlu0 %306
  %308 = vrot.lane.b32.xlu0 %v252, 126
  %v309 = vpop.permute.xlu0 %308
  %310 = vrot.lane.b32.xlu0 %v253, 126
  %v311 = vpop.permute.xlu0 %310
  %312 = vrot.lane.b32.xlu0 %v254, 126
  %v313 = vpop.permute.xlu0 %312
  %314 = vrot.lane.b32.xlu0 %v255, 126
  %v315 = vpop.permute.xlu0 %314
  %316 = vrot.lane.b32.xlu0 %v256, 126
  %v317 = vpop.permute.xlu0 %316
  %318 = vrot.lane.b32.xlu0 %v257, 126
  %v319 = vpop.permute.xlu0 %318
  %320 = vrot.lane.b32.xlu0 %v258, 126
  %v321 = vpop.permute.xlu0 %320
  %322 = vrot.lane.b32.xlu0 %v259, 126
  %v323 = vpop.permute.xlu0 %322
  %324 = vrot.lane.b32.xlu0 %v260, 126
  %v325 = vpop.permute.xlu0 %324
  %326 = vrot.lane.b32.xlu0 %v261, 126
  %v327 = vpop.permute.xlu0 %326
  %328 = vrot.lane.b32.xlu0 %v262, 126
  %v329 = vpop.permute.xlu0 %328
  %330 = vrot.lane.b32.xlu0 %v263, 126
  %v331 = vpop.permute.xlu0 %330
  %332 = vrot.lane.b32.xlu0 %v264, 126
  %v333 = vpop.permute.xlu0 %332
  %334 = vrot.lane.b32.xlu0 %v265, 126
  %v335 = vpop.permute.xlu0 %334
  %336 = vrot.lane.b32.xlu0 %v266, 126
  %v337 = vpop.permute.xlu0 %336
  %338 = vrot.lane.b32.xlu0 %v267, 126
  %v339 = vpop.permute.xlu0 %338
  %vm340 = vcmask 1031168
  %v341 = vsel %vm340, %v293, %v295
  %v342 = vsel %vm340, %v295, %v297
  %v343 = vsel %vm340, %v297, %v299
  %v344 = vsel %vm340, %v299, %v301
  %v345 = vsel %vm340, %v301, %v303
  %v346 = vsel %vm340, %v303, %v305
  %v347 = vsel %vm340, %v305, %v307
  %v348 = vsel %vm340, %v309, %v311
  %v349 = vsel %vm340, %v311, %v313
  %v350 = vsel %vm340, %v313, %v315
  %v351 = vsel %vm340, %v315, %v317
  %v352 = vsel %vm340, %v317, %v319
  %v353 = vsel %vm340, %v319, %v321
  %v354 = vsel %vm340, %v321, %v323
  %v355 = vsel %vm340, %v325, %v327
  %v356 = vsel %vm340, %v327, %v329
  %v357 = vsel %vm340, %v329, %v331
  %v358 = vsel %vm340, %v331, %v333
  %v359 = vsel %vm340, %v333, %v335
  %v360 = vsel %vm340, %v335, %v337
  %v361 = vsel %vm340, %v337, %v339
  %383 = vst [vmem:[#allocation2 + $0x150] sm:$0xff] %v341
  %384 = vst [vmem:[#allocation2 + $0x158] sm:$0xff] %v342
  %385 = vst [vmem:[#allocation2 + $0x160] sm:$0xff] %v343
  %386 = vst [vmem:[#allocation2 + $0x168] sm:$0xff] %v344
  %387 = vst [vmem:[#allocation2 + $0x170] sm:$0xff] %v345
  %388 = vst [vmem:[#allocation2 + $0x178] sm:$0xff] %v346
  %389 = vst [vmem:[#allocation2 + $0x180] sm:$0xff] %v347
  %390 = vst [vmem:[#allocation2 + $0x188] sm:$0xff] %v348
  %391 = vst [vmem:[#allocation2 + $0x190] sm:$0xff] %v349
  %392 = vst [vmem:[#allocation2 + $0x198] sm:$0xff] %v350
  %393 = vst [vmem:[#allocation2 + $0x1a0] sm:$0xff] %v351
  %394 = vst [vmem:[#allocation2 + $0x1a8] sm:$0xff] %v352
  %395 = vst [vmem:[#allocation2 + $0x1b0] sm:$0xff] %v353
  %396 = vst [vmem:[#allocation2 + $0x1b8] sm:$0xff] %v354
  %397 = vst [vmem:[#allocation2 + $0x1c0] sm:$0xff] %v355
  %398 = vst [vmem:[#allocation2 + $0x1c8] sm:$0xff] %v356
  %399 = vst [vmem:[#allocation2 + $0x1d0] sm:$0xff] %v357
  %400 = vst [vmem:[#allocation2 + $0x1d8] sm:$0xff] %v358
  %401 = vst [vmem:[#allocation2 + $0x1e0] sm:$0xff] %v359
  %402 = vst [vmem:[#allocation2 + $0x1e8] sm:$0xff] %v360
  %403 = vst [vmem:[#allocation2 + $0x1f0] sm:$0xff] %v361
  %v404 = vld [vmem:[%s0] sm:$0xff]
  %v405 = vld [vmem:[%s0 + $0x8] sm:$0xff]
  %v406 = vld [vmem:[%s0 + $0x10] sm:$0xff]
  %v407 = vld [vmem:[%s0 + $0x18] sm:$0xff]
  %v408 = vld [vmem:[%s0 + $0x20] sm:$0xff]
  %v409 = vld [vmem:[%s0 + $0x28] sm:$0xff]
  %v410 = vld [vmem:[%s0 + $0x30] sm:$0xff]
  %v411 = vld [vmem:[%s0 + $0x38] sm:$0xff]
  %v412 = vld [vmem:[%s0 + $0x48] sm:$0xff]
  %v413 = vld [vmem:[%s0 + $0x50] sm:$0xff]
  %v414 = vld [vmem:[%s0 + $0x58] sm:$0xff]
  %v415 = vld [vmem:[%s0 + $0x60] sm:$0xff]
  %v416 = vld [vmem:[%s0 + $0x68] sm:$0xff]
  %v417 = vld [vmem:[%s0 + $0x70] sm:$0xff]
  %v418 = vld [vmem:[%s0 + $0x78] sm:$0xff]
  %v419 = vld [vmem:[%s0 + $0x80] sm:$0xff]
  %v420 = vld [vmem:[%s0 + $0x90] sm:$0xff]
  %v421 = vld [vmem:[%s0 + $0x98] sm:$0xff]
  %v422 = vld [vmem:[%s0 + $0xa0] sm:$0xff]
  %v423 = vld [vmem:[%s0 + $0xa8] sm:$0xff]
  %v424 = vld [vmem:[%s0 + $0xb0] sm:$0xff]
  %v425 = vld [vmem:[%s0 + $0xb8] sm:$0xff]
  %v426 = vld [vmem:[%s0 + $0xc0] sm:$0xff]
  %v427 = vld [vmem:[%s0 + $0xc8] sm:$0xff]
  %452 = vrot.lane.b32.xlu0 %v404, 125
  %v453 = vpop.permute.xlu0 %452
  %454 = vrot.lane.b32.xlu0 %v405, 125
  %v455 = vpop.permute.xlu0 %454
  %456 = vrot.lane.b32.xlu0 %v406, 125
  %v457 = vpop.permute.xlu0 %456
  %458 = vrot.lane.b32.xlu0 %v407, 125
  %v459 = vpop.permute.xlu0 %458
  %460 = vrot.lane.b32.xlu0 %v408, 125
  %v461 = vpop.permute.xlu0 %460
  %462 = vrot.lane.b32.xlu0 %v409, 125
  %v463 = vpop.permute.xlu0 %462
  %464 = vrot.lane.b32.xlu0 %v410, 125
  %v465 = vpop.permute.xlu0 %464
  %466 = vrot.lane.b32.xlu0 %v411, 125
  %v467 = vpop.permute.xlu0 %466
  %468 = vrot.lane.b32.xlu0 %v412, 125
  %v469 = vpop.permute.xlu0 %468
  %470 = vrot.lane.b32.xlu0 %v413, 125
  %v471 = vpop.permute.xlu0 %470
  %472 = vrot.lane.b32.xlu0 %v414, 125
  %v473 = vpop.permute.xlu0 %472
  %474 = vrot.lane.b32.xlu0 %v415, 125
  %v475 = vpop.permute.xlu0 %474
  %476 = vrot.lane.b32.xlu0 %v416, 125
  %v477 = vpop.permute.xlu0 %476
  %478 = vrot.lane.b32.xlu0 %v417, 125
  %v479 = vpop.permute.xlu0 %478
  %480 = vrot.lane.b32.xlu0 %v418, 125
  %v481 = vpop.permute.xlu0 %480
  %482 = vrot.lane.b32.xlu0 %v419, 125
  %v483 = vpop.permute.xlu0 %482
  %484 = vrot.lane.b32.xlu0 %v420, 125
  %v485 = vpop.permute.xlu0 %484
  %486 = vrot.lane.b32.xlu0 %v421, 125
  %v487 = vpop.permute.xlu0 %486
  %488 = vrot.lane.b32.xlu0 %v422, 125
  %v489 = vpop.permute.xlu0 %488
  %490 = vrot.lane.b32.xlu0 %v423, 125
  %v491 = vpop.permute.xlu0 %490
  %492 = vrot.lane.b32.xlu0 %v424, 125
  %v493 = vpop.permute.xlu0 %492
  %494 = vrot.lane.b32.xlu0 %v425, 125
  %v495 = vpop.permute.xlu0 %494
  %496 = vrot.lane.b32.xlu0 %v426, 125
  %v497 = vpop.permute.xlu0 %496
  %498 = vrot.lane.b32.xlu0 %v427, 125
  %v499 = vpop.permute.xlu0 %498
  %vm500 = vcmask 1022976
  %v501 = vsel %vm500, %v453, %v455
  %v502 = vsel %vm500, %v455, %v457
  %v503 = vsel %vm500, %v457, %v459
  %v504 = vsel %vm500, %v459, %v461
  %v505 = vsel %vm500, %v461, %v463
  %v506 = vsel %vm500, %v463, %v465
  %v507 = vsel %vm500, %v465, %v467
  %v508 = vsel %vm500, %v469, %v471
  %v509 = vsel %vm500, %v471, %v473
  %v510 = vsel %vm500, %v473, %v475
  %v511 = vsel %vm500, %v475, %v477
  %v512 = vsel %vm500, %v477, %v479
  %v513 = vsel %vm500, %v479, %v481
  %v514 = vsel %vm500, %v481, %v483
  %v515 = vsel %vm500, %v485, %v487
  %v516 = vsel %vm500, %v487, %v489
  %v517 = vsel %vm500, %v489, %v491
  %v518 = vsel %vm500, %v491, %v493
  %v519 = vsel %vm500, %v493, %v495
  %v520 = vsel %vm500, %v495, %v497
  %v521 = vsel %vm500, %v497, %v499
  %543 = vst [vmem:[#allocation2 + $0x1f8] sm:$0xff] %v501
  %544 = vst [vmem:[#allocation2 + $0x200] sm:$0xff] %v502
  %545 = vst [vmem:[#allocation2 + $0x208] sm:$0xff] %v503
  %546 = vst [vmem:[#allocation2 + $0x210] sm:$0xff] %v504
  %547 = vst [vmem:[#allocation2 + $0x218] sm:$0xff] %v505
  %548 = vst [vmem:[#allocation2 + $0x220] sm:$0xff] %v506
  %549 = vst [vmem:[#allocation2 + $0x228] sm:$0xff] %v507
  %550 = vst [vmem:[#allocation2 + $0x230] sm:$0xff] %v508
  %551 = vst [vmem:[#allocation2 + $0x238] sm:$0xff] %v509
  %552 = vst [vmem:[#allocation2 + $0x240] sm:$0xff] %v510
  %553 = vst [vmem:[#allocation2 + $0x248] sm:$0xff] %v511
  %554 = vst [vmem:[#allocation2 + $0x250] sm:$0xff] %v512
  %555 = vst [vmem:[#allocation2 + $0x258] sm:$0xff] %v513
  %556 = vst [vmem:[#allocation2 + $0x260] sm:$0xff] %v514
  %557 = vst [vmem:[#allocation2 + $0x268] sm:$0xff] %v515
  %558 = vst [vmem:[#allocation2 + $0x270] sm:$0xff] %v516
  %559 = vst [vmem:[#allocation2 + $0x278] sm:$0xff] %v517
  %560 = vst [vmem:[#allocation2 + $0x280] sm:$0xff] %v518
  %561 = vst [vmem:[#allocation2 + $0x288] sm:$0xff] %v519
  %562 = vst [vmem:[#allocation2 + $0x290] sm:$0xff] %v520
  %563 = vst [vmem:[#allocation2 + $0x298] sm:$0xff] %v521
  %v564 = vld [vmem:[%s0] sm:$0xff]
  %v565 = vld [vmem:[%s0 + $0x8] sm:$0xff]
  %v566 = vld [vmem:[%s0 + $0x10] sm:$0xff]
  %v567 = vld [vmem:[%s0 + $0x18] sm:$0xff]
  %v568 = vld [vmem:[%s0 + $0x20] sm:$0xff]
  %v569 = vld [vmem:[%s0 + $0x28] sm:$0xff]
  %v570 = vld [vmem:[%s0 + $0x30] sm:$0xff]
  %v571 = vld [vmem:[%s0 + $0x38] sm:$0xff]
  %v572 = vld [vmem:[%s0 + $0x48] sm:$0xff]
  %v573 = vld [vmem:[%s0 + $0x50] sm:$0xff]
  %v574 = vld [vmem:[%s0 + $0x58] sm:$0xff]
  %v575 = vld [vmem:[%s0 + $0x60] sm:$0xff]
  %v576 = vld [vmem:[%s0 + $0x68] sm:$0xff]
  %v577 = vld [vmem:[%s0 + $0x70] sm:$0xff]
  %v578 = vld [vmem:[%s0 + $0x78] sm:$0xff]
  %v579 = vld [vmem:[%s0 + $0x80] sm:$0xff]
  %v580 = vld [vmem:[%s0 + $0x90] sm:$0xff]
  %v581 = vld [vmem:[%s0 + $0x98] sm:$0xff]
  %v582 = vld [vmem:[%s0 + $0xa0] sm:$0xff]
  %v583 = vld [vmem:[%s0 + $0xa8] sm:$0xff]
  %v584 = vld [vmem:[%s0 + $0xb0] sm:$0xff]
  %v585 = vld [vmem:[%s0 + $0xb8] sm:$0xff]
  %v586 = vld [vmem:[%s0 + $0xc0] sm:$0xff]
  %v587 = vld [vmem:[%s0 + $0xc8] sm:$0xff]
  %612 = vrot.lane.b32.xlu0 %v564, 124
  %v613 = vpop.permute.xlu0 %612
  %614 = vrot.lane.b32.xlu0 %v565, 124
  %v615 = vpop.permute.xlu0 %614
  %616 = vrot.lane.b32.xlu0 %v566, 124
  %v617 = vpop.permute.xlu0 %616
  %618 = vrot.lane.b32.xlu0 %v567, 124
  %v619 = vpop.permute.xlu0 %618
  %620 = vrot.lane.b32.xlu0 %v568, 124
  %v621 = vpop.permute.xlu0 %620
  %622 = vrot.lane.b32.xlu0 %v569, 124
  %v623 = vpop.permute.xlu0 %622
  %624 = vrot.lane.b32.xlu0 %v570, 124
  %v625 = vpop.permute.xlu0 %624
  %626 = vrot.lane.b32.xlu0 %v571, 124
  %v627 = vpop.permute.xlu0 %626
  %628 = vrot.lane.b32.xlu0 %v572, 124
  %v629 = vpop.permute.xlu0 %628
  %630 = vrot.lane.b32.xlu0 %v573, 124
  %v631 = vpop.permute.xlu0 %630
  %632 = vrot.lane.b32.xlu0 %v574, 124
  %v633 = vpop.permute.xlu0 %632
  %634 = vrot.lane.b32.xlu0 %v575, 124
  %v635 = vpop.permute.xlu0 %634
  %636 = vrot.lane.b32.xlu0 %v576, 124
  %v637 = vpop.permute.xlu0 %636
  %638 = vrot.lane.b32.xlu0 %v577, 124
  %v639 = vpop.permute.xlu0 %638
  %640 = vrot.lane.b32.xlu0 %v578, 124
  %v641 = vpop.permute.xlu0 %640
  %642 = vrot.lane.b32.xlu0 %v579, 124
  %v643 = vpop.permute.xlu0 %642
  %644 = vrot.lane.b32.xlu0 %v580, 124
  %v645 = vpop.permute.xlu0 %644
  %646 = vrot.lane.b32.xlu0 %v581, 124
  %v647 = vpop.permute.xlu0 %646
  %648 = vrot.lane.b32.xlu0 %v582, 124
  %v649 = vpop.permute.xlu0 %648
  %650 = vrot.lane.b32.xlu0 %v583, 124
  %v651 = vpop.permute.xlu0 %650
  %652 = vrot.lane.b32.xlu0 %v584, 124
  %v653 = vpop.permute.xlu0 %652
  %654 = vrot.lane.b32.xlu0 %v585, 124
  %v655 = vpop.permute.xlu0 %654
  %656 = vrot.lane.b32.xlu0 %v586, 124
  %v657 = vpop.permute.xlu0 %656
  %658 = vrot.lane.b32.xlu0 %v587, 124
  %v659 = vpop.permute.xlu0 %658
  %vm660 = vcmask 1014784
  %v661 = vsel %vm660, %v613, %v615
  %v662 = vsel %vm660, %v615, %v617
  %v663 = vsel %vm660, %v617, %v619
  %v664 = vsel %vm660, %v619, %v621
  %v665 = vsel %vm660, %v621, %v623
  %v666 = vsel %vm660, %v623, %v625
  %v667 = vsel %vm660, %v625, %v627
  %v668 = vsel %vm660, %v629, %v631
  %v669 = vsel %vm660, %v631, %v633
  %v670 = vsel %vm660, %v633, %v635
  %v671 = vsel %vm660, %v635, %v637
  %v672 = vsel %vm660, %v637, %v639
  %v673 = vsel %vm660, %v639, %v641
  %v674 = vsel %vm660, %v641, %v643
  %v675 = vsel %vm660, %v645, %v647
  %v676 = vsel %vm660, %v647, %v649
  %v677 = vsel %vm660, %v649, %v651
  %v678 = vsel %vm660, %v651, %v653
  %v679 = vsel %vm660, %v653, %v655
  %v680 = vsel %vm660, %v655, %v657
  %v681 = vsel %vm660, %v657, %v659
  %703 = vst [vmem:[#allocation2 + $0x2a0] sm:$0xff] %v661
  %704 = vst [vmem:[#allocation2 + $0x2a8] sm:$0xff] %v662
  %705 = vst [vmem:[#allocation2 + $0x2b0] sm:$0xff] %v663
  %706 = vst [vmem:[#allocation2 + $0x2b8] sm:$0xff] %v664
  %707 = vst [vmem:[#allocation2 + $0x2c0] sm:$0xff] %v665
  %708 = vst [vmem:[#allocation2 + $0x2c8] sm:$0xff] %v666
  %709 = vst [vmem:[#allocation2 + $0x2d0] sm:$0xff] %v667
  %710 = vst [vmem:[#allocation2 + $0x2d8] sm:$0xff] %v668
  %711 = vst [vmem:[#allocation2 + $0x2e0] sm:$0xff] %v669
  %712 = vst [vmem:[#allocation2 + $0x2e8] sm:$0xff] %v670
  %713 = vst [vmem:[#allocation2 + $0x2f0] sm:$0xff] %v671
  %714 = vst [vmem:[#allocation2 + $0x2f8] sm:$0xff] %v672
  %715 = vst [vmem:[#allocation2 + $0x300] sm:$0xff] %v673
  %716 = vst [vmem:[#allocation2 + $0x308] sm:$0xff] %v674
  %717 = vst [vmem:[#allocation2 + $0x310] sm:$0xff] %v675
  %718 = vst [vmem:[#allocation2 + $0x318] sm:$0xff] %v676
  %719 = vst [vmem:[#allocation2 + $0x320] sm:$0xff] %v677
  %720 = vst [vmem:[#allocation2 + $0x328] sm:$0xff] %v678
  %721 = vst [vmem:[#allocation2 + $0x330] sm:$0xff] %v679
  %722 = vst [vmem:[#allocation2 + $0x338] sm:$0xff] %v680
  %723 = vst [vmem:[#allocation2 + $0x340] sm:$0xff] %v681
  %v724 = vld [vmem:[%s0] sm:$0xff]
  %v725 = vld [vmem:[%s0 + $0x8] sm:$0xff]
  %v726 = vld [vmem:[%s0 + $0x10] sm:$0xff]
  %v727 = vld [vmem:[%s0 + $0x18] sm:$0xff]
  %v728 = vld [vmem:[%s0 + $0x20] sm:$0xff]
  %v729 = vld [vmem:[%s0 + $0x28] sm:$0xff]
  %v730 = vld [vmem:[%s0 + $0x30] sm:$0xff]
  %v731 = vld [vmem:[%s0 + $0x38] sm:$0xff]
  %v732 = vld [vmem:[%s0 + $0x48] sm:$0xff]
  %v733 = vld [vmem:[%s0 + $0x50] sm:$0xff]
  %v734 = vld [vmem:[%s0 + $0x58] sm:$0xff]
  %v735 = vld [vmem:[%s0 + $0x60] sm:$0xff]
  %v736 = vld [vmem:[%s0 + $0x68] sm:$0xff]
  %v737 = vld [vmem:[%s0 + $0x70] sm:$0xff]
  %v738 = vld [vmem:[%s0 + $0x78] sm:$0xff]
  %v739 = vld [vmem:[%s0 + $0x80] sm:$0xff]
  %v740 = vld [vmem:[%s0 + $0x90] sm:$0xff]
  %v741 = vld [vmem:[%s0 + $0x98] sm:$0xff]
  %v742 = vld [vmem:[%s0 + $0xa0] sm:$0xff]
  %v743 = vld [vmem:[%s0 + $0xa8] sm:$0xff]
  %v744 = vld [vmem:[%s0 + $0xb0] sm:$0xff]
  %v745 = vld [vmem:[%s0 + $0xb8] sm:$0xff]
  %v746 = vld [vmem:[%s0 + $0xc0] sm:$0xff]
  %v747 = vld [vmem:[%s0 + $0xc8] sm:$0xff]
  %772 = vrot.lane.b32.xlu0 %v724, 96
  %v773 = vpop.permute.xlu0 %772
  %774 = vrot.lane.b32.xlu0 %v725, 96
  %v775 = vpop.permute.xlu0 %774
  %776 = vrot.lane.b32.xlu0 %v726, 96
  %v777 = vpop.permute.xlu0 %776
  %778 = vrot.lane.b32.xlu0 %v727, 96
  %v779 = vpop.permute.xlu0 %778
  %780 = vrot.lane.b32.xlu0 %v728, 96
  %v781 = vpop.permute.xlu0 %780
  %782 = vrot.lane.b32.xlu0 %v729, 96
  %v783 = vpop.permute.xlu0 %782
  %784 = vrot.lane.b32.xlu0 %v730, 96
  %v785 = vpop.permute.xlu0 %784
  %786 = vrot.lane.b32.xlu0 %v731, 96
  %v787 = vpop.permute.xlu0 %786
  %788 = vrot.lane.b32.xlu0 %v732, 96
  %v789 = vpop.permute.xlu0 %788
  %790 = vrot.lane.b32.xlu0 %v733, 96
  %v791 = vpop.permute.xlu0 %790
  %792 = vrot.lane.b32.xlu0 %v734, 96
  %v793 = vpop.permute.xlu0 %792
  %794 = vrot.lane.b32.xlu0 %v735, 96
  %v795 = vpop.permute.xlu0 %794
  %796 = vrot.lane.b32.xlu0 %v736, 96
  %v797 = vpop.permute.xlu0 %796
  %798 = vrot.lane.b32.xlu0 %v737, 96
  %v799 = vpop.permute.xlu0 %798
  %800 = vrot.lane.b32.xlu0 %v738, 96
  %v801 = vpop.permute.xlu0 %800
  %802 = vrot.lane.b32.xlu0 %v739, 96
  %v803 = vpop.permute.xlu0 %802
  %804 = vrot.lane.b32.xlu0 %v740, 96
  %v805 = vpop.permute.xlu0 %804
  %806 = vrot.lane.b32.xlu0 %v741, 96
  %v807 = vpop.permute.xlu0 %806
  %808 = vrot.lane.b32.xlu0 %v742, 96
  %v809 = vpop.permute.xlu0 %808
  %810 = vrot.lane.b32.xlu0 %v743, 96
  %v811 = vpop.permute.xlu0 %810
  %812 = vrot.lane.b32.xlu0 %v744, 96
  %v813 = vpop.permute.xlu0 %812
  %814 = vrot.lane.b32.xlu0 %v745, 96
  %v815 = vpop.permute.xlu0 %814
  %816 = vrot.lane.b32.xlu0 %v746, 96
  %v817 = vpop.permute.xlu0 %816
  %818 = vrot.lane.b32.xlu0 %v747, 96
  %v819 = vpop.permute.xlu0 %818
  %vm820 = vcmask 785408
  %v821 = vsel %vm820, %v773, %v775
  %v822 = vsel %vm820, %v775, %v777
  %v823 = vsel %vm820, %v777, %v779
  %v824 = vsel %vm820, %v779, %v781
  %v825 = vsel %vm820, %v781, %v783
  %v826 = vsel %vm820, %v783, %v785
  %v827 = vsel %vm820, %v785, %v787
  %v828 = vsel %vm820, %v789, %v791
  %v829 = vsel %vm820, %v791, %v793
  %v830 = vsel %vm820, %v793, %v795
  %v831 = vsel %vm820, %v795, %v797
  %v832 = vsel %vm820, %v797, %v799
  %v833 = vsel %vm820, %v799, %v801
  %v834 = vsel %vm820, %v801, %v803
  %v835 = vsel %vm820, %v805, %v807
  %v836 = vsel %vm820, %v807, %v809
  %v837 = vsel %vm820, %v809, %v811
  %v838 = vsel %vm820, %v811, %v813
  %v839 = vsel %vm820, %v813, %v815
  %v840 = vsel %vm820, %v815, %v817
  %v841 = vsel %vm820, %v817, %v819
  %863 = vst [vmem:[#allocation2 + $0x348] sm:$0xff] %v821
  %864 = vst [vmem:[#allocation2 + $0x350] sm:$0xff] %v822
  %865 = vst [vmem:[#allocation2 + $0x358] sm:$0xff] %v823
  %866 = vst [vmem:[#allocation2 + $0x360] sm:$0xff] %v824
  %867 = vst [vmem:[#allocation2 + $0x368] sm:$0xff] %v825
  %868 = vst [vmem:[#allocation2 + $0x370] sm:$0xff] %v826
  %869 = vst [vmem:[#allocation2 + $0x378] sm:$0xff] %v827
  %870 = vst [vmem:[#allocation2 + $0x380] sm:$0xff] %v828
  %871 = vst [vmem:[#allocation2 + $0x388] sm:$0xff] %v829
  %872 = vst [vmem:[#allocation2 + $0x390] sm:$0xff] %v830
  %873 = vst [vmem:[#allocation2 + $0x398] sm:$0xff] %v831
  %874 = vst [vmem:[#allocation2 + $0x3a0] sm:$0xff] %v832
  %875 = vst [vmem:[#allocation2 + $0x3a8] sm:$0xff] %v833
  %876 = vst [vmem:[#allocation2 + $0x3b0] sm:$0xff] %v834
  %877 = vst [vmem:[#allocation2 + $0x3b8] sm:$0xff] %v835
  %878 = vst [vmem:[#allocation2 + $0x3c0] sm:$0xff] %v836
  %879 = vst [vmem:[#allocation2 + $0x3c8] sm:$0xff] %v837
  %880 = vst [vmem:[#allocation2 + $0x3d0] sm:$0xff] %v838
  %881 = vst [vmem:[#allocation2 + $0x3d8] sm:$0xff] %v839
  %882 = vst [vmem:[#allocation2 + $0x3e0] sm:$0xff] %v840
  %883 = vst [vmem:[#allocation2 + $0x3e8] sm:$0xff] %v841
  %v884 = vld [vmem:[%s0] sm:$0xff]
  %v885 = vld [vmem:[%s0 + $0x8] sm:$0xff]
  %v886 = vld [vmem:[%s0 + $0x10] sm:$0xff]
  %v887 = vld [vmem:[%s0 + $0x18] sm:$0xff]
  %v888 = vld [vmem:[%s0 + $0x20] sm:$0xff]
  %v889 = vld [vmem:[%s0 + $0x28] sm:$0xff]
  %v890 = vld [vmem:[%s0 + $0x30] sm:$0xff]
  %v891 = vld [vmem:[%s0 + $0x38] sm:$0xff]
  %v892 = vld [vmem:[%s0 + $0x48] sm:$0xff]
  %v893 = vld [vmem:[%s0 + $0x50] sm:$0xff]
  %v894 = vld [vmem:[%s0 + $0x58] sm:$0xff]
  %v895 = vld [vmem:[%s0 + $0x60] sm:$0xff]
  %v896 = vld [vmem:[%s0 + $0x68] sm:$0xff]
  %v897 = vld [vmem:[%s0 + $0x70] sm:$0xff]
  %v898 = vld [vmem:[%s0 + $0x78] sm:$0xff]
  %v899 = vld [vmem:[%s0 + $0x80] sm:$0xff]
  %v900 = vld [vmem:[%s0 + $0x90] sm:$0xff]
  %v901 = vld [vmem:[%s0 + $0x98] sm:$0xff]
  %v902 = vld [vmem:[%s0 + $0xa0] sm:$0xff]
  %v903 = vld [vmem:[%s0 + $0xa8] sm:$0xff]
  %v904 = vld [vmem:[%s0 + $0xb0] sm:$0xff]
  %v905 = vld [vmem:[%s0 + $0xb8] sm:$0xff]
  %v906 = vld [vmem:[%s0 + $0xc0] sm:$0xff]
  %v907 = vld [vmem:[%s0 + $0xc8] sm:$0xff]
  %932 = vrot.lane.b32.xlu0 %v884, 95
  %v933 = vpop.permute.xlu0 %932
  %934 = vrot.lane.b32.xlu0 %v885, 95
  %v935 = vpop.permute.xlu0 %934
  %936 = vrot.lane.b32.xlu0 %v886, 95
  %v937 = vpop.permute.xlu0 %936
  %938 = vrot.lane.b32.xlu0 %v887, 95
  %v939 = vpop.permute.xlu0 %938
  %940 = vrot.lane.b32.xlu0 %v888, 95
  %v941 = vpop.permute.xlu0 %940
  %942 = vrot.lane.b32.xlu0 %v889, 95
  %v943 = vpop.permute.xlu0 %942
  %944 = vrot.lane.b32.xlu0 %v890, 95
  %v945 = vpop.permute.xlu0 %944
  %946 = vrot.lane.b32.xlu0 %v891, 95
  %v947 = vpop.permute.xlu0 %946
  %948 = vrot.lane.b32.xlu0 %v892, 95
  %v949 = vpop.permute.xlu0 %948
  %950 = vrot.lane.b32.xlu0 %v893, 95
  %v951 = vpop.permute.xlu0 %950
  %952 = vrot.lane.b32.xlu0 %v894, 95
  %v953 = vpop.permute.xlu0 %952
  %954 = vrot.lane.b32.xlu0 %v895, 95
  %v955 = vpop.permute.xlu0 %954
  %956 = vrot.lane.b32.xlu0 %v896, 95
  %v957 = vpop.permute.xlu0 %956
  %958 = vrot.lane.b32.xlu0 %v897, 95
  %v959 = vpop.permute.xlu0 %958
  %960 = vrot.lane.b32.xlu0 %v898, 95
  %v961 = vpop.permute.xlu0 %960
  %962 = vrot.lane.b32.xlu0 %v899, 95
  %v963 = vpop.permute.xlu0 %962
  %964 = vrot.lane.b32.xlu0 %v900, 95
  %v965 = vpop.permute.xlu0 %964
  %966 = vrot.lane.b32.xlu0 %v901, 95
  %v967 = vpop.permute.xlu0 %966
  %968 = vrot.lane.b32.xlu0 %v902, 95
  %v969 = vpop.permute.xlu0 %968
  %970 = vrot.lane.b32.xlu0 %v903, 95
  %v971 = vpop.permute.xlu0 %970
  %972 = vrot.lane.b32.xlu0 %v904, 95
  %v973 = vpop.permute.xlu0 %972
  %974 = vrot.lane.b32.xlu0 %v905, 95
  %v975 = vpop.permute.xlu0 %974
  %976 = vrot.lane.b32.xlu0 %v906, 95
  %v977 = vpop.permute.xlu0 %976
  %978 = vrot.lane.b32.xlu0 %v907, 95
  %v979 = vpop.permute.xlu0 %978
  %vm980 = vcmask 777216
  %v981 = vsel %vm980, %v933, %v935
  %v982 = vsel %vm980, %v935, %v937
  %v983 = vsel %vm980, %v937, %v939
  %v984 = vsel %vm980, %v939, %v941
  %v985 = vsel %vm980, %v941, %v943
  %v986 = vsel %vm980, %v943, %v945
  %v987 = vsel %vm980, %v945, %v947
  %v988 = vsel %vm980, %v949, %v951
  %v989 = vsel %vm980, %v951, %v953
  %v990 = vsel %vm980, %v953, %v955
  %v991 = vsel %vm980, %v955, %v957
  %v992 = vsel %vm980, %v957, %v959
  %v993 = vsel %vm980, %v959, %v961
  %v994 = vsel %vm980, %v961, %v963
  %v995 = vsel %vm980, %v965, %v967
  %v996 = vsel %vm980, %v967, %v969
  %v997 = vsel %vm980, %v969, %v971
  %v998 = vsel %vm980, %v971, %v973
  %v999 = vsel %vm980, %v973, %v975
  %v1000 = vsel %vm980, %v975, %v977
  %v1001 = vsel %vm980, %v977, %v979
  %1023 = vst [vmem:[#allocation2 + $0x3f0] sm:$0xff] %v981
  %1024 = vst [vmem:[#allocation2 + $0x3f8] sm:$0xff] %v982
  %1025 = vst [vmem:[#allocation2 + $0x400] sm:$0xff] %v983
  %1026 = vst [vmem:[#allocation2 + $0x408] sm:$0xff] %v984
  %1027 = vst [vmem:[#allocation2 + $0x410] sm:$0xff] %v985
  %1028 = vst [vmem:[#allocation2 + $0x418] sm:$0xff] %v986
  %1029 = vst [vmem:[#allocation2 + $0x420] sm:$0xff] %v987
  %1030 = vst [vmem:[#allocation2 + $0x428] sm:$0xff] %v988
  %1031 = vst [vmem:[#allocation2 + $0x430] sm:$0xff] %v989
  %1032 = vst [vmem:[#allocation2 + $0x438] sm:$0xff] %v990
  %1033 = vst [vmem:[#allocation2 + $0x440] sm:$0xff] %v991
  %1034 = vst [vmem:[#allocation2 + $0x448] sm:$0xff] %v992
  %1035 = vst [vmem:[#allocation2 + $0x450] sm:$0xff] %v993
  %1036 = vst [vmem:[#allocation2 + $0x458] sm:$0xff] %v994
  %1037 = vst [vmem:[#allocation2 + $0x460] sm:$0xff] %v995
  %1038 = vst [vmem:[#allocation2 + $0x468] sm:$0xff] %v996
  %1039 = vst [vmem:[#allocation2 + $0x470] sm:$0xff] %v997
  %1040 = vst [vmem:[#allocation2 + $0x478] sm:$0xff] %v998
  %1041 = vst [vmem:[#allocation2 + $0x480] sm:$0xff] %v999
  %1042 = vst [vmem:[#allocation2 + $0x488] sm:$0xff] %v1000
  %1043 = vst [vmem:[#allocation2 + $0x490] sm:$0xff] %v1001
  %v1044 = vld [vmem:[%s0] sm:$0xff]
  %v1045 = vld [vmem:[%s0 + $0x8] sm:$0xff]
  %v1046 = vld [vmem:[%s0 + $0x10] sm:$0xff]
  %v1047 = vld [vmem:[%s0 + $0x18] sm:$0xff]
  %v1048 = vld [vmem:[%s0 + $0x20] sm:$0xff]
  %v1049 = vld [vmem:[%s0 + $0x28] sm:$0xff]
  %v1050 = vld [vmem:[%s0 + $0x30] sm:$0xff]
  %v1051 = vld [vmem:[%s0 + $0x38] sm:$0xff]
  %v1052 = vld [vmem:[%s0 + $0x48] sm:$0xff]
  %v1053 = vld [vmem:[%s0 + $0x50] sm:$0xff]
  %v1054 = vld [vmem:[%s0 + $0x58] sm:$0xff]
  %v1055 = vld [vmem:[%s0 + $0x60] sm:$0xff]
  %v1056 = vld [vmem:[%s0 + $0x68] sm:$0xff]
  %v1057 = vld [vmem:[%s0 + $0x70] sm:$0xff]
  %v1058 = vld [vmem:[%s0 + $0x78] sm:$0xff]
  %v1059 = vld [vmem:[%s0 + $0x80] sm:$0xff]
  %v1060 = vld [vmem:[%s0 + $0x90] sm:$0xff]
  %v1061 = vld [vmem:[%s0 + $0x98] sm:$0xff]
  %v1062 = vld [vmem:[%s0 + $0xa0] sm:$0xff]
  %v1063 = vld [vmem:[%s0 + $0xa8] sm:$0xff]
  %v1064 = vld [vmem:[%s0 + $0xb0] sm:$0xff]
  %v1065 = vld [vmem:[%s0 + $0xb8] sm:$0xff]
  %v1066 = vld [vmem:[%s0 + $0xc0] sm:$0xff]
  %v1067 = vld [vmem:[%s0 + $0xc8] sm:$0xff]
  %1092 = vrot.lane.b32.xlu0 %v1044, 94
  %v1093 = vpop.permute.xlu0 %1092
  %1094 = vrot.lane.b32.xlu0 %v1045, 94
  %v1095 = vpop.permute.xlu0 %1094
  %1096 = vrot.lane.b32.xlu0 %v1046, 94
  %v1097 = vpop.permute.xlu0 %1096
  %1098 = vrot.lane.b32.xlu0 %v1047, 94
  %v1099 = vpop.permute.xlu0 %1098
  %1100 = vrot.lane.b32.xlu0 %v1048, 94
  %v1101 = vpop.permute.xlu0 %1100
  %1102 = vrot.lane.b32.xlu0 %v1049, 94
  %v1103 = vpop.permute.xlu0 %1102
  %1104 = vrot.lane.b32.xlu0 %v1050, 94
  %v1105 = vpop.permute.xlu0 %1104
  %1106 = vrot.lane.b32.xlu0 %v1051, 94
  %v1107 = vpop.permute.xlu0 %1106
  %1108 = vrot.lane.b32.xlu0 %v1052, 94
  %v1109 = vpop.permute.xlu0 %1108
  %1110 = vrot.lane.b32.xlu0 %v1053, 94
  %v1111 = vpop.permute.xlu0 %1110
  %1112 = vrot.lane.b32.xlu0 %v1054, 94
  %v1113 = vpop.permute.xlu0 %1112
  %1114 = vrot.lane.b32.xlu0 %v1055, 94
  %v1115 = vpop.permute.xlu0 %1114
  %1116 = vrot.lane.b32.xlu0 %v1056, 94
  %v1117 = vpop.permute.xlu0 %1116
  %1118 = vrot.lane.b32.xlu0 %v1057, 94
  %v1119 = vpop.permute.xlu0 %1118
  %1120 = vrot.lane.b32.xlu0 %v1058, 94
  %v1121 = vpop.permute.xlu0 %1120
  %1122 = vrot.lane.b32.xlu0 %v1059, 94
  %v1123 = vpop.permute.xlu0 %1122
  %1124 = vrot.lane.b32.xlu0 %v1060, 94
  %v1125 = vpop.permute.xlu0 %1124
  %1126 = vrot.lane.b32.xlu0 %v1061, 94
  %v1127 = vpop.permute.xlu0 %1126
  %1128 = vrot.lane.b32.xlu0 %v1062, 94
  %v1129 = vpop.permute.xlu0 %1128
  %1130 = vrot.lane.b32.xlu0 %v1063, 94
  %v1131 = vpop.permute.xlu0 %1130
  %1132 = vrot.lane.b32.xlu0 %v1064, 94
  %v1133 = vpop.permute.xlu0 %1132
  %1134 = vrot.lane.b32.xlu0 %v1065, 94
  %v1135 = vpop.permute.xlu0 %1134
  %1136 = vrot.lane.b32.xlu0 %v1066, 94
  %v1137 = vpop.permute.xlu0 %1136
  %1138 = vrot.lane.b32.xlu0 %v1067, 94
  %v1139 = vpop.permute.xlu0 %1138
  %vm1140 = vcmask 769024
  %v1141 = vsel %vm1140, %v1093, %v1095
  %v1142 = vsel %vm1140, %v1095, %v1097
  %v1143 = vsel %vm1140, %v1097, %v1099
  %v1144 = vsel %vm1140, %v1099, %v1101
  %v1145 = vsel %vm1140, %v1101, %v1103
  %v1146 = vsel %vm1140, %v1103, %v1105
  %v1147 = vsel %vm1140, %v1105, %v1107
  %v1148 = vsel %vm1140, %v1109, %v1111
  %v1149 = vsel %vm1140, %v1111, %v1113
  %v1150 = vsel %vm1140, %v1113, %v1115
  %v1151 = vsel %vm1140, %v1115, %v1117
  %v1152 = vsel %vm1140, %v1117, %v1119
  %v1153 = vsel %vm1140, %v1119, %v1121
  %v1154 = vsel %vm1140, %v1121, %v1123
  %v1155 = vsel %vm1140, %v1125, %v1127
  %v1156 = vsel %vm1140, %v1127, %v1129
  %v1157 = vsel %vm1140, %v1129, %v1131
  %v1158 = vsel %vm1140, %v1131, %v1133
  %v1159 = vsel %vm1140, %v1133, %v1135
  %v1160 = vsel %vm1140, %v1135, %v1137
  %v1161 = vsel %vm1140, %v1137, %v1139
  %1183 = vst [vmem:[#allocation2 + $0x498] sm:$0xff] %v1141
  %1184 = vst [vmem:[#allocation2 + $0x4a0] sm:$0xff] %v1142
  %1185 = vst [vmem:[#allocation2 + $0x4a8] sm:$0xff] %v1143
  %1186 = vst [vmem:[#allocation2 + $0x4b0] sm:$0xff] %v1144
  %1187 = vst [vmem:[#allocation2 + $0x4b8] sm:$0xff] %v1145
  %1188 = vst [vmem:[#allocation2 + $0x4c0] sm:$0xff] %v1146
  %1189 = vst [vmem:[#allocation2 + $0x4c8] sm:$0xff] %v1147
  %1190 = vst [vmem:[#allocation2 + $0x4d0] sm:$0xff] %v1148
  %1191 = vst [vmem:[#allocation2 + $0x4d8] sm:$0xff] %v1149
  %1192 = vst [vmem:[#allocation2 + $0x4e0] sm:$0xff] %v1150
  %1193 = vst [vmem:[#allocation2 + $0x4e8] sm:$0xff] %v1151
  %1194 = vst [vmem:[#allocation2 + $0x4f0] sm:$0xff] %v1152
  %1195 = vst [vmem:[#allocation2 + $0x4f8] sm:$0xff] %v1153
  %1196 = vst [vmem:[#allocation2 + $0x500] sm:$0xff] %v1154
  %1197 = vst [vmem:[#allocation2 + $0x508] sm:$0xff] %v1155
  %1198 = vst [vmem:[#allocation2 + $0x510] sm:$0xff] %v1156
  %1199 = vst [vmem:[#allocation2 + $0x518] sm:$0xff] %v1157
  %1200 = vst [vmem:[#allocation2 + $0x520] sm:$0xff] %v1158
  %1201 = vst [vmem:[#allocation2 + $0x528] sm:$0xff] %v1159
  %1202 = vst [vmem:[#allocation2 + $0x530] sm:$0xff] %v1160
  %1203 = vst [vmem:[#allocation2 + $0x538] sm:$0xff] %v1161
  %v1204 = vld [vmem:[%s0] sm:$0xff]
  %v1205 = vld [vmem:[%s0 + $0x8] sm:$0xff]
  %v1206 = vld [vmem:[%s0 + $0x10] sm:$0xff]
  %v1207 = vld [vmem:[%s0 + $0x18] sm:$0xff]
  %v1208 = vld [vmem:[%s0 + $0x20] sm:$0xff]
  %v1209 = vld [vmem:[%s0 + $0x28] sm:$0xff]
  %v1210 = vld [vmem:[%s0 + $0x30] sm:$0xff]
  %v1211 = vld [vmem:[%s0 + $0x38] sm:$0xff]
  %v1212 = vld [vmem:[%s0 + $0x48] sm:$0xff]
  %v1213 = vld [vmem:[%s0 + $0x50] sm:$0xff]
  %v1214 = vld [vmem:[%s0 + $0x58] sm:$0xff]
  %v1215 = vld [vmem:[%s0 + $0x60] sm:$0xff]
  %v1216 = vld [vmem:[%s0 + $0x68] sm:$0xff]
  %v1217 = vld [vmem:[%s0 + $0x70] sm:$0xff]
  %v1218 = vld [vmem:[%s0 + $0x78] sm:$0xff]
  %v1219 = vld [vmem:[%s0 + $0x80] sm:$0xff]
  %v1220 = vld [vmem:[%s0 + $0x90] sm:$0xff]
  %v1221 = vld [vmem:[%s0 + $0x98] sm:$0xff]
  %v1222 = vld [vmem:[%s0 + $0xa0] sm:$0xff]
  %v1223 = vld [vmem:[%s0 + $0xa8] sm:$0xff]
  %v1224 = vld [vmem:[%s0 + $0xb0] sm:$0xff]
  %v1225 = vld [vmem:[%s0 + $0xb8] sm:$0xff]
  %v1226 = vld [vmem:[%s0 + $0xc0] sm:$0xff]
  %v1227 = vld [vmem:[%s0 + $0xc8] sm:$0xff]
  %1252 = vrot.lane.b32.xlu0 %v1204, 93
  %v1253 = vpop.permute.xlu0 %1252
  %1254 = vrot.lane.b32.xlu0 %v1205, 93
  %v1255 = vpop.permute.xlu0 %1254
  %1256 = vrot.lane.b32.xlu0 %v1206, 93
  %v1257 = vpop.permute.xlu0 %1256
  %1258 = vrot.lane.b32.xlu0 %v1207, 93
  %v1259 = vpop.permute.xlu0 %1258
  %1260 = vrot.lane.b32.xlu0 %v1208, 93
  %v1261 = vpop.permute.xlu0 %1260
  %1262 = vrot.lane.b32.xlu0 %v1209, 93
  %v1263 = vpop.permute.xlu0 %1262
  %1264 = vrot.lane.b32.xlu0 %v1210, 93
  %v1265 = vpop.permute.xlu0 %1264
  %1266 = vrot.lane.b32.xlu0 %v1211, 93
  %v1267 = vpop.permute.xlu0 %1266
  %1268 = vrot.lane.b32.xlu0 %v1212, 93
  %v1269 = vpop.permute.xlu0 %1268
  %1270 = vrot.lane.b32.xlu0 %v1213, 93
  %v1271 = vpop.permute.xlu0 %1270
  %1272 = vrot.lane.b32.xlu0 %v1214, 93
  %v1273 = vpop.permute.xlu0 %1272
  %1274 = vrot.lane.b32.xlu0 %v1215, 93
  %v1275 = vpop.permute.xlu0 %1274
  %1276 = vrot.lane.b32.xlu0 %v1216, 93
  %v1277 = vpop.permute.xlu0 %1276
  %1278 = vrot.lane.b32.xlu0 %v1217, 93
  %v1279 = vpop.permute.xlu0 %1278
  %1280 = vrot.lane.b32.xlu0 %v1218, 93
  %v1281 = vpop.permute.xlu0 %1280
  %1282 = vrot.lane.b32.xlu0 %v1219, 93
  %v1283 = vpop.permute.xlu0 %1282
  %1284 = vrot.lane.b32.xlu0 %v1220, 93
  %v1285 = vpop.permute.xlu0 %1284
  %1286 = vrot.lane.b32.xlu0 %v1221, 93
  %v1287 = vpop.permute.xlu0 %1286
  %1288 = vrot.lane.b32.xlu0 %v1222, 93
  %v1289 = vpop.permute.xlu0 %1288
  %1290 = vrot.lane.b32.xlu0 %v1223, 93
  %v1291 = vpop.permute.xlu0 %1290
  %1292 = vrot.lane.b32.xlu0 %v1224, 93
  %v1293 = vpop.permute.xlu0 %1292
  %1294 = vrot.lane.b32.xlu0 %v1225, 93
  %v1295 = vpop.permute.xlu0 %1294
  %1296 = vrot.lane.b32.xlu0 %v1226, 93
  %v1297 = vpop.permute.xlu0 %1296
  %1298 = vrot.lane.b32.xlu0 %v1227, 93
  %v1299 = vpop.permute.xlu0 %1298
  %vm1300 = vcmask 760832
  %v1301 = vsel %vm1300, %v1253, %v1255
  %v1302 = vsel %vm1300, %v1255, %v1257
  %v1303 = vsel %vm1300, %v1257, %v1259
  %v1304 = vsel %vm1300, %v1259, %v1261
  %v1305 = vsel %vm1300, %v1261, %v1263
  %v1306 = vsel %vm1300, %v1263, %v1265
  %v1307 = vsel %vm1300, %v1265, %v1267
  %v1308 = vsel %vm1300, %v1269, %v1271
  %v1309 = vsel %vm1300, %v1271, %v1273
  %v1310 = vsel %vm1300, %v1273, %v1275
  %v1311 = vsel %vm1300, %v1275, %v1277
  %v1312 = vsel %vm1300, %v1277, %v1279
  %v1313 = vsel %vm1300, %v1279, %v1281
  %v1314 = vsel %vm1300, %v1281, %v1283
  %v1315 = vsel %vm1300, %v1285, %v1287
  %v1316 = vsel %vm1300, %v1287, %v1289
  %v1317 = vsel %vm1300, %v1289, %v1291
  %v1318 = vsel %vm1300, %v1291, %v1293
  %v1319 = vsel %vm1300, %v1293, %v1295
  %v1320 = vsel %vm1300, %v1295, %v1297
  %v1321 = vsel %vm1300, %v1297, %v1299
  %1343 = vst [vmem:[#allocation2 + $0x540] sm:$0xff] %v1301
  %1344 = vst [vmem:[#allocation2 + $0x548] sm:$0xff] %v1302
  %1345 = vst [vmem:[#allocation2 + $0x550] sm:$0xff] %v1303
  %1346 = vst [vmem:[#allocation2 + $0x558] sm:$0xff] %v1304
  %1347 = vst [vmem:[#allocation2 + $0x560] sm:$0xff] %v1305
  %1348 = vst [vmem:[#allocation2 + $0x568] sm:$0xff] %v1306
  %1349 = vst [vmem:[#allocation2 + $0x570] sm:$0xff] %v1307
  %1350 = vst [vmem:[#allocation2 + $0x578] sm:$0xff] %v1308
  %1351 = vst [vmem:[#allocation2 + $0x580] sm:$0xff] %v1309
  %1352 = vst [vmem:[#allocation2 + $0x588] sm:$0xff] %v1310
  %1353 = vst [vmem:[#allocation2 + $0x590] sm:$0xff] %v1311
  %1354 = vst [vmem:[#allocation2 + $0x598] sm:$0xff] %v1312
  %1355 = vst [vmem:[#allocation2 + $0x5a0] sm:$0xff] %v1313
  %1356 = vst [vmem:[#allocation2 + $0x5a8] sm:$0xff] %v1314
  %1357 = vst [vmem:[#allocation2 + $0x5b0] sm:$0xff] %v1315
  %1358 = vst [vmem:[#allocation2 + $0x5b8] sm:$0xff] %v1316
  %1359 = vst [vmem:[#allocation2 + $0x5c0] sm:$0xff] %v1317
  %1360 = vst [vmem:[#allocation2 + $0x5c8] sm:$0xff] %v1318
  %1361 = vst [vmem:[#allocation2 + $0x5d0] sm:$0xff] %v1319
  %1362 = vst [vmem:[#allocation2 + $0x5d8] sm:$0xff] %v1320
  %1363 = vst [vmem:[#allocation2 + $0x5e0] sm:$0xff] %v1321
  %v1364 = vld [vmem:[%s0] sm:$0xff]
  %v1365 = vld [vmem:[%s0 + $0x8] sm:$0xff]
  %v1366 = vld [vmem:[%s0 + $0x10] sm:$0xff]
  %v1367 = vld [vmem:[%s0 + $0x18] sm:$0xff]
  %v1368 = vld [vmem:[%s0 + $0x20] sm:$0xff]
  %v1369 = vld [vmem:[%s0 + $0x28] sm:$0xff]
  %v1370 = vld [vmem:[%s0 + $0x30] sm:$0xff]
  %v1371 = vld [vmem:[%s0 + $0x38] sm:$0xff]
  %v1372 = vld [vmem:[%s0 + $0x48] sm:$0xff]
  %v1373 = vld [vmem:[%s0 + $0x50] sm:$0xff]
  %v1374 = vld [vmem:[%s0 + $0x58] sm:$0xff]
  %v1375 = vld [vmem:[%s0 + $0x60] sm:$0xff]
  %v1376 = vld [vmem:[%s0 + $0x68] sm:$0xff]
  %v1377 = vld [vmem:[%s0 + $0x70] sm:$0xff]
  %v1378 = vld [vmem:[%s0 + $0x78] sm:$0xff]
  %v1379 = vld [vmem:[%s0 + $0x80] sm:$0xff]
  %v1380 = vld [vmem:[%s0 + $0x90] sm:$0xff]
  %v1381 = vld [vmem:[%s0 + $0x98] sm:$0xff]
  %v1382 = vld [vmem:[%s0 + $0xa0] sm:$0xff]
  %v1383 = vld [vmem:[%s0 + $0xa8] sm:$0xff]
  %v1384 = vld [vmem:[%s0 + $0xb0] sm:$0xff]
  %v1385 = vld [vmem:[%s0 + $0xb8] sm:$0xff]
  %v1386 = vld [vmem:[%s0 + $0xc0] sm:$0xff]
  %v1387 = vld [vmem:[%s0 + $0xc8] sm:$0xff]
  %1412 = vrot.lane.b32.xlu0 %v1364, 92
  %v1413 = vpop.permute.xlu0 %1412
  %1414 = vrot.lane.b32.xlu0 %v1365, 92
  %v1415 = vpop.permute.xlu0 %1414
  %1416 = vrot.lane.b32.xlu0 %v1366, 92
  %v1417 = vpop.permute.xlu0 %1416
  %1418 = vrot.lane.b32.xlu0 %v1367, 92
  %v1419 = vpop.permute.xlu0 %1418
  %1420 = vrot.lane.b32.xlu0 %v1368, 92
  %v1421 = vpop.permute.xlu0 %1420
  %1422 = vrot.lane.b32.xlu0 %v1369, 92
  %v1423 = vpop.permute.xlu0 %1422
  %1424 = vrot.lane.b32.xlu0 %v1370, 92
  %v1425 = vpop.permute.xlu0 %1424
  %1426 = vrot.lane.b32.xlu0 %v1371, 92
  %v1427 = vpop.permute.xlu0 %1426
  %1428 = vrot.lane.b32.xlu0 %v1372, 92
  %v1429 = vpop.permute.xlu0 %1428
  %1430 = vrot.lane.b32.xlu0 %v1373, 92
  %v1431 = vpop.permute.xlu0 %1430
  %1432 = vrot.lane.b32.xlu0 %v1374, 92
  %v1433 = vpop.permute.xlu0 %1432
  %1434 = vrot.lane.b32.xlu0 %v1375, 92
  %v1435 = vpop.permute.xlu0 %1434
  %1436 = vrot.lane.b32.xlu0 %v1376, 92
  %v1437 = vpop.permute.xlu0 %1436
  %1438 = vrot.lane.b32.xlu0 %v1377, 92
  %v1439 = vpop.permute.xlu0 %1438
  %1440 = vrot.lane.b32.xlu0 %v1378, 92
  %v1441 = vpop.permute.xlu0 %1440
  %1442 = vrot.lane.b32.xlu0 %v1379, 92
  %v1443 = vpop.permute.xlu0 %1442
  %1444 = vrot.lane.b32.xlu0 %v1380, 92
  %v1445 = vpop.permute.xlu0 %1444
  %1446 = vrot.lane.b32.xlu0 %v1381, 92
  %v1447 = vpop.permute.xlu0 %1446
  %1448 = vrot.lane.b32.xlu0 %v1382, 92
  %v1449 = vpop.permute.xlu0 %1448
  %1450 = vrot.lane.b32.xlu0 %v1383, 92
  %v1451 = vpop.permute.xlu0 %1450
  %1452 = vrot.lane.b32.xlu0 %v1384, 92
  %v1453 = vpop.permute.xlu0 %1452
  %1454 = vrot.lane.b32.xlu0 %v1385, 92
  %v1455 = vpop.permute.xlu0 %1454
  %1456 = vrot.lane.b32.xlu0 %v1386, 92
  %v1457 = vpop.permute.xlu0 %1456
  %1458 = vrot.lane.b32.xlu0 %v1387, 92
  %v1459 = vpop.permute.xlu0 %1458
  %vm1460 = vcmask 752640
  %v1461 = vsel %vm1460, %v1413, %v1415
  %v1462 = vsel %vm1460, %v1415, %v1417
  %v1463 = vsel %vm1460, %v1417, %v1419
  %v1464 = vsel %vm1460, %v1419, %v1421
  %v1465 = vsel %vm1460, %v1421, %v1423
  %v1466 = vsel %vm1460, %v1423, %v1425
  %v1467 = vsel %vm1460, %v1425, %v1427
  %v1468 = vsel %vm1460, %v1429, %v1431
  %v1469 = vsel %vm1460, %v1431, %v1433
  %v1470 = vsel %vm1460, %v1433, %v1435
  %v1471 = vsel %vm1460, %v1435, %v1437
  %v1472 = vsel %vm1460, %v1437, %v1439
  %v1473 = vsel %vm1460, %v1439, %v1441
  %v1474 = vsel %vm1460, %v1441, %v1443
  %v1475 = vsel %vm1460, %v1445, %v1447
  %v1476 = vsel %vm1460, %v1447, %v1449
  %v1477 = vsel %vm1460, %v1449, %v1451
  %v1478 = vsel %vm1460, %v1451, %v1453
  %v1479 = vsel %vm1460, %v1453, %v1455
  %v1480 = vsel %vm1460, %v1455, %v1457
  %v1481 = vsel %vm1460, %v1457, %v1459
  %1503 = vst [vmem:[#allocation2 + $0x5e8] sm:$0xff] %v1461
  %1504 = vst [vmem:[#allocation2 + $0x5f0] sm:$0xff] %v1462
  %1505 = vst [vmem:[#allocation2 + $0x5f8] sm:$0xff] %v1463
  %1506 = vst [vmem:[#allocation2 + $0x600] sm:$0xff] %v1464
  %1507 = vst [vmem:[#allocation2 + $0x608] sm:$0xff] %v1465
  %1508 = vst [vmem:[#allocation2 + $0x610] sm:$0xff] %v1466
  %1509 = vst [vmem:[#allocation2 + $0x618] sm:$0xff] %v1467
  %1510 = vst [vmem:[#allocation2 + $0x620] sm:$0xff] %v1468
  %1511 = vst [vmem:[#allocation2 + $0x628] sm:$0xff] %v1469
  %1512 = vst [vmem:[#allocation2 + $0x630] sm:$0xff] %v1470
  %1513 = vst [vmem:[#allocation2 + $0x638] sm:$0xff] %v1471
  %1514 = vst [vmem:[#allocation2 + $0x640] sm:$0xff] %v1472
  %1515 = vst [vmem:[#allocation2 + $0x648] sm:$0xff] %v1473
  %1516 = vst [vmem:[#allocation2 + $0x650] sm:$0xff] %v1474
  %1517 = vst [vmem:[#allocation2 + $0x658] sm:$0xff] %v1475
  %1518 = vst [vmem:[#allocation2 + $0x660] sm:$0xff] %v1476
  %1519 = vst [vmem:[#allocation2 + $0x668] sm:$0xff] %v1477
  %1520 = vst [vmem:[#allocation2 + $0x670] sm:$0xff] %v1478
  %1521 = vst [vmem:[#allocation2 + $0x678] sm:$0xff] %v1479
  %1522 = vst [vmem:[#allocation2 + $0x680] sm:$0xff] %v1480
  %1523 = vst [vmem:[#allocation2 + $0x688] sm:$0xff] %v1481
  %v1524 = vld [vmem:[%s0] sm:$0xff]
  %v1525 = vld [vmem:[%s0 + $0x8] sm:$0xff]
  %v1526 = vld [vmem:[%s0 + $0x10] sm:$0xff]
  %v1527 = vld [vmem:[%s0 + $0x18] sm:$0xff]
  %v1528 = vld [vmem:[%s0 + $0x20] sm:$0xff]
  %v1529 = vld [vmem:[%s0 + $0x28] sm:$0xff]
  %v1530 = vld [vmem:[%s0 + $0x30] sm:$0xff]
  %v1531 = vld [vmem:[%s0 + $0x38] sm:$0xff]
  %v1532 = vld [vmem:[%s0 + $0x48] sm:$0xff]
  %v1533 = vld [vmem:[%s0 + $0x50] sm:$0xff]
  %v1534 = vld [vmem:[%s0 + $0x58] sm:$0xff]
  %v1535 = vld [vmem:[%s0 + $0x60] sm:$0xff]
  %v1536 = vld [vmem:[%s0 + $0x68] sm:$0xff]
  %v1537 = vld [vmem:[%s0 + $0x70] sm:$0xff]
  %v1538 = vld [vmem:[%s0 + $0x78] sm:$0xff]
  %v1539 = vld [vmem:[%s0 + $0x80] sm:$0xff]
  %v1540 = vld [vmem:[%s0 + $0x90] sm:$0xff]
  %v1541 = vld [vmem:[%s0 + $0x98] sm:$0xff]
  %v1542 = vld [vmem:[%s0 + $0xa0] sm:$0xff]
  %v1543 = vld [vmem:[%s0 + $0xa8] sm:$0xff]
  %v1544 = vld [vmem:[%s0 + $0xb0] sm:$0xff]
  %v1545 = vld [vmem:[%s0 + $0xb8] sm:$0xff]
  %v1546 = vld [vmem:[%s0 + $0xc0] sm:$0xff]
  %v1547 = vld [vmem:[%s0 + $0xc8] sm:$0xff]
  %1572 = vrot.lane.b32.xlu0 %v1524, 64
  %v1573 = vpop.permute.xlu0 %1572
  %1574 = vrot.lane.b32.xlu0 %v1525, 64
  %v1575 = vpop.permute.xlu0 %1574
  %1576 = vrot.lane.b32.xlu0 %v1526, 64
  %v1577 = vpop.permute.xlu0 %1576
  %1578 = vrot.lane.b32.xlu0 %v1527, 64
  %v1579 = vpop.permute.xlu0 %1578
  %1580 = vrot.lane.b32.xlu0 %v1528, 64
  %v1581 = vpop.permute.xlu0 %1580
  %1582 = vrot.lane.b32.xlu0 %v1529, 64
  %v1583 = vpop.permute.xlu0 %1582
  %1584 = vrot.lane.b32.xlu0 %v1530, 64
  %v1585 = vpop.permute.xlu0 %1584
  %1586 = vrot.lane.b32.xlu0 %v1531, 64
  %v1587 = vpop.permute.xlu0 %1586
  %1588 = vrot.lane.b32.xlu0 %v1532, 64
  %v1589 = vpop.permute.xlu0 %1588
  %1590 = vrot.lane.b32.xlu0 %v1533, 64
  %v1591 = vpop.permute.xlu0 %1590
  %1592 = vrot.lane.b32.xlu0 %v1534, 64
  %v1593 = vpop.permute.xlu0 %1592
  %1594 = vrot.lane.b32.xlu0 %v1535, 64
  %v1595 = vpop.permute.xlu0 %1594
  %1596 = vrot.lane.b32.xlu0 %v1536, 64
  %v1597 = vpop.permute.xlu0 %1596
  %1598 = vrot.lane.b32.xlu0 %v1537, 64
  %v1599 = vpop.permute.xlu0 %1598
  %1600 = vrot.lane.b32.xlu0 %v1538, 64
  %v1601 = vpop.permute.xlu0 %1600
  %1602 = vrot.lane.b32.xlu0 %v1539, 64
  %v1603 = vpop.permute.xlu0 %1602
  %1604 = vrot.lane.b32.xlu0 %v1540, 64
  %v1605 = vpop.permute.xlu0 %1604
  %1606 = vrot.lane.b32.xlu0 %v1541, 64
  %v1607 = vpop.permute.xlu0 %1606
  %1608 = vrot.lane.b32.xlu0 %v1542, 64
  %v1609 = vpop.permute.xlu0 %1608
  %1610 = vrot.lane.b32.xlu0 %v1543, 64
  %v1611 = vpop.permute.xlu0 %1610
  %1612 = vrot.lane.b32.xlu0 %v1544, 64
  %v1613 = vpop.permute.xlu0 %1612
  %1614 = vrot.lane.b32.xlu0 %v1545, 64
  %v1615 = vpop.permute.xlu0 %1614
  %1616 = vrot.lane.b32.xlu0 %v1546, 64
  %v1617 = vpop.permute.xlu0 %1616
  %1618 = vrot.lane.b32.xlu0 %v1547, 64
  %v1619 = vpop.permute.xlu0 %1618
  %vm1620 = vcmask 523264
  %v1621 = vsel %vm1620, %v1573, %v1575
  %v1622 = vsel %vm1620, %v1575, %v1577
  %v1623 = vsel %vm1620, %v1577, %v1579
  %v1624 = vsel %vm1620, %v1579, %v1581
  %v1625 = vsel %vm1620, %v1581, %v1583
  %v1626 = vsel %vm1620, %v1583, %v1585
  %v1627 = vsel %vm1620, %v1585, %v1587
  %v1628 = vsel %vm1620, %v1589, %v1591
  %v1629 = vsel %vm1620, %v1591, %v1593
  %v1630 = vsel %vm1620, %v1593, %v1595
  %v1631 = vsel %vm1620, %v1595, %v1597
  %v1632 = vsel %vm1620, %v1597, %v1599
  %v1633 = vsel %vm1620, %v1599, %v1601
  %v1634 = vsel %vm1620, %v1601, %v1603
  %v1635 = vsel %vm1620, %v1605, %v1607
  %v1636 = vsel %vm1620, %v1607, %v1609
  %v1637 = vsel %vm1620, %v1609, %v1611
  %v1638 = vsel %vm1620, %v1611, %v1613
  %v1639 = vsel %vm1620, %v1613, %v1615
  %v1640 = vsel %vm1620, %v1615, %v1617
  %v1641 = vsel %vm1620, %v1617, %v1619
  %1663 = vst [vmem:[#allocation2 + $0x690] sm:$0xff] %v1621
  %1664 = vst [vmem:[#allocation2 + $0x698] sm:$0xff] %v1622
  %1665 = vst [vmem:[#allocation2 + $0x6a0] sm:$0xff] %v1623
  %1666 = vst [vmem:[#allocation2 + $0x6a8] sm:$0xff] %v1624
  %1667 = vst [vmem:[#allocation2 + $0x6b0] sm:$0xff] %v1625
  %1668 = vst [vmem:[#allocation2 + $0x6b8] sm:$0xff] %v1626
  %1669 = vst [vmem:[#allocation2 + $0x6c0] sm:$0xff] %v1627
  %1670 = vst [vmem:[#allocation2 + $0x6c8] sm:$0xff] %v1628
  %1671 = vst [vmem:[#allocation2 + $0x6d0] sm:$0xff] %v1629
  %1672 = vst [vmem:[#allocation2 + $0x6d8] sm:$0xff] %v1630
  %1673 = vst [vmem:[#allocation2 + $0x6e0] sm:$0xff] %v1631
  %1674 = vst [vmem:[#allocation2 + $0x6e8] sm:$0xff] %v1632
  %1675 = vst [vmem:[#allocation2 + $0x6f0] sm:$0xff] %v1633
  %1676 = vst [vmem:[#allocation2 + $0x6f8] sm:$0xff] %v1634
  %1677 = vst [vmem:[#allocation2 + $0x700] sm:$0xff] %v1635
  %1678 = vst [vmem:[#allocation2 + $0x708] sm:$0xff] %v1636
  %1679 = vst [vmem:[#allocation2 + $0x710] sm:$0xff] %v1637
  %1680 = vst [vmem:[#allocation2 + $0x718] sm:$0xff] %v1638
  %1681 = vst [vmem:[#allocation2 + $0x720] sm:$0xff] %v1639
  %1682 = vst [vmem:[#allocation2 + $0x728] sm:$0xff] %v1640
  %1683 = vst [vmem:[#allocation2 + $0x730] sm:$0xff] %v1641
  %v1684 = vld [vmem:[%s0] sm:$0xff]
  %v1685 = vld [vmem:[%s0 + $0x8] sm:$0xff]
  %v1686 = vld [vmem:[%s0 + $0x10] sm:$0xff]
  %v1687 = vld [vmem:[%s0 + $0x18] sm:$0xff]
  %v1688 = vld [vmem:[%s0 + $0x20] sm:$0xff]
  %v1689 = vld [vmem:[%s0 + $0x28] sm:$0xff]
  %v1690 = vld [vmem:[%s0 + $0x30] sm:$0xff]
  %v1691 = vld [vmem:[%s0 + $0x38] sm:$0xff]
  %v1692 = vld [vmem:[%s0 + $0x48] sm:$0xff]
  %v1693 = vld [vmem:[%s0 + $0x50] sm:$0xff]
  %v1694 = vld [vmem:[%s0 + $0x58] sm:$0xff]
  %v1695 = vld [vmem:[%s0 + $0x60] sm:$0xff]
  %v1696 = vld [vmem:[%s0 + $0x68] sm:$0xff]
  %v1697 = vld [vmem:[%s0 + $0x70] sm:$0xff]
  %v1698 = vld [vmem:[%s0 + $0x78] sm:$0xff]
  %v1699 = vld [vmem:[%s0 + $0x80] sm:$0xff]
  %v1700 = vld [vmem:[%s0 + $0x90] sm:$0xff]
  %v1701 = vld [vmem:[%s0 + $0x98] sm:$0xff]
  %v1702 = vld [vmem:[%s0 + $0xa0] sm:$0xff]
  %v1703 = vld [vmem:[%s0 + $0xa8] sm:$0xff]
  %v1704 = vld [vmem:[%s0 + $0xb0] sm:$0xff]
  %v1705 = vld [vmem:[%s0 + $0xb8] sm:$0xff]
  %v1706 = vld [vmem:[%s0 + $0xc0] sm:$0xff]
  %v1707 = vld [vmem:[%s0 + $0xc8] sm:$0xff]
  %1732 = vrot.lane.b32.xlu0 %v1684, 63
  %v1733 = vpop.permute.xlu0 %1732
  %1734 = vrot.lane.b32.xlu0 %v1685, 63
  %v1735 = vpop.permute.xlu0 %1734
  %1736 = vrot.lane.b32.xlu0 %v1686, 63
  %v1737 = vpop.permute.xlu0 %1736
  %1738 = vrot.lane.b32.xlu0 %v1687, 63
  %v1739 = vpop.permute.xlu0 %1738
  %1740 = vrot.lane.b32.xlu0 %v1688, 63
  %v1741 = vpop.permute.xlu0 %1740
  %1742 = vrot.lane.b32.xlu0 %v1689, 63
  %v1743 = vpop.permute.xlu0 %1742
  %1744 = vrot.lane.b32.xlu0 %v1690, 63
  %v1745 = vpop.permute.xlu0 %1744
  %1746 = vrot.lane.b32.xlu0 %v1691, 63
  %v1747 = vpop.permute.xlu0 %1746
  %1748 = vrot.lane.b32.xlu0 %v1692, 63
  %v1749 = vpop.permute.xlu0 %1748
  %1750 = vrot.lane.b32.xlu0 %v1693, 63
  %v1751 = vpop.permute.xlu0 %1750
  %1752 = vrot.lane.b32.xlu0 %v1694, 63
  %v1753 = vpop.permute.xlu0 %1752
  %1754 = vrot.lane.b32.xlu0 %v1695, 63
  %v1755 = vpop.permute.xlu0 %1754
  %1756 = vrot.lane.b32.xlu0 %v1696, 63
  %v1757 = vpop.permute.xlu0 %1756
  %1758 = vrot.lane.b32.xlu0 %v1697, 63
  %v1759 = vpop.permute.xlu0 %1758
  %1760 = vrot.lane.b32.xlu0 %v1698, 63
  %v1761 = vpop.permute.xlu0 %1760
  %1762 = vrot.lane.b32.xlu0 %v1699, 63
  %v1763 = vpop.permute.xlu0 %1762
  %1764 = vrot.lane.b32.xlu0 %v1700, 63
  %v1765 = vpop.permute.xlu0 %1764
  %1766 = vrot.lane.b32.xlu0 %v1701, 63
  %v1767 = vpop.permute.xlu0 %1766
  %1768 = vrot.lane.b32.xlu0 %v1702, 63
  %v1769 = vpop.permute.xlu0 %1768
  %1770 = vrot.lane.b32.xlu0 %v1703, 63
  %v1771 = vpop.permute.xlu0 %1770
  %1772 = vrot.lane.b32.xlu0 %v1704, 63
  %v1773 = vpop.permute.xlu0 %1772
  %1774 = vrot.lane.b32.xlu0 %v1705, 63
  %v1775 = vpop.permute.xlu0 %1774
  %1776 = vrot.lane.b32.xlu0 %v1706, 63
  %v1777 = vpop.permute.xlu0 %1776
  %1778 = vrot.lane.b32.xlu0 %v1707, 63
  %v1779 = vpop.permute.xlu0 %1778
  %vm1780 = vcmask 515072
  %v1781 = vsel %vm1780, %v1733, %v1735
  %v1782 = vsel %vm1780, %v1735, %v1737
  %v1783 = vsel %vm1780, %v1737, %v1739
  %v1784 = vsel %vm1780, %v1739, %v1741
  %v1785 = vsel %vm1780, %v1741, %v1743
  %v1786 = vsel %vm1780, %v1743, %v1745
  %v1787 = vsel %vm1780, %v1745, %v1747
  %v1788 = vsel %vm1780, %v1749, %v1751
  %v1789 = vsel %vm1780, %v1751, %v1753
  %v1790 = vsel %vm1780, %v1753, %v1755
  %v1791 = vsel %vm1780, %v1755, %v1757
  %v1792 = vsel %vm1780, %v1757, %v1759
  %v1793 = vsel %vm1780, %v1759, %v1761
  %v1794 = vsel %vm1780, %v1761, %v1763
  %v1795 = vsel %vm1780, %v1765, %v1767
  %v1796 = vsel %vm1780, %v1767, %v1769
  %v1797 = vsel %vm1780, %v1769, %v1771
  %v1798 = vsel %vm1780, %v1771, %v1773
  %v1799 = vsel %vm1780, %v1773, %v1775
  %v1800 = vsel %vm1780, %v1775, %v1777
  %v1801 = vsel %vm1780, %v1777, %v1779
  %1823 = vst [vmem:[#allocation2 + $0x738] sm:$0xff] %v1781
  %1824 = vst [vmem:[#allocation2 + $0x740] sm:$0xff] %v1782
  %1825 = vst [vmem:[#allocation2 + $0x748] sm:$0xff] %v1783
  %1826 = vst [vmem:[#allocation2 + $0x750] sm:$0xff] %v1784
  %1827 = vst [vmem:[#allocation2 + $0x758] sm:$0xff] %v1785
  %1828 = vst [vmem:[#allocation2 + $0x760] sm:$0xff] %v1786
  %1829 = vst [vmem:[#allocation2 + $0x768] sm:$0xff] %v1787
  %1830 = vst [vmem:[#allocation2 + $0x770] sm:$0xff] %v1788
  %1831 = vst [vmem:[#allocation2 + $0x778] sm:$0xff] %v1789
  %1832 = vst [vmem:[#allocation2 + $0x780] sm:$0xff] %v1790
  %1833 = vst [vmem:[#allocation2 + $0x788] sm:$0xff] %v1791
  %1834 = vst [vmem:[#allocation2 + $0x790] sm:$0xff] %v1792
  %1835 = vst [vmem:[#allocation2 + $0x798] sm:$0xff] %v1793
  %1836 = vst [vmem:[#allocation2 + $0x7a0] sm:$0xff] %v1794
  %1837 = vst [vmem:[#allocation2 + $0x7a8] sm:$0xff] %v1795
  %1838 = vst [vmem:[#allocation2 + $0x7b0] sm:$0xff] %v1796
  %1839 = vst [vmem:[#allocation2 + $0x7b8] sm:$0xff] %v1797
  %1840 = vst [vmem:[#allocation2 + $0x7c0] sm:$0xff] %v1798
  %1841 = vst [vmem:[#allocation2 + $0x7c8] sm:$0xff] %v1799
  %1842 = vst [vmem:[#allocation2 + $0x7d0] sm:$0xff] %v1800
  %1843 = vst [vmem:[#allocation2 + $0x7d8] sm:$0xff] %v1801
  %v1844 = vld [vmem:[%s0] sm:$0xff]
  %v1845 = vld [vmem:[%s0 + $0x8] sm:$0xff]
  %v1846 = vld [vmem:[%s0 + $0x10] sm:$0xff]
  %v1847 = vld [vmem:[%s0 + $0x18] sm:$0xff]
  %v1848 = vld [vmem:[%s0 + $0x20] sm:$0xff]
  %v1849 = vld [vmem:[%s0 + $0x28] sm:$0xff]
  %v1850 = vld [vmem:[%s0 + $0x30] sm:$0xff]
  %v1851 = vld [vmem:[%s0 + $0x38] sm:$0xff]
  %v1852 = vld [vmem:[%s0 + $0x48] sm:$0xff]
  %v1853 = vld [vmem:[%s0 + $0x50] sm:$0xff]
  %v1854 = vld [vmem:[%s0 + $0x58] sm:$0xff]
  %v1855 = vld [vmem:[%s0 + $0x60] sm:$0xff]
  %v1856 = vld [vmem:[%s0 + $0x68] sm:$0xff]
  %v1857 = vld [vmem:[%s0 + $0x70] sm:$0xff]
  %v1858 = vld [vmem:[%s0 + $0x78] sm:$0xff]
  %v1859 = vld [vmem:[%s0 + $0x80] sm:$0xff]
  %v1860 = vld [vmem:[%s0 + $0x90] sm:$0xff]
  %v1861 = vld [vmem:[%s0 + $0x98] sm:$0xff]
  %v1862 = vld [vmem:[%s0 + $0xa0] sm:$0xff]
  %v1863 = vld [vmem:[%s0 + $0xa8] sm:$0xff]
  %v1864 = vld [vmem:[%s0 + $0xb0] sm:$0xff]
  %v1865 = vld [vmem:[%s0 + $0xb8] sm:$0xff]
  %v1866 = vld [vmem:[%s0 + $0xc0] sm:$0xff]
  %v1867 = vld [vmem:[%s0 + $0xc8] sm:$0xff]
  %1892 = vrot.lane.b32.xlu0 %v1844, 62
  %v1893 = vpop.permute.xlu0 %1892
  %1894 = vrot.lane.b32.xlu0 %v1845, 62
  %v1895 = vpop.permute.xlu0 %1894
  %1896 = vrot.lane.b32.xlu0 %v1846, 62
  %v1897 = vpop.permute.xlu0 %1896
  %1898 = vrot.lane.b32.xlu0 %v1847, 62
  %v1899 = vpop.permute.xlu0 %1898
  %1900 = vrot.lane.b32.xlu0 %v1848, 62
  %v1901 = vpop.permute.xlu0 %1900
  %1902 = vrot.lane.b32.xlu0 %v1849, 62
  %v1903 = vpop.permute.xlu0 %1902
  %1904 = vrot.lane.b32.xlu0 %v1850, 62
  %v1905 = vpop.permute.xlu0 %1904
  %1906 = vrot.lane.b32.xlu0 %v1851, 62
  %v1907 = vpop.permute.xlu0 %1906
  %1908 = vrot.lane.b32.xlu0 %v1852, 62
  %v1909 = vpop.permute.xlu0 %1908
  %1910 = vrot.lane.b32.xlu0 %v1853, 62
  %v1911 = vpop.permute.xlu0 %1910
  %1912 = vrot.lane.b32.xlu0 %v1854, 62
  %v1913 = vpop.permute.xlu0 %1912
  %1914 = vrot.lane.b32.xlu0 %v1855, 62
  %v1915 = vpop.permute.xlu0 %1914
  %1916 = vrot.lane.b32.xlu0 %v1856, 62
  %v1917 = vpop.permute.xlu0 %1916
  %1918 = vrot.lane.b32.xlu0 %v1857, 62
  %v1919 = vpop.permute.xlu0 %1918
  %1920 = vrot.lane.b32.xlu0 %v1858, 62
  %v1921 = vpop.permute.xlu0 %1920
  %1922 = vrot.lane.b32.xlu0 %v1859, 62
  %v1923 = vpop.permute.xlu0 %1922
  %1924 = vrot.lane.b32.xlu0 %v1860, 62
  %v1925 = vpop.permute.xlu0 %1924
  %1926 = vrot.lane.b32.xlu0 %v1861, 62
  %v1927 = vpop.permute.xlu0 %1926
  %1928 = vrot.lane.b32.xlu0 %v1862, 62
  %v1929 = vpop.permute.xlu0 %1928
  %1930 = vrot.lane.b32.xlu0 %v1863, 62
  %v1931 = vpop.permute.xlu0 %1930
  %1932 = vrot.lane.b32.xlu0 %v1864, 62
  %v1933 = vpop.permute.xlu0 %1932
  %1934 = vrot.lane.b32.xlu0 %v1865, 62
  %v1935 = vpop.permute.xlu0 %1934
  %1936 = vrot.lane.b32.xlu0 %v1866, 62
  %v1937 = vpop.permute.xlu0 %1936
  %1938 = vrot.lane.b32.xlu0 %v1867, 62
  %v1939 = vpop.permute.xlu0 %1938
  %vm1940 = vcmask 506880
  %v1941 = vsel %vm1940, %v1893, %v1895
  %v1942 = vsel %vm1940, %v1895, %v1897
  %v1943 = vsel %vm1940, %v1897, %v1899
  %v1944 = vsel %vm1940, %v1899, %v1901
  %v1945 = vsel %vm1940, %v1901, %v1903
  %v1946 = vsel %vm1940, %v1903, %v1905
  %v1947 = vsel %vm1940, %v1905, %v1907
  %v1948 = vsel %vm1940, %v1909, %v1911
  %v1949 = vsel %vm1940, %v1911, %v1913
  %v1950 = vsel %vm1940, %v1913, %v1915
  %v1951 = vsel %vm1940, %v1915, %v1917
  %v1952 = vsel %vm1940, %v1917, %v1919
  %v1953 = vsel %vm1940, %v1919, %v1921
  %v1954 = vsel %vm1940, %v1921, %v1923
  %v1955 = vsel %vm1940, %v1925, %v1927
  %v1956 = vsel %vm1940, %v1927, %v1929
  %v1957 = vsel %vm1940, %v1929, %v1931
  %v1958 = vsel %vm1940, %v1931, %v1933
  %v1959 = vsel %vm1940, %v1933, %v1935
  %v1960 = vsel %vm1940, %v1935, %v1937
  %v1961 = vsel %vm1940, %v1937, %v1939
  %1983 = vst [vmem:[#allocation2 + $0x7e0] sm:$0xff] %v1941
  %1984 = vst [vmem:[#allocation2 + $0x7e8] sm:$0xff] %v1942
  %1985 = vst [vmem:[#allocation2 + $0x7f0] sm:$0xff] %v1943
  %1986 = vst [vmem:[#allocation2 + $0x7f8] sm:$0xff] %v1944
  %1987 = vst [vmem:[#allocation2 + $0x800] sm:$0xff] %v1945
  %1988 = vst [vmem:[#allocation2 + $0x808] sm:$0xff] %v1946
  %1989 = vst [vmem:[#allocation2 + $0x810] sm:$0xff] %v1947
  %1990 = vst [vmem:[#allocation2 + $0x818] sm:$0xff] %v1948
  %1991 = vst [vmem:[#allocation2 + $0x820] sm:$0xff] %v1949
  %1992 = vst [vmem:[#allocation2 + $0x828] sm:$0xff] %v1950
  %1993 = vst [vmem:[#allocation2 + $0x830] sm:$0xff] %v1951
  %1994 = vst [vmem:[#allocation2 + $0x838] sm:$0xff] %v1952
  %1995 = vst [vmem:[#allocation2 + $0x840] sm:$0xff] %v1953
  %1996 = vst [vmem:[#allocation2 + $0x848] sm:$0xff] %v1954
  %1997 = vst [vmem:[#allocation2 + $0x850] sm:$0xff] %v1955
  %1998 = vst [vmem:[#allocation2 + $0x858] sm:$0xff] %v1956
  %1999 = vst [vmem:[#allocation2 + $0x860] sm:$0xff] %v1957
  %2000 = vst [vmem:[#allocation2 + $0x868] sm:$0xff] %v1958
  %2001 = vst [vmem:[#allocation2 + $0x870] sm:$0xff] %v1959
  %2002 = vst [vmem:[#allocation2 + $0x878] sm:$0xff] %v1960
  %2003 = vst [vmem:[#allocation2 + $0x880] sm:$0xff] %v1961
  %v2004 = vld [vmem:[%s0] sm:$0xff]
  %v2005 = vld [vmem:[%s0 + $0x8] sm:$0xff]
  %v2006 = vld [vmem:[%s0 + $0x10] sm:$0xff]
  %v2007 = vld [vmem:[%s0 + $0x18] sm:$0xff]
  %v2008 = vld [vmem:[%s0 + $0x20] sm:$0xff]
  %v2009 = vld [vmem:[%s0 + $0x28] sm:$0xff]
  %v2010 = vld [vmem:[%s0 + $0x30] sm:$0xff]
  %v2011 = vld [vmem:[%s0 + $0x38] sm:$0xff]
  %v2012 = vld [vmem:[%s0 + $0x48] sm:$0xff]
  %v2013 = vld [vmem:[%s0 + $0x50] sm:$0xff]
  %v2014 = vld [vmem:[%s0 + $0x58] sm:$0xff]
  %v2015 = vld [vmem:[%s0 + $0x60] sm:$0xff]
  %v2016 = vld [vmem:[%s0 + $0x68] sm:$0xff]
  %v2017 = vld [vmem:[%s0 + $0x70] sm:$0xff]
  %v2018 = vld [vmem:[%s0 + $0x78] sm:$0xff]
  %v2019 = vld [vmem:[%s0 + $0x80] sm:$0xff]
  %v2020 = vld [vmem:[%s0 + $0x90] sm:$0xff]
  %v2021 = vld [vmem:[%s0 + $0x98] sm:$0xff]
  %v2022 = vld [vmem:[%s0 + $0xa0] sm:$0xff]
  %v2023 = vld [vmem:[%s0 + $0xa8] sm:$0xff]
  %v2024 = vld [vmem:[%s0 + $0xb0] sm:$0xff]
  %v2025 = vld [vmem:[%s0 + $0xb8] sm:$0xff]
  %v2026 = vld [vmem:[%s0 + $0xc0] sm:$0xff]
  %v2027 = vld [vmem:[%s0 + $0xc8] sm:$0xff]
  %2052 = vrot.lane.b32.xlu0 %v2004, 61
  %v2053 = vpop.permute.xlu0 %2052
  %2054 = vrot.lane.b32.xlu0 %v2005, 61
  %v2055 = vpop.permute.xlu0 %2054
  %2056 = vrot.lane.b32.xlu0 %v2006, 61
  %v2057 = vpop.permute.xlu0 %2056
  %2058 = vrot.lane.b32.xlu0 %v2007, 61
  %v2059 = vpop.permute.xlu0 %2058
  %2060 = vrot.lane.b32.xlu0 %v2008, 61
  %v2061 = vpop.permute.xlu0 %2060
  %2062 = vrot.lane.b32.xlu0 %v2009, 61
  %v2063 = vpop.permute.xlu0 %2062
  %2064 = vrot.lane.b32.xlu0 %v2010, 61
  %v2065 = vpop.permute.xlu0 %2064
  %2066 = vrot.lane.b32.xlu0 %v2011, 61
  %v2067 = vpop.permute.xlu0 %2066
  %2068 = vrot.lane.b32.xlu0 %v2012, 61
  %v2069 = vpop.permute.xlu0 %2068
  %2070 = vrot.lane.b32.xlu0 %v2013, 61
  %v2071 = vpop.permute.xlu0 %2070
  %2072 = vrot.lane.b32.xlu0 %v2014, 61
  %v2073 = vpop.permute.xlu0 %2072
  %2074 = vrot.lane.b32.xlu0 %v2015, 61
  %v2075 = vpop.permute.xlu0 %2074
  %2076 = vrot.lane.b32.xlu0 %v2016, 61
  %v2077 = vpop.permute.xlu0 %2076
  %2078 = vrot.lane.b32.xlu0 %v2017, 61
  %v2079 = vpop.permute.xlu0 %2078
  %2080 = vrot.lane.b32.xlu0 %v2018, 61
  %v2081 = vpop.permute.xlu0 %2080
  %2082 = vrot.lane.b32.xlu0 %v2019, 61
  %v2083 = vpop.permute.xlu0 %2082
  %2084 = vrot.lane.b32.xlu0 %v2020, 61
  %v2085 = vpop.permute.xlu0 %2084
  %2086 = vrot.lane.b32.xlu0 %v2021, 61
  %v2087 = vpop.permute.xlu0 %2086
  %2088 = vrot.lane.b32.xlu0 %v2022, 61
  %v2089 = vpop.permute.xlu0 %2088
  %2090 = vrot.lane.b32.xlu0 %v2023, 61
  %v2091 = vpop.permute.xlu0 %2090
  %2092 = vrot.lane.b32.xlu0 %v2024, 61
  %v2093 = vpop.permute.xlu0 %2092
  %2094 = vrot.lane.b32.xlu0 %v2025, 61
  %v2095 = vpop.permute.xlu0 %2094
  %2096 = vrot.lane.b32.xlu0 %v2026, 61
  %v2097 = vpop.permute.xlu0 %2096
  %2098 = vrot.lane.b32.xlu0 %v2027, 61
  %v2099 = vpop.permute.xlu0 %2098
  %vm2100 = vcmask 498688
  %v2101 = vsel %vm2100, %v2053, %v2055
  %v2102 = vsel %vm2100, %v2055, %v2057
  %v2103 = vsel %vm2100, %v2057, %v2059
  %v2104 = vsel %vm2100, %v2059, %v2061
  %v2105 = vsel %vm2100, %v2061, %v2063
  %v2106 = vsel %vm2100, %v2063, %v2065
  %v2107 = vsel %vm2100, %v2065, %v2067
  %v2108 = vsel %vm2100, %v2069, %v2071
  %v2109 = vsel %vm2100, %v2071, %v2073
  %v2110 = vsel %vm2100, %v2073, %v2075
  %v2111 = vsel %vm2100, %v2075, %v2077
  %v2112 = vsel %vm2100, %v2077, %v2079
  %v2113 = vsel %vm2100, %v2079, %v2081
  %v2114 = vsel %vm2100, %v2081, %v2083
  %v2115 = vsel %vm2100, %v2085, %v2087
  %v2116 = vsel %vm2100, %v2087, %v2089
  %v2117 = vsel %vm2100, %v2089, %v2091
  %v2118 = vsel %vm2100, %v2091, %v2093
  %v2119 = vsel %vm2100, %v2093, %v2095
  %v2120 = vsel %vm2100, %v2095, %v2097
  %v2121 = vsel %vm2100, %v2097, %v2099
  %2143 = vst [vmem:[#allocation2 + $0x888] sm:$0xff] %v2101
  %2144 = vst [vmem:[#allocation2 + $0x890] sm:$0xff] %v2102
  %2145 = vst [vmem:[#allocation2 + $0x898] sm:$0xff] %v2103
  %2146 = vst [vmem:[#allocation2 + $0x8a0] sm:$0xff] %v2104
  %2147 = vst [vmem:[#allocation2 + $0x8a8] sm:$0xff] %v2105
  %2148 = vst [vmem:[#allocation2 + $0x8b0] sm:$0xff] %v2106
  %2149 = vst [vmem:[#allocation2 + $0x8b8] sm:$0xff] %v2107
  %2150 = vst [vmem:[#allocation2 + $0x8c0] sm:$0xff] %v2108
  %2151 = vst [vmem:[#allocation2 + $0x8c8] sm:$0xff] %v2109
  %2152 = vst [vmem:[#allocation2 + $0x8d0] sm:$0xff] %v2110
  %2153 = vst [vmem:[#allocation2 + $0x8d8] sm:$0xff] %v2111
  %2154 = vst [vmem:[#allocation2 + $0x8e0] sm:$0xff] %v2112
  %2155 = vst [vmem:[#allocation2 + $0x8e8] sm:$0xff] %v2113
  %2156 = vst [vmem:[#allocation2 + $0x8f0] sm:$0xff] %v2114
  %2157 = vst [vmem:[#allocation2 + $0x8f8] sm:$0xff] %v2115
  %2158 = vst [vmem:[#allocation2 + $0x900] sm:$0xff] %v2116
  %2159 = vst [vmem:[#allocation2 + $0x908] sm:$0xff] %v2117
  %2160 = vst [vmem:[#allocation2 + $0x910] sm:$0xff] %v2118
  %2161 = vst [vmem:[#allocation2 + $0x918] sm:$0xff] %v2119
  %2162 = vst [vmem:[#allocation2 + $0x920] sm:$0xff] %v2120
  %2163 = vst [vmem:[#allocation2 + $0x928] sm:$0xff] %v2121
  %v2164 = vld [vmem:[%s0] sm:$0xff]
  %v2165 = vld [vmem:[%s0 + $0x8] sm:$0xff]
  %v2166 = vld [vmem:[%s0 + $0x10] sm:$0xff]
  %v2167 = vld [vmem:[%s0 + $0x18] sm:$0xff]
  %v2168 = vld [vmem:[%s0 + $0x20] sm:$0xff]
  %v2169 = vld [vmem:[%s0 + $0x28] sm:$0xff]
  %v2170 = vld [vmem:[%s0 + $0x30] sm:$0xff]
  %v2171 = vld [vmem:[%s0 + $0x38] sm:$0xff]
  %v2172 = vld [vmem:[%s0 + $0x48] sm:$0xff]
  %v2173 = vld [vmem:[%s0 + $0x50] sm:$0xff]
  %v2174 = vld [vmem:[%s0 + $0x58] sm:$0xff]
  %v2175 = vld [vmem:[%s0 + $0x60] sm:$0xff]
  %v2176 = vld [vmem:[%s0 + $0x68] sm:$0xff]
  %v2177 = vld [vmem:[%s0 + $0x70] sm:$0xff]
  %v2178 = vld [vmem:[%s0 + $0x78] sm:$0xff]
  %v2179 = vld [vmem:[%s0 + $0x80] sm:$0xff]
  %v2180 = vld [vmem:[%s0 + $0x90] sm:$0xff]
  %v2181 = vld [vmem:[%s0 + $0x98] sm:$0xff]
  %v2182 = vld [vmem:[%s0 + $0xa0] sm:$0xff]
  %v2183 = vld [vmem:[%s0 + $0xa8] sm:$0xff]
  %v2184 = vld [vmem:[%s0 + $0xb0] sm:$0xff]
  %v2185 = vld [vmem:[%s0 + $0xb8] sm:$0xff]
  %v2186 = vld [vmem:[%s0 + $0xc0] sm:$0xff]
  %v2187 = vld [vmem:[%s0 + $0xc8] sm:$0xff]
  %2212 = vrot.lane.b32.xlu0 %v2164, 60
  %v2213 = vpop.permute.xlu0 %2212
  %2214 = vrot.lane.b32.xlu0 %v2165, 60
  %v2215 = vpop.permute.xlu0 %2214
  %2216 = vrot.lane.b32.xlu0 %v2166, 60
  %v2217 = vpop.permute.xlu0 %2216
  %2218 = vrot.lane.b32.xlu0 %v2167, 60
  %v2219 = vpop.permute.xlu0 %2218
  %2220 = vrot.lane.b32.xlu0 %v2168, 60
  %v2221 = vpop.permute.xlu0 %2220
  %2222 = vrot.lane.b32.xlu0 %v2169, 60
  %v2223 = vpop.permute.xlu0 %2222
  %2224 = vrot.lane.b32.xlu0 %v2170, 60
  %v2225 = vpop.permute.xlu0 %2224
  %2226 = vrot.lane.b32.xlu0 %v2171, 60
  %v2227 = vpop.permute.xlu0 %2226
  %2228 = vrot.lane.b32.xlu0 %v2172, 60
  %v2229 = vpop.permute.xlu0 %2228
  %2230 = vrot.lane.b32.xlu0 %v2173, 60
  %v2231 = vpop.permute.xlu0 %2230
  %2232 = vrot.lane.b32.xlu0 %v2174, 60
  %v2233 = vpop.permute.xlu0 %2232
  %2234 = vrot.lane.b32.xlu0 %v2175, 60
  %v2235 = vpop.permute.xlu0 %2234
  %2236 = vrot.lane.b32.xlu0 %v2176, 60
  %v2237 = vpop.permute.xlu0 %2236
  %2238 = vrot.lane.b32.xlu0 %v2177, 60
  %v2239 = vpop.permute.xlu0 %2238
  %2240 = vrot.lane.b32.xlu0 %v2178, 60
  %v2241 = vpop.permute.xlu0 %2240
  %2242 = vrot.lane.b32.xlu0 %v2179, 60
  %v2243 = vpop.permute.xlu0 %2242
  %2244 = vrot.lane.b32.xlu0 %v2180, 60
  %v2245 = vpop.permute.xlu0 %2244
  %2246 = vrot.lane.b32.xlu0 %v2181, 60
  %v2247 = vpop.permute.xlu0 %2246
  %2248 = vrot.lane.b32.xlu0 %v2182, 60
  %v2249 = vpop.permute.xlu0 %2248
  %2250 = vrot.lane.b32.xlu0 %v2183, 60
  %v2251 = vpop.permute.xlu0 %2250
  %2252 = vrot.lane.b32.xlu0 %v2184, 60
  %v2253 = vpop.permute.xlu0 %2252
  %2254 = vrot.lane.b32.xlu0 %v2185, 60
  %v2255 = vpop.permute.xlu0 %2254
  %2256 = vrot.lane.b32.xlu0 %v2186, 60
  %v2257 = vpop.permute.xlu0 %2256
  %2258 = vrot.lane.b32.xlu0 %v2187, 60
  %v2259 = vpop.permute.xlu0 %2258
  %vm2260 = vcmask 490496
  %v2261 = vsel %vm2260, %v2213, %v2215
  %v2262 = vsel %vm2260, %v2215, %v2217
  %v2263 = vsel %vm2260, %v2217, %v2219
  %v2264 = vsel %vm2260, %v2219, %v2221
  %v2265 = vsel %vm2260, %v2221, %v2223
  %v2266 = vsel %vm2260, %v2223, %v2225
  %v2267 = vsel %vm2260, %v2225, %v2227
  %v2268 = vsel %vm2260, %v2229, %v2231
  %v2269 = vsel %vm2260, %v2231, %v2233
  %v2270 = vsel %vm2260, %v2233, %v2235
  %v2271 = vsel %vm2260, %v2235, %v2237
  %v2272 = vsel %vm2260, %v2237, %v2239
  %v2273 = vsel %vm2260, %v2239, %v2241
  %v2274 = vsel %vm2260, %v2241, %v2243
  %v2275 = vsel %vm2260, %v2245, %v2247
  %v2276 = vsel %vm2260, %v2247, %v2249
  %v2277 = vsel %vm2260, %v2249, %v2251
  %v2278 = vsel %vm2260, %v2251, %v2253
  %v2279 = vsel %vm2260, %v2253, %v2255
  %v2280 = vsel %vm2260, %v2255, %v2257
  %v2281 = vsel %vm2260, %v2257, %v2259
  %2303 = vst [vmem:[#allocation2 + $0x930] sm:$0xff] %v2261
  %2304 = vst [vmem:[#allocation2 + $0x938] sm:$0xff] %v2262
  %2305 = vst [vmem:[#allocation2 + $0x940] sm:$0xff] %v2263
  %2306 = vst [vmem:[#allocation2 + $0x948] sm:$0xff] %v2264
  %2307 = vst [vmem:[#allocation2 + $0x950] sm:$0xff] %v2265
  %2308 = vst [vmem:[#allocation2 + $0x958] sm:$0xff] %v2266
  %2309 = vst [vmem:[#allocation2 + $0x960] sm:$0xff] %v2267
  %2310 = vst [vmem:[#allocation2 + $0x968] sm:$0xff] %v2268
  %2311 = vst [vmem:[#allocation2 + $0x970] sm:$0xff] %v2269
  %2312 = vst [vmem:[#allocation2 + $0x978] sm:$0xff] %v2270
  %2313 = vst [vmem:[#allocation2 + $0x980] sm:$0xff] %v2271
  %2314 = vst [vmem:[#allocation2 + $0x988] sm:$0xff] %v2272
  %2315 = vst [vmem:[#allocation2 + $0x990] sm:$0xff] %v2273
  %2316 = vst [vmem:[#allocation2 + $0x998] sm:$0xff] %v2274
  %2317 = vst [vmem:[#allocation2 + $0x9a0] sm:$0xff] %v2275
  %2318 = vst [vmem:[#allocation2 + $0x9a8] sm:$0xff] %v2276
  %2319 = vst [vmem:[#allocation2 + $0x9b0] sm:$0xff] %v2277
  %2320 = vst [vmem:[#allocation2 + $0x9b8] sm:$0xff] %v2278
  %2321 = vst [vmem:[#allocation2 + $0x9c0] sm:$0xff] %v2279
  %2322 = vst [vmem:[#allocation2 + $0x9c8] sm:$0xff] %v2280
  %2323 = vst [vmem:[#allocation2 + $0x9d0] sm:$0xff] %v2281
  %v2324 = vld [vmem:[%s0] sm:$0xff]
  %v2325 = vld [vmem:[%s0 + $0x8] sm:$0xff]
  %v2326 = vld [vmem:[%s0 + $0x10] sm:$0xff]
  %v2327 = vld [vmem:[%s0 + $0x18] sm:$0xff]
  %v2328 = vld [vmem:[%s0 + $0x20] sm:$0xff]
  %v2329 = vld [vmem:[%s0 + $0x28] sm:$0xff]
  %v2330 = vld [vmem:[%s0 + $0x30] sm:$0xff]
  %v2331 = vld [vmem:[%s0 + $0x38] sm:$0xff]
  %v2332 = vld [vmem:[%s0 + $0x48] sm:$0xff]
  %v2333 = vld [vmem:[%s0 + $0x50] sm:$0xff]
  %v2334 = vld [vmem:[%s0 + $0x58] sm:$0xff]
  %v2335 = vld [vmem:[%s0 + $0x60] sm:$0xff]
  %v2336 = vld [vmem:[%s0 + $0x68] sm:$0xff]
  %v2337 = vld [vmem:[%s0 + $0x70] sm:$0xff]
  %v2338 = vld [vmem:[%s0 + $0x78] sm:$0xff]
  %v2339 = vld [vmem:[%s0 + $0x80] sm:$0xff]
  %v2340 = vld [vmem:[%s0 + $0x90] sm:$0xff]
  %v2341 = vld [vmem:[%s0 + $0x98] sm:$0xff]
  %v2342 = vld [vmem:[%s0 + $0xa0] sm:$0xff]
  %v2343 = vld [vmem:[%s0 + $0xa8] sm:$0xff]
  %v2344 = vld [vmem:[%s0 + $0xb0] sm:$0xff]
  %v2345 = vld [vmem:[%s0 + $0xb8] sm:$0xff]
  %v2346 = vld [vmem:[%s0 + $0xc0] sm:$0xff]
  %v2347 = vld [vmem:[%s0 + $0xc8] sm:$0xff]
  %2372 = vrot.lane.b32.xlu0 %v2324, 32
  %v2373 = vpop.permute.xlu0 %2372
  %2374 = vrot.lane.b32.xlu0 %v2325, 32
  %v2375 = vpop.permute.xlu0 %2374
  %2376 = vrot.lane.b32.xlu0 %v2326, 32
  %v2377 = vpop.permute.xlu0 %2376
  %2378 = vrot.lane.b32.xlu0 %v2327, 32
  %v2379 = vpop.permute.xlu0 %2378
  %2380 = vrot.lane.b32.xlu0 %v2328, 32
  %v2381 = vpop.permute.xlu0 %2380
  %2382 = vrot.lane.b32.xlu0 %v2329, 32
  %v2383 = vpop.permute.xlu0 %2382
  %2384 = vrot.lane.b32.xlu0 %v2330, 32
  %v2385 = vpop.permute.xlu0 %2384
  %2386 = vrot.lane.b32.xlu0 %v2331, 32
  %v2387 = vpop.permute.xlu0 %2386
  %2388 = vrot.lane.b32.xlu0 %v2332, 32
  %v2389 = vpop.permute.xlu0 %2388
  %2390 = vrot.lane.b32.xlu0 %v2333, 32
  %v2391 = vpop.permute.xlu0 %2390
  %2392 = vrot.lane.b32.xlu0 %v2334, 32
  %v2393 = vpop.permute.xlu0 %2392
  %2394 = vrot.lane.b32.xlu0 %v2335, 32
  %v2395 = vpop.permute.xlu0 %2394
  %2396 = vrot.lane.b32.xlu0 %v2336, 32
  %v2397 = vpop.permute.xlu0 %2396
  %2398 = vrot.lane.b32.xlu0 %v2337, 32
  %v2399 = vpop.permute.xlu0 %2398
  %2400 = vrot.lane.b32.xlu0 %v2338, 32
  %v2401 = vpop.permute.xlu0 %2400
  %2402 = vrot.lane.b32.xlu0 %v2339, 32
  %v2403 = vpop.permute.xlu0 %2402
  %2404 = vrot.lane.b32.xlu0 %v2340, 32
  %v2405 = vpop.permute.xlu0 %2404
  %2406 = vrot.lane.b32.xlu0 %v2341, 32
  %v2407 = vpop.permute.xlu0 %2406
  %2408 = vrot.lane.b32.xlu0 %v2342, 32
  %v2409 = vpop.permute.xlu0 %2408
  %2410 = vrot.lane.b32.xlu0 %v2343, 32
  %v2411 = vpop.permute.xlu0 %2410
  %2412 = vrot.lane.b32.xlu0 %v2344, 32
  %v2413 = vpop.permute.xlu0 %2412
  %2414 = vrot.lane.b32.xlu0 %v2345, 32
  %v2415 = vpop.permute.xlu0 %2414
  %2416 = vrot.lane.b32.xlu0 %v2346, 32
  %v2417 = vpop.permute.xlu0 %2416
  %2418 = vrot.lane.b32.xlu0 %v2347, 32
  %v2419 = vpop.permute.xlu0 %2418
  %vm2420 = vcmask 261120
  %v2421 = vsel %vm2420, %v2373, %v2375
  %v2422 = vsel %vm2420, %v2375, %v2377
  %v2423 = vsel %vm2420, %v2377, %v2379
  %v2424 = vsel %vm2420, %v2379, %v2381
  %v2425 = vsel %vm2420, %v2381, %v2383
  %v2426 = vsel %vm2420, %v2383, %v2385
  %v2427 = vsel %vm2420, %v2385, %v2387
  %v2428 = vsel %vm2420, %v2389, %v2391
  %v2429 = vsel %vm2420, %v2391, %v2393
  %v2430 = vsel %vm2420, %v2393, %v2395
  %v2431 = vsel %vm2420, %v2395, %v2397
  %v2432 = vsel %vm2420, %v2397, %v2399
  %v2433 = vsel %vm2420, %v2399, %v2401
  %v2434 = vsel %vm2420, %v2401, %v2403
  %v2435 = vsel %vm2420, %v2405, %v2407
  %v2436 = vsel %vm2420, %v2407, %v2409
  %v2437 = vsel %vm2420, %v2409, %v2411
  %v2438 = vsel %vm2420, %v2411, %v2413
  %v2439 = vsel %vm2420, %v2413, %v2415
  %v2440 = vsel %vm2420, %v2415, %v2417
  %v2441 = vsel %vm2420, %v2417, %v2419
  %2463 = vst [vmem:[#allocation2 + $0x9d8] sm:$0xff] %v2421
  %2464 = vst [vmem:[#allocation2 + $0x9e0] sm:$0xff] %v2422
  %2465 = vst [vmem:[#allocation2 + $0x9e8] sm:$0xff] %v2423
  %2466 = vst [vmem:[#allocation2 + $0x9f0] sm:$0xff] %v2424
  %2467 = vst [vmem:[#allocation2 + $0x9f8] sm:$0xff] %v2425
  %2468 = vst [vmem:[#allocation2 + $0xa00] sm:$0xff] %v2426
  %2469 = vst [vmem:[#allocation2 + $0xa08] sm:$0xff] %v2427
  %2470 = vst [vmem:[#allocation2 + $0xa10] sm:$0xff] %v2428
  %2471 = vst [vmem:[#allocation2 + $0xa18] sm:$0xff] %v2429
  %2472 = vst [vmem:[#allocation2 + $0xa20] sm:$0xff] %v2430
  %2473 = vst [vmem:[#allocation2 + $0xa28] sm:$0xff] %v2431
  %2474 = vst [vmem:[#allocation2 + $0xa30] sm:$0xff] %v2432
  %2475 = vst [vmem:[#allocation2 + $0xa38] sm:$0xff] %v2433
  %2476 = vst [vmem:[#allocation2 + $0xa40] sm:$0xff] %v2434
  %2477 = vst [vmem:[#allocation2 + $0xa48] sm:$0xff] %v2435
  %2478 = vst [vmem:[#allocation2 + $0xa50] sm:$0xff] %v2436
  %2479 = vst [vmem:[#allocation2 + $0xa58] sm:$0xff] %v2437
  %2480 = vst [vmem:[#allocation2 + $0xa60] sm:$0xff] %v2438
  %2481 = vst [vmem:[#allocation2 + $0xa68] sm:$0xff] %v2439
  %2482 = vst [vmem:[#allocation2 + $0xa70] sm:$0xff] %v2440
  %2483 = vst [vmem:[#allocation2 + $0xa78] sm:$0xff] %v2441
  %v2484 = vld [vmem:[%s0] sm:$0xff]
  %v2485 = vld [vmem:[%s0 + $0x8] sm:$0xff]
  %v2486 = vld [vmem:[%s0 + $0x10] sm:$0xff]
  %v2487 = vld [vmem:[%s0 + $0x18] sm:$0xff]
  %v2488 = vld [vmem:[%s0 + $0x20] sm:$0xff]
  %v2489 = vld [vmem:[%s0 + $0x28] sm:$0xff]
  %v2490 = vld [vmem:[%s0 + $0x30] sm:$0xff]
  %v2491 = vld [vmem:[%s0 + $0x38] sm:$0xff]
  %v2492 = vld [vmem:[%s0 + $0x48] sm:$0xff]
  %v2493 = vld [vmem:[%s0 + $0x50] sm:$0xff]
  %v2494 = vld [vmem:[%s0 + $0x58] sm:$0xff]
  %v2495 = vld [vmem:[%s0 + $0x60] sm:$0xff]
  %v2496 = vld [vmem:[%s0 + $0x68] sm:$0xff]
  %v2497 = vld [vmem:[%s0 + $0x70] sm:$0xff]
  %v2498 = vld [vmem:[%s0 + $0x78] sm:$0xff]
  %v2499 = vld [vmem:[%s0 + $0x80] sm:$0xff]
  %v2500 = vld [vmem:[%s0 + $0x90] sm:$0xff]
  %v2501 = vld [vmem:[%s0 + $0x98] sm:$0xff]
  %v2502 = vld [vmem:[%s0 + $0xa0] sm:$0xff]
  %v2503 = vld [vmem:[%s0 + $0xa8] sm:$0xff]
  %v2504 = vld [vmem:[%s0 + $0xb0] sm:$0xff]
  %v2505 = vld [vmem:[%s0 + $0xb8] sm:$0xff]
  %v2506 = vld [vmem:[%s0 + $0xc0] sm:$0xff]
  %v2507 = vld [vmem:[%s0 + $0xc8] sm:$0xff]
  %2532 = vrot.lane.b32.xlu0 %v2484, 31
  %v2533 = vpop.permute.xlu0 %2532
  %2534 = vrot.lane.b32.xlu0 %v2485, 31
  %v2535 = vpop.permute.xlu0 %2534
  %2536 = vrot.lane.b32.xlu0 %v2486, 31
  %v2537 = vpop.permute.xlu0 %2536
  %2538 = vrot.lane.b32.xlu0 %v2487, 31
  %v2539 = vpop.permute.xlu0 %2538
  %2540 = vrot.lane.b32.xlu0 %v2488, 31
  %v2541 = vpop.permute.xlu0 %2540
  %2542 = vrot.lane.b32.xlu0 %v2489, 31
  %v2543 = vpop.permute.xlu0 %2542
  %2544 = vrot.lane.b32.xlu0 %v2490, 31
  %v2545 = vpop.permute.xlu0 %2544
  %2546 = vrot.lane.b32.xlu0 %v2491, 31
  %v2547 = vpop.permute.xlu0 %2546
  %2548 = vrot.lane.b32.xlu0 %v2492, 31
  %v2549 = vpop.permute.xlu0 %2548
  %2550 = vrot.lane.b32.xlu0 %v2493, 31
  %v2551 = vpop.permute.xlu0 %2550
  %2552 = vrot.lane.b32.xlu0 %v2494, 31
  %v2553 = vpop.permute.xlu0 %2552
  %2554 = vrot.lane.b32.xlu0 %v2495, 31
  %v2555 = vpop.permute.xlu0 %2554
  %2556 = vrot.lane.b32.xlu0 %v2496, 31
  %v2557 = vpop.permute.xlu0 %2556
  %2558 = vrot.lane.b32.xlu0 %v2497, 31
  %v2559 = vpop.permute.xlu0 %2558
  %2560 = vrot.lane.b32.xlu0 %v2498, 31
  %v2561 = vpop.permute.xlu0 %2560
  %2562 = vrot.lane.b32.xlu0 %v2499, 31
  %v2563 = vpop.permute.xlu0 %2562
  %2564 = vrot.lane.b32.xlu0 %v2500, 31
  %v2565 = vpop.permute.xlu0 %2564
  %2566 = vrot.lane.b32.xlu0 %v2501, 31
  %v2567 = vpop.permute.xlu0 %2566
  %2568 = vrot.lane.b32.xlu0 %v2502, 31
  %v2569 = vpop.permute.xlu0 %2568
  %2570 = vrot.lane.b32.xlu0 %v2503, 31
  %v2571 = vpop.permute.xlu0 %2570
  %2572 = vrot.lane.b32.xlu0 %v2504, 31
  %v2573 = vpop.permute.xlu0 %2572
  %2574 = vrot.lane.b32.xlu0 %v2505, 31
  %v2575 = vpop.permute.xlu0 %2574
  %2576 = vrot.lane.b32.xlu0 %v2506, 31
  %v2577 = vpop.permute.xlu0 %2576
  %2578 = vrot.lane.b32.xlu0 %v2507, 31
  %v2579 = vpop.permute.xlu0 %2578
  %vm2580 = vcmask 252928
  %v2581 = vsel %vm2580, %v2533, %v2535
  %v2582 = vsel %vm2580, %v2535, %v2537
  %v2583 = vsel %vm2580, %v2537, %v2539
  %v2584 = vsel %vm2580, %v2539, %v2541
  %v2585 = vsel %vm2580, %v2541, %v2543
  %v2586 = vsel %vm2580, %v2543, %v2545
  %v2587 = vsel %vm2580, %v2545, %v2547
  %v2588 = vsel %vm2580, %v2549, %v2551
  %v2589 = vsel %vm2580, %v2551, %v2553
  %v2590 = vsel %vm2580, %v2553, %v2555
  %v2591 = vsel %vm2580, %v2555, %v2557
  %v2592 = vsel %vm2580, %v2557, %v2559
  %v2593 = vsel %vm2580, %v2559, %v2561
  %v2594 = vsel %vm2580, %v2561, %v2563
  %v2595 = vsel %vm2580, %v2565, %v2567
  %v2596 = vsel %vm2580, %v2567, %v2569
  %v2597 = vsel %vm2580, %v2569, %v2571
  %v2598 = vsel %vm2580, %v2571, %v2573
  %v2599 = vsel %vm2580, %v2573, %v2575
  %v2600 = vsel %vm2580, %v2575, %v2577
  %v2601 = vsel %vm2580, %v2577, %v2579
  %2623 = vst [vmem:[#allocation2 + $0xa80] sm:$0xff] %v2581
  %2624 = vst [vmem:[#allocation2 + $0xa88] sm:$0xff] %v2582
  %2625 = vst [vmem:[#allocation2 + $0xa90] sm:$0xff] %v2583
  %2626 = vst [vmem:[#allocation2 + $0xa98] sm:$0xff] %v2584
  %2627 = vst [vmem:[#allocation2 + $0xaa0] sm:$0xff] %v2585
  %2628 = vst [vmem:[#allocation2 + $0xaa8] sm:$0xff] %v2586
  %2629 = vst [vmem:[#allocation2 + $0xab0] sm:$0xff] %v2587
  %2630 = vst [vmem:[#allocation2 + $0xab8] sm:$0xff] %v2588
  %2631 = vst [vmem:[#allocation2 + $0xac0] sm:$0xff] %v2589
  %2632 = vst [vmem:[#allocation2 + $0xac8] sm:$0xff] %v2590
  %2633 = vst [vmem:[#allocation2 + $0xad0] sm:$0xff] %v2591
  %2634 = vst [vmem:[#allocation2 + $0xad8] sm:$0xff] %v2592
  %2635 = vst [vmem:[#allocation2 + $0xae0] sm:$0xff] %v2593
  %2636 = vst [vmem:[#allocation2 + $0xae8] sm:$0xff] %v2594
  %2637 = vst [vmem:[#allocation2 + $0xaf0] sm:$0xff] %v2595
  %2638 = vst [vmem:[#allocation2 + $0xaf8] sm:$0xff] %v2596
  %2639 = vst [vmem:[#allocation2 + $0xb00] sm:$0xff] %v2597
  %2640 = vst [vmem:[#allocation2 + $0xb08] sm:$0xff] %v2598
  %2641 = vst [vmem:[#allocation2 + $0xb10] sm:$0xff] %v2599
  %2642 = vst [vmem:[#allocation2 + $0xb18] sm:$0xff] %v2600
  %2643 = vst [vmem:[#allocation2 + $0xb20] sm:$0xff] %v2601
  %v2644 = vld [vmem:[%s0] sm:$0xff]
  %v2645 = vld [vmem:[%s0 + $0x8] sm:$0xff]
  %v2646 = vld [vmem:[%s0 + $0x10] sm:$0xff]
  %v2647 = vld [vmem:[%s0 + $0x18] sm:$0xff]
  %v2648 = vld [vmem:[%s0 + $0x20] sm:$0xff]
  %v2649 = vld [vmem:[%s0 + $0x28] sm:$0xff]
  %v2650 = vld [vmem:[%s0 + $0x30] sm:$0xff]
  %v2651 = vld [vmem:[%s0 + $0x38] sm:$0xff]
  %v2652 = vld [vmem:[%s0 + $0x48] sm:$0xff]
  %v2653 = vld [vmem:[%s0 + $0x50] sm:$0xff]
  %v2654 = vld [vmem:[%s0 + $0x58] sm:$0xff]
  %v2655 = vld [vmem:[%s0 + $0x60] sm:$0xff]
  %v2656 = vld [vmem:[%s0 + $0x68] sm:$0xff]
  %v2657 = vld [vmem:[%s0 + $0x70] sm:$0xff]
  %v2658 = vld [vmem:[%s0 + $0x78] sm:$0xff]
  %v2659 = vld [vmem:[%s0 + $0x80] sm:$0xff]
  %v2660 = vld [vmem:[%s0 + $0x90] sm:$0xff]
  %v2661 = vld [vmem:[%s0 + $0x98] sm:$0xff]
  %v2662 = vld [vmem:[%s0 + $0xa0] sm:$0xff]
  %v2663 = vld [vmem:[%s0 + $0xa8] sm:$0xff]
  %v2664 = vld [vmem:[%s0 + $0xb0] sm:$0xff]
  %v2665 = vld [vmem:[%s0 + $0xb8] sm:$0xff]
  %v2666 = vld [vmem:[%s0 + $0xc0] sm:$0xff]
  %v2667 = vld [vmem:[%s0 + $0xc8] sm:$0xff]
  %2692 = vrot.lane.b32.xlu0 %v2644, 30
  %v2693 = vpop.permute.xlu0 %2692
  %2694 = vrot.lane.b32.xlu0 %v2645, 30
  %v2695 = vpop.permute.xlu0 %2694
  %2696 = vrot.lane.b32.xlu0 %v2646, 30
  %v2697 = vpop.permute.xlu0 %2696
  %2698 = vrot.lane.b32.xlu0 %v2647, 30
  %v2699 = vpop.permute.xlu0 %2698
  %2700 = vrot.lane.b32.xlu0 %v2648, 30
  %v2701 = vpop.permute.xlu0 %2700
  %2702 = vrot.lane.b32.xlu0 %v2649, 30
  %v2703 = vpop.permute.xlu0 %2702
  %2704 = vrot.lane.b32.xlu0 %v2650, 30
  %v2705 = vpop.permute.xlu0 %2704
  %2706 = vrot.lane.b32.xlu0 %v2651, 30
  %v2707 = vpop.permute.xlu0 %2706
  %2708 = vrot.lane.b32.xlu0 %v2652, 30
  %v2709 = vpop.permute.xlu0 %2708
  %2710 = vrot.lane.b32.xlu0 %v2653, 30
  %v2711 = vpop.permute.xlu0 %2710
  %2712 = vrot.lane.b32.xlu0 %v2654, 30
  %v2713 = vpop.permute.xlu0 %2712
  %2714 = vrot.lane.b32.xlu0 %v2655, 30
  %v2715 = vpop.permute.xlu0 %2714
  %2716 = vrot.lane.b32.xlu0 %v2656, 30
  %v2717 = vpop.permute.xlu0 %2716
  %2718 = vrot.lane.b32.xlu0 %v2657, 30
  %v2719 = vpop.permute.xlu0 %2718
  %2720 = vrot.lane.b32.xlu0 %v2658, 30
  %v2721 = vpop.permute.xlu0 %2720
  %2722 = vrot.lane.b32.xlu0 %v2659, 30
  %v2723 = vpop.permute.xlu0 %2722
  %2724 = vrot.lane.b32.xlu0 %v2660, 30
  %v2725 = vpop.permute.xlu0 %2724
  %2726 = vrot.lane.b32.xlu0 %v2661, 30
  %v2727 = vpop.permute.xlu0 %2726
  %2728 = vrot.lane.b32.xlu0 %v2662, 30
  %v2729 = vpop.permute.xlu0 %2728
  %2730 = vrot.lane.b32.xlu0 %v2663, 30
  %v2731 = vpop.permute.xlu0 %2730
  %2732 = vrot.lane.b32.xlu0 %v2664, 30
  %v2733 = vpop.permute.xlu0 %2732
  %2734 = vrot.lane.b32.xlu0 %v2665, 30
  %v2735 = vpop.permute.xlu0 %2734
  %2736 = vrot.lane.b32.xlu0 %v2666, 30
  %v2737 = vpop.permute.xlu0 %2736
  %2738 = vrot.lane.b32.xlu0 %v2667, 30
  %v2739 = vpop.permute.xlu0 %2738
  %vm2740 = vcmask 244736
  %v2741 = vsel %vm2740, %v2693, %v2695
  %v2742 = vsel %vm2740, %v2695, %v2697
  %v2743 = vsel %vm2740, %v2697, %v2699
  %v2744 = vsel %vm2740, %v2699, %v2701
  %v2745 = vsel %vm2740, %v2701, %v2703
  %v2746 = vsel %vm2740, %v2703, %v2705
  %v2747 = vsel %vm2740, %v2705, %v2707
  %v2748 = vsel %vm2740, %v2709, %v2711
  %v2749 = vsel %vm2740, %v2711, %v2713
  %v2750 = vsel %vm2740, %v2713, %v2715
  %v2751 = vsel %vm2740, %v2715, %v2717
  %v2752 = vsel %vm2740, %v2717, %v2719
  %v2753 = vsel %vm2740, %v2719, %v2721
  %v2754 = vsel %vm2740, %v2721, %v2723
  %v2755 = vsel %vm2740, %v2725, %v2727
  %v2756 = vsel %vm2740, %v2727, %v2729
  %v2757 = vsel %vm2740, %v2729, %v2731
  %v2758 = vsel %vm2740, %v2731, %v2733
  %v2759 = vsel %vm2740, %v2733, %v2735
  %v2760 = vsel %vm2740, %v2735, %v2737
  %v2761 = vsel %vm2740, %v2737, %v2739
  %2783 = vst [vmem:[#allocation2 + $0xb28] sm:$0xff] %v2741
  %2784 = vst [vmem:[#allocation2 + $0xb30] sm:$0xff] %v2742
  %2785 = vst [vmem:[#allocation2 + $0xb38] sm:$0xff] %v2743
  %2786 = vst [vmem:[#allocation2 + $0xb40] sm:$0xff] %v2744
  %2787 = vst [vmem:[#allocation2 + $0xb48] sm:$0xff] %v2745
  %2788 = vst [vmem:[#allocation2 + $0xb50] sm:$0xff] %v2746
  %2789 = vst [vmem:[#allocation2 + $0xb58] sm:$0xff] %v2747
  %2790 = vst [vmem:[#allocation2 + $0xb60] sm:$0xff] %v2748
  %2791 = vst [vmem:[#allocation2 + $0xb68] sm:$0xff] %v2749
  %2792 = vst [vmem:[#allocation2 + $0xb70] sm:$0xff] %v2750
  %2793 = vst [vmem:[#allocation2 + $0xb78] sm:$0xff] %v2751
  %2794 = vst [vmem:[#allocation2 + $0xb80] sm:$0xff] %v2752
  %2795 = vst [vmem:[#allocation2 + $0xb88] sm:$0xff] %v2753
  %2796 = vst [vmem:[#allocation2 + $0xb90] sm:$0xff] %v2754
  %2797 = vst [vmem:[#allocation2 + $0xb98] sm:$0xff] %v2755
  %2798 = vst [vmem:[#allocation2 + $0xba0] sm:$0xff] %v2756
  %2799 = vst [vmem:[#allocation2 + $0xba8] sm:$0xff] %v2757
  %2800 = vst [vmem:[#allocation2 + $0xbb0] sm:$0xff] %v2758
  %2801 = vst [vmem:[#allocation2 + $0xbb8] sm:$0xff] %v2759
  %2802 = vst [vmem:[#allocation2 + $0xbc0] sm:$0xff] %v2760
  %2803 = vst [vmem:[#allocation2 + $0xbc8] sm:$0xff] %v2761
  %v2804 = vld [vmem:[%s0] sm:$0xff]
  %v2805 = vld [vmem:[%s0 + $0x8] sm:$0xff]
  %v2806 = vld [vmem:[%s0 + $0x10] sm:$0xff]
  %v2807 = vld [vmem:[%s0 + $0x18] sm:$0xff]
  %v2808 = vld [vmem:[%s0 + $0x20] sm:$0xff]
  %v2809 = vld [vmem:[%s0 + $0x28] sm:$0xff]
  %v2810 = vld [vmem:[%s0 + $0x30] sm:$0xff]
  %v2811 = vld [vmem:[%s0 + $0x38] sm:$0xff]
  %v2812 = vld [vmem:[%s0 + $0x48] sm:$0xff]
  %v2813 = vld [vmem:[%s0 + $0x50] sm:$0xff]
  %v2814 = vld [vmem:[%s0 + $0x58] sm:$0xff]
  %v2815 = vld [vmem:[%s0 + $0x60] sm:$0xff]
  %v2816 = vld [vmem:[%s0 + $0x68] sm:$0xff]
  %v2817 = vld [vmem:[%s0 + $0x70] sm:$0xff]
  %v2818 = vld [vmem:[%s0 + $0x78] sm:$0xff]
  %v2819 = vld [vmem:[%s0 + $0x80] sm:$0xff]
  %v2820 = vld [vmem:[%s0 + $0x90] sm:$0xff]
  %v2821 = vld [vmem:[%s0 + $0x98] sm:$0xff]
  %v2822 = vld [vmem:[%s0 + $0xa0] sm:$0xff]
  %v2823 = vld [vmem:[%s0 + $0xa8] sm:$0xff]
  %v2824 = vld [vmem:[%s0 + $0xb0] sm:$0xff]
  %v2825 = vld [vmem:[%s0 + $0xb8] sm:$0xff]
  %v2826 = vld [vmem:[%s0 + $0xc0] sm:$0xff]
  %v2827 = vld [vmem:[%s0 + $0xc8] sm:$0xff]
  %2852 = vrot.lane.b32.xlu0 %v2804, 29
  %v2853 = vpop.permute.xlu0 %2852
  %2854 = vrot.lane.b32.xlu0 %v2805, 29
  %v2855 = vpop.permute.xlu0 %2854
  %2856 = vrot.lane.b32.xlu0 %v2806, 29
  %v2857 = vpop.permute.xlu0 %2856
  %2858 = vrot.lane.b32.xlu0 %v2807, 29
  %v2859 = vpop.permute.xlu0 %2858
  %2860 = vrot.lane.b32.xlu0 %v2808, 29
  %v2861 = vpop.permute.xlu0 %2860
  %2862 = vrot.lane.b32.xlu0 %v2809, 29
  %v2863 = vpop.permute.xlu0 %2862
  %2864 = vrot.lane.b32.xlu0 %v2810, 29
  %v2865 = vpop.permute.xlu0 %2864
  %2866 = vrot.lane.b32.xlu0 %v2811, 29
  %v2867 = vpop.permute.xlu0 %2866
  %2868 = vrot.lane.b32.xlu0 %v2812, 29
  %v2869 = vpop.permute.xlu0 %2868
  %2870 = vrot.lane.b32.xlu0 %v2813, 29
  %v2871 = vpop.permute.xlu0 %2870
  %2872 = vrot.lane.b32.xlu0 %v2814, 29
  %v2873 = vpop.permute.xlu0 %2872
  %2874 = vrot.lane.b32.xlu0 %v2815, 29
  %v2875 = vpop.permute.xlu0 %2874
  %2876 = vrot.lane.b32.xlu0 %v2816, 29
  %v2877 = vpop.permute.xlu0 %2876
  %2878 = vrot.lane.b32.xlu0 %v2817, 29
  %v2879 = vpop.permute.xlu0 %2878
  %2880 = vrot.lane.b32.xlu0 %v2818, 29
  %v2881 = vpop.permute.xlu0 %2880
  %2882 = vrot.lane.b32.xlu0 %v2819, 29
  %v2883 = vpop.permute.xlu0 %2882
  %2884 = vrot.lane.b32.xlu0 %v2820, 29
  %v2885 = vpop.permute.xlu0 %2884
  %2886 = vrot.lane.b32.xlu0 %v2821, 29
  %v2887 = vpop.permute.xlu0 %2886
  %2888 = vrot.lane.b32.xlu0 %v2822, 29
  %v2889 = vpop.permute.xlu0 %2888
  %2890 = vrot.lane.b32.xlu0 %v2823, 29
  %v2891 = vpop.permute.xlu0 %2890
  %2892 = vrot.lane.b32.xlu0 %v2824, 29
  %v2893 = vpop.permute.xlu0 %2892
  %2894 = vrot.lane.b32.xlu0 %v2825, 29
  %v2895 = vpop.permute.xlu0 %2894
  %2896 = vrot.lane.b32.xlu0 %v2826, 29
  %v2897 = vpop.permute.xlu0 %2896
  %2898 = vrot.lane.b32.xlu0 %v2827, 29
  %v2899 = vpop.permute.xlu0 %2898
  %vm2900 = vcmask 236544
  %v2901 = vsel %vm2900, %v2853, %v2855
  %v2902 = vsel %vm2900, %v2855, %v2857
  %v2903 = vsel %vm2900, %v2857, %v2859
  %v2904 = vsel %vm2900, %v2859, %v2861
  %v2905 = vsel %vm2900, %v2861, %v2863
  %v2906 = vsel %vm2900, %v2863, %v2865
  %v2907 = vsel %vm2900, %v2865, %v2867
  %v2908 = vsel %vm2900, %v2869, %v2871
  %v2909 = vsel %vm2900, %v2871, %v2873
  %v2910 = vsel %vm2900, %v2873, %v2875
  %v2911 = vsel %vm2900, %v2875, %v2877
  %v2912 = vsel %vm2900, %v2877, %v2879
  %v2913 = vsel %vm2900, %v2879, %v2881
  %v2914 = vsel %vm2900, %v2881, %v2883
  %v2915 = vsel %vm2900, %v2885, %v2887
  %v2916 = vsel %vm2900, %v2887, %v2889
  %v2917 = vsel %vm2900, %v2889, %v2891
  %v2918 = vsel %vm2900, %v2891, %v2893
  %v2919 = vsel %vm2900, %v2893, %v2895
  %v2920 = vsel %vm2900, %v2895, %v2897
  %v2921 = vsel %vm2900, %v2897, %v2899
  %2943 = vst [vmem:[#allocation2 + $0xbd0] sm:$0xff] %v2901
  %2944 = vst [vmem:[#allocation2 + $0xbd8] sm:$0xff] %v2902
  %2945 = vst [vmem:[#allocation2 + $0xbe0] sm:$0xff] %v2903
  %2946 = vst [vmem:[#allocation2 + $0xbe8] sm:$0xff] %v2904
  %2947 = vst [vmem:[#allocation2 + $0xbf0] sm:$0xff] %v2905
  %2948 = vst [vmem:[#allocation2 + $0xbf8] sm:$0xff] %v2906
  %2949 = vst [vmem:[#allocation2 + $0xc00] sm:$0xff] %v2907
  %2950 = vst [vmem:[#allocation2 + $0xc08] sm:$0xff] %v2908
  %2951 = vst [vmem:[#allocation2 + $0xc10] sm:$0xff] %v2909
  %2952 = vst [vmem:[#allocation2 + $0xc18] sm:$0xff] %v2910
  %2953 = vst [vmem:[#allocation2 + $0xc20] sm:$0xff] %v2911
  %2954 = vst [vmem:[#allocation2 + $0xc28] sm:$0xff] %v2912
  %2955 = vst [vmem:[#allocation2 + $0xc30] sm:$0xff] %v2913
  %2956 = vst [vmem:[#allocation2 + $0xc38] sm:$0xff] %v2914
  %2957 = vst [vmem:[#allocation2 + $0xc40] sm:$0xff] %v2915
  %2958 = vst [vmem:[#allocation2 + $0xc48] sm:$0xff] %v2916
  %2959 = vst [vmem:[#allocation2 + $0xc50] sm:$0xff] %v2917
  %2960 = vst [vmem:[#allocation2 + $0xc58] sm:$0xff] %v2918
  %2961 = vst [vmem:[#allocation2 + $0xc60] sm:$0xff] %v2919
  %2962 = vst [vmem:[#allocation2 + $0xc68] sm:$0xff] %v2920
  %2963 = vst [vmem:[#allocation2 + $0xc70] sm:$0xff] %v2921
  %v2964 = vld [vmem:[%s0] sm:$0xff]
  %v2965 = vld [vmem:[%s0 + $0x8] sm:$0xff]
  %v2966 = vld [vmem:[%s0 + $0x10] sm:$0xff]
  %v2967 = vld [vmem:[%s0 + $0x18] sm:$0xff]
  %v2968 = vld [vmem:[%s0 + $0x20] sm:$0xff]
  %v2969 = vld [vmem:[%s0 + $0x28] sm:$0xff]
  %v2970 = vld [vmem:[%s0 + $0x30] sm:$0xff]
  %v2971 = vld [vmem:[%s0 + $0x38] sm:$0xff]
  %v2972 = vld [vmem:[%s0 + $0x48] sm:$0xff]
  %v2973 = vld [vmem:[%s0 + $0x50] sm:$0xff]
  %v2974 = vld [vmem:[%s0 + $0x58] sm:$0xff]
  %v2975 = vld [vmem:[%s0 + $0x60] sm:$0xff]
  %v2976 = vld [vmem:[%s0 + $0x68] sm:$0xff]
  %v2977 = vld [vmem:[%s0 + $0x70] sm:$0xff]
  %v2978 = vld [vmem:[%s0 + $0x78] sm:$0xff]
  %v2979 = vld [vmem:[%s0 + $0x80] sm:$0xff]
  %v2980 = vld [vmem:[%s0 + $0x90] sm:$0xff]
  %v2981 = vld [vmem:[%s0 + $0x98] sm:$0xff]
  %v2982 = vld [vmem:[%s0 + $0xa0] sm:$0xff]
  %v2983 = vld [vmem:[%s0 + $0xa8] sm:$0xff]
  %v2984 = vld [vmem:[%s0 + $0xb0] sm:$0xff]
  %v2985 = vld [vmem:[%s0 + $0xb8] sm:$0xff]
  %v2986 = vld [vmem:[%s0 + $0xc0] sm:$0xff]
  %v2987 = vld [vmem:[%s0 + $0xc8] sm:$0xff]
  %3012 = vrot.lane.b32.xlu0 %v2964, 28
  %v3013 = vpop.permute.xlu0 %3012
  %3014 = vrot.lane.b32.xlu0 %v2965, 28
  %v3015 = vpop.permute.xlu0 %3014
  %3016 = vrot.lane.b32.xlu0 %v2966, 28
  %v3017 = vpop.permute.xlu0 %3016
  %3018 = vrot.lane.b32.xlu0 %v2967, 28
  %v3019 = vpop.permute.xlu0 %3018
  %3020 = vrot.lane.b32.xlu0 %v2968, 28
  %v3021 = vpop.permute.xlu0 %3020
  %3022 = vrot.lane.b32.xlu0 %v2969, 28
  %v3023 = vpop.permute.xlu0 %3022
  %3024 = vrot.lane.b32.xlu0 %v2970, 28
  %v3025 = vpop.permute.xlu0 %3024
  %3026 = vrot.lane.b32.xlu0 %v2971, 28
  %v3027 = vpop.permute.xlu0 %3026
  %3028 = vrot.lane.b32.xlu0 %v2972, 28
  %v3029 = vpop.permute.xlu0 %3028
  %3030 = vrot.lane.b32.xlu0 %v2973, 28
  %v3031 = vpop.permute.xlu0 %3030
  %3032 = vrot.lane.b32.xlu0 %v2974, 28
  %v3033 = vpop.permute.xlu0 %3032
  %3034 = vrot.lane.b32.xlu0 %v2975, 28
  %v3035 = vpop.permute.xlu0 %3034
  %3036 = vrot.lane.b32.xlu0 %v2976, 28
  %v3037 = vpop.permute.xlu0 %3036
  %3038 = vrot.lane.b32.xlu0 %v2977, 28
  %v3039 = vpop.permute.xlu0 %3038
  %3040 = vrot.lane.b32.xlu0 %v2978, 28
  %v3041 = vpop.permute.xlu0 %3040
  %3042 = vrot.lane.b32.xlu0 %v2979, 28
  %v3043 = vpop.permute.xlu0 %3042
  %3044 = vrot.lane.b32.xlu0 %v2980, 28
  %v3045 = vpop.permute.xlu0 %3044
  %3046 = vrot.lane.b32.xlu0 %v2981, 28
  %v3047 = vpop.permute.xlu0 %3046
  %3048 = vrot.lane.b32.xlu0 %v2982, 28
  %v3049 = vpop.permute.xlu0 %3048
  %3050 = vrot.lane.b32.xlu0 %v2983, 28
  %v3051 = vpop.permute.xlu0 %3050
  %3052 = vrot.lane.b32.xlu0 %v2984, 28
  %v3053 = vpop.permute.xlu0 %3052
  %3054 = vrot.lane.b32.xlu0 %v2985, 28
  %v3055 = vpop.permute.xlu0 %3054
  %3056 = vrot.lane.b32.xlu0 %v2986, 28
  %v3057 = vpop.permute.xlu0 %3056
  %3058 = vrot.lane.b32.xlu0 %v2987, 28
  %v3059 = vpop.permute.xlu0 %3058
  %vm3060 = vcmask 228352
  %v3061 = vsel %vm3060, %v3013, %v3015
  %v3062 = vsel %vm3060, %v3015, %v3017
  %v3063 = vsel %vm3060, %v3017, %v3019
  %v3064 = vsel %vm3060, %v3019, %v3021
  %v3065 = vsel %vm3060, %v3021, %v3023
  %v3066 = vsel %vm3060, %v3023, %v3025
  %v3067 = vsel %vm3060, %v3025, %v3027
  %v3068 = vsel %vm3060, %v3029, %v3031
  %v3069 = vsel %vm3060, %v3031, %v3033
  %v3070 = vsel %vm3060, %v3033, %v3035
  %v3071 = vsel %vm3060, %v3035, %v3037
  %v3072 = vsel %vm3060, %v3037, %v3039
  %v3073 = vsel %vm3060, %v3039, %v3041
  %v3074 = vsel %vm3060, %v3041, %v3043
  %v3075 = vsel %vm3060, %v3045, %v3047
  %v3076 = vsel %vm3060, %v3047, %v3049
  %v3077 = vsel %vm3060, %v3049, %v3051
  %v3078 = vsel %vm3060, %v3051, %v3053
  %v3079 = vsel %vm3060, %v3053, %v3055
  %v3080 = vsel %vm3060, %v3055, %v3057
  %v3081 = vsel %vm3060, %v3057, %v3059
  %3103 = vst [vmem:[#allocation2 + $0xc78] sm:$0xff] %v3061
  %3104 = vst [vmem:[#allocation2 + $0xc80] sm:$0xff] %v3062
  %3105 = vst [vmem:[#allocation2 + $0xc88] sm:$0xff] %v3063
  %3106 = vst [vmem:[#allocation2 + $0xc90] sm:$0xff] %v3064
  %3107 = vst [vmem:[#allocation2 + $0xc98] sm:$0xff] %v3065
  %3108 = vst [vmem:[#allocation2 + $0xca0] sm:$0xff] %v3066
  %3109 = vst [vmem:[#allocation2 + $0xca8] sm:$0xff] %v3067
  %3110 = vst [vmem:[#allocation2 + $0xcb0] sm:$0xff] %v3068
  %3111 = vst [vmem:[#allocation2 + $0xcb8] sm:$0xff] %v3069
  %3112 = vst [vmem:[#allocation2 + $0xcc0] sm:$0xff] %v3070
  %3113 = vst [vmem:[#allocation2 + $0xcc8] sm:$0xff] %v3071
  %3114 = vst [vmem:[#allocation2 + $0xcd0] sm:$0xff] %v3072
  %3115 = vst [vmem:[#allocation2 + $0xcd8] sm:$0xff] %v3073
  %3116 = vst [vmem:[#allocation2 + $0xce0] sm:$0xff] %v3074
  %3117 = vst [vmem:[#allocation2 + $0xce8] sm:$0xff] %v3075
  %3118 = vst [vmem:[#allocation2 + $0xcf0] sm:$0xff] %v3076
  %3119 = vst [vmem:[#allocation2 + $0xcf8] sm:$0xff] %v3077
  %3120 = vst [vmem:[#allocation2 + $0xd00] sm:$0xff] %v3078
  %3121 = vst [vmem:[#allocation2 + $0xd08] sm:$0xff] %v3079
  %3122 = vst [vmem:[#allocation2 + $0xd10] sm:$0xff] %v3080
  %3123 = vst [vmem:[#allocation2 + $0xd18] sm:$0xff] %v3081
  %v3124 = vld [vmem:[%s0 + $0x8] sm:$0xff]
  %v3125 = vld [vmem:[%s0 + $0x10] sm:$0xff]
  %v3126 = vld [vmem:[%s0 + $0x18] sm:$0xff]
  %v3127 = vld [vmem:[%s0 + $0x20] sm:$0xff]
  %v3128 = vld [vmem:[%s0 + $0x28] sm:$0xff]
  %v3129 = vld [vmem:[%s0 + $0x30] sm:$0xff]
  %v3130 = vld [vmem:[%s0 + $0x38] sm:$0xff]
  %v3131 = vld [vmem:[%s0 + $0x50] sm:$0xff]
  %v3132 = vld [vmem:[%s0 + $0x58] sm:$0xff]
  %v3133 = vld [vmem:[%s0 + $0x60] sm:$0xff]
  %v3134 = vld [vmem:[%s0 + $0x68] sm:$0xff]
  %v3135 = vld [vmem:[%s0 + $0x70] sm:$0xff]
  %v3136 = vld [vmem:[%s0 + $0x78] sm:$0xff]
  %v3137 = vld [vmem:[%s0 + $0x80] sm:$0xff]
  %v3138 = vld [vmem:[%s0 + $0x98] sm:$0xff]
  %v3139 = vld [vmem:[%s0 + $0xa0] sm:$0xff]
  %v3140 = vld [vmem:[%s0 + $0xa8] sm:$0xff]
  %v3141 = vld [vmem:[%s0 + $0xb0] sm:$0xff]
  %v3142 = vld [vmem:[%s0 + $0xb8] sm:$0xff]
  %v3143 = vld [vmem:[%s0 + $0xc0] sm:$0xff]
  %v3144 = vld [vmem:[%s0 + $0xc8] sm:$0xff]
  %3145 = vst [vmem:[#allocation2 + $0xd20] sm:$0xff] %v3124
  %3146 = vst [vmem:[#allocation2 + $0xd28] sm:$0xff] %v3125
  %3147 = vst [vmem:[#allocation2 + $0xd30] sm:$0xff] %v3126
  %3148 = vst [vmem:[#allocation2 + $0xd38] sm:$0xff] %v3127
  %3149 = vst [vmem:[#allocation2 + $0xd40] sm:$0xff] %v3128
  %3150 = vst [vmem:[#allocation2 + $0xd48] sm:$0xff] %v3129
  %3151 = vst [vmem:[#allocation2 + $0xd50] sm:$0xff] %v3130
  %3152 = vst [vmem:[#allocation2 + $0xd58] sm:$0xff] %v3131
  %3153 = vst [vmem:[#allocation2 + $0xd60] sm:$0xff] %v3132
  %3154 = vst [vmem:[#allocation2 + $0xd68] sm:$0xff] %v3133
  %3155 = vst [vmem:[#allocation2 + $0xd70] sm:$0xff] %v3134
  %3156 = vst [vmem:[#allocation2 + $0xd78] sm:$0xff] %v3135
  %3157 = vst [vmem:[#allocation2 + $0xd80] sm:$0xff] %v3136
  %3158 = vst [vmem:[#allocation2 + $0xd88] sm:$0xff] %v3137
  %3159 = vst [vmem:[#allocation2 + $0xd90] sm:$0xff] %v3138
  %3160 = vst [vmem:[#allocation2 + $0xd98] sm:$0xff] %v3139
  %3161 = vst [vmem:[#allocation2 + $0xda0] sm:$0xff] %v3140
  %3162 = vst [vmem:[#allocation2 + $0xda8] sm:$0xff] %v3141
  %3163 = vst [vmem:[#allocation2 + $0xdb0] sm:$0xff] %v3142
  %3164 = vst [vmem:[#allocation2 + $0xdb8] sm:$0xff] %v3143
  %3165 = vst [vmem:[#allocation2 + $0xdc0] sm:$0xff] %v3144
  %v3166 = vld [vmem:[%s0 + $0x8] sm:$0xff]
  %v3167 = vld [vmem:[%s0 + $0x10] sm:$0xff]
  %v3168 = vld [vmem:[%s0 + $0x18] sm:$0xff]
  %v3169 = vld [vmem:[%s0 + $0x20] sm:$0xff]
  %v3170 = vld [vmem:[%s0 + $0x28] sm:$0xff]
  %v3171 = vld [vmem:[%s0 + $0x30] sm:$0xff]
  %v3172 = vld [vmem:[%s0 + $0x38] sm:$0xff]
  %v3173 = vld [vmem:[%s0 + $0x40] sm:$0xff]
  %v3174 = vld [vmem:[%s0 + $0x50] sm:$0xff]
  %v3175 = vld [vmem:[%s0 + $0x58] sm:$0xff]
  %v3176 = vld [vmem:[%s0 + $0x60] sm:$0xff]
  %v3177 = vld [vmem:[%s0 + $0x68] sm:$0xff]
  %v3178 = vld [vmem:[%s0 + $0x70] sm:$0xff]
  %v3179 = vld [vmem:[%s0 + $0x78] sm:$0xff]
  %v3180 = vld [vmem:[%s0 + $0x80] sm:$0xff]
  %v3181 = vld [vmem:[%s0 + $0x88] sm:$0xff]
  %v3182 = vld [vmem:[%s0 + $0x98] sm:$0xff]
  %v3183 = vld [vmem:[%s0 + $0xa0] sm:$0xff]
  %v3184 = vld [vmem:[%s0 + $0xa8] sm:$0xff]
  %v3185 = vld [vmem:[%s0 + $0xb0] sm:$0xff]
  %v3186 = vld [vmem:[%s0 + $0xb8] sm:$0xff]
  %v3187 = vld [vmem:[%s0 + $0xc0] sm:$0xff]
  %v3188 = vld [vmem:[%s0 + $0xc8] sm:$0xff]
  %v3189 = vld [vmem:[%s0 + $0xd0] sm:$0xff]
  %3214 = vrot.lane.b32.xlu0 %v3166, 127
  %v3215 = vpop.permute.xlu0 %3214
  %3216 = vrot.lane.b32.xlu0 %v3167, 127
  %v3217 = vpop.permute.xlu0 %3216
  %3218 = vrot.lane.b32.xlu0 %v3168, 127
  %v3219 = vpop.permute.xlu0 %3218
  %3220 = vrot.lane.b32.xlu0 %v3169, 127
  %v3221 = vpop.permute.xlu0 %3220
  %3222 = vrot.lane.b32.xlu0 %v3170, 127
  %v3223 = vpop.permute.xlu0 %3222
  %3224 = vrot.lane.b32.xlu0 %v3171, 127
  %v3225 = vpop.permute.xlu0 %3224
  %3226 = vrot.lane.b32.xlu0 %v3172, 127
  %v3227 = vpop.permute.xlu0 %3226
  %3228 = vrot.lane.b32.xlu0 %v3173, 127
  %v3229 = vpop.permute.xlu0 %3228
  %3230 = vrot.lane.b32.xlu0 %v3174, 127
  %v3231 = vpop.permute.xlu0 %3230
  %3232 = vrot.lane.b32.xlu0 %v3175, 127
  %v3233 = vpop.permute.xlu0 %3232
  %3234 = vrot.lane.b32.xlu0 %v3176, 127
  %v3235 = vpop.permute.xlu0 %3234
  %3236 = vrot.lane.b32.xlu0 %v3177, 127
  %v3237 = vpop.permute.xlu0 %3236
  %3238 = vrot.lane.b32.xlu0 %v3178, 127
  %v3239 = vpop.permute.xlu0 %3238
  %3240 = vrot.lane.b32.xlu0 %v3179, 127
  %v3241 = vpop.permute.xlu0 %3240
  %3242 = vrot.lane.b32.xlu0 %v3180, 127
  %v3243 = vpop.permute.xlu0 %3242
  %3244 = vrot.lane.b32.xlu0 %v3181, 127
  %v3245 = vpop.permute.xlu0 %3244
  %3246 = vrot.lane.b32.xlu0 %v3182, 127
  %v3247 = vpop.permute.xlu0 %3246
  %3248 = vrot.lane.b32.xlu0 %v3183, 127
  %v3249 = vpop.permute.xlu0 %3248
  %3250 = vrot.lane.b32.xlu0 %v3184, 127
  %v3251 = vpop.permute.xlu0 %3250
  %3252 = vrot.lane.b32.xlu0 %v3185, 127
  %v3253 = vpop.permute.xlu0 %3252
  %3254 = vrot.lane.b32.xlu0 %v3186, 127
  %v3255 = vpop.permute.xlu0 %3254
  %3256 = vrot.lane.b32.xlu0 %v3187, 127
  %v3257 = vpop.permute.xlu0 %3256
  %3258 = vrot.lane.b32.xlu0 %v3188, 127
  %v3259 = vpop.permute.xlu0 %3258
  %3260 = vrot.lane.b32.xlu0 %v3189, 127
  %v3261 = vpop.permute.xlu0 %3260
  %v3262 = vsel %vm180, %v3215, %v3217
  %v3263 = vsel %vm180, %v3217, %v3219
  %v3264 = vsel %vm180, %v3219, %v3221
  %v3265 = vsel %vm180, %v3221, %v3223
  %v3266 = vsel %vm180, %v3223, %v3225
  %v3267 = vsel %vm180, %v3225, %v3227
  %v3268 = vsel %vm180, %v3227, %v3229
  %v3269 = vsel %vm180, %v3231, %v3233
  %v3270 = vsel %vm180, %v3233, %v3235
  %v3271 = vsel %vm180, %v3235, %v3237
  %v3272 = vsel %vm180, %v3237, %v3239
  %v3273 = vsel %vm180, %v3239, %v3241
  %v3274 = vsel %vm180, %v3241, %v3243
  %v3275 = vsel %vm180, %v3243, %v3245
  %v3276 = vsel %vm180, %v3247, %v3249
  %v3277 = vsel %vm180, %v3249, %v3251
  %v3278 = vsel %vm180, %v3251, %v3253
  %v3279 = vsel %vm180, %v3253, %v3255
  %v3280 = vsel %vm180, %v3255, %v3257
  %v3281 = vsel %vm180, %v3257, %v3259
  %v3282 = vsel %vm180, %v3259, %v3261
  %3304 = vst [vmem:[#allocation2 + $0xdc8] sm:$0xff] %v3262
  %3305 = vst [vmem:[#allocation2 + $0xdd0] sm:$0xff] %v3263
  %3306 = vst [vmem:[#allocation2 + $0xdd8] sm:$0xff] %v3264
  %3307 = vst [vmem:[#allocation2 + $0xde0] sm:$0xff] %v3265
  %3308 = vst [vmem:[#allocation2 + $0xde8] sm:$0xff] %v3266
  %3309 = vst [vmem:[#allocation2 + $0xdf0] sm:$0xff] %v3267
  %3310 = vst [vmem:[#allocation2 + $0xdf8] sm:$0xff] %v3268
  %3311 = vst [vmem:[#allocation2 + $0xe00] sm:$0xff] %v3269
  %3312 = vst [vmem:[#allocation2 + $0xe08] sm:$0xff] %v3270
  %3313 = vst [vmem:[#allocation2 + $0xe10] sm:$0xff] %v3271
  %3314 = vst [vmem:[#allocation2 + $0xe18] sm:$0xff] %v3272
  %3315 = vst [vmem:[#allocation2 + $0xe20] sm:$0xff] %v3273
  %3316 = vst [vmem:[#allocation2 + $0xe28] sm:$0xff] %v3274
  %3317 = vst [vmem:[#allocation2 + $0xe30] sm:$0xff] %v3275
  %3318 = vst [vmem:[#allocation2 + $0xe38] sm:$0xff] %v3276
  %3319 = vst [vmem:[#allocation2 + $0xe40] sm:$0xff] %v3277
  %3320 = vst [vmem:[#allocation2 + $0xe48] sm:$0xff] %v3278
  %3321 = vst [vmem:[#allocation2 + $0xe50] sm:$0xff] %v3279
  %3322 = vst [vmem:[#allocation2 + $0xe58] sm:$0xff] %v3280
  %3323 = vst [vmem:[#allocation2 + $0xe60] sm:$0xff] %v3281
  %3324 = vst [vmem:[#allocation2 + $0xe68] sm:$0xff] %v3282
  %v3325 = vld [vmem:[%s0 + $0x8] sm:$0xff]
  %v3326 = vld [vmem:[%s0 + $0x10] sm:$0xff]
  %v3327 = vld [vmem:[%s0 + $0x18] sm:$0xff]
  %v3328 = vld [vmem:[%s0 + $0x20] sm:$0xff]
  %v3329 = vld [vmem:[%s0 + $0x28] sm:$0xff]
  %v3330 = vld [vmem:[%s0 + $0x30] sm:$0xff]
  %v3331 = vld [vmem:[%s0 + $0x38] sm:$0xff]
  %v3332 = vld [vmem:[%s0 + $0x40] sm:$0xff]
  %v3333 = vld [vmem:[%s0 + $0x50] sm:$0xff]
  %v3334 = vld [vmem:[%s0 + $0x58] sm:$0xff]
  %v3335 = vld [vmem:[%s0 + $0x60] sm:$0xff]
  %v3336 = vld [vmem:[%s0 + $0x68] sm:$0xff]
  %v3337 = vld [vmem:[%s0 + $0x70] sm:$0xff]
  %v3338 = vld [vmem:[%s0 + $0x78] sm:$0xff]
  %v3339 = vld [vmem:[%s0 + $0x80] sm:$0xff]
  %v3340 = vld [vmem:[%s0 + $0x88] sm:$0xff]
  %v3341 = vld [vmem:[%s0 + $0x98] sm:$0xff]
  %v3342 = vld [vmem:[%s0 + $0xa0] sm:$0xff]
  %v3343 = vld [vmem:[%s0 + $0xa8] sm:$0xff]
  %v3344 = vld [vmem:[%s0 + $0xb0] sm:$0xff]
  %v3345 = vld [vmem:[%s0 + $0xb8] sm:$0xff]
  %v3346 = vld [vmem:[%s0 + $0xc0] sm:$0xff]
  %v3347 = vld [vmem:[%s0 + $0xc8] sm:$0xff]
  %v3348 = vld [vmem:[%s0 + $0xd0] sm:$0xff]
  %3373 = vrot.lane.b32.xlu0 %v3325, 126
  %v3374 = vpop.permute.xlu0 %3373
  %3375 = vrot.lane.b32.xlu0 %v3326, 126
  %v3376 = vpop.permute.xlu0 %3375
  %3377 = vrot.lane.b32.xlu0 %v3327, 126
  %v3378 = vpop.permute.xlu0 %3377
  %3379 = vrot.lane.b32.xlu0 %v3328, 126
  %v3380 = vpop.permute.xlu0 %3379
  %3381 = vrot.lane.b32.xlu0 %v3329, 126
  %v3382 = vpop.permute.xlu0 %3381
  %3383 = vrot.lane.b32.xlu0 %v3330, 126
  %v3384 = vpop.permute.xlu0 %3383
  %3385 = vrot.lane.b32.xlu0 %v3331, 126
  %v3386 = vpop.permute.xlu0 %3385
  %3387 = vrot.lane.b32.xlu0 %v3332, 126
  %v3388 = vpop.permute.xlu0 %3387
  %3389 = vrot.lane.b32.xlu0 %v3333, 126
  %v3390 = vpop.permute.xlu0 %3389
  %3391 = vrot.lane.b32.xlu0 %v3334, 126
  %v3392 = vpop.permute.xlu0 %3391
  %3393 = vrot.lane.b32.xlu0 %v3335, 126
  %v3394 = vpop.permute.xlu0 %3393
  %3395 = vrot.lane.b32.xlu0 %v3336, 126
  %v3396 = vpop.permute.xlu0 %3395
  %3397 = vrot.lane.b32.xlu0 %v3337, 126
  %v3398 = vpop.permute.xlu0 %3397
  %3399 = vrot.lane.b32.xlu0 %v3338, 126
  %v3400 = vpop.permute.xlu0 %3399
  %3401 = vrot.lane.b32.xlu0 %v3339, 126
  %v3402 = vpop.permute.xlu0 %3401
  %3403 = vrot.lane.b32.xlu0 %v3340, 126
  %v3404 = vpop.permute.xlu0 %3403
  %3405 = vrot.lane.b32.xlu0 %v3341, 126
  %v3406 = vpop.permute.xlu0 %3405
  %3407 = vrot.lane.b32.xlu0 %v3342, 126
  %v3408 = vpop.permute.xlu0 %3407
  %3409 = vrot.lane.b32.xlu0 %v3343, 126
  %v3410 = vpop.permute.xlu0 %3409
  %3411 = vrot.lane.b32.xlu0 %v3344, 126
  %v3412 = vpop.permute.xlu0 %3411
  %3413 = vrot.lane.b32.xlu0 %v3345, 126
  %v3414 = vpop.permute.xlu0 %3413
  %3415 = vrot.lane.b32.xlu0 %v3346, 126
  %v3416 = vpop.permute.xlu0 %3415
  %3417 = vrot.lane.b32.xlu0 %v3347, 126
  %v3418 = vpop.permute.xlu0 %3417
  %3419 = vrot.lane.b32.xlu0 %v3348, 126
  %v3420 = vpop.permute.xlu0 %3419
  %v3421 = vsel %vm340, %v3374, %v3376
  %v3422 = vsel %vm340, %v3376, %v3378
  %v3423 = vsel %vm340, %v3378, %v3380
  %v3424 = vsel %vm340, %v3380, %v3382
  %v3425 = vsel %vm340, %v3382, %v3384
  %v3426 = vsel %vm340, %v3384, %v3386
  %v3427 = vsel %vm340, %v3386, %v3388
  %v3428 = vsel %vm340, %v3390, %v3392
  %v3429 = vsel %vm340, %v3392, %v3394
  %v3430 = vsel %vm340, %v3394, %v3396
  %v3431 = vsel %vm340, %v3396, %v3398
  %v3432 = vsel %vm340, %v3398, %v3400
  %v3433 = vsel %vm340, %v3400, %v3402
  %v3434 = vsel %vm340, %v3402, %v3404
  %v3435 = vsel %vm340, %v3406, %v3408
  %v3436 = vsel %vm340, %v3408, %v3410
  %v3437 = vsel %vm340, %v3410, %v3412
  %v3438 = vsel %vm340, %v3412, %v3414
  %v3439 = vsel %vm340, %v3414, %v3416
  %v3440 = vsel %vm340, %v3416, %v3418
  %v3441 = vsel %vm340, %v3418, %v3420
  %3463 = vst [vmem:[#allocation2 + $0xe70] sm:$0xff] %v3421
  %3464 = vst [vmem:[#allocation2 + $0xe78] sm:$0xff] %v3422
  %3465 = vst [vmem:[#allocation2 + $0xe80] sm:$0xff] %v3423
  %3466 = vst [vmem:[#allocation2 + $0xe88] sm:$0xff] %v3424
  %3467 = vst [vmem:[#allocation2 + $0xe90] sm:$0xff] %v3425
  %3468 = vst [vmem:[#allocation2 + $0xe98] sm:$0xff] %v3426
  %3469 = vst [vmem:[#allocation2 + $0xea0] sm:$0xff] %v3427
  %3470 = vst [vmem:[#allocation2 + $0xea8] sm:$0xff] %v3428
  %3471 = vst [vmem:[#allocation2 + $0xeb0] sm:$0xff] %v3429
  %3472 = vst [vmem:[#allocation2 + $0xeb8] sm:$0xff] %v3430
  %3473 = vst [vmem:[#allocation2 + $0xec0] sm:$0xff] %v3431
  %3474 = vst [vmem:[#allocation2 + $0xec8] sm:$0xff] %v3432
  %3475 = vst [vmem:[#allocation2 + $0xed0] sm:$0xff] %v3433
  %3476 = vst [vmem:[#allocation2 + $0xed8] sm:$0xff] %v3434
  %3477 = vst [vmem:[#allocation2 + $0xee0] sm:$0xff] %v3435
  %3478 = vst [vmem:[#allocation2 + $0xee8] sm:$0xff] %v3436
  %3479 = vst [vmem:[#allocation2 + $0xef0] sm:$0xff] %v3437
  %3480 = vst [vmem:[#allocation2 + $0xef8] sm:$0xff] %v3438
  %3481 = vst [vmem:[#allocation2 + $0xf00] sm:$0xff] %v3439
  %3482 = vst [vmem:[#allocation2 + $0xf08] sm:$0xff] %v3440
  %3483 = vst [vmem:[#allocation2 + $0xf10] sm:$0xff] %v3441
  %v3484 = vld [vmem:[%s0 + $0x8] sm:$0xff]
  %v3485 = vld [vmem:[%s0 + $0x10] sm:$0xff]
  %v3486 = vld [vmem:[%s0 + $0x18] sm:$0xff]
  %v3487 = vld [vmem:[%s0 + $0x20] sm:$0xff]
  %v3488 = vld [vmem:[%s0 + $0x28] sm:$0xff]
  %v3489 = vld [vmem:[%s0 + $0x30] sm:$0xff]
  %v3490 = vld [vmem:[%s0 + $0x38] sm:$0xff]
  %v3491 = vld [vmem:[%s0 + $0x40] sm:$0xff]
  %v3492 = vld [vmem:[%s0 + $0x50] sm:$0xff]
  %v3493 = vld [vmem:[%s0 + $0x58] sm:$0xff]
  %v3494 = vld [vmem:[%s0 + $0x60] sm:$0xff]
  %v3495 = vld [vmem:[%s0 + $0x68] sm:$0xff]
  %v3496 = vld [vmem:[%s0 + $0x70] sm:$0xff]
  %v3497 = vld [vmem:[%s0 + $0x78] sm:$0xff]
  %v3498 = vld [vmem:[%s0 + $0x80] sm:$0xff]
  %v3499 = vld [vmem:[%s0 + $0x88] sm:$0xff]
  %v3500 = vld [vmem:[%s0 + $0x98] sm:$0xff]
  %v3501 = vld [vmem:[%s0 + $0xa0] sm:$0xff]
  %v3502 = vld [vmem:[%s0 + $0xa8] sm:$0xff]
  %v3503 = vld [vmem:[%s0 + $0xb0] sm:$0xff]
  %v3504 = vld [vmem:[%s0 + $0xb8] sm:$0xff]
  %v3505 = vld [vmem:[%s0 + $0xc0] sm:$0xff]
  %v3506 = vld [vmem:[%s0 + $0xc8] sm:$0xff]
  %v3507 = vld [vmem:[%s0 + $0xd0] sm:$0xff]
  %3532 = vrot.lane.b32.xlu0 %v3484, 125
  %v3533 = vpop.permute.xlu0 %3532
  %3534 = vrot.lane.b32.xlu0 %v3485, 125
  %v3535 = vpop.permute.xlu0 %3534
  %3536 = vrot.lane.b32.xlu0 %v3486, 125
  %v3537 = vpop.permute.xlu0 %3536
  %3538 = vrot.lane.b32.xlu0 %v3487, 125
  %v3539 = vpop.permute.xlu0 %3538
  %3540 = vrot.lane.b32.xlu0 %v3488, 125
  %v3541 = vpop.permute.xlu0 %3540
  %3542 = vrot.lane.b32.xlu0 %v3489, 125
  %v3543 = vpop.permute.xlu0 %3542
  %3544 = vrot.lane.b32.xlu0 %v3490, 125
  %v3545 = vpop.permute.xlu0 %3544
  %3546 = vrot.lane.b32.xlu0 %v3491, 125
  %v3547 = vpop.permute.xlu0 %3546
  %3548 = vrot.lane.b32.xlu0 %v3492, 125
  %v3549 = vpop.permute.xlu0 %3548
  %3550 = vrot.lane.b32.xlu0 %v3493, 125
  %v3551 = vpop.permute.xlu0 %3550
  %3552 = vrot.lane.b32.xlu0 %v3494, 125
  %v3553 = vpop.permute.xlu0 %3552
  %3554 = vrot.lane.b32.xlu0 %v3495, 125
  %v3555 = vpop.permute.xlu0 %3554
  %3556 = vrot.lane.b32.xlu0 %v3496, 125
  %v3557 = vpop.permute.xlu0 %3556
  %3558 = vrot.lane.b32.xlu0 %v3497, 125
  %v3559 = vpop.permute.xlu0 %3558
  %3560 = vrot.lane.b32.xlu0 %v3498, 125
  %v3561 = vpop.permute.xlu0 %3560
  %3562 = vrot.lane.b32.xlu0 %v3499, 125
  %v3563 = vpop.permute.xlu0 %3562
  %3564 = vrot.lane.b32.xlu0 %v3500, 125
  %v3565 = vpop.permute.xlu0 %3564
  %3566 = vrot.lane.b32.xlu0 %v3501, 125
  %v3567 = vpop.permute.xlu0 %3566
  %3568 = vrot.lane.b32.xlu0 %v3502, 125
  %v3569 = vpop.permute.xlu0 %3568
  %3570 = vrot.lane.b32.xlu0 %v3503, 125
  %v3571 = vpop.permute.xlu0 %3570
  %3572 = vrot.lane.b32.xlu0 %v3504, 125
  %v3573 = vpop.permute.xlu0 %3572
  %3574 = vrot.lane.b32.xlu0 %v3505, 125
  %v3575 = vpop.permute.xlu0 %3574
  %3576 = vrot.lane.b32.xlu0 %v3506, 125
  %v3577 = vpop.permute.xlu0 %3576
  %3578 = vrot.lane.b32.xlu0 %v3507, 125
  %v3579 = vpop.permute.xlu0 %3578
  %v3580 = vsel %vm500, %v3533, %v3535
  %v3581 = vsel %vm500, %v3535, %v3537
  %v3582 = vsel %vm500, %v3537, %v3539
  %v3583 = vsel %vm500, %v3539, %v3541
  %v3584 = vsel %vm500, %v3541, %v3543
  %v3585 = vsel %vm500, %v3543, %v3545
  %v3586 = vsel %vm500, %v3545, %v3547
  %v3587 = vsel %vm500, %v3549, %v3551
  %v3588 = vsel %vm500, %v3551, %v3553
  %v3589 = vsel %vm500, %v3553, %v3555
  %v3590 = vsel %vm500, %v3555, %v3557
  %v3591 = vsel %vm500, %v3557, %v3559
  %v3592 = vsel %vm500, %v3559, %v3561
  %v3593 = vsel %vm500, %v3561, %v3563
  %v3594 = vsel %vm500, %v3565, %v3567
  %v3595 = vsel %vm500, %v3567, %v3569
  %v3596 = vsel %vm500, %v3569, %v3571
  %v3597 = vsel %vm500, %v3571, %v3573
  %v3598 = vsel %vm500, %v3573, %v3575
  %v3599 = vsel %vm500, %v3575, %v3577
  %v3600 = vsel %vm500, %v3577, %v3579
  %3622 = vst [vmem:[#allocation2 + $0xf18] sm:$0xff] %v3580
  %3623 = vst [vmem:[#allocation2 + $0xf20] sm:$0xff] %v3581
  %3624 = vst [vmem:[#allocation2 + $0xf28] sm:$0xff] %v3582
  %3625 = vst [vmem:[#allocation2 + $0xf30] sm:$0xff] %v3583
  %3626 = vst [vmem:[#allocation2 + $0xf38] sm:$0xff] %v3584
  %3627 = vst [vmem:[#allocation2 + $0xf40] sm:$0xff] %v3585
  %3628 = vst [vmem:[#allocation2 + $0xf48] sm:$0xff] %v3586
  %3629 = vst [vmem:[#allocation2 + $0xf50] sm:$0xff] %v3587
  %3630 = vst [vmem:[#allocation2 + $0xf58] sm:$0xff] %v3588
  %3631 = vst [vmem:[#allocation2 + $0xf60] sm:$0xff] %v3589
  %3632 = vst [vmem:[#allocation2 + $0xf68] sm:$0xff] %v3590
  %3633 = vst [vmem:[#allocation2 + $0xf70] sm:$0xff] %v3591
  %3634 = vst [vmem:[#allocation2 + $0xf78] sm:$0xff] %v3592
  %3635 = vst [vmem:[#allocation2 + $0xf80] sm:$0xff] %v3593
  %3636 = vst [vmem:[#allocation2 + $0xf88] sm:$0xff] %v3594
  %3637 = vst [vmem:[#allocation2 + $0xf90] sm:$0xff] %v3595
  %3638 = vst [vmem:[#allocation2 + $0xf98] sm:$0xff] %v3596
  %3639 = vst [vmem:[#allocation2 + $0xfa0] sm:$0xff] %v3597
  %3640 = vst [vmem:[#allocation2 + $0xfa8] sm:$0xff] %v3598
  %3641 = vst [vmem:[#allocation2 + $0xfb0] sm:$0xff] %v3599
  %3642 = vst [vmem:[#allocation2 + $0xfb8] sm:$0xff] %v3600
  %v3643 = vld [vmem:[%s0 + $0x8] sm:$0xff]
  %v3644 = vld [vmem:[%s0 + $0x10] sm:$0xff]
  %v3645 = vld [vmem:[%s0 + $0x18] sm:$0xff]
  %v3646 = vld [vmem:[%s0 + $0x20] sm:$0xff]
  %v3647 = vld [vmem:[%s0 + $0x28] sm:$0xff]
  %v3648 = vld [vmem:[%s0 + $0x30] sm:$0xff]
  %v3649 = vld [vmem:[%s0 + $0x38] sm:$0xff]
  %v3650 = vld [vmem:[%s0 + $0x40] sm:$0xff]
  %v3651 = vld [vmem:[%s0 + $0x50] sm:$0xff]
  %v3652 = vld [vmem:[%s0 + $0x58] sm:$0xff]
  %v3653 = vld [vmem:[%s0 + $0x60] sm:$0xff]
  %v3654 = vld [vmem:[%s0 + $0x68] sm:$0xff]
  %v3655 = vld [vmem:[%s0 + $0x70] sm:$0xff]
  %v3656 = vld [vmem:[%s0 + $0x78] sm:$0xff]
  %v3657 = vld [vmem:[%s0 + $0x80] sm:$0xff]
  %v3658 = vld [vmem:[%s0 + $0x88] sm:$0xff]
  %v3659 = vld [vmem:[%s0 + $0x98] sm:$0xff]
  %v3660 = vld [vmem:[%s0 + $0xa0] sm:$0xff]
  %v3661 = vld [vmem:[%s0 + $0xa8] sm:$0xff]
  %v3662 = vld [vmem:[%s0 + $0xb0] sm:$0xff]
  %v3663 = vld [vmem:[%s0 + $0xb8] sm:$0xff]
  %v3664 = vld [vmem:[%s0 + $0xc0] sm:$0xff]
  %v3665 = vld [vmem:[%s0 + $0xc8] sm:$0xff]
  %v3666 = vld [vmem:[%s0 + $0xd0] sm:$0xff]
  %3691 = vrot.lane.b32.xlu0 %v3643, 124
  %v3692 = vpop.permute.xlu0 %3691
  %3693 = vrot.lane.b32.xlu0 %v3644, 124
  %v3694 = vpop.permute.xlu0 %3693
  %3695 = vrot.lane.b32.xlu0 %v3645, 124
  %v3696 = vpop.permute.xlu0 %3695
  %3697 = vrot.lane.b32.xlu0 %v3646, 124
  %v3698 = vpop.permute.xlu0 %3697
  %3699 = vrot.lane.b32.xlu0 %v3647, 124
  %v3700 = vpop.permute.xlu0 %3699
  %3701 = vrot.lane.b32.xlu0 %v3648, 124
  %v3702 = vpop.permute.xlu0 %3701
  %3703 = vrot.lane.b32.xlu0 %v3649, 124
  %v3704 = vpop.permute.xlu0 %3703
  %3705 = vrot.lane.b32.xlu0 %v3650, 124
  %v3706 = vpop.permute.xlu0 %3705
  %3707 = vrot.lane.b32.xlu0 %v3651, 124
  %v3708 = vpop.permute.xlu0 %3707
  %3709 = vrot.lane.b32.xlu0 %v3652, 124
  %v3710 = vpop.permute.xlu0 %3709
  %3711 = vrot.lane.b32.xlu0 %v3653, 124
  %v3712 = vpop.permute.xlu0 %3711
  %3713 = vrot.lane.b32.xlu0 %v3654, 124
  %v3714 = vpop.permute.xlu0 %3713
  %3715 = vrot.lane.b32.xlu0 %v3655, 124
  %v3716 = vpop.permute.xlu0 %3715
  %3717 = vrot.lane.b32.xlu0 %v3656, 124
  %v3718 = vpop.permute.xlu0 %3717
  %3719 = vrot.lane.b32.xlu0 %v3657, 124
  %v3720 = vpop.permute.xlu0 %3719
  %3721 = vrot.lane.b32.xlu0 %v3658, 124
  %v3722 = vpop.permute.xlu0 %3721
  %3723 = vrot.lane.b32.xlu0 %v3659, 124
  %v3724 = vpop.permute.xlu0 %3723
  %3725 = vrot.lane.b32.xlu0 %v3660, 124
  %v3726 = vpop.permute.xlu0 %3725
  %3727 = vrot.lane.b32.xlu0 %v3661, 124
  %v3728 = vpop.permute.xlu0 %3727
  %3729 = vrot.lane.b32.xlu0 %v3662, 124
  %v3730 = vpop.permute.xlu0 %3729
  %3731 = vrot.lane.b32.xlu0 %v3663, 124
  %v3732 = vpop.permute.xlu0 %3731
  %3733 = vrot.lane.b32.xlu0 %v3664, 124
  %v3734 = vpop.permute.xlu0 %3733
  %3735 = vrot.lane.b32.xlu0 %v3665, 124
  %v3736 = vpop.permute.xlu0 %3735
  %3737 = vrot.lane.b32.xlu0 %v3666, 124
  %v3738 = vpop.permute.xlu0 %3737
  %v3739 = vsel %vm660, %v3692, %v3694
  %v3740 = vsel %vm660, %v3694, %v3696
  %v3741 = vsel %vm660, %v3696, %v3698
  %v3742 = vsel %vm660, %v3698, %v3700
  %v3743 = vsel %vm660, %v3700, %v3702
  %v3744 = vsel %vm660, %v3702, %v3704
  %v3745 = vsel %vm660, %v3704, %v3706
  %v3746 = vsel %vm660, %v3708, %v3710
  %v3747 = vsel %vm660, %v3710, %v3712
  %v3748 = vsel %vm660, %v3712, %v3714
  %v3749 = vsel %vm660, %v3714, %v3716
  %v3750 = vsel %vm660, %v3716, %v3718
  %v3751 = vsel %vm660, %v3718, %v3720
  %v3752 = vsel %vm660, %v3720, %v3722
  %v3753 = vsel %vm660, %v3724, %v3726
  %v3754 = vsel %vm660, %v3726, %v3728
  %v3755 = vsel %vm660, %v3728, %v3730
  %v3756 = vsel %vm660, %v3730, %v3732
  %v3757 = vsel %vm660, %v3732, %v3734
  %v3758 = vsel %vm660, %v3734, %v3736
  %v3759 = vsel %vm660, %v3736, %v3738
  %3781 = vst [vmem:[#allocation2 + $0xfc0] sm:$0xff] %v3739
  %3782 = vst [vmem:[#allocation2 + $0xfc8] sm:$0xff] %v3740
  %3783 = vst [vmem:[#allocation2 + $0xfd0] sm:$0xff] %v3741
  %3784 = vst [vmem:[#allocation2 + $0xfd8] sm:$0xff] %v3742
  %3785 = vst [vmem:[#allocation2 + $0xfe0] sm:$0xff] %v3743
  %3786 = vst [vmem:[#allocation2 + $0xfe8] sm:$0xff] %v3744
  %3787 = vst [vmem:[#allocation2 + $0xff0] sm:$0xff] %v3745
  %3788 = vst [vmem:[#allocation2 + $0xff8] sm:$0xff] %v3746
  %3789 = vst [vmem:[#allocation2 + $0x1000] sm:$0xff] %v3747
  %3790 = vst [vmem:[#allocation2 + $0x1008] sm:$0xff] %v3748
  %3791 = vst [vmem:[#allocation2 + $0x1010] sm:$0xff] %v3749
  %3792 = vst [vmem:[#allocation2 + $0x1018] sm:$0xff] %v3750
  %3793 = vst [vmem:[#allocation2 + $0x1020] sm:$0xff] %v3751
  %3794 = vst [vmem:[#allocation2 + $0x1028] sm:$0xff] %v3752
  %3795 = vst [vmem:[#allocation2 + $0x1030] sm:$0xff] %v3753
  %3796 = vst [vmem:[#allocation2 + $0x1038] sm:$0xff] %v3754
  %3797 = vst [vmem:[#allocation2 + $0x1040] sm:$0xff] %v3755
  %3798 = vst [vmem:[#allocation2 + $0x1048] sm:$0xff] %v3756
  %3799 = vst [vmem:[#allocation2 + $0x1050] sm:$0xff] %v3757
  %3800 = vst [vmem:[#allocation2 + $0x1058] sm:$0xff] %v3758
  %3801 = vst [vmem:[#allocation2 + $0x1060] sm:$0xff] %v3759
  %v3802 = vld [vmem:[%s1] sm:$0xff]
  %v3803 = vld [vmem:[%s1 + $0x8] sm:$0xff]
  %v3804 = vld [vmem:[%s1 + $0x10] sm:$0xf]
  %v3805 = vld [vmem:[%s1 + $0x14] sm:$0xff]
  %v3806 = vld [vmem:[%s1 + $0x1c] sm:$0xff]
  %v3807 = vld [vmem:[%s1 + $0x24] sm:$0xf]
  %v3808 = vld [vmem:[%s1 + $0x28] sm:$0xff]
  %v3809 = vld [vmem:[%s1 + $0x30] sm:$0xff]
  %v3810 = vld [vmem:[%s1 + $0x38] sm:$0xf]
  %v3811 = vld [vmem:[%s1 + $0x3c] sm:$0xff]
  %v3812 = vld [vmem:[%s1 + $0x44] sm:$0xff]
  %v3813 = vld [vmem:[%s1 + $0x4c] sm:$0xf]
  %v3814 = vld [vmem:[%s1 + $0x50] sm:$0xff]
  %v3815 = vld [vmem:[%s1 + $0x58] sm:$0xff]
  %v3816 = vld [vmem:[%s1 + $0x60] sm:$0xf]
  %v3817 = vld [vmem:[%s1 + $0x64] sm:$0xff]
  %v3818 = vld [vmem:[%s1 + $0x6c] sm:$0xff]
  %v3819 = vld [vmem:[%s1 + $0x74] sm:$0xf]
  %v3820 = vld [vmem:[#allocation2] sm:$0xff]
  %v3821 = vld [vmem:[#allocation2 + $0x8] sm:$0xff]
  %v3822 = vld [vmem:[#allocation2 + $0x10] sm:$0xff]
  %v3823 = vld [vmem:[#allocation2 + $0x18] sm:$0xff]
  %v3824 = vld [vmem:[#allocation2 + $0x20] sm:$0xff]
  %v3825 = vld [vmem:[#allocation2 + $0x28] sm:$0xff]
  %v3826 = vld [vmem:[#allocation2 + $0x30] sm:$0xff]
  %v3827 = vld [vmem:[#allocation2 + $0x38] sm:$0xff]
  %v3828 = vld [vmem:[#allocation2 + $0x40] sm:$0xff]
  %v3829 = vld [vmem:[#allocation2 + $0x48] sm:$0xff]
  %v3830 = vld [vmem:[#allocation2 + $0x50] sm:$0xff]
  %v3831 = vld [vmem:[#allocation2 + $0x58] sm:$0xff]
  %v3832 = vld [vmem:[#allocation2 + $0x60] sm:$0xff]
  %v3833 = vld [vmem:[#allocation2 + $0x68] sm:$0xff]
  %v3834 = vld [vmem:[#allocation2 + $0x70] sm:$0xff]
  %v3835 = vld [vmem:[#allocation2 + $0x78] sm:$0xff]
  %v3836 = vld [vmem:[#allocation2 + $0x80] sm:$0xff]
  %v3837 = vld [vmem:[#allocation2 + $0x88] sm:$0xff]
  %v3838 = vld [vmem:[#allocation2 + $0x90] sm:$0xff]
  %v3839 = vld [vmem:[#allocation2 + $0x98] sm:$0xff]
  %v3840 = vld [vmem:[#allocation2 + $0xa0] sm:$0xff]
  %v3841 = vld [vmem:[#allocation2 + $0xa8] sm:$0xff]
  %v3842 = vld [vmem:[#allocation2 + $0xb0] sm:$0xff]
  %v3843 = vld [vmem:[#allocation2 + $0xb8] sm:$0xff]
  %v3844 = vld [vmem:[#allocation2 + $0xc0] sm:$0xff]
  %v3845 = vld [vmem:[#allocation2 + $0xc8] sm:$0xff]
  %v3846 = vld [vmem:[#allocation2 + $0xd0] sm:$0xff]
  %v3847 = vld [vmem:[#allocation2 + $0xd8] sm:$0xff]
  %v3848 = vld [vmem:[#allocation2 + $0xe0] sm:$0xff]
  %v3849 = vld [vmem:[#allocation2 + $0xe8] sm:$0xff]
  %v3850 = vld [vmem:[#allocation2 + $0xf0] sm:$0xff]
  %v3851 = vld [vmem:[#allocation2 + $0xf8] sm:$0xff]
  %v3852 = vld [vmem:[#allocation2 + $0x100] sm:$0xff]
  %v3853 = vld [vmem:[#allocation2 + $0x108] sm:$0xff]
  %v3854 = vld [vmem:[#allocation2 + $0x110] sm:$0xff]
  %v3855 = vld [vmem:[#allocation2 + $0x118] sm:$0xff]
  %v3856 = vld [vmem:[#allocation2 + $0x120] sm:$0xff]
  %v3857 = vld [vmem:[#allocation2 + $0x128] sm:$0xff]
  %v3858 = vld [vmem:[#allocation2 + $0x130] sm:$0xff]
  %v3859 = vld [vmem:[#allocation2 + $0x138] sm:$0xff]
  %v3860 = vld [vmem:[#allocation2 + $0x140] sm:$0xff]
  %v3861 = vld [vmem:[#allocation2 + $0x148] sm:$0xff]
  %v3862 = vld [vmem:[#allocation2 + $0x150] sm:$0xff]
  %v3863 = vld [vmem:[#allocation2 + $0x158] sm:$0xff]
  %v3864 = vld [vmem:[#allocation2 + $0x160] sm:$0xff]
  %v3865 = vld [vmem:[#allocation2 + $0x168] sm:$0xff]
  %v3866 = vld [vmem:[#allocation2 + $0x170] sm:$0xff]
  %v3867 = vld [vmem:[#allocation2 + $0x178] sm:$0xff]
  %v3868 = vld [vmem:[#allocation2 + $0x180] sm:$0xff]
  %v3869 = vld [vmem:[#allocation2 + $0x188] sm:$0xff]
  %v3870 = vld [vmem:[#allocation2 + $0x190] sm:$0xff]
  %v3871 = vld [vmem:[#allocation2 + $0x198] sm:$0xff]
  %v3872 = vld [vmem:[#allocation2 + $0x1a0] sm:$0xff]
  %v3873 = vld [vmem:[#allocation2 + $0x1a8] sm:$0xff]
  %v3874 = vld [vmem:[#allocation2 + $0x1b0] sm:$0xff]
  %v3875 = vld [vmem:[#allocation2 + $0x1b8] sm:$0xff]
  %v3876 = vld [vmem:[#allocation2 + $0x1c0] sm:$0xff]
  %v3877 = vld [vmem:[#allocation2 + $0x1c8] sm:$0xff]
  %v3878 = vld [vmem:[#allocation2 + $0x1d0] sm:$0xff]
  %v3879 = vld [vmem:[#allocation2 + $0x1d8] sm:$0xff]
  %v3880 = vld [vmem:[#allocation2 + $0x1e0] sm:$0xff]
  %v3881 = vld [vmem:[#allocation2 + $0x1e8] sm:$0xff]
  %v3882 = vld [vmem:[#allocation2 + $0x1f0] sm:$0xff]
  %v3883 = vld [vmem:[#allocation2 + $0x1f8] sm:$0xff]
  %v3884 = vld [vmem:[#allocation2 + $0x200] sm:$0xff]
  %v3885 = vld [vmem:[#allocation2 + $0x208] sm:$0xff]
  %v3886 = vld [vmem:[#allocation2 + $0x210] sm:$0xff]
  %v3887 = vld [vmem:[#allocation2 + $0x218] sm:$0xff]
  %v3888 = vld [vmem:[#allocation2 + $0x220] sm:$0xff]
  %v3889 = vld [vmem:[#allocation2 + $0x228] sm:$0xff]
  %v3890 = vld [vmem:[#allocation2 + $0x230] sm:$0xff]
  %v3891 = vld [vmem:[#allocation2 + $0x238] sm:$0xff]
  %v3892 = vld [vmem:[#allocation2 + $0x240] sm:$0xff]
  %v3893 = vld [vmem:[#allocation2 + $0x248] sm:$0xff]
  %v3894 = vld [vmem:[#allocation2 + $0x250] sm:$0xff]
  %v3895 = vld [vmem:[#allocation2 + $0x258] sm:$0xff]
  %v3896 = vld [vmem:[#allocation2 + $0x260] sm:$0xff]
  %v3897 = vld [vmem:[#allocation2 + $0x268] sm:$0xff]
  %v3898 = vld [vmem:[#allocation2 + $0x270] sm:$0xff]
  %v3899 = vld [vmem:[#allocation2 + $0x278] sm:$0xff]
  %v3900 = vld [vmem:[#allocation2 + $0x280] sm:$0xff]
  %v3901 = vld [vmem:[#allocation2 + $0x288] sm:$0xff]
  %v3902 = vld [vmem:[#allocation2 + $0x290] sm:$0xff]
  %v3903 = vld [vmem:[#allocation2 + $0x298] sm:$0xff]
  %v3904 = vld [vmem:[#allocation2 + $0x2a0] sm:$0xff]
  %v3905 = vld [vmem:[#allocation2 + $0x2a8] sm:$0xff]
  %v3906 = vld [vmem:[#allocation2 + $0x2b0] sm:$0xff]
  %v3907 = vld [vmem:[#allocation2 + $0x2b8] sm:$0xff]
  %v3908 = vld [vmem:[#allocation2 + $0x2c0] sm:$0xff]
  %v3909 = vld [vmem:[#allocation2 + $0x2c8] sm:$0xff]
  %v3910 = vld [vmem:[#allocation2 + $0x2d0] sm:$0xff]
  %v3911 = vld [vmem:[#allocation2 + $0x2d8] sm:$0xff]
  %v3912 = vld [vmem:[#allocation2 + $0x2e0] sm:$0xff]
  %v3913 = vld [vmem:[#allocation2 + $0x2e8] sm:$0xff]
  %v3914 = vld [vmem:[#allocation2 + $0x2f0] sm:$0xff]
  %v3915 = vld [vmem:[#allocation2 + $0x2f8] sm:$0xff]
  %v3916 = vld [vmem:[#allocation2 + $0x300] sm:$0xff]
  %v3917 = vld [vmem:[#allocation2 + $0x308] sm:$0xff]
  %v3918 = vld [vmem:[#allocation2 + $0x310] sm:$0xff]
  %v3919 = vld [vmem:[#allocation2 + $0x318] sm:$0xff]
  %v3920 = vld [vmem:[#allocation2 + $0x320] sm:$0xff]
  %v3921 = vld [vmem:[#allocation2 + $0x328] sm:$0xff]
  %v3922 = vld [vmem:[#allocation2 + $0x330] sm:$0xff]
  %v3923 = vld [vmem:[#allocation2 + $0x338] sm:$0xff]
  %v3924 = vld [vmem:[#allocation2 + $0x340] sm:$0xff]
  %v3925 = vld [vmem:[#allocation2 + $0x348] sm:$0xff]
  %v3926 = vld [vmem:[#allocation2 + $0x350] sm:$0xff]
  %v3927 = vld [vmem:[#allocation2 + $0x358] sm:$0xff]
  %v3928 = vld [vmem:[#allocation2 + $0x360] sm:$0xff]
  %v3929 = vld [vmem:[#allocation2 + $0x368] sm:$0xff]
  %v3930 = vld [vmem:[#allocation2 + $0x370] sm:$0xff]
  %v3931 = vld [vmem:[#allocation2 + $0x378] sm:$0xff]
  %v3932 = vld [vmem:[#allocation2 + $0x380] sm:$0xff]
  %v3933 = vld [vmem:[#allocation2 + $0x388] sm:$0xff]
  %v3934 = vld [vmem:[#allocation2 + $0x390] sm:$0xff]
  %v3935 = vld [vmem:[#allocation2 + $0x398] sm:$0xff]
  %v3936 = vld [vmem:[#allocation2 + $0x3a0] sm:$0xff]
  %v3937 = vld [vmem:[#allocation2 + $0x3a8] sm:$0xff]
  %v3938 = vld [vmem:[#allocation2 + $0x3b0] sm:$0xff]
  %v3939 = vld [vmem:[#allocation2 + $0x3b8] sm:$0xff]
  %v3940 = vld [vmem:[#allocation2 + $0x3c0] sm:$0xff]
  %v3941 = vld [vmem:[#allocation2 + $0x3c8] sm:$0xff]
  %v3942 = vld [vmem:[#allocation2 + $0x3d0] sm:$0xff]
  %v3943 = vld [vmem:[#allocation2 + $0x3d8] sm:$0xff]
  %v3944 = vld [vmem:[#allocation2 + $0x3e0] sm:$0xff]
  %v3945 = vld [vmem:[#allocation2 + $0x3e8] sm:$0xff]
  %v3946 = vld [vmem:[#allocation2 + $0x3f0] sm:$0xff]
  %v3947 = vld [vmem:[#allocation2 + $0x3f8] sm:$0xff]
  %v3948 = vld [vmem:[#allocation2 + $0x400] sm:$0xff]
  %v3949 = vld [vmem:[#allocation2 + $0x408] sm:$0xff]
  %v3950 = vld [vmem:[#allocation2 + $0x410] sm:$0xff]
  %v3951 = vld [vmem:[#allocation2 + $0x418] sm:$0xff]
  %v3952 = vld [vmem:[#allocation2 + $0x420] sm:$0xff]
  %v3953 = vld [vmem:[#allocation2 + $0x428] sm:$0xff]
  %v3954 = vld [vmem:[#allocation2 + $0x430] sm:$0xff]
  %v3955 = vld [vmem:[#allocation2 + $0x438] sm:$0xff]
  %v3956 = vld [vmem:[#allocation2 + $0x440] sm:$0xff]
  %v3957 = vld [vmem:[#allocation2 + $0x448] sm:$0xff]
  %v3958 = vld [vmem:[#allocation2 + $0x450] sm:$0xff]
  %v3959 = vld [vmem:[#allocation2 + $0x458] sm:$0xff]
  %v3960 = vld [vmem:[#allocation2 + $0x460] sm:$0xff]
  %v3961 = vld [vmem:[#allocation2 + $0x468] sm:$0xff]
  %v3962 = vld [vmem:[#allocation2 + $0x470] sm:$0xff]
  %v3963 = vld [vmem:[#allocation2 + $0x478] sm:$0xff]
  %v3964 = vld [vmem:[#allocation2 + $0x480] sm:$0xff]
  %v3965 = vld [vmem:[#allocation2 + $0x488] sm:$0xff]
  %v3966 = vld [vmem:[#allocation2 + $0x490] sm:$0xff]
  %v3967 = vld [vmem:[#allocation2 + $0x498] sm:$0xff]
  %v3968 = vld [vmem:[#allocation2 + $0x4a0] sm:$0xff]
  %v3969 = vld [vmem:[#allocation2 + $0x4a8] sm:$0xff]
  %v3970 = vld [vmem:[#allocation2 + $0x4b0] sm:$0xff]
  %v3971 = vld [vmem:[#allocation2 + $0x4b8] sm:$0xff]
  %v3972 = vld [vmem:[#allocation2 + $0x4c0] sm:$0xff]
  %v3973 = vld [vmem:[#allocation2 + $0x4c8] sm:$0xff]
  %v3974 = vld [vmem:[#allocation2 + $0x4d0] sm:$0xff]
  %v3975 = vld [vmem:[#allocation2 + $0x4d8] sm:$0xff]
  %v3976 = vld [vmem:[#allocation2 + $0x4e0] sm:$0xff]
  %v3977 = vld [vmem:[#allocation2 + $0x4e8] sm:$0xff]
  %v3978 = vld [vmem:[#allocation2 + $0x4f0] sm:$0xff]
  %v3979 = vld [vmem:[#allocation2 + $0x4f8] sm:$0xff]
  %v3980 = vld [vmem:[#allocation2 + $0x500] sm:$0xff]
  %v3981 = vld [vmem:[#allocation2 + $0x508] sm:$0xff]
  %v3982 = vld [vmem:[#allocation2 + $0x510] sm:$0xff]
  %v3983 = vld [vmem:[#allocation2 + $0x518] sm:$0xff]
  %v3984 = vld [vmem:[#allocation2 + $0x520] sm:$0xff]
  %v3985 = vld [vmem:[#allocation2 + $0x528] sm:$0xff]
  %v3986 = vld [vmem:[#allocation2 + $0x530] sm:$0xff]
  %v3987 = vld [vmem:[#allocation2 + $0x538] sm:$0xff]
  %v3988 = vld [vmem:[#allocation2 + $0x540] sm:$0xff]
  %v3989 = vld [vmem:[#allocation2 + $0x548] sm:$0xff]
  %v3990 = vld [vmem:[#allocation2 + $0x550] sm:$0xff]
  %v3991 = vld [vmem:[#allocation2 + $0x558] sm:$0xff]
  %v3992 = vld [vmem:[#allocation2 + $0x560] sm:$0xff]
  %v3993 = vld [vmem:[#allocation2 + $0x568] sm:$0xff]
  %v3994 = vld [vmem:[#allocation2 + $0x570] sm:$0xff]
  %v3995 = vld [vmem:[#allocation2 + $0x578] sm:$0xff]
  %v3996 = vld [vmem:[#allocation2 + $0x580] sm:$0xff]
  %v3997 = vld [vmem:[#allocation2 + $0x588] sm:$0xff]
  %v3998 = vld [vmem:[#allocation2 + $0x590] sm:$0xff]
  %v3999 = vld [vmem:[#allocation2 + $0x598] sm:$0xff]
  %v4000 = vld [vmem:[#allocation2 + $0x5a0] sm:$0xff]
  %v4001 = vld [vmem:[#allocation2 + $0x5a8] sm:$0xff]
  %v4002 = vld [vmem:[#allocation2 + $0x5b0] sm:$0xff]
  %v4003 = vld [vmem:[#allocation2 + $0x5b8] sm:$0xff]
  %v4004 = vld [vmem:[#allocation2 + $0x5c0] sm:$0xff]
  %v4005 = vld [vmem:[#allocation2 + $0x5c8] sm:$0xff]
  %v4006 = vld [vmem:[#allocation2 + $0x5d0] sm:$0xff]
  %v4007 = vld [vmem:[#allocation2 + $0x5d8] sm:$0xff]
  %v4008 = vld [vmem:[#allocation2 + $0x5e0] sm:$0xff]
  %v4009 = vld [vmem:[#allocation2 + $0x5e8] sm:$0xff]
  %v4010 = vld [vmem:[#allocation2 + $0x5f0] sm:$0xff]
  %v4011 = vld [vmem:[#allocation2 + $0x5f8] sm:$0xff]
  %v4012 = vld [vmem:[#allocation2 + $0x600] sm:$0xff]
  %v4013 = vld [vmem:[#allocation2 + $0x608] sm:$0xff]
  %v4014 = vld [vmem:[#allocation2 + $0x610] sm:$0xff]
  %v4015 = vld [vmem:[#allocation2 + $0x618] sm:$0xff]
  %v4016 = vld [vmem:[#allocation2 + $0x620] sm:$0xff]
  %v4017 = vld [vmem:[#allocation2 + $0x628] sm:$0xff]
  %v4018 = vld [vmem:[#allocation2 + $0x630] sm:$0xff]
  %v4019 = vld [vmem:[#allocation2 + $0x638] sm:$0xff]
  %v4020 = vld [vmem:[#allocation2 + $0x640] sm:$0xff]
  %v4021 = vld [vmem:[#allocation2 + $0x648] sm:$0xff]
  %v4022 = vld [vmem:[#allocation2 + $0x650] sm:$0xff]
  %v4023 = vld [vmem:[#allocation2 + $0x658] sm:$0xff]
  %v4024 = vld [vmem:[#allocation2 + $0x660] sm:$0xff]
  %v4025 = vld [vmem:[#allocation2 + $0x668] sm:$0xff]
  %v4026 = vld [vmem:[#allocation2 + $0x670] sm:$0xff]
  %v4027 = vld [vmem:[#allocation2 + $0x678] sm:$0xff]
  %v4028 = vld [vmem:[#allocation2 + $0x680] sm:$0xff]
  %v4029 = vld [vmem:[#allocation2 + $0x688] sm:$0xff]
  %v4030 = vld [vmem:[#allocation2 + $0x690] sm:$0xff]
  %v4031 = vld [vmem:[#allocation2 + $0x698] sm:$0xff]
  %v4032 = vld [vmem:[#allocation2 + $0x6a0] sm:$0xff]
  %v4033 = vld [vmem:[#allocation2 + $0x6a8] sm:$0xff]
  %v4034 = vld [vmem:[#allocation2 + $0x6b0] sm:$0xff]
  %v4035 = vld [vmem:[#allocation2 + $0x6b8] sm:$0xff]
  %v4036 = vld [vmem:[#allocation2 + $0x6c0] sm:$0xff]
  %v4037 = vld [vmem:[#allocation2 + $0x6c8] sm:$0xff]
  %v4038 = vld [vmem:[#allocation2 + $0x6d0] sm:$0xff]
  %v4039 = vld [vmem:[#allocation2 + $0x6d8] sm:$0xff]
  %v4040 = vld [vmem:[#allocation2 + $0x6e0] sm:$0xff]
  %v4041 = vld [vmem:[#allocation2 + $0x6e8] sm:$0xff]
  %v4042 = vld [vmem:[#allocation2 + $0x6f0] sm:$0xff]
  %v4043 = vld [vmem:[#allocation2 + $0x6f8] sm:$0xff]
  %v4044 = vld [vmem:[#allocation2 + $0x700] sm:$0xff]
  %v4045 = vld [vmem:[#allocation2 + $0x708] sm:$0xff]
  %v4046 = vld [vmem:[#allocation2 + $0x710] sm:$0xff]
  %v4047 = vld [vmem:[#allocation2 + $0x718] sm:$0xff]
  %v4048 = vld [vmem:[#allocation2 + $0x720] sm:$0xff]
  %v4049 = vld [vmem:[#allocation2 + $0x728] sm:$0xff]
  %v4050 = vld [vmem:[#allocation2 + $0x730] sm:$0xff]
  %v4051 = vld [vmem:[#allocation2 + $0x738] sm:$0xff]
  %v4052 = vld [vmem:[#allocation2 + $0x740] sm:$0xff]
  %v4053 = vld [vmem:[#allocation2 + $0x748] sm:$0xff]
  %v4054 = vld [vmem:[#allocation2 + $0x750] sm:$0xff]
  %v4055 = vld [vmem:[#allocation2 + $0x758] sm:$0xff]
  %v4056 = vld [vmem:[#allocation2 + $0x760] sm:$0xff]
  %v4057 = vld [vmem:[#allocation2 + $0x768] sm:$0xff]
  %v4058 = vld [vmem:[#allocation2 + $0x770] sm:$0xff]
  %v4059 = vld [vmem:[#allocation2 + $0x778] sm:$0xff]
  %v4060 = vld [vmem:[#allocation2 + $0x780] sm:$0xff]
  %v4061 = vld [vmem:[#allocation2 + $0x788] sm:$0xff]
  %v4062 = vld [vmem:[#allocation2 + $0x790] sm:$0xff]
  %v4063 = vld [vmem:[#allocation2 + $0x798] sm:$0xff]
  %v4064 = vld [vmem:[#allocation2 + $0x7a0] sm:$0xff]
  %v4065 = vld [vmem:[#allocation2 + $0x7a8] sm:$0xff]
  %v4066 = vld [vmem:[#allocation2 + $0x7b0] sm:$0xff]
  %v4067 = vld [vmem:[#allocation2 + $0x7b8] sm:$0xff]
  %v4068 = vld [vmem:[#allocation2 + $0x7c0] sm:$0xff]
  %v4069 = vld [vmem:[#allocation2 + $0x7c8] sm:$0xff]
  %v4070 = vld [vmem:[#allocation2 + $0x7d0] sm:$0xff]
  %v4071 = vld [vmem:[#allocation2 + $0x7d8] sm:$0xff]
  %v4072 = vld [vmem:[#allocation2 + $0x7e0] sm:$0xff]
  %v4073 = vld [vmem:[#allocation2 + $0x7e8] sm:$0xff]
  %v4074 = vld [vmem:[#allocation2 + $0x7f0] sm:$0xff]
  %v4075 = vld [vmem:[#allocation2 + $0x7f8] sm:$0xff]
  %v4076 = vld [vmem:[#allocation2 + $0x800] sm:$0xff]
  %v4077 = vld [vmem:[#allocation2 + $0x808] sm:$0xff]
  %v4078 = vld [vmem:[#allocation2 + $0x810] sm:$0xff]
  %v4079 = vld [vmem:[#allocation2 + $0x818] sm:$0xff]
  %v4080 = vld [vmem:[#allocation2 + $0x820] sm:$0xff]
  %v4081 = vld [vmem:[#allocation2 + $0x828] sm:$0xff]
  %v4082 = vld [vmem:[#allocation2 + $0x830] sm:$0xff]
  %v4083 = vld [vmem:[#allocation2 + $0x838] sm:$0xff]
  %v4084 = vld [vmem:[#allocation2 + $0x840] sm:$0xff]
  %v4085 = vld [vmem:[#allocation2 + $0x848] sm:$0xff]
  %v4086 = vld [vmem:[#allocation2 + $0x850] sm:$0xff]
  %v4087 = vld [vmem:[#allocation2 + $0x858] sm:$0xff]
  %v4088 = vld [vmem:[#allocation2 + $0x860] sm:$0xff]
  %v4089 = vld [vmem:[#allocation2 + $0x868] sm:$0xff]
  %v4090 = vld [vmem:[#allocation2 + $0x870] sm:$0xff]
  %v4091 = vld [vmem:[#allocation2 + $0x878] sm:$0xff]
  %v4092 = vld [vmem:[#allocation2 + $0x880] sm:$0xff]
  %v4093 = vld [vmem:[#allocation2 + $0x888] sm:$0xff]
  %v4094 = vld [vmem:[#allocation2 + $0x890] sm:$0xff]
  %v4095 = vld [vmem:[#allocation2 + $0x898] sm:$0xff]
  %v4096 = vld [vmem:[#allocation2 + $0x8a0] sm:$0xff]
  %v4097 = vld [vmem:[#allocation2 + $0x8a8] sm:$0xff]
  %v4098 = vld [vmem:[#allocation2 + $0x8b0] sm:$0xff]
  %v4099 = vld [vmem:[#allocation2 + $0x8b8] sm:$0xff]
  %v4100 = vld [vmem:[#allocation2 + $0x8c0] sm:$0xff]
  %v4101 = vld [vmem:[#allocation2 + $0x8c8] sm:$0xff]
  %v4102 = vld [vmem:[#allocation2 + $0x8d0] sm:$0xff]
  %v4103 = vld [vmem:[#allocation2 + $0x8d8] sm:$0xff]
  %v4104 = vld [vmem:[#allocation2 + $0x8e0] sm:$0xff]
  %v4105 = vld [vmem:[#allocation2 + $0x8e8] sm:$0xff]
  %v4106 = vld [vmem:[#allocation2 + $0x8f0] sm:$0xff]
  %v4107 = vld [vmem:[#allocation2 + $0x8f8] sm:$0xff]
  %v4108 = vld [vmem:[#allocation2 + $0x900] sm:$0xff]
  %v4109 = vld [vmem:[#allocation2 + $0x908] sm:$0xff]
  %v4110 = vld [vmem:[#allocation2 + $0x910] sm:$0xff]
  %v4111 = vld [vmem:[#allocation2 + $0x918] sm:$0xff]
  %v4112 = vld [vmem:[#allocation2 + $0x920] sm:$0xff]
  %v4113 = vld [vmem:[#allocation2 + $0x928] sm:$0xff]
  %v4114 = vld [vmem:[#allocation2 + $0x930] sm:$0xff]
  %v4115 = vld [vmem:[#allocation2 + $0x938] sm:$0xff]
  %v4116 = vld [vmem:[#allocation2 + $0x940] sm:$0xff]
  %v4117 = vld [vmem:[#allocation2 + $0x948] sm:$0xff]
  %v4118 = vld [vmem:[#allocation2 + $0x950] sm:$0xff]
  %v4119 = vld [vmem:[#allocation2 + $0x958] sm:$0xff]
  %v4120 = vld [vmem:[#allocation2 + $0x960] sm:$0xff]
  %v4121 = vld [vmem:[#allocation2 + $0x968] sm:$0xff]
  %v4122 = vld [vmem:[#allocation2 + $0x970] sm:$0xff]
  %v4123 = vld [vmem:[#allocation2 + $0x978] sm:$0xff]
  %v4124 = vld [vmem:[#allocation2 + $0x980] sm:$0xff]
  %v4125 = vld [vmem:[#allocation2 + $0x988] sm:$0xff]
  %v4126 = vld [vmem:[#allocation2 + $0x990] sm:$0xff]
  %v4127 = vld [vmem:[#allocation2 + $0x998] sm:$0xff]
  %v4128 = vld [vmem:[#allocation2 + $0x9a0] sm:$0xff]
  %v4129 = vld [vmem:[#allocation2 + $0x9a8] sm:$0xff]
  %v4130 = vld [vmem:[#allocation2 + $0x9b0] sm:$0xff]
  %v4131 = vld [vmem:[#allocation2 + $0x9b8] sm:$0xff]
  %v4132 = vld [vmem:[#allocation2 + $0x9c0] sm:$0xff]
  %v4133 = vld [vmem:[#allocation2 + $0x9c8] sm:$0xff]
  %v4134 = vld [vmem:[#allocation2 + $0x9d0] sm:$0xff]
  %v4135 = vld [vmem:[#allocation2 + $0x9d8] sm:$0xff]
  %v4136 = vld [vmem:[#allocation2 + $0x9e0] sm:$0xff]
  %v4137 = vld [vmem:[#allocation2 + $0x9e8] sm:$0xff]
  %v4138 = vld [vmem:[#allocation2 + $0x9f0] sm:$0xff]
  %v4139 = vld [vmem:[#allocation2 + $0x9f8] sm:$0xff]
  %v4140 = vld [vmem:[#allocation2 + $0xa00] sm:$0xff]
  %v4141 = vld [vmem:[#allocation2 + $0xa08] sm:$0xff]
  %v4142 = vld [vmem:[#allocation2 + $0xa10] sm:$0xff]
  %v4143 = vld [vmem:[#allocation2 + $0xa18] sm:$0xff]
  %v4144 = vld [vmem:[#allocation2 + $0xa20] sm:$0xff]
  %v4145 = vld [vmem:[#allocation2 + $0xa28] sm:$0xff]
  %v4146 = vld [vmem:[#allocation2 + $0xa30] sm:$0xff]
  %v4147 = vld [vmem:[#allocation2 + $0xa38] sm:$0xff]
  %v4148 = vld [vmem:[#allocation2 + $0xa40] sm:$0xff]
  %v4149 = vld [vmem:[#allocation2 + $0xa48] sm:$0xff]
  %v4150 = vld [vmem:[#allocation2 + $0xa50] sm:$0xff]
  %v4151 = vld [vmem:[#allocation2 + $0xa58] sm:$0xff]
  %v4152 = vld [vmem:[#allocation2 + $0xa60] sm:$0xff]
  %v4153 = vld [vmem:[#allocation2 + $0xa68] sm:$0xff]
  %v4154 = vld [vmem:[#allocation2 + $0xa70] sm:$0xff]
  %v4155 = vld [vmem:[#allocation2 + $0xa78] sm:$0xff]
  %v4156 = vld [vmem:[#allocation2 + $0xa80] sm:$0xff]
  %v4157 = vld [vmem:[#allocation2 + $0xa88] sm:$0xff]
  %v4158 = vld [vmem:[#allocation2 + $0xa90] sm:$0xff]
  %v4159 = vld [vmem:[#allocation2 + $0xa98] sm:$0xff]
  %v4160 = vld [vmem:[#allocation2 + $0xaa0] sm:$0xff]
  %v4161 = vld [vmem:[#allocation2 + $0xaa8] sm:$0xff]
  %v4162 = vld [vmem:[#allocation2 + $0xab0] sm:$0xff]
  %v4163 = vld [vmem:[#allocation2 + $0xab8] sm:$0xff]
  %v4164 = vld [vmem:[#allocation2 + $0xac0] sm:$0xff]
  %v4165 = vld [vmem:[#allocation2 + $0xac8] sm:$0xff]
  %v4166 = vld [vmem:[#allocation2 + $0xad0] sm:$0xff]
  %v4167 = vld [vmem:[#allocation2 + $0xad8] sm:$0xff]
  %v4168 = vld [vmem:[#allocation2 + $0xae0] sm:$0xff]
  %v4169 = vld [vmem:[#allocation2 + $0xae8] sm:$0xff]
  %v4170 = vld [vmem:[#allocation2 + $0xaf0] sm:$0xff]
  %v4171 = vld [vmem:[#allocation2 + $0xaf8] sm:$0xff]
  %v4172 = vld [vmem:[#allocation2 + $0xb00] sm:$0xff]
  %v4173 = vld [vmem:[#allocation2 + $0xb08] sm:$0xff]
  %v4174 = vld [vmem:[#allocation2 + $0xb10] sm:$0xff]
  %v4175 = vld [vmem:[#allocation2 + $0xb18] sm:$0xff]
  %v4176 = vld [vmem:[#allocation2 + $0xb20] sm:$0xff]
  %v4177 = vld [vmem:[#allocation2 + $0xb28] sm:$0xff]
  %v4178 = vld [vmem:[#allocation2 + $0xb30] sm:$0xff]
  %v4179 = vld [vmem:[#allocation2 + $0xb38] sm:$0xff]
  %v4180 = vld [vmem:[#allocation2 + $0xb40] sm:$0xff]
  %v4181 = vld [vmem:[#allocation2 + $0xb48] sm:$0xff]
  %v4182 = vld [vmem:[#allocation2 + $0xb50] sm:$0xff]
  %v4183 = vld [vmem:[#allocation2 + $0xb58] sm:$0xff]
  %v4184 = vld [vmem:[#allocation2 + $0xb60] sm:$0xff]
  %v4185 = vld [vmem:[#allocation2 + $0xb68] sm:$0xff]
  %v4186 = vld [vmem:[#allocation2 + $0xb70] sm:$0xff]
  %v4187 = vld [vmem:[#allocation2 + $0xb78] sm:$0xff]
  %v4188 = vld [vmem:[#allocation2 + $0xb80] sm:$0xff]
  %v4189 = vld [vmem:[#allocation2 + $0xb88] sm:$0xff]
  %v4190 = vld [vmem:[#allocation2 + $0xb90] sm:$0xff]
  %v4191 = vld [vmem:[#allocation2 + $0xb98] sm:$0xff]
  %v4192 = vld [vmem:[#allocation2 + $0xba0] sm:$0xff]
  %v4193 = vld [vmem:[#allocation2 + $0xba8] sm:$0xff]
  %v4194 = vld [vmem:[#allocation2 + $0xbb0] sm:$0xff]
  %v4195 = vld [vmem:[#allocation2 + $0xbb8] sm:$0xff]
  %v4196 = vld [vmem:[#allocation2 + $0xbc0] sm:$0xff]
  %v4197 = vld [vmem:[#allocation2 + $0xbc8] sm:$0xff]
  %v4198 = vld [vmem:[#allocation2 + $0xbd0] sm:$0xff]
  %v4199 = vld [vmem:[#allocation2 + $0xbd8] sm:$0xff]
  %v4200 = vld [vmem:[#allocation2 + $0xbe0] sm:$0xff]
  %v4201 = vld [vmem:[#allocation2 + $0xbe8] sm:$0xff]
  %v4202 = vld [vmem:[#allocation2 + $0xbf0] sm:$0xff]
  %v4203 = vld [vmem:[#allocation2 + $0xbf8] sm:$0xff]
  %v4204 = vld [vmem:[#allocation2 + $0xc00] sm:$0xff]
  %v4205 = vld [vmem:[#allocation2 + $0xc08] sm:$0xff]
  %v4206 = vld [vmem:[#allocation2 + $0xc10] sm:$0xff]
  %v4207 = vld [vmem:[#allocation2 + $0xc18] sm:$0xff]
  %v4208 = vld [vmem:[#allocation2 + $0xc20] sm:$0xff]
  %v4209 = vld [vmem:[#allocation2 + $0xc28] sm:$0xff]
  %v4210 = vld [vmem:[#allocation2 + $0xc30] sm:$0xff]
  %v4211 = vld [vmem:[#allocation2 + $0xc38] sm:$0xff]
  %v4212 = vld [vmem:[#allocation2 + $0xc40] sm:$0xff]
  %v4213 = vld [vmem:[#allocation2 + $0xc48] sm:$0xff]
  %v4214 = vld [vmem:[#allocation2 + $0xc50] sm:$0xff]
  %v4215 = vld [vmem:[#allocation2 + $0xc58] sm:$0xff]
  %v4216 = vld [vmem:[#allocation2 + $0xc60] sm:$0xff]
  %v4217 = vld [vmem:[#allocation2 + $0xc68] sm:$0xff]
  %v4218 = vld [vmem:[#allocation2 + $0xc70] sm:$0xff]
  %v4219 = vld [vmem:[#allocation2 + $0xc78] sm:$0xff]
  %v4220 = vld [vmem:[#allocation2 + $0xc80] sm:$0xff]
  %v4221 = vld [vmem:[#allocation2 + $0xc88] sm:$0xff]
  %v4222 = vld [vmem:[#allocation2 + $0xc90] sm:$0xff]
  %v4223 = vld [vmem:[#allocation2 + $0xc98] sm:$0xff]
  %v4224 = vld [vmem:[#allocation2 + $0xca0] sm:$0xff]
  %v4225 = vld [vmem:[#allocation2 + $0xca8] sm:$0xff]
  %v4226 = vld [vmem:[#allocation2 + $0xcb0] sm:$0xff]
  %v4227 = vld [vmem:[#allocation2 + $0xcb8] sm:$0xff]
  %v4228 = vld [vmem:[#allocation2 + $0xcc0] sm:$0xff]
  %v4229 = vld [vmem:[#allocation2 + $0xcc8] sm:$0xff]
  %v4230 = vld [vmem:[#allocation2 + $0xcd0] sm:$0xff]
  %v4231 = vld [vmem:[#allocation2 + $0xcd8] sm:$0xff]
  %v4232 = vld [vmem:[#allocation2 + $0xce0] sm:$0xff]
  %v4233 = vld [vmem:[#allocation2 + $0xce8] sm:$0xff]
  %v4234 = vld [vmem:[#allocation2 + $0xcf0] sm:$0xff]
  %v4235 = vld [vmem:[#allocation2 + $0xcf8] sm:$0xff]
  %v4236 = vld [vmem:[#allocation2 + $0xd00] sm:$0xff]
  %v4237 = vld [vmem:[#allocation2 + $0xd08] sm:$0xff]
  %v4238 = vld [vmem:[#allocation2 + $0xd10] sm:$0xff]
  %v4239 = vld [vmem:[#allocation2 + $0xd18] sm:$0xff]
  %v4240 = vld [vmem:[#allocation2 + $0xd20] sm:$0xff]
  %v4241 = vld [vmem:[#allocation2 + $0xd28] sm:$0xff]
  %v4242 = vld [vmem:[#allocation2 + $0xd30] sm:$0xff]
  %v4243 = vld [vmem:[#allocation2 + $0xd38] sm:$0xff]
  %v4244 = vld [vmem:[#allocation2 + $0xd40] sm:$0xff]
  %v4245 = vld [vmem:[#allocation2 + $0xd48] sm:$0xff]
  %v4246 = vld [vmem:[#allocation2 + $0xd50] sm:$0xff]
  %v4247 = vld [vmem:[#allocation2 + $0xd58] sm:$0xff]
  %v4248 = vld [vmem:[#allocation2 + $0xd60] sm:$0xff]
  %v4249 = vld [vmem:[#allocation2 + $0xd68] sm:$0xff]
  %v4250 = vld [vmem:[#allocation2 + $0xd70] sm:$0xff]
  %v4251 = vld [vmem:[#allocation2 + $0xd78] sm:$0xff]
  %v4252 = vld [vmem:[#allocation2 + $0xd80] sm:$0xff]
  %v4253 = vld [vmem:[#allocation2 + $0xd88] sm:$0xff]
  %v4254 = vld [vmem:[#allocation2 + $0xd90] sm:$0xff]
  %v4255 = vld [vmem:[#allocation2 + $0xd98] sm:$0xff]
  %v4256 = vld [vmem:[#allocation2 + $0xda0] sm:$0xff]
  %v4257 = vld [vmem:[#allocation2 + $0xda8] sm:$0xff]
  %v4258 = vld [vmem:[#allocation2 + $0xdb0] sm:$0xff]
  %v4259 = vld [vmem:[#allocation2 + $0xdb8] sm:$0xff]
  %v4260 = vld [vmem:[#allocation2 + $0xdc0] sm:$0xff]
  %v4261 = vld [vmem:[#allocation2 + $0xdc8] sm:$0xff]
  %v4262 = vld [vmem:[#allocation2 + $0xdd0] sm:$0xff]
  %v4263 = vld [vmem:[#allocation2 + $0xdd8] sm:$0xff]
  %v4264 = vld [vmem:[#allocation2 + $0xde0] sm:$0xff]
  %v4265 = vld [vmem:[#allocation2 + $0xde8] sm:$0xff]
  %v4266 = vld [vmem:[#allocation2 + $0xdf0] sm:$0xff]
  %v4267 = vld [vmem:[#allocation2 + $0xdf8] sm:$0xff]
  %v4268 = vld [vmem:[#allocation2 + $0xe00] sm:$0xff]
  %v4269 = vld [vmem:[#allocation2 + $0xe08] sm:$0xff]
  %v4270 = vld [vmem:[#allocation2 + $0xe10] sm:$0xff]
  %v4271 = vld [vmem:[#allocation2 + $0xe18] sm:$0xff]
  %v4272 = vld [vmem:[#allocation2 + $0xe20] sm:$0xff]
  %v4273 = vld [vmem:[#allocation2 + $0xe28] sm:$0xff]
  %v4274 = vld [vmem:[#allocation2 + $0xe30] sm:$0xff]
  %v4275 = vld [vmem:[#allocation2 + $0xe38] sm:$0xff]
  %v4276 = vld [vmem:[#allocation2 + $0xe40] sm:$0xff]
  %v4277 = vld [vmem:[#allocation2 + $0xe48] sm:$0xff]
  %v4278 = vld [vmem:[#allocation2 + $0xe50] sm:$0xff]
  %v4279 = vld [vmem:[#allocation2 + $0xe58] sm:$0xff]
  %v4280 = vld [vmem:[#allocation2 + $0xe60] sm:$0xff]
  %v4281 = vld [vmem:[#allocation2 + $0xe68] sm:$0xff]
  %v4282 = vld [vmem:[#allocation2 + $0xe70] sm:$0xff]
  %v4283 = vld [vmem:[#allocation2 + $0xe78] sm:$0xff]
  %v4284 = vld [vmem:[#allocation2 + $0xe80] sm:$0xff]
  %v4285 = vld [vmem:[#allocation2 + $0xe88] sm:$0xff]
  %v4286 = vld [vmem:[#allocation2 + $0xe90] sm:$0xff]
  %v4287 = vld [vmem:[#allocation2 + $0xe98] sm:$0xff]
  %v4288 = vld [vmem:[#allocation2 + $0xea0] sm:$0xff]
  %v4289 = vld [vmem:[#allocation2 + $0xea8] sm:$0xff]
  %v4290 = vld [vmem:[#allocation2 + $0xeb0] sm:$0xff]
  %v4291 = vld [vmem:[#allocation2 + $0xeb8] sm:$0xff]
  %v4292 = vld [vmem:[#allocation2 + $0xec0] sm:$0xff]
  %v4293 = vld [vmem:[#allocation2 + $0xec8] sm:$0xff]
  %v4294 = vld [vmem:[#allocation2 + $0xed0] sm:$0xff]
  %v4295 = vld [vmem:[#allocation2 + $0xed8] sm:$0xff]
  %v4296 = vld [vmem:[#allocation2 + $0xee0] sm:$0xff]
  %v4297 = vld [vmem:[#allocation2 + $0xee8] sm:$0xff]
  %v4298 = vld [vmem:[#allocation2 + $0xef0] sm:$0xff]
  %v4299 = vld [vmem:[#allocation2 + $0xef8] sm:$0xff]
  %v4300 = vld [vmem:[#allocation2 + $0xf00] sm:$0xff]
  %v4301 = vld [vmem:[#allocation2 + $0xf08] sm:$0xff]
  %v4302 = vld [vmem:[#allocation2 + $0xf10] sm:$0xff]
  %v4303 = vld [vmem:[#allocation2 + $0xf18] sm:$0xff]
  %v4304 = vld [vmem:[#allocation2 + $0xf20] sm:$0xff]
  %v4305 = vld [vmem:[#allocation2 + $0xf28] sm:$0xff]
  %v4306 = vld [vmem:[#allocation2 + $0xf30] sm:$0xff]
  %v4307 = vld [vmem:[#allocation2 + $0xf38] sm:$0xff]
  %v4308 = vld [vmem:[#allocation2 + $0xf40] sm:$0xff]
  %v4309 = vld [vmem:[#allocation2 + $0xf48] sm:$0xff]
  %v4310 = vld [vmem:[#allocation2 + $0xf50] sm:$0xff]
  %v4311 = vld [vmem:[#allocation2 + $0xf58] sm:$0xff]
  %v4312 = vld [vmem:[#allocation2 + $0xf60] sm:$0xff]
  %v4313 = vld [vmem:[#allocation2 + $0xf68] sm:$0xff]
  %v4314 = vld [vmem:[#allocation2 + $0xf70] sm:$0xff]
  %v4315 = vld [vmem:[#allocation2 + $0xf78] sm:$0xff]
  %v4316 = vld [vmem:[#allocation2 + $0xf80] sm:$0xff]
  %v4317 = vld [vmem:[#allocation2 + $0xf88] sm:$0xff]
  %v4318 = vld [vmem:[#allocation2 + $0xf90] sm:$0xff]
  %v4319 = vld [vmem:[#allocation2 + $0xf98] sm:$0xff]
  %v4320 = vld [vmem:[#allocation2 + $0xfa0] sm:$0xff]
  %v4321 = vld [vmem:[#allocation2 + $0xfa8] sm:$0xff]
  %v4322 = vld [vmem:[#allocation2 + $0xfb0] sm:$0xff]
  %v4323 = vld [vmem:[#allocation2 + $0xfb8] sm:$0xff]
  %v4324 = vld [vmem:[#allocation2 + $0xfc0] sm:$0xff]
  %v4325 = vld [vmem:[#allocation2 + $0xfc8] sm:$0xff]
  %v4326 = vld [vmem:[#allocation2 + $0xfd0] sm:$0xff]
  %v4327 = vld [vmem:[#allocation2 + $0xfd8] sm:$0xff]
  %v4328 = vld [vmem:[#allocation2 + $0xfe0] sm:$0xff]
  %v4329 = vld [vmem:[#allocation2 + $0xfe8] sm:$0xff]
  %v4330 = vld [vmem:[#allocation2 + $0xff0] sm:$0xff]
  %v4331 = vld [vmem:[#allocation2 + $0xff8] sm:$0xff]
  %v4332 = vld [vmem:[#allocation2 + $0x1000] sm:$0xff]
  %v4333 = vld [vmem:[#allocation2 + $0x1008] sm:$0xff]
  %v4334 = vld [vmem:[#allocation2 + $0x1010] sm:$0xff]
  %v4335 = vld [vmem:[#allocation2 + $0x1018] sm:$0xff]
  %v4336 = vld [vmem:[#allocation2 + $0x1020] sm:$0xff]
  %v4337 = vld [vmem:[#allocation2 + $0x1028] sm:$0xff]
  %v4338 = vld [vmem:[#allocation2 + $0x1030] sm:$0xff]
  %v4339 = vld [vmem:[#allocation2 + $0x1038] sm:$0xff]
  %v4340 = vld [vmem:[#allocation2 + $0x1040] sm:$0xff]
  %v4341 = vld [vmem:[#allocation2 + $0x1048] sm:$0xff]
  %v4342 = vld [vmem:[#allocation2 + $0x1050] sm:$0xff]
  %v4343 = vld [vmem:[#allocation2 + $0x1058] sm:$0xff]
  %v4344 = vld [vmem:[#allocation2 + $0x1060] sm:$0xff]
  %v4345 = vpack.c.bf16 %v3827, %v3820
  %v4346 = vpack.c.bf16 %v3828, %v3821
  %v4347 = vpack.c.bf16 %v3829, %v3822
  %v4348 = vpack.c.bf16 %v3830, %v3823
  %v4349 = vpack.c.bf16 %v3831, %v3824
  %v4350 = vpack.c.bf16 %v3832, %v3825
  %v4351 = vpack.c.bf16 %v3833, %v3826
  %v4352 = vpack.c.bf16 %v3841, %v3834
  %v4353 = vpack.c.bf16 %v3842, %v3835
  %v4354 = vpack.c.bf16 %v3843, %v3836
  %v4355 = vpack.c.bf16 %v3844, %v3837
  %v4356 = vpack.c.bf16 %v3845, %v3838
  %v4357 = vpack.c.bf16 %v3846, %v3839
  %v4358 = vpack.c.bf16 %v3847, %v3840
  %v4359 = vpack.c.bf16 %v3855, %v3848
  %v4360 = vpack.c.bf16 %v3856, %v3849
  %v4361 = vpack.c.bf16 %v3857, %v3850
  %v4362 = vpack.c.bf16 %v3858, %v3851
  %v4363 = vpack.c.bf16 %v3859, %v3852
  %v4364 = vpack.c.bf16 %v3860, %v3853
  %v4365 = vpack.c.bf16 %v3861, %v3854
  %v4366 = vpack.c.bf16 %v3869, %v3862
  %v4367 = vpack.c.bf16 %v3870, %v3863
  %v4368 = vpack.c.bf16 %v3871, %v3864
  %v4369 = vpack.c.bf16 %v3872, %v3865
  %v4370 = vpack.c.bf16 %v3873, %v3866
  %v4371 = vpack.c.bf16 %v3874, %v3867
  %v4372 = vpack.c.bf16 %v3875, %v3868
  %v4373 = vpack.c.bf16 %v3883, %v3876
  %v4374 = vpack.c.bf16 %v3884, %v3877
  %v4375 = vpack.c.bf16 %v3885, %v3878
  %v4376 = vpack.c.bf16 %v3886, %v3879
  %v4377 = vpack.c.bf16 %v3887, %v3880
  %v4378 = vpack.c.bf16 %v3888, %v3881
  %v4379 = vpack.c.bf16 %v3889, %v3882
  %v4380 = vpack.c.bf16 %v3897, %v3890
  %v4381 = vpack.c.bf16 %v3898, %v3891
  %v4382 = vpack.c.bf16 %v3899, %v3892
  %v4383 = vpack.c.bf16 %v3900, %v3893
  %v4384 = vpack.c.bf16 %v3901, %v3894
  %v4385 = vpack.c.bf16 %v3902, %v3895
  %v4386 = vpack.c.bf16 %v3903, %v3896
  %v4387 = vpack.c.bf16 %v3911, %v3904
  %v4388 = vpack.c.bf16 %v3912, %v3905
  %v4389 = vpack.c.bf16 %v3913, %v3906
  %v4390 = vpack.c.bf16 %v3914, %v3907
  %v4391 = vpack.c.bf16 %v3915, %v3908
  %v4392 = vpack.c.bf16 %v3916, %v3909
  %v4393 = vpack.c.bf16 %v3917, %v3910
  %v4394 = vpack.c.bf16 %v3925, %v3918
  %v4395 = vpack.c.bf16 %v3926, %v3919
  %v4396 = vpack.c.bf16 %v3927, %v3920
  %v4397 = vpack.c.bf16 %v3928, %v3921
  %v4398 = vpack.c.bf16 %v3929, %v3922
  %v4399 = vpack.c.bf16 %v3930, %v3923
  %v4400 = vpack.c.bf16 %v3931, %v3924
  %v4401 = vpack.c.bf16 %v3939, %v3932
  %v4402 = vpack.c.bf16 %v3940, %v3933
  %v4403 = vpack.c.bf16 %v3941, %v3934
  %v4404 = vpack.c.bf16 %v3942, %v3935
  %v4405 = vpack.c.bf16 %v3943, %v3936
  %v4406 = vpack.c.bf16 %v3944, %v3937
  %v4407 = vpack.c.bf16 %v3945, %v3938
  %v4408 = vpack.c.bf16 %v3953, %v3946
  %v4409 = vpack.c.bf16 %v3954, %v3947
  %v4410 = vpack.c.bf16 %v3955, %v3948
  %v4411 = vpack.c.bf16 %v3956, %v3949
  %v4412 = vpack.c.bf16 %v3957, %v3950
  %v4413 = vpack.c.bf16 %v3958, %v3951
  %v4414 = vpack.c.bf16 %v3959, %v3952
  %v4415 = vpack.c.bf16 %v3967, %v3960
  %v4416 = vpack.c.bf16 %v3968, %v3961
  %v4417 = vpack.c.bf16 %v3969, %v3962
  %v4418 = vpack.c.bf16 %v3970, %v3963
  %v4419 = vpack.c.bf16 %v3971, %v3964
  %v4420 = vpack.c.bf16 %v3972, %v3965
  %v4421 = vpack.c.bf16 %v3973, %v3966
  %v4422 = vpack.c.bf16 %v3981, %v3974
  %v4423 = vpack.c.bf16 %v3982, %v3975
  %v4424 = vpack.c.bf16 %v3983, %v3976
  %v4425 = vpack.c.bf16 %v3984, %v3977
  %v4426 = vpack.c.bf16 %v3985, %v3978
  %v4427 = vpack.c.bf16 %v3986, %v3979
  %v4428 = vpack.c.bf16 %v3987, %v3980
  %v4429 = vpack.c.bf16 %v3995, %v3988
  %v4430 = vpack.c.bf16 %v3996, %v3989
  %v4431 = vpack.c.bf16 %v3997, %v3990
  %v4432 = vpack.c.bf16 %v3998, %v3991
  %v4433 = vpack.c.bf16 %v3999, %v3992
  %v4434 = vpack.c.bf16 %v4000, %v3993
  %v4435 = vpack.c.bf16 %v4001, %v3994
  %v4436 = vpack.c.bf16 %v4009, %v4002
  %v4437 = vpack.c.bf16 %v4010, %v4003
  %v4438 = vpack.c.bf16 %v4011, %v4004
  %v4439 = vpack.c.bf16 %v4012, %v4005
  %v4440 = vpack.c.bf16 %v4013, %v4006
  %v4441 = vpack.c.bf16 %v4014, %v4007
  %v4442 = vpack.c.bf16 %v4015, %v4008
  %v4443 = vpack.c.bf16 %v4023, %v4016
  %v4444 = vpack.c.bf16 %v4024, %v4017
  %v4445 = vpack.c.bf16 %v4025, %v4018
  %v4446 = vpack.c.bf16 %v4026, %v4019
  %v4447 = vpack.c.bf16 %v4027, %v4020
  %v4448 = vpack.c.bf16 %v4028, %v4021
  %v4449 = vpack.c.bf16 %v4029, %v4022
  %v4450 = vpack.c.bf16 %v4037, %v4030
  %v4451 = vpack.c.bf16 %v4038, %v4031
  %v4452 = vpack.c.bf16 %v4039, %v4032
  %v4453 = vpack.c.bf16 %v4040, %v4033
  %v4454 = vpack.c.bf16 %v4041, %v4034
  %v4455 = vpack.c.bf16 %v4042, %v4035
  %v4456 = vpack.c.bf16 %v4043, %v4036
  %v4457 = vpack.c.bf16 %v4051, %v4044
  %v4458 = vpack.c.bf16 %v4052, %v4045
  %v4459 = vpack.c.bf16 %v4053, %v4046
  %v4460 = vpack.c.bf16 %v4054, %v4047
  %v4461 = vpack.c.bf16 %v4055, %v4048
  %v4462 = vpack.c.bf16 %v4056, %v4049
  %v4463 = vpack.c.bf16 %v4057, %v4050
  %v4464 = vpack.c.bf16 %v4065, %v4058
  %v4465 = vpack.c.bf16 %v4066, %v4059
  %v4466 = vpack.c.bf16 %v4067, %v4060
  %v4467 = vpack.c.bf16 %v4068, %v4061
  %v4468 = vpack.c.bf16 %v4069, %v4062
  %v4469 = vpack.c.bf16 %v4070, %v4063
  %v4470 = vpack.c.bf16 %v4071, %v4064
  %v4471 = vpack.c.bf16 %v4079, %v4072
  %v4472 = vpack.c.bf16 %v4080, %v4073
  %v4473 = vpack.c.bf16 %v4081, %v4074
  %v4474 = vpack.c.bf16 %v4082, %v4075
  %v4475 = vpack.c.bf16 %v4083, %v4076
  %v4476 = vpack.c.bf16 %v4084, %v4077
  %v4477 = vpack.c.bf16 %v4085, %v4078
  %v4478 = vpack.c.bf16 %v4093, %v4086
  %v4479 = vpack.c.bf16 %v4094, %v4087
  %v4480 = vpack.c.bf16 %v4095, %v4088
  %v4481 = vpack.c.bf16 %v4096, %v4089
  %v4482 = vpack.c.bf16 %v4097, %v4090
  %v4483 = vpack.c.bf16 %v4098, %v4091
  %v4484 = vpack.c.bf16 %v4099, %v4092
  %v4485 = vpack.c.bf16 %v4107, %v4100
  %v4486 = vpack.c.bf16 %v4108, %v4101
  %v4487 = vpack.c.bf16 %v4109, %v4102
  %v4488 = vpack.c.bf16 %v4110, %v4103
  %v4489 = vpack.c.bf16 %v4111, %v4104
  %v4490 = vpack.c.bf16 %v4112, %v4105
  %v4491 = vpack.c.bf16 %v4113, %v4106
  %v4492 = vpack.c.bf16 %v4121, %v4114
  %v4493 = vpack.c.bf16 %v4122, %v4115
  %v4494 = vpack.c.bf16 %v4123, %v4116
  %v4495 = vpack.c.bf16 %v4124, %v4117
  %v4496 = vpack.c.bf16 %v4125, %v4118
  %v4497 = vpack.c.bf16 %v4126, %v4119
  %v4498 = vpack.c.bf16 %v4127, %v4120
  %v4499 = vpack.c.bf16 %v4135, %v4128
  %v4500 = vpack.c.bf16 %v4136, %v4129
  %v4501 = vpack.c.bf16 %v4137, %v4130
  %v4502 = vpack.c.bf16 %v4138, %v4131
  %v4503 = vpack.c.bf16 %v4139, %v4132
  %v4504 = vpack.c.bf16 %v4140, %v4133
  %v4505 = vpack.c.bf16 %v4141, %v4134
  %v4506 = vpack.c.bf16 %v4149, %v4142
  %v4507 = vpack.c.bf16 %v4150, %v4143
  %v4508 = vpack.c.bf16 %v4151, %v4144
  %v4509 = vpack.c.bf16 %v4152, %v4145
  %v4510 = vpack.c.bf16 %v4153, %v4146
  %v4511 = vpack.c.bf16 %v4154, %v4147
  %v4512 = vpack.c.bf16 %v4155, %v4148
  %v4513 = vpack.c.bf16 %v4163, %v4156
  %v4514 = vpack.c.bf16 %v4164, %v4157
  %v4515 = vpack.c.bf16 %v4165, %v4158
  %v4516 = vpack.c.bf16 %v4166, %v4159
  %v4517 = vpack.c.bf16 %v4167, %v4160
  %v4518 = vpack.c.bf16 %v4168, %v4161
  %v4519 = vpack.c.bf16 %v4169, %v4162
  %v4520 = vpack.c.bf16 %v4177, %v4170
  %v4521 = vpack.c.bf16 %v4178, %v4171
  %v4522 = vpack.c.bf16 %v4179, %v4172
  %v4523 = vpack.c.bf16 %v4180, %v4173
  %v4524 = vpack.c.bf16 %v4181, %v4174
  %v4525 = vpack.c.bf16 %v4182, %v4175
  %v4526 = vpack.c.bf16 %v4183, %v4176
  %v4527 = vpack.c.bf16 %v4191, %v4184
  %v4528 = vpack.c.bf16 %v4192, %v4185
  %v4529 = vpack.c.bf16 %v4193, %v4186
  %v4530 = vpack.c.bf16 %v4194, %v4187
  %v4531 = vpack.c.bf16 %v4195, %v4188
  %v4532 = vpack.c.bf16 %v4196, %v4189
  %v4533 = vpack.c.bf16 %v4197, %v4190
  %v4534 = vpack.c.bf16 %v4205, %v4198
  %v4535 = vpack.c.bf16 %v4206, %v4199
  %v4536 = vpack.c.bf16 %v4207, %v4200
  %v4537 = vpack.c.bf16 %v4208, %v4201
  %v4538 = vpack.c.bf16 %v4209, %v4202
  %v4539 = vpack.c.bf16 %v4210, %v4203
  %v4540 = vpack.c.bf16 %v4211, %v4204
  %v4541 = vpack.c.bf16 %v4219, %v4212
  %v4542 = vpack.c.bf16 %v4220, %v4213
  %v4543 = vpack.c.bf16 %v4221, %v4214
  %v4544 = vpack.c.bf16 %v4222, %v4215
  %v4545 = vpack.c.bf16 %v4223, %v4216
  %v4546 = vpack.c.bf16 %v4224, %v4217
  %v4547 = vpack.c.bf16 %v4225, %v4218
  %v4548 = vpack.c.bf16 %v4233, %v4226
  %v4549 = vpack.c.bf16 %v4234, %v4227
  %v4550 = vpack.c.bf16 %v4235, %v4228
  %v4551 = vpack.c.bf16 %v4236, %v4229
  %v4552 = vpack.c.bf16 %v4237, %v4230
  %v4553 = vpack.c.bf16 %v4238, %v4231
  %v4554 = vpack.c.bf16 %v4239, %v4232
  %v4555 = vpack.c.bf16 %v4247, %v4240
  %v4556 = vpack.c.bf16 %v4248, %v4241
  %v4557 = vpack.c.bf16 %v4249, %v4242
  %v4558 = vpack.c.bf16 %v4250, %v4243
  %v4559 = vpack.c.bf16 %v4251, %v4244
  %v4560 = vpack.c.bf16 %v4252, %v4245
  %v4561 = vpack.c.bf16 %v4253, %v4246
  %v4562 = vpack.c.bf16 %v4261, %v4254
  %v4563 = vpack.c.bf16 %v4262, %v4255
  %v4564 = vpack.c.bf16 %v4263, %v4256
  %v4565 = vpack.c.bf16 %v4264, %v4257
  %v4566 = vpack.c.bf16 %v4265, %v4258
  %v4567 = vpack.c.bf16 %v4266, %v4259
  %v4568 = vpack.c.bf16 %v4267, %v4260
  %v4569 = vpack.c.bf16 %v4275, %v4268
  %v4570 = vpack.c.bf16 %v4276, %v4269
  %v4571 = vpack.c.bf16 %v4277, %v4270
  %v4572 = vpack.c.bf16 %v4278, %v4271
  %v4573 = vpack.c.bf16 %v4279, %v4272
  %v4574 = vpack.c.bf16 %v4280, %v4273
  %v4575 = vpack.c.bf16 %v4281, %v4274
  %v4576 = vpack.c.bf16 %v4289, %v4282
  %v4577 = vpack.c.bf16 %v4290, %v4283
  %v4578 = vpack.c.bf16 %v4291, %v4284
  %v4579 = vpack.c.bf16 %v4292, %v4285
  %v4580 = vpack.c.bf16 %v4293, %v4286
  %v4581 = vpack.c.bf16 %v4294, %v4287
  %v4582 = vpack.c.bf16 %v4295, %v4288
  %v4583 = vpack.c.bf16 %v4303, %v4296
  %v4584 = vpack.c.bf16 %v4304, %v4297
  %v4585 = vpack.c.bf16 %v4305, %v4298
  %v4586 = vpack.c.bf16 %v4306, %v4299
  %v4587 = vpack.c.bf16 %v4307, %v4300
  %v4588 = vpack.c.bf16 %v4308, %v4301
  %v4589 = vpack.c.bf16 %v4309, %v4302
  %v4590 = vpack.c.bf16 %v4317, %v4310
  %v4591 = vpack.c.bf16 %v4318, %v4311
  %v4592 = vpack.c.bf16 %v4319, %v4312
  %v4593 = vpack.c.bf16 %v4320, %v4313
  %v4594 = vpack.c.bf16 %v4321, %v4314
  %v4595 = vpack.c.bf16 %v4322, %v4315
  %v4596 = vpack.c.bf16 %v4323, %v4316
  %v4597 = vpack.c.bf16 %v4331, %v4324
  %v4598 = vpack.c.bf16 %v4332, %v4325
  %v4599 = vpack.c.bf16 %v4333, %v4326
  %v4600 = vpack.c.bf16 %v4334, %v4327
  %v4601 = vpack.c.bf16 %v4335, %v4328
  %v4602 = vpack.c.bf16 %v4336, %v4329
  %v4603 = vpack.c.bf16 %v4337, %v4330
  %v4604 = vpack.c.bf16 %v4338, %v4338
  %v4605 = vpack.c.bf16 %v4339, %v4339
  %v4606 = vpack.c.bf16 %v4340, %v4340
  %v4607 = vpack.c.bf16 %v4341, %v4341
  %v4608 = vpack.c.bf16 %v4342, %v4342
  %v4609 = vpack.c.bf16 %v4343, %v4343
  %v4610 = vpack.c.bf16 %v4344, %v4344
  %v4611 = vld [vmem:[%s2] sm:$0xff]
  %v4612 = vld [vmem:[%s2 + $0x8] sm:$0xff]
  %v4613 = vld [vmem:[%s2 + $0x10] sm:$0xff]
  %v4614 = vld [vmem:[%s2 + $0x18] sm:$0xff]
  %v4615 = vld [vmem:[%s2 + $0x20] sm:$0xff]
  %v4616 = vld [vmem:[%s2 + $0x28] sm:$0xff]
  %4618 = vset.pattern.permute.xlu0 0
  %4619 = vperm.xlu0 %4618, %v4611
  %v4620 = vpop.permute.xlu0 %4619
  %4623 = vset.pattern.permute.xlu0 0
  %4624 = vperm.xlu0 %4623, %v4612
  %v4625 = vpop.permute.xlu0 %4624
  %4628 = vset.pattern.permute.xlu0 0
  %4629 = vperm.xlu0 %4628, %v4613
  %v4630 = vpop.permute.xlu0 %4629
  %4633 = vset.pattern.permute.xlu0 0
  %4634 = vperm.xlu0 %4633, %v4614
  %v4635 = vpop.permute.xlu0 %4634
  %4638 = vset.pattern.permute.xlu0 0
  %4639 = vperm.xlu0 %4638, %v4615
  %v4640 = vpop.permute.xlu0 %4639
  %4643 = vset.pattern.permute.xlu0 0
  %4644 = vperm.xlu0 %4643, %v4616
  %v4645 = vpop.permute.xlu0 %4644
  %v4665 = vunpack.c.l.b16 %v3802
  %v4666 = vunpack.c.h.b16 %v3802
  %v4667 = vunpack.c.l.b16 %v3803
  %v4668 = vunpack.c.h.b16 %v3803
  %v4669 = vunpack.c.l.b16 %v3804
  %v4670 = vunpack.c.l.b16 %v3805
  %v4671 = vunpack.c.h.b16 %v3805
  %v4672 = vunpack.c.l.b16 %v3806
  %v4673 = vunpack.c.h.b16 %v3806
  %v4674 = vunpack.c.l.b16 %v3807
  %v4675 = vunpack.c.l.b16 %v3808
  %v4676 = vunpack.c.h.b16 %v3808
  %v4677 = vunpack.c.l.b16 %v3809
  %v4678 = vunpack.c.h.b16 %v3809
  %v4679 = vunpack.c.l.b16 %v3810
  %v4680 = vunpack.c.l.b16 %v3811
  %v4681 = vunpack.c.h.b16 %v3811
  %v4682 = vunpack.c.l.b16 %v3812
  %v4683 = vunpack.c.h.b16 %v3812
  %v4684 = vunpack.c.l.b16 %v3813
  %v4685 = vunpack.c.l.b16 %v3814
  %v4686 = vunpack.c.h.b16 %v3814
  %v4687 = vunpack.c.l.b16 %v3815
  %v4688 = vunpack.c.h.b16 %v3815
  %v4689 = vunpack.c.l.b16 %v3816
  %v4690 = vunpack.c.l.b16 %v3817
  %v4691 = vunpack.c.h.b16 %v3817
  %v4692 = vunpack.c.l.b16 %v3818
  %v4693 = vunpack.c.h.b16 %v3818
  %v4694 = vunpack.c.l.b16 %v3819
  %v4695 = vpack.c.b16 %v4670, %v4665
  %v4696 = vpack.c.b16 %v4671, %v4666
  %v4697 = vpack.c.b16 %v4672, %v4667
  %v4698 = vpack.c.b16 %v4673, %v4668
  %v4699 = vpack.c.b16 %v4674, %v4669
  %v4700 = vpack.c.b16 %v4680, %v4675
  %v4701 = vpack.c.b16 %v4681, %v4676
  %v4702 = vpack.c.b16 %v4682, %v4677
  %v4703 = vpack.c.b16 %v4683, %v4678
  %v4704 = vpack.c.b16 %v4684, %v4679
  %v4705 = vpack.c.b16 %v4690, %v4685
  %v4706 = vpack.c.b16 %v4691, %v4686
  %v4707 = vpack.c.b16 %v4692, %v4687
  %v4708 = vpack.c.b16 %v4693, %v4688
  %v4709 = vpack.c.b16 %v4694, %v4689
  %vm4722 = vcmask 719872
  %v4724 = vsel %vm4722, %v4699, 0
  %v4727 = vsel %vm4722, %v4704, 0
  %v4730 = vsel %vm4722, %v4709, 0
  %vm4732 = vcmask 1043456
  %v4734 = vsel %vm4732, %v4604, 0
  %v4737 = vsel %vm4732, %v4605, 0
  %v4740 = vsel %vm4732, %v4606, 0
  %v4743 = vsel %vm4732, %v4607, 0
  %v4746 = vsel %vm4732, %v4608, 0
  %v4749 = vsel %vm4732, %v4609, 0
  %v4752 = vsel %vm4732, %v4610, 0
  %4754 = vmatprep.subr.bf16.mxu0 %v4346
  %4755 = vmatpush1.bf16.msra.mxu0 %v4345
  %4756 = vmatprep.subr.bf16.mxu0 %v4353
  %4757 = vmatpush1.bf16.msra.mxu0 %v4352
  %4758 = vmatprep.subr.bf16.mxu0 %v4360
  %4759 = vmatpush1.bf16.msra.mxu0 %v4359
  %4760 = vmatprep.subr.bf16.mxu0 %v4367
  %4761 = vmatpush1.bf16.msra.mxu0 %v4366
  %4762 = vmatprep.subr.bf16.mxu0 %v4374
  %4763 = vmatpush1.bf16.msra.mxu0 %v4373
  %4764 = vmatprep.subr.bf16.mxu0 %v4381
  %4765 = vmatpush1.bf16.msra.mxu0 %v4380
  %4766 = vmatprep.subr.bf16.mxu0 %v4388
  %4767 = vmatpush1.bf16.msra.mxu0 %v4387
  %4768 = vmatprep.subr.bf16.mxu0 %v4395
  %4769 = vmatpush1.bf16.msra.mxu0 %v4394
  %4770 = vmatprep.subr.bf16.mxu0 %v4402
  %4771 = vmatpush1.bf16.msra.mxu0 %v4401
  %4772 = vmatprep.subr.bf16.mxu0 %v4409
  %4773 = vmatpush1.bf16.msra.mxu0 %v4408
  %4774 = vmatprep.subr.bf16.mxu0 %v4416
  %4775 = vmatpush1.bf16.msra.mxu0 %v4415
  %4776 = vmatprep.subr.bf16.mxu0 %v4423
  %4777 = vmatpush1.bf16.msra.mxu0 %v4422
  %4778 = vmatprep.subr.bf16.mxu0 %v4430
  %4779 = vmatpush1.bf16.msra.mxu0 %v4429
  %4780 = vmatprep.subr.bf16.mxu0 %v4437
  %4781 = vmatpush1.bf16.msra.mxu0 %v4436
  %4782 = vmatprep.subr.bf16.mxu0 %v4444
  %4783 = vmatpush1.bf16.msra.mxu0 %v4443
  %4784 = vmatprep.subr.bf16.mxu0 %v4451
  %4785 = vmatpush1.bf16.msra.mxu0 %v4450
  %4786 = vmatprep.mubr.bf16.mxu0 %v4696
  %4787 = vmatmul.mubr.bf16.gmra.mrb[0].mxu0 %v4695
  %v4788 = vpop.f32.mrb[0].mxu0
  %v4789 = vadd.f32 %v4620, %v4788
  %v4790 = vpop.f32.mrb[0].mxu0
  %v4791 = vadd.f32 %v4620, %v4790
  %v4792 = vpop.f32.mrb[0].mxu0
  %v4793 = vadd.f32 %v4625, %v4792
  %v4794 = vpop.f32.mrb[0].mxu0
  %v4795 = vadd.f32 %v4625, %v4794
  %4796 = vmatprep.mubr.bf16.mxu0 %v4701
  %4797 = vmatmul.mubr.bf16.gmra.mrb[0].mxu0 %v4700
  %v4798 = vpop.f32.mrb[0].mxu0
  %v4799 = vadd.f32 %v4630, %v4798
  %v4800 = vpop.f32.mrb[0].mxu0
  %v4801 = vadd.f32 %v4630, %v4800
  %v4802 = vpop.f32.mrb[0].mxu0
  %v4803 = vadd.f32 %v4635, %v4802
  %v4804 = vpop.f32.mrb[0].mxu0
  %v4805 = vadd.f32 %v4635, %v4804
  %4806 = vmatprep.mubr.bf16.mxu0 %v4706
  %4807 = vmatmul.mubr.bf16.gmra.mrb[0].mxu0 %v4705
  %v4808 = vpop.f32.mrb[0].mxu0
  %v4809 = vadd.f32 %v4640, %v4808
  %v4810 = vpop.f32.mrb[0].mxu0
  %v4811 = vadd.f32 %v4640, %v4810
  %v4812 = vpop.f32.mrb[0].mxu0
  %v4813 = vadd.f32 %v4645, %v4812
  %v4814 = vpop.f32.mrb[0].mxu0
  %v4815 = vadd.f32 %v4645, %v4814
  %4816 = vdwg.mxu0
  %4817 = vmatprep.subr.bf16.mxu0 %v4458
  %4818 = vmatpush1.bf16.msra.mxu0 %v4457
  %4819 = vmatprep.subr.bf16.mxu0 %v4465
  %4820 = vmatpush1.bf16.msra.mxu0 %v4464
  %4821 = vmatprep.subr.bf16.mxu0 %v4472
  %4822 = vmatpush1.bf16.msra.mxu0 %v4471
  %4823 = vmatprep.subr.bf16.mxu0 %v4479
  %4824 = vmatpush1.bf16.msra.mxu0 %v4478
  %4825 = vmatprep.subr.bf16.mxu0 %v4486
  %4826 = vmatpush1.bf16.msra.mxu0 %v4485
  %4827 = vmatprep.subr.bf16.mxu0 %v4493
  %4828 = vmatpush1.bf16.msra.mxu0 %v4492
  %4829 = vmatprep.subr.bf16.mxu0 %v4500
  %4830 = vmatpush1.bf16.msra.mxu0 %v4499
  %4831 = vmatprep.subr.bf16.mxu0 %v4507
  %4832 = vmatpush1.bf16.msra.mxu0 %v4506
  %4833 = vmatprep.subr.bf16.mxu0 %v4514
  %4834 = vmatpush1.bf16.msra.mxu0 %v4513
  %4835 = vmatprep.subr.bf16.mxu0 %v4521
  %4836 = vmatpush1.bf16.msra.mxu0 %v4520
  %4837 = vmatprep.subr.bf16.mxu0 %v4528
  %4838 = vmatpush1.bf16.msra.mxu0 %v4527
  %4839 = vmatprep.subr.bf16.mxu0 %v4535
  %4840 = vmatpush1.bf16.msra.mxu0 %v4534
  %4841 = vmatprep.subr.bf16.mxu0 %v4542
  %4842 = vmatpush1.bf16.msra.mxu0 %v4541
  %4843 = vmatprep.subr.bf16.mxu0 %v4549
  %4844 = vmatpush1.bf16.msra.mxu0 %v4548
  %4845 = vmatprep.subr.bf16.mxu0 %v4556
  %4846 = vmatpush1.bf16.msra.mxu0 %v4555
  %4847 = vmatprep.subr.bf16.mxu0 %v4563
  %4848 = vmatpush1.bf16.msra.mxu0 %v4562
  %4849 = vmatprep.mubr.bf16.mxu0 %v4698
  %4850 = vmatmul.mubr.bf16.gmra.mrb[0].mxu0 %v4697
  %v4851 = vpop.f32.mrb[0].mxu0
  %v4852 = vadd.f32 %v4789, %v4851
  %v4853 = vpop.f32.mrb[0].mxu0
  %v4854 = vadd.f32 %v4791, %v4853
  %v4855 = vpop.f32.mrb[0].mxu0
  %v4856 = vadd.f32 %v4793, %v4855
  %v4857 = vpop.f32.mrb[0].mxu0
  %v4858 = vadd.f32 %v4795, %v4857
  %4859 = vmatprep.mubr.bf16.mxu0 %v4703
  %4860 = vmatmul.mubr.bf16.gmra.mrb[0].mxu0 %v4702
  %v4861 = vpop.f32.mrb[0].mxu0
  %v4862 = vadd.f32 %v4799, %v4861
  %v4863 = vpop.f32.mrb[0].mxu0
  %v4864 = vadd.f32 %v4801, %v4863
  %v4865 = vpop.f32.mrb[0].mxu0
  %v4866 = vadd.f32 %v4803, %v4865
  %v4867 = vpop.f32.mrb[0].mxu0
  %v4868 = vadd.f32 %v4805, %v4867
  %4869 = vmatprep.mubr.bf16.mxu0 %v4708
  %4870 = vmatmul.mubr.bf16.gmra.mrb[0].mxu0 %v4707
  %v4871 = vpop.f32.mrb[0].mxu0
  %v4872 = vadd.f32 %v4809, %v4871
  %v4873 = vpop.f32.mrb[0].mxu0
  %v4874 = vadd.f32 %v4811, %v4873
  %v4875 = vpop.f32.mrb[0].mxu0
  %v4876 = vadd.f32 %v4813, %v4875
  %v4877 = vpop.f32.mrb[0].mxu0
  %v4878 = vadd.f32 %v4815, %v4877
  %4879 = vdwg.mxu0
  %4880 = vmatprep.subr.bf16.mxu0 %v4570
  %4881 = vmatpush1.bf16.msra.mxu0 %v4569
  %4882 = vmatprep.subr.bf16.mxu0 %v4577
  %4883 = vmatpush1.bf16.msra.mxu0 %v4576
  %4884 = vmatprep.subr.bf16.mxu0 %v4584
  %4885 = vmatpush1.bf16.msra.mxu0 %v4583
  %4886 = vmatprep.subr.bf16.mxu0 %v4591
  %4887 = vmatpush1.bf16.msra.mxu0 %v4590
  %4888 = vmatprep.subr.bf16.mxu0 %v4598
  %4889 = vmatpush1.bf16.msra.mxu0 %v4597
  %4890 = vmatprep.subr.bf16.mxu0 %v4737
  %4891 = vmatpush1.bf16.msra.mxu0 %v4734
  %4892 = vmatprep.subr.bf16.mxu0 0
  %4893 = vmatpush1.bf16.msra.mxu0 0
  %4894 = vmatprep.subr.bf16.mxu0 0
  %4895 = vmatpush1.bf16.msra.mxu0 0
  %4896 = vmatprep.subr.bf16.mxu0 0
  %4897 = vmatpush1.bf16.msra.mxu0 0
  %4898 = vmatprep.subr.bf16.mxu0 0
  %4899 = vmatpush1.bf16.msra.mxu0 0
  %4900 = vmatprep.subr.bf16.mxu0 0
  %4901 = vmatpush1.bf16.msra.mxu0 0
  %4902 = vmatprep.subr.bf16.mxu0 0
  %4903 = vmatpush1.bf16.msra.mxu0 0
  %4904 = vmatprep.subr.bf16.mxu0 0
  %4905 = vmatpush1.bf16.msra.mxu0 0
  %4906 = vmatprep.subr.bf16.mxu0 0
  %4907 = vmatpush1.bf16.msra.mxu0 0
  %4908 = vmatprep.subr.bf16.mxu0 0
  %4909 = vmatpush1.bf16.msra.mxu0 0
  %4910 = vmatprep.subr.bf16.mxu0 0
  %4911 = vmatpush1.bf16.msra.mxu0 0
  %4912 = vmatprep.mubr.bf16.mxu0 0
  %4913 = vmatmul.mubr.bf16.gmra.mrb[0].mxu0 %v4724
  %v4914 = vpop.f32.mrb[0].mxu0
  %v4915 = vadd.f32 %v4852, %v4914
  %v4916 = vpop.f32.mrb[0].mxu0
  %v4917 = vadd.f32 %v4854, %v4916
  %v4918 = vpop.f32.mrb[0].mxu0
  %v4919 = vadd.f32 %v4856, %v4918
  %v4920 = vpop.f32.mrb[0].mxu0
  %v4921 = vadd.f32 %v4858, %v4920
  %4922 = vmatprep.mubr.bf16.mxu0 0
  %4923 = vmatmul.mubr.bf16.gmra.mrb[0].mxu0 %v4727
  %v4924 = vpop.f32.mrb[0].mxu0
  %v4925 = vadd.f32 %v4862, %v4924
  %v4926 = vpop.f32.mrb[0].mxu0
  %v4927 = vadd.f32 %v4864, %v4926
  %v4928 = vpop.f32.mrb[0].mxu0
  %v4929 = vadd.f32 %v4866, %v4928
  %v4930 = vpop.f32.mrb[0].mxu0
  %v4931 = vadd.f32 %v4868, %v4930
  %4932 = vmatprep.mubr.bf16.mxu0 0
  %4933 = vmatmul.mubr.bf16.gmra.mrb[0].mxu0 %v4730
  %v4934 = vpop.f32.mrb[0].mxu0
  %v4935 = vadd.f32 %v4872, %v4934
  %v4936 = vpop.f32.mrb[0].mxu0
  %v4937 = vadd.f32 %v4874, %v4936
  %v4938 = vpop.f32.mrb[0].mxu0
  %v4939 = vadd.f32 %v4876, %v4938
  %v4940 = vpop.f32.mrb[0].mxu0
  %v4941 = vadd.f32 %v4878, %v4940
  %4942 = vdwg.mxu0
  %4943 = vmatprep.subr.bf16.mxu0 %v4348
  %4944 = vmatpush1.bf16.msra.mxu0 %v4347
  %4945 = vmatprep.subr.bf16.mxu0 %v4355
  %4946 = vmatpush1.bf16.msra.mxu0 %v4354
  %4947 = vmatprep.subr.bf16.mxu0 %v4362
  %4948 = vmatpush1.bf16.msra.mxu0 %v4361
  %4949 = vmatprep.subr.bf16.mxu0 %v4369
  %4950 = vmatpush1.bf16.msra.mxu0 %v4368
  %4951 = vmatprep.subr.bf16.mxu0 %v4376
  %4952 = vmatpush1.bf16.msra.mxu0 %v4375
  %4953 = vmatprep.subr.bf16.mxu0 %v4383
  %4954 = vmatpush1.bf16.msra.mxu0 %v4382
  %4955 = vmatprep.subr.bf16.mxu0 %v4390
  %4956 = vmatpush1.bf16.msra.mxu0 %v4389
  %4957 = vmatprep.subr.bf16.mxu0 %v4397
  %4958 = vmatpush1.bf16.msra.mxu0 %v4396
  %4959 = vmatprep.subr.bf16.mxu0 %v4404
  %4960 = vmatpush1.bf16.msra.mxu0 %v4403
  %4961 = vmatprep.subr.bf16.mxu0 %v4411
  %4962 = vmatpush1.bf16.msra.mxu0 %v4410
  %4963 = vmatprep.subr.bf16.mxu0 %v4418
  %4964 = vmatpush1.bf16.msra.mxu0 %v4417
  %4965 = vmatprep.subr.bf16.mxu0 %v4425
  %4966 = vmatpush1.bf16.msra.mxu0 %v4424
  %4967 = vmatprep.subr.bf16.mxu0 %v4432
  %4968 = vmatpush1.bf16.msra.mxu0 %v4431
  %4969 = vmatprep.subr.bf16.mxu0 %v4439
  %4970 = vmatpush1.bf16.msra.mxu0 %v4438
  %4971 = vmatprep.subr.bf16.mxu0 %v4446
  %4972 = vmatpush1.bf16.msra.mxu0 %v4445
  %4973 = vmatprep.subr.bf16.mxu0 %v4453
  %4974 = vmatpush1.bf16.msra.mxu0 %v4452
  %4975 = vmatprep.mubr.bf16.mxu0 %v4696
  %4976 = vmatmul.mubr.bf16.gmra.mrb[0].mxu0 %v4695
  %v4977 = vpop.f32.mrb[0].mxu0
  %v4978 = vadd.f32 %v4620, %v4977
  %v4979 = vpop.f32.mrb[0].mxu0
  %v4980 = vadd.f32 %v4620, %v4979
  %v4981 = vpop.f32.mrb[0].mxu0
  %v4982 = vadd.f32 %v4625, %v4981
  %v4983 = vpop.f32.mrb[0].mxu0
  %v4984 = vadd.f32 %v4625, %v4983
  %4985 = vmatprep.mubr.bf16.mxu0 %v4701
  %4986 = vmatmul.mubr.bf16.gmra.mrb[0].mxu0 %v4700
  %v4987 = vpop.f32.mrb[0].mxu0
  %v4988 = vadd.f32 %v4630, %v4987
  %v4989 = vpop.f32.mrb[0].mxu0
  %v4990 = vadd.f32 %v4630, %v4989
  %v4991 = vpop.f32.mrb[0].mxu0
  %v4992 = vadd.f32 %v4635, %v4991
  %v4993 = vpop.f32.mrb[0].mxu0
  %v4994 = vadd.f32 %v4635, %v4993
  %4995 = vmatprep.mubr.bf16.mxu0 %v4706
  %4996 = vmatmul.mubr.bf16.gmra.mrb[0].mxu0 %v4705
  %v4997 = vpop.f32.mrb[0].mxu0
  %v4998 = vadd.f32 %v4640, %v4997
  %v4999 = vpop.f32.mrb[0].mxu0
  %v5000 = vadd.f32 %v4640, %v4999
  %v5001 = vpop.f32.mrb[0].mxu0
  %v5002 = vadd.f32 %v4645, %v5001
  %v5003 = vpop.f32.mrb[0].mxu0
  %v5004 = vadd.f32 %v4645, %v5003
  %5005 = vdwg.mxu0
  %5006 = vmatprep.subr.bf16.mxu0 %v4460
  %5007 = vmatpush1.bf16.msra.mxu0 %v4459
  %5008 = vmatprep.subr.bf16.mxu0 %v4467
  %5009 = vmatpush1.bf16.msra.mxu0 %v4466
  %5010 = vmatprep.subr.bf16.mxu0 %v4474
  %5011 = vmatpush1.bf16.msra.mxu0 %v4473
  %5012 = vmatprep.subr.bf16.mxu0 %v4481
  %5013 = vmatpush1.bf16.msra.mxu0 %v4480
  %5014 = vmatprep.subr.bf16.mxu0 %v4488
  %5015 = vmatpush1.bf16.msra.mxu0 %v4487
  %5016 = vmatprep.subr.bf16.mxu0 %v4495
  %5017 = vmatpush1.bf16.msra.mxu0 %v4494
  %5018 = vmatprep.subr.bf16.mxu0 %v4502
  %5019 = vmatpush1.bf16.msra.mxu0 %v4501
  %5020 = vmatprep.subr.bf16.mxu0 %v4509
  %5021 = vmatpush1.bf16.msra.mxu0 %v4508
  %5022 = vmatprep.subr.bf16.mxu0 %v4516
  %5023 = vmatpush1.bf16.msra.mxu0 %v4515
  %5024 = vmatprep.subr.bf16.mxu0 %v4523
  %5025 = vmatpush1.bf16.msra.mxu0 %v4522
  %5026 = vmatprep.subr.bf16.mxu0 %v4530
  %5027 = vmatpush1.bf16.msra.mxu0 %v4529
  %5028 = vmatprep.subr.bf16.mxu0 %v4537
  %5029 = vmatpush1.bf16.msra.mxu0 %v4536
  %5030 = vmatprep.subr.bf16.mxu0 %v4544
  %5031 = vmatpush1.bf16.msra.mxu0 %v4543
  %5032 = vmatprep.subr.bf16.mxu0 %v4551
  %5033 = vmatpush1.bf16.msra.mxu0 %v4550
  %5034 = vmatprep.subr.bf16.mxu0 %v4558
  %5035 = vmatpush1.bf16.msra.mxu0 %v4557
  %5036 = vmatprep.subr.bf16.mxu0 %v4565
  %5037 = vmatpush1.bf16.msra.mxu0 %v4564
  %5038 = vmatprep.mubr.bf16.mxu0 %v4698
  %5039 = vmatmul.mubr.bf16.gmra.mrb[0].mxu0 %v4697
  %v5040 = vpop.f32.mrb[0].mxu0
  %v5041 = vadd.f32 %v4978, %v5040
  %v5042 = vpop.f32.mrb[0].mxu0
  %v5043 = vadd.f32 %v4980, %v5042
  %v5044 = vpop.f32.mrb[0].mxu0
  %v5045 = vadd.f32 %v4982, %v5044
  %v5046 = vpop.f32.mrb[0].mxu0
  %v5047 = vadd.f32 %v4984, %v5046
  %5048 = vmatprep.mubr.bf16.mxu0 %v4703
  %5049 = vmatmul.mubr.bf16.gmra.mrb[0].mxu0 %v4702
  %v5050 = vpop.f32.mrb[0].mxu0
  %v5051 = vadd.f32 %v4988, %v5050
  %v5052 = vpop.f32.mrb[0].mxu0
  %v5053 = vadd.f32 %v4990, %v5052
  %v5054 = vpop.f32.mrb[0].mxu0
  %v5055 = vadd.f32 %v4992, %v5054
  %v5056 = vpop.f32.mrb[0].mxu0
  %v5057 = vadd.f32 %v4994, %v5056
  %5058 = vmatprep.mubr.bf16.mxu0 %v4708
  %5059 = vmatmul.mubr.bf16.gmra.mrb[0].mxu0 %v4707
  %v5060 = vpop.f32.mrb[0].mxu0
  %v5061 = vadd.f32 %v4998, %v5060
  %v5062 = vpop.f32.mrb[0].mxu0
  %v5063 = vadd.f32 %v5000, %v5062
  %v5064 = vpop.f32.mrb[0].mxu0
  %v5065 = vadd.f32 %v5002, %v5064
  %v5066 = vpop.f32.mrb[0].mxu0
  %v5067 = vadd.f32 %v5004, %v5066
  %5068 = vdwg.mxu0
  %5069 = vmatprep.subr.bf16.mxu0 %v4572
  %5070 = vmatpush1.bf16.msra.mxu0 %v4571
  %5071 = vmatprep.subr.bf16.mxu0 %v4579
  %5072 = vmatpush1.bf16.msra.mxu0 %v4578
  %5073 = vmatprep.subr.bf16.mxu0 %v4586
  %5074 = vmatpush1.bf16.msra.mxu0 %v4585
  %5075 = vmatprep.subr.bf16.mxu0 %v4593
  %5076 = vmatpush1.bf16.msra.mxu0 %v4592
  %5077 = vmatprep.subr.bf16.mxu0 %v4600
  %5078 = vmatpush1.bf16.msra.mxu0 %v4599
  %5079 = vmatprep.subr.bf16.mxu0 %v4743
  %5080 = vmatpush1.bf16.msra.mxu0 %v4740
  %5081 = vmatprep.subr.bf16.mxu0 0
  %5082 = vmatpush1.bf16.msra.mxu0 0
  %5083 = vmatprep.subr.bf16.mxu0 0
  %5084 = vmatpush1.bf16.msra.mxu0 0
  %5085 = vmatprep.subr.bf16.mxu0 0
  %5086 = vmatpush1.bf16.msra.mxu0 0
  %5087 = vmatprep.subr.bf16.mxu0 0
  %5088 = vmatpush1.bf16.msra.mxu0 0
  %5089 = vmatprep.subr.bf16.mxu0 0
  %5090 = vmatpush1.bf16.msra.mxu0 0
  %5091 = vmatprep.subr.bf16.mxu0 0
  %5092 = vmatpush1.bf16.msra.mxu0 0
  %5093 = vmatprep.subr.bf16.mxu0 0
  %5094 = vmatpush1.bf16.msra.mxu0 0
  %5095 = vmatprep.subr.bf16.mxu0 0
  %5096 = vmatpush1.bf16.msra.mxu0 0
  %5097 = vmatprep.subr.bf16.mxu0 0
  %5098 = vmatpush1.bf16.msra.mxu0 0
  %5099 = vmatprep.subr.bf16.mxu0 0
  %5100 = vmatpush1.bf16.msra.mxu0 0
  %5101 = vmatprep.mubr.bf16.mxu0 0
  %5102 = vmatmul.mubr.bf16.gmra.mrb[0].mxu0 %v4724
  %v5103 = vpop.f32.mrb[0].mxu0
  %v5104 = vadd.f32 %v5041, %v5103
  %v5105 = vpop.f32.mrb[0].mxu0
  %v5106 = vadd.f32 %v5043, %v5105
  %v5107 = vpop.f32.mrb[0].mxu0
  %v5108 = vadd.f32 %v5045, %v5107
  %v5109 = vpop.f32.mrb[0].mxu0
  %v5110 = vadd.f32 %v5047, %v5109
  %5111 = vmatprep.mubr.bf16.mxu0 0
  %5112 = vmatmul.mubr.bf16.gmra.mrb[0].mxu0 %v4727
  %v5113 = vpop.f32.mrb[0].mxu0
  %v5114 = vadd.f32 %v5051, %v5113
  %v5115 = vpop.f32.mrb[0].mxu0
  %v5116 = vadd.f32 %v5053, %v5115
  %v5117 = vpop.f32.mrb[0].mxu0
  %v5118 = vadd.f32 %v5055, %v5117
  %v5119 = vpop.f32.mrb[0].mxu0
  %v5120 = vadd.f32 %v5057, %v5119
  %5121 = vmatprep.mubr.bf16.mxu0 0
  %5122 = vmatmul.mubr.bf16.gmra.mrb[0].mxu0 %v4730
  %v5123 = vpop.f32.mrb[0].mxu0
  %v5124 = vadd.f32 %v5061, %v5123
  %v5125 = vpop.f32.mrb[0].mxu0
  %v5126 = vadd.f32 %v5063, %v5125
  %v5127 = vpop.f32.mrb[0].mxu0
  %v5128 = vadd.f32 %v5065, %v5127
  %v5129 = vpop.f32.mrb[0].mxu0
  %v5130 = vadd.f32 %v5067, %v5129
  %5131 = vdwg.mxu0
  %5132 = vmatprep.subr.bf16.mxu0 %v4350
  %5133 = vmatpush1.bf16.msra.mxu0 %v4349
  %5134 = vmatprep.subr.bf16.mxu0 %v4357
  %5135 = vmatpush1.bf16.msra.mxu0 %v4356
  %5136 = vmatprep.subr.bf16.mxu0 %v4364
  %5137 = vmatpush1.bf16.msra.mxu0 %v4363
  %5138 = vmatprep.subr.bf16.mxu0 %v4371
  %5139 = vmatpush1.bf16.msra.mxu0 %v4370
  %5140 = vmatprep.subr.bf16.mxu0 %v4378
  %5141 = vmatpush1.bf16.msra.mxu0 %v4377
  %5142 = vmatprep.subr.bf16.mxu0 %v4385
  %5143 = vmatpush1.bf16.msra.mxu0 %v4384
  %5144 = vmatprep.subr.bf16.mxu0 %v4392
  %5145 = vmatpush1.bf16.msra.mxu0 %v4391
  %5146 = vmatprep.subr.bf16.mxu0 %v4399
  %5147 = vmatpush1.bf16.msra.mxu0 %v4398
  %5148 = vmatprep.subr.bf16.mxu0 %v4406
  %5149 = vmatpush1.bf16.msra.mxu0 %v4405
  %5150 = vmatprep.subr.bf16.mxu0 %v4413
  %5151 = vmatpush1.bf16.msra.mxu0 %v4412
  %5152 = vmatprep.subr.bf16.mxu0 %v4420
  %5153 = vmatpush1.bf16.msra.mxu0 %v4419
  %5154 = vmatprep.subr.bf16.mxu0 %v4427
  %5155 = vmatpush1.bf16.msra.mxu0 %v4426
  %5156 = vmatprep.subr.bf16.mxu0 %v4434
  %5157 = vmatpush1.bf16.msra.mxu0 %v4433
  %5158 = vmatprep.subr.bf16.mxu0 %v4441
  %5159 = vmatpush1.bf16.msra.mxu0 %v4440
  %5160 = vmatprep.subr.bf16.mxu0 %v4448
  %5161 = vmatpush1.bf16.msra.mxu0 %v4447
  %5162 = vmatprep.subr.bf16.mxu0 %v4455
  %5163 = vmatpush1.bf16.msra.mxu0 %v4454
  %5164 = vmatprep.mubr.bf16.mxu0 %v4696
  %5165 = vmatmul.mubr.bf16.gmra.mrb[0].mxu0 %v4695
  %v5166 = vpop.f32.mrb[0].mxu0
  %v5167 = vadd.f32 %v4620, %v5166
  %v5168 = vpop.f32.mrb[0].mxu0
  %v5169 = vadd.f32 %v4620, %v5168
  %v5170 = vpop.f32.mrb[0].mxu0
  %v5171 = vadd.f32 %v4625, %v5170
  %v5172 = vpop.f32.mrb[0].mxu0
  %v5173 = vadd.f32 %v4625, %v5172
  %5174 = vmatprep.mubr.bf16.mxu0 %v4701
  %5175 = vmatmul.mubr.bf16.gmra.mrb[0].mxu0 %v4700
  %v5176 = vpop.f32.mrb[0].mxu0
  %v5177 = vadd.f32 %v4630, %v5176
  %v5178 = vpop.f32.mrb[0].mxu0
  %v5179 = vadd.f32 %v4630, %v5178
  %v5180 = vpop.f32.mrb[0].mxu0
  %v5181 = vadd.f32 %v4635, %v5180
  %v5182 = vpop.f32.mrb[0].mxu0
  %v5183 = vadd.f32 %v4635, %v5182
  %5184 = vmatprep.mubr.bf16.mxu0 %v4706
  %5185 = vmatmul.mubr.bf16.gmra.mrb[0].mxu0 %v4705
  %v5186 = vpop.f32.mrb[0].mxu0
  %v5187 = vadd.f32 %v4640, %v5186
  %v5188 = vpop.f32.mrb[0].mxu0
  %v5189 = vadd.f32 %v4640, %v5188
  %v5190 = vpop.f32.mrb[0].mxu0
  %v5191 = vadd.f32 %v4645, %v5190
  %v5192 = vpop.f32.mrb[0].mxu0
  %v5193 = vadd.f32 %v4645, %v5192
  %5194 = vdwg.mxu0
  %5195 = vmatprep.subr.bf16.mxu0 %v4462
  %5196 = vmatpush1.bf16.msra.mxu0 %v4461
  %5197 = vmatprep.subr.bf16.mxu0 %v4469
  %5198 = vmatpush1.bf16.msra.mxu0 %v4468
  %5199 = vmatprep.subr.bf16.mxu0 %v4476
  %5200 = vmatpush1.bf16.msra.mxu0 %v4475
  %5201 = vmatprep.subr.bf16.mxu0 %v4483
  %5202 = vmatpush1.bf16.msra.mxu0 %v4482
  %5203 = vmatprep.subr.bf16.mxu0 %v4490
  %5204 = vmatpush1.bf16.msra.mxu0 %v4489
  %5205 = vmatprep.subr.bf16.mxu0 %v4497
  %5206 = vmatpush1.bf16.msra.mxu0 %v4496
  %5207 = vmatprep.subr.bf16.mxu0 %v4504
  %5208 = vmatpush1.bf16.msra.mxu0 %v4503
  %5209 = vmatprep.subr.bf16.mxu0 %v4511
  %5210 = vmatpush1.bf16.msra.mxu0 %v4510
  %5211 = vmatprep.subr.bf16.mxu0 %v4518
  %5212 = vmatpush1.bf16.msra.mxu0 %v4517
  %5213 = vmatprep.subr.bf16.mxu0 %v4525
  %5214 = vmatpush1.bf16.msra.mxu0 %v4524
  %5215 = vmatprep.subr.bf16.mxu0 %v4532
  %5216 = vmatpush1.bf16.msra.mxu0 %v4531
  %5217 = vmatprep.subr.bf16.mxu0 %v4539
  %5218 = vmatpush1.bf16.msra.mxu0 %v4538
  %5219 = vmatprep.subr.bf16.mxu0 %v4546
  %5220 = vmatpush1.bf16.msra.mxu0 %v4545
  %5221 = vmatprep.subr.bf16.mxu0 %v4553
  %5222 = vmatpush1.bf16.msra.mxu0 %v4552
  %5223 = vmatprep.subr.bf16.mxu0 %v4560
  %5224 = vmatpush1.bf16.msra.mxu0 %v4559
  %5225 = vmatprep.subr.bf16.mxu0 %v4567
  %5226 = vmatpush1.bf16.msra.mxu0 %v4566
  %5227 = vmatprep.mubr.bf16.mxu0 %v4698
  %5228 = vmatmul.mubr.bf16.gmra.mrb[0].mxu0 %v4697
  %v5229 = vpop.f32.mrb[0].mxu0
  %v5230 = vadd.f32 %v5167, %v5229
  %v5231 = vpop.f32.mrb[0].mxu0
  %v5232 = vadd.f32 %v5169, %v5231
  %v5233 = vpop.f32.mrb[0].mxu0
  %v5234 = vadd.f32 %v5171, %v5233
  %v5235 = vpop.f32.mrb[0].mxu0
  %v5236 = vadd.f32 %v5173, %v5235
  %5237 = vmatprep.mubr.bf16.mxu0 %v4703
  %5238 = vmatmul.mubr.bf16.gmra.mrb[0].mxu0 %v4702
  %v5239 = vpop.f32.mrb[0].mxu0
  %v5240 = vadd.f32 %v5177, %v5239
  %v5241 = vpop.f32.mrb[0].mxu0
  %v5242 = vadd.f32 %v5179, %v5241
  %v5243 = vpop.f32.mrb[0].mxu0
  %v5244 = vadd.f32 %v5181, %v5243
  %v5245 = vpop.f32.mrb[0].mxu0
  %v5246 = vadd.f32 %v5183, %v5245
  %5247 = vmatprep.mubr.bf16.mxu0 %v4708
  %5248 = vmatmul.mubr.bf16.gmra.mrb[0].mxu0 %v4707
  %v5249 = vpop.f32.mrb[0].mxu0
  %v5250 = vadd.f32 %v5187, %v5249
  %v5251 = vpop.f32.mrb[0].mxu0
  %v5252 = vadd.f32 %v5189, %v5251
  %v5253 = vpop.f32.mrb[0].mxu0
  %v5254 = vadd.f32 %v5191, %v5253
  %v5255 = vpop.f32.mrb[0].mxu0
  %v5256 = vadd.f32 %v5193, %v5255
  %5257 = vdwg.mxu0
  %5258 = vmatprep.subr.bf16.mxu0 %v4574
  %5259 = vmatpush1.bf16.msra.mxu0 %v4573
  %5260 = vmatprep.subr.bf16.mxu0 %v4581
  %5261 = vmatpush1.bf16.msra.mxu0 %v4580
  %5262 = vmatprep.subr.bf16.mxu0 %v4588
  %5263 = vmatpush1.bf16.msra.mxu0 %v4587
  %5264 = vmatprep.subr.bf16.mxu0 %v4595
  %5265 = vmatpush1.bf16.msra.mxu0 %v4594
  %5266 = vmatprep.subr.bf16.mxu0 %v4602
  %5267 = vmatpush1.bf16.msra.mxu0 %v4601
  %5268 = vmatprep.subr.bf16.mxu0 %v4749
  %5269 = vmatpush1.bf16.msra.mxu0 %v4746
  %5270 = vmatprep.subr.bf16.mxu0 0
  %5271 = vmatpush1.bf16.msra.mxu0 0
  %5272 = vmatprep.subr.bf16.mxu0 0
  %5273 = vmatpush1.bf16.msra.mxu0 0
  %5274 = vmatprep.subr.bf16.mxu0 0
  %5275 = vmatpush1.bf16.msra.mxu0 0
  %5276 = vmatprep.subr.bf16.mxu0 0
  %5277 = vmatpush1.bf16.msra.mxu0 0
  %5278 = vmatprep.subr.bf16.mxu0 0
  %5279 = vmatpush1.bf16.msra.mxu0 0
  %5280 = vmatprep.subr.bf16.mxu0 0
  %5281 = vmatpush1.bf16.msra.mxu0 0
  %5282 = vmatprep.subr.bf16.mxu0 0
  %5283 = vmatpush1.bf16.msra.mxu0 0
  %5284 = vmatprep.subr.bf16.mxu0 0
  %5285 = vmatpush1.bf16.msra.mxu0 0
  %5286 = vmatprep.subr.bf16.mxu0 0
  %5287 = vmatpush1.bf16.msra.mxu0 0
  %5288 = vmatprep.subr.bf16.mxu0 0
  %5289 = vmatpush1.bf16.msra.mxu0 0
  %5290 = vmatprep.mubr.bf16.mxu0 0
  %5291 = vmatmul.mubr.bf16.gmra.mrb[0].mxu0 %v4724
  %v5292 = vpop.f32.mrb[0].mxu0
  %v5293 = vadd.f32 %v5230, %v5292
  %v5294 = vpop.f32.mrb[0].mxu0
  %v5295 = vadd.f32 %v5232, %v5294
  %v5296 = vpop.f32.mrb[0].mxu0
  %v5297 = vadd.f32 %v5234, %v5296
  %v5298 = vpop.f32.mrb[0].mxu0
  %v5299 = vadd.f32 %v5236, %v5298
  %5300 = vmatprep.mubr.bf16.mxu0 0
  %5301 = vmatmul.mubr.bf16.gmra.mrb[0].mxu0 %v4727
  %v5302 = vpop.f32.mrb[0].mxu0
  %v5303 = vadd.f32 %v5240, %v5302
  %v5304 = vpop.f32.mrb[0].mxu0
  %v5305 = vadd.f32 %v5242, %v5304
  %v5306 = vpop.f32.mrb[0].mxu0
  %v5307 = vadd.f32 %v5244, %v5306
  %v5308 = vpop.f32.mrb[0].mxu0
  %v5309 = vadd.f32 %v5246, %v5308
  %5310 = vmatprep.mubr.bf16.mxu0 0
  %5311 = vmatmul.mubr.bf16.gmra.mrb[0].mxu0 %v4730
  %v5312 = vpop.f32.mrb[0].mxu0
  %v5313 = vadd.f32 %v5250, %v5312
  %v5314 = vpop.f32.mrb[0].mxu0
  %v5315 = vadd.f32 %v5252, %v5314
  %v5316 = vpop.f32.mrb[0].mxu0
  %v5317 = vadd.f32 %v5254, %v5316
  %v5318 = vpop.f32.mrb[0].mxu0
  %v5319 = vadd.f32 %v5256, %v5318
  %5320 = vdwg.mxu0
  %5321 = vmatprep.subr.bf16.mxu0 0
  %5322 = vmatpush1.bf16.msra.mxu0 %v4351
  %5323 = vmatprep.subr.bf16.mxu0 0
  %5324 = vmatpush1.bf16.msra.mxu0 %v4358
  %5325 = vmatprep.subr.bf16.mxu0 0
  %5326 = vmatpush1.bf16.msra.mxu0 %v4365
  %5327 = vmatprep.subr.bf16.mxu0 0
  %5328 = vmatpush1.bf16.msra.mxu0 %v4372
  %5329 = vmatprep.subr.bf16.mxu0 0
  %5330 = vmatpush1.bf16.msra.mxu0 %v4379
  %5331 = vmatprep.subr.bf16.mxu0 0
  %5332 = vmatpush1.bf16.msra.mxu0 %v4386
  %5333 = vmatprep.subr.bf16.mxu0 0
  %5334 = vmatpush1.bf16.msra.mxu0 %v4393
  %5335 = vmatprep.subr.bf16.mxu0 0
  %5336 = vmatpush1.bf16.msra.mxu0 %v4400
  %5337 = vmatprep.subr.bf16.mxu0 0
  %5338 = vmatpush1.bf16.msra.mxu0 %v4407
  %5339 = vmatprep.subr.bf16.mxu0 0
  %5340 = vmatpush1.bf16.msra.mxu0 %v4414
  %5341 = vmatprep.subr.bf16.mxu0 0
  %5342 = vmatpush1.bf16.msra.mxu0 %v4421
  %5343 = vmatprep.subr.bf16.mxu0 0
  %5344 = vmatpush1.bf16.msra.mxu0 %v4428
  %5345 = vmatprep.subr.bf16.mxu0 0
  %5346 = vmatpush1.bf16.msra.mxu0 %v4435
  %5347 = vmatprep.subr.bf16.mxu0 0
  %5348 = vmatpush1.bf16.msra.mxu0 %v4442
  %5349 = vmatprep.subr.bf16.mxu0 0
  %5350 = vmatpush1.bf16.msra.mxu0 %v4449
  %5351 = vmatprep.subr.bf16.mxu0 0
  %5352 = vmatpush1.bf16.msra.mxu0 %v4456
  %5353 = vmatprep.mubr.bf16.mxu0 %v4696
  %5354 = vmatmul.mubr.bf16.gmra.mrb[0].mxu0 %v4695
  %v5355 = vpop.f32.mrb[0].mxu0
  %v5356 = vadd.f32 %v4620, %v5355
  %v5357 = vpop.f32.mrb[0].mxu0
  %v5358 = vpop.f32.mrb[0].mxu0
  %v5359 = vadd.f32 %v4625, %v5358
  %v5360 = vpop.f32.mrb[0].mxu0
  %5361 = vmatprep.mubr.bf16.mxu0 %v4701
  %5362 = vmatmul.mubr.bf16.gmra.mrb[0].mxu0 %v4700
  %v5363 = vpop.f32.mrb[0].mxu0
  %v5364 = vadd.f32 %v4630, %v5363
  %v5365 = vpop.f32.mrb[0].mxu0
  %v5366 = vpop.f32.mrb[0].mxu0
  %v5367 = vadd.f32 %v4635, %v5366
  %v5368 = vpop.f32.mrb[0].mxu0
  %5369 = vmatprep.mubr.bf16.mxu0 %v4706
  %5370 = vmatmul.mubr.bf16.gmra.mrb[0].mxu0 %v4705
  %v5371 = vpop.f32.mrb[0].mxu0
  %v5372 = vadd.f32 %v4640, %v5371
  %v5373 = vpop.f32.mrb[0].mxu0
  %v5374 = vpop.f32.mrb[0].mxu0
  %v5375 = vadd.f32 %v4645, %v5374
  %v5376 = vpop.f32.mrb[0].mxu0
  %5377 = vdwg.mxu0
  %5378 = vmatprep.subr.bf16.mxu0 0
  %5379 = vmatpush1.bf16.msra.mxu0 %v4463
  %5380 = vmatprep.subr.bf16.mxu0 0
  %5381 = vmatpush1.bf16.msra.mxu0 %v4470
  %5382 = vmatprep.subr.bf16.mxu0 0
  %5383 = vmatpush1.bf16.msra.mxu0 %v4477
  %5384 = vmatprep.subr.bf16.mxu0 0
  %5385 = vmatpush1.bf16.msra.mxu0 %v4484
  %5386 = vmatprep.subr.bf16.mxu0 0
  %5387 = vmatpush1.bf16.msra.mxu0 %v4491
  %5388 = vmatprep.subr.bf16.mxu0 0
  %5389 = vmatpush1.bf16.msra.mxu0 %v4498
  %5390 = vmatprep.subr.bf16.mxu0 0
  %5391 = vmatpush1.bf16.msra.mxu0 %v4505
  %5392 = vmatprep.subr.bf16.mxu0 0
  %5393 = vmatpush1.bf16.msra.mxu0 %v4512
  %5394 = vmatprep.subr.bf16.mxu0 0
  %5395 = vmatpush1.bf16.msra.mxu0 %v4519
  %5396 = vmatprep.subr.bf16.mxu0 0
  %5397 = vmatpush1.bf16.msra.mxu0 %v4526
  %5398 = vmatprep.subr.bf16.mxu0 0
  %5399 = vmatpush1.bf16.msra.mxu0 %v4533
  %5400 = vmatprep.subr.bf16.mxu0 0
  %5401 = vmatpush1.bf16.msra.mxu0 %v4540
  %5402 = vmatprep.subr.bf16.mxu0 0
  %5403 = vmatpush1.bf16.msra.mxu0 %v4547
  %5404 = vmatprep.subr.bf16.mxu0 0
  %5405 = vmatpush1.bf16.msra.mxu0 %v4554
  %5406 = vmatprep.subr.bf16.mxu0 0
  %5407 = vmatpush1.bf16.msra.mxu0 %v4561
  %5408 = vmatprep.subr.bf16.mxu0 0
  %5409 = vmatpush1.bf16.msra.mxu0 %v4568
  %5410 = vmatprep.mubr.bf16.mxu0 %v4698
  %5411 = vmatmul.mubr.bf16.gmra.mrb[0].mxu0 %v4697
  %v5412 = vpop.f32.mrb[0].mxu0
  %v5413 = vadd.f32 %v5356, %v5412
  %v5414 = vpop.f32.mrb[0].mxu0
  %v5415 = vpop.f32.mrb[0].mxu0
  %v5416 = vadd.f32 %v5359, %v5415
  %v5417 = vpop.f32.mrb[0].mxu0
  %5418 = vmatprep.mubr.bf16.mxu0 %v4703
  %5419 = vmatmul.mubr.bf16.gmra.mrb[0].mxu0 %v4702
  %v5420 = vpop.f32.mrb[0].mxu0
  %v5421 = vadd.f32 %v5364, %v5420
  %v5422 = vpop.f32.mrb[0].mxu0
  %v5423 = vpop.f32.mrb[0].mxu0
  %v5424 = vadd.f32 %v5367, %v5423
  %v5425 = vpop.f32.mrb[0].mxu0
  %5426 = vmatprep.mubr.bf16.mxu0 %v4708
  %5427 = vmatmul.mubr.bf16.gmra.mrb[0].mxu0 %v4707
  %v5428 = vpop.f32.mrb[0].mxu0
  %v5429 = vadd.f32 %v5372, %v5428
  %v5430 = vpop.f32.mrb[0].mxu0
  %v5431 = vpop.f32.mrb[0].mxu0
  %v5432 = vadd.f32 %v5375, %v5431
  %v5433 = vpop.f32.mrb[0].mxu0
  %5434 = vdwg.mxu0
  %5435 = vmatprep.subr.bf16.mxu0 0
  %5436 = vmatpush1.bf16.msra.mxu0 %v4575
  %5437 = vmatprep.subr.bf16.mxu0 0
  %5438 = vmatpush1.bf16.msra.mxu0 %v4582
  %5439 = vmatprep.subr.bf16.mxu0 0
  %5440 = vmatpush1.bf16.msra.mxu0 %v4589
  %5441 = vmatprep.subr.bf16.mxu0 0
  %5442 = vmatpush1.bf16.msra.mxu0 %v4596
  %5443 = vmatprep.subr.bf16.mxu0 0
  %5444 = vmatpush1.bf16.msra.mxu0 %v4603
  %5445 = vmatprep.subr.bf16.mxu0 0
  %5446 = vmatpush1.bf16.msra.mxu0 %v4752
  %5447 = vmatprep.subr.bf16.mxu0 0
  %5448 = vmatpush1.bf16.msra.mxu0 0
  %5449 = vmatprep.subr.bf16.mxu0 0
  %5450 = vmatpush1.bf16.msra.mxu0 0
  %5451 = vmatprep.subr.bf16.mxu0 0
  %5452 = vmatpush1.bf16.msra.mxu0 0
  %5453 = vmatprep.subr.bf16.mxu0 0
  %5454 = vmatpush1.bf16.msra.mxu0 0
  %5455 = vmatprep.subr.bf16.mxu0 0
  %5456 = vmatpush1.bf16.msra.mxu0 0
  %5457 = vmatprep.subr.bf16.mxu0 0
  %5458 = vmatpush1.bf16.msra.mxu0 0
  %5459 = vmatprep.subr.bf16.mxu0 0
  %5460 = vmatpush1.bf16.msra.mxu0 0
  %5461 = vmatprep.subr.bf16.mxu0 0
  %5462 = vmatpush1.bf16.msra.mxu0 0
  %5463 = vmatprep.subr.bf16.mxu0 0
  %5464 = vmatpush1.bf16.msra.mxu0 0
  %5465 = vmatprep.subr.bf16.mxu0 0
  %5466 = vmatpush1.bf16.msra.mxu0 0
  %5467 = vmatprep.mubr.bf16.mxu0 0
  %5468 = vmatmul.mubr.bf16.gmra.mrb[0].mxu0 %v4724
  %v5469 = vpop.f32.mrb[0].mxu0
  %v5470 = vadd.f32 %v5413, %v5469
  %v5471 = vpop.f32.mrb[0].mxu0
  %v5472 = vpop.f32.mrb[0].mxu0
  %v5473 = vadd.f32 %v5416, %v5472
  %v5474 = vpop.f32.mrb[0].mxu0
  %5475 = vmatprep.mubr.bf16.mxu0 0
  %5476 = vmatmul.mubr.bf16.gmra.mrb[0].mxu0 %v4727
  %v5477 = vpop.f32.mrb[0].mxu0
  %v5478 = vadd.f32 %v5421, %v5477
  %v5479 = vpop.f32.mrb[0].mxu0
  %v5480 = vpop.f32.mrb[0].mxu0
  %v5481 = vadd.f32 %v5424, %v5480
  %v5482 = vpop.f32.mrb[0].mxu0
  %5483 = vmatprep.mubr.bf16.mxu0 0
  %5484 = vmatmul.mubr.bf16.gmra.mrb[0].mxu0 %v4730
  %v5485 = vpop.f32.mrb[0].mxu0
  %v5486 = vadd.f32 %v5429, %v5485
  %v5487 = vpop.f32.mrb[0].mxu0
  %v5488 = vpop.f32.mrb[0].mxu0
  %v5489 = vadd.f32 %v5432, %v5488
  %v5490 = vpop.f32.mrb[0].mxu0
  %5491 = vdwg.mxu0
  %v5492 = vmax.f32 %v4915, 0.0
  %v5493 = vmax.f32 %v4917, 0.0
  %v5494 = vmax.f32 %v5104, 0.0
  %v5495 = vmax.f32 %v5106, 0.0
  %v5496 = vmax.f32 %v5293, 0.0
  %v5497 = vmax.f32 %v5295, 0.0
  %v5498 = vmax.f32 %v5470, 0.0
  %v5499 = vmax.f32 %v4919, 0.0
  %v5500 = vmax.f32 %v4921, 0.0
  %v5501 = vmax.f32 %v5108, 0.0
  %v5502 = vmax.f32 %v5110, 0.0
  %v5503 = vmax.f32 %v5297, 0.0
  %v5504 = vmax.f32 %v5299, 0.0
  %v5505 = vmax.f32 %v5473, 0.0
  %v5506 = vmax.f32 %v4925, 0.0
  %v5507 = vmax.f32 %v4927, 0.0
  %v5508 = vmax.f32 %v5114, 0.0
  %v5509 = vmax.f32 %v5116, 0.0
  %v5510 = vmax.f32 %v5303, 0.0
  %v5511 = vmax.f32 %v5305, 0.0
  %v5512 = vmax.f32 %v5478, 0.0
  %v5513 = vmax.f32 %v4929, 0.0
  %v5514 = vmax.f32 %v4931, 0.0
  %v5515 = vmax.f32 %v5118, 0.0
  %v5516 = vmax.f32 %v5120, 0.0
  %v5517 = vmax.f32 %v5307, 0.0
  %v5518 = vmax.f32 %v5309, 0.0
  %v5519 = vmax.f32 %v5481, 0.0
  %v5520 = vmax.f32 %v4935, 0.0
  %v5521 = vmax.f32 %v4937, 0.0
  %v5522 = vmax.f32 %v5124, 0.0
  %v5523 = vmax.f32 %v5126, 0.0
  %v5524 = vmax.f32 %v5313, 0.0
  %v5525 = vmax.f32 %v5315, 0.0
  %v5526 = vmax.f32 %v5486, 0.0
  %v5527 = vmax.f32 %v4939, 0.0
  %v5528 = vmax.f32 %v4941, 0.0
  %v5529 = vmax.f32 %v5128, 0.0
  %v5530 = vmax.f32 %v5130, 0.0
  %v5531 = vmax.f32 %v5317, 0.0
  %v5532 = vmax.f32 %v5319, 0.0
  %v5533 = vmax.f32 %v5489, 0.0
  %5534 = vst [vmem:[#allocation3] sm:$0xff] %v5492
  %5535 = vst [vmem:[#allocation3 + $0x8] sm:$0xff] %v5493
  %5536 = vst [vmem:[#allocation3 + $0x10] sm:$0xff] %v5494
  %5537 = vst [vmem:[#allocation3 + $0x18] sm:$0xff] %v5495
  %5538 = vst [vmem:[#allocation3 + $0x20] sm:$0xff] %v5496
  %5539 = vst [vmem:[#allocation3 + $0x28] sm:$0xff] %v5497
  %5540 = vst [vmem:[#allocation3 + $0x30] sm:$0xff] %v5498
  %5541 = vst [vmem:[#allocation3 + $0x38] sm:$0xff] %v5499
  %5542 = vst [vmem:[#allocation3 + $0x40] sm:$0xff] %v5500
  %5543 = vst [vmem:[#allocation3 + $0x48] sm:$0xff] %v5501
  %5544 = vst [vmem:[#allocation3 + $0x50] sm:$0xff] %v5502
  %5545 = vst [vmem:[#allocation3 + $0x58] sm:$0xff] %v5503
  %5546 = vst [vmem:[#allocation3 + $0x60] sm:$0xff] %v5504
  %5547 = vst [vmem:[#allocation3 + $0x68] sm:$0xff] %v5505
  %5548 = vst [vmem:[#allocation3 + $0x70] sm:$0xff] %v5506
  %5549 = vst [vmem:[#allocation3 + $0x78] sm:$0xff] %v5507
  %5550 = vst [vmem:[#allocation3 + $0x80] sm:$0xff] %v5508
  %5551 = vst [vmem:[#allocation3 + $0x88] sm:$0xff] %v5509
  %5552 = vst [vmem:[#allocation3 + $0x90] sm:$0xff] %v5510
  %5553 = vst [vmem:[#allocation3 + $0x98] sm:$0xff] %v5511
  %5554 = vst [vmem:[#allocation3 + $0xa0] sm:$0xff] %v5512
  %5555 = vst [vmem:[#allocation3 + $0xa8] sm:$0xff] %v5513
  %5556 = vst [vmem:[#allocation3 + $0xb0] sm:$0xff] %v5514
  %5557 = vst [vmem:[#allocation3 + $0xb8] sm:$0xff] %v5515
  %5558 = vst [vmem:[#allocation3 + $0xc0] sm:$0xff] %v5516
  %5559 = vst [vmem:[#allocation3 + $0xc8] sm:$0xff] %v5517
  %5560 = vst [vmem:[#allocation3 + $0xd0] sm:$0xff] %v5518
  %5561 = vst [vmem:[#allocation3 + $0xd8] sm:$0xff] %v5519
  %5562 = vst [vmem:[#allocation3 + $0xe0] sm:$0xff] %v5520
  %5563 = vst [vmem:[#allocation3 + $0xe8] sm:$0xff] %v5521
  %5564 = vst [vmem:[#allocation3 + $0xf0] sm:$0xff] %v5522
  %5565 = vst [vmem:[#allocation3 + $0xf8] sm:$0xff] %v5523
  %5566 = vst [vmem:[#allocation3 + $0x100] sm:$0xff] %v5524
  %5567 = vst [vmem:[#allocation3 + $0x108] sm:$0xff] %v5525
  %5568 = vst [vmem:[#allocation3 + $0x110] sm:$0xff] %v5526
  %5569 = vst [vmem:[#allocation3 + $0x118] sm:$0xff] %v5527
  %5570 = vst [vmem:[#allocation3 + $0x120] sm:$0xff] %v5528
  %5571 = vst [vmem:[#allocation3 + $0x128] sm:$0xff] %v5529
  %5572 = vst [vmem:[#allocation3 + $0x130] sm:$0xff] %v5530
  %5573 = vst [vmem:[#allocation3 + $0x138] sm:$0xff] %v5531
  %5574 = vst [vmem:[#allocation3 + $0x140] sm:$0xff] %v5532
  %5575 = vst [vmem:[#allocation3 + $0x148] sm:$0xff] %v5533
  %v5576 = vld [vmem:[#allocation3] sm:$0xff]
  %v5577 = vld [vmem:[#allocation3 + $0x8] sm:$0xff]
  %v5578 = vld [vmem:[#allocation3 + $0x10] sm:$0xff]
  %v5579 = vld [vmem:[#allocation3 + $0x18] sm:$0xff]
  %v5580 = vld [vmem:[#allocation3 + $0x20] sm:$0xff]
  %v5581 = vld [vmem:[#allocation3 + $0x28] sm:$0xff]
  %v5582 = vld [vmem:[#allocation3 + $0x30] sm:$0xff]
  %v5583 = vld [vmem:[#allocation3 + $0x38] sm:$0xff]
  %v5584 = vld [vmem:[#allocation3 + $0x40] sm:$0xff]
  %v5585 = vld [vmem:[#allocation3 + $0x48] sm:$0xff]
  %v5586 = vld [vmem:[#allocation3 + $0x50] sm:$0xff]
  %v5587 = vld [vmem:[#allocation3 + $0x58] sm:$0xff]
  %v5588 = vld [vmem:[#allocation3 + $0x60] sm:$0xff]
  %v5589 = vld [vmem:[#allocation3 + $0x68] sm:$0xff]
  %v5590 = vld [vmem:[#allocation3 + $0x70] sm:$0xff]
  %v5591 = vld [vmem:[#allocation3 + $0x78] sm:$0xff]
  %v5592 = vld [vmem:[#allocation3 + $0x80] sm:$0xff]
  %v5593 = vld [vmem:[#allocation3 + $0x88] sm:$0xff]
  %v5594 = vld [vmem:[#allocation3 + $0x90] sm:$0xff]
  %v5595 = vld [vmem:[#allocation3 + $0x98] sm:$0xff]
  %v5596 = vld [vmem:[#allocation3 + $0xa0] sm:$0xff]
  %v5597 = vld [vmem:[#allocation3 + $0xa8] sm:$0xff]
  %v5598 = vld [vmem:[#allocation3 + $0xb0] sm:$0xff]
  %v5599 = vld [vmem:[#allocation3 + $0xb8] sm:$0xff]
  %v5600 = vld [vmem:[#allocation3 + $0xc0] sm:$0xff]
  %v5601 = vld [vmem:[#allocation3 + $0xc8] sm:$0xff]
  %v5602 = vld [vmem:[#allocation3 + $0xd0] sm:$0xff]
  %v5603 = vld [vmem:[#allocation3 + $0xd8] sm:$0xff]
  %v5604 = vld [vmem:[#allocation3 + $0xe0] sm:$0xff]
  %v5605 = vld [vmem:[#allocation3 + $0xe8] sm:$0xff]
  %v5606 = vld [vmem:[#allocation3 + $0xf0] sm:$0xff]
  %v5607 = vld [vmem:[#allocation3 + $0xf8] sm:$0xff]
  %v5608 = vld [vmem:[#allocation3 + $0x100] sm:$0xff]
  %v5609 = vld [vmem:[#allocation3 + $0x108] sm:$0xff]
  %v5610 = vld [vmem:[#allocation3 + $0x110] sm:$0xff]
  %v5611 = vld [vmem:[#allocation3 + $0x118] sm:$0xff]
  %v5612 = vld [vmem:[#allocation3 + $0x120] sm:$0xff]
  %v5613 = vld [vmem:[#allocation3 + $0x128] sm:$0xff]
  %v5614 = vld [vmem:[#allocation3 + $0x130] sm:$0xff]
  %v5615 = vld [vmem:[#allocation3 + $0x138] sm:$0xff]
  %v5616 = vld [vmem:[#allocation3 + $0x140] sm:$0xff]
  %v5617 = vld [vmem:[#allocation3 + $0x148] sm:$0xff]
  %5660 = vrot.lane.b32.xlu0 %v5576, 127
  %v5661 = vpop.permute.xlu0 %5660
  %5662 = vrot.lane.b32.xlu0 %v5577, 127
  %v5663 = vpop.permute.xlu0 %5662
  %5664 = vrot.lane.b32.xlu0 %v5578, 127
  %v5665 = vpop.permute.xlu0 %5664
  %5666 = vrot.lane.b32.xlu0 %v5579, 127
  %v5667 = vpop.permute.xlu0 %5666
  %5668 = vrot.lane.b32.xlu0 %v5580, 127
  %v5669 = vpop.permute.xlu0 %5668
  %5670 = vrot.lane.b32.xlu0 %v5581, 127
  %v5671 = vpop.permute.xlu0 %5670
  %5672 = vrot.lane.b32.xlu0 %v5582, 127
  %v5673 = vpop.permute.xlu0 %5672
  %5674 = vrot.lane.b32.xlu0 %v5583, 127
  %v5675 = vpop.permute.xlu0 %5674
  %5676 = vrot.lane.b32.xlu0 %v5584, 127
  %v5677 = vpop.permute.xlu0 %5676
  %5678 = vrot.lane.b32.xlu0 %v5585, 127
  %v5679 = vpop.permute.xlu0 %5678
  %5680 = vrot.lane.b32.xlu0 %v5586, 127
  %v5681 = vpop.permute.xlu0 %5680
  %5682 = vrot.lane.b32.xlu0 %v5587, 127
  %v5683 = vpop.permute.xlu0 %5682
  %5684 = vrot.lane.b32.xlu0 %v5588, 127
  %v5685 = vpop.permute.xlu0 %5684
  %5686 = vrot.lane.b32.xlu0 %v5589, 127
  %v5687 = vpop.permute.xlu0 %5686
  %5688 = vrot.lane.b32.xlu0 %v5590, 127
  %v5689 = vpop.permute.xlu0 %5688
  %5690 = vrot.lane.b32.xlu0 %v5591, 127
  %v5691 = vpop.permute.xlu0 %5690
  %5692 = vrot.lane.b32.xlu0 %v5592, 127
  %v5693 = vpop.permute.xlu0 %5692
  %5694 = vrot.lane.b32.xlu0 %v5593, 127
  %v5695 = vpop.permute.xlu0 %5694
  %5696 = vrot.lane.b32.xlu0 %v5594, 127
  %v5697 = vpop.permute.xlu0 %5696
  %5698 = vrot.lane.b32.xlu0 %v5595, 127
  %v5699 = vpop.permute.xlu0 %5698
  %5700 = vrot.lane.b32.xlu0 %v5596, 127
  %v5701 = vpop.permute.xlu0 %5700
  %5702 = vrot.lane.b32.xlu0 %v5597, 127
  %v5703 = vpop.permute.xlu0 %5702
  %5704 = vrot.lane.b32.xlu0 %v5598, 127
  %v5705 = vpop.permute.xlu0 %5704
  %5706 = vrot.lane.b32.xlu0 %v5599, 127
  %v5707 = vpop.permute.xlu0 %5706
  %5708 = vrot.lane.b32.xlu0 %v5600, 127
  %v5709 = vpop.permute.xlu0 %5708
  %5710 = vrot.lane.b32.xlu0 %v5601, 127
  %v5711 = vpop.permute.xlu0 %5710
  %5712 = vrot.lane.b32.xlu0 %v5602, 127
  %v5713 = vpop.permute.xlu0 %5712
  %5714 = vrot.lane.b32.xlu0 %v5603, 127
  %v5715 = vpop.permute.xlu0 %5714
  %5716 = vrot.lane.b32.xlu0 %v5604, 127
  %v5717 = vpop.permute.xlu0 %5716
  %5718 = vrot.lane.b32.xlu0 %v5605, 127
  %v5719 = vpop.permute.xlu0 %5718
  %5720 = vrot.lane.b32.xlu0 %v5606, 127
  %v5721 = vpop.permute.xlu0 %5720
  %5722 = vrot.lane.b32.xlu0 %v5607, 127
  %v5723 = vpop.permute.xlu0 %5722
  %5724 = vrot.lane.b32.xlu0 %v5608, 127
  %v5725 = vpop.permute.xlu0 %5724
  %5726 = vrot.lane.b32.xlu0 %v5609, 127
  %v5727 = vpop.permute.xlu0 %5726
  %5728 = vrot.lane.b32.xlu0 %v5610, 127
  %v5729 = vpop.permute.xlu0 %5728
  %5730 = vrot.lane.b32.xlu0 %v5611, 127
  %v5731 = vpop.permute.xlu0 %5730
  %5732 = vrot.lane.b32.xlu0 %v5612, 127
  %v5733 = vpop.permute.xlu0 %5732
  %5734 = vrot.lane.b32.xlu0 %v5613, 127
  %v5735 = vpop.permute.xlu0 %5734
  %5736 = vrot.lane.b32.xlu0 %v5614, 127
  %v5737 = vpop.permute.xlu0 %5736
  %5738 = vrot.lane.b32.xlu0 %v5615, 127
  %v5739 = vpop.permute.xlu0 %5738
  %5740 = vrot.lane.b32.xlu0 %v5616, 127
  %v5741 = vpop.permute.xlu0 %5740
  %5742 = vrot.lane.b32.xlu0 %v5617, 127
  %v5743 = vpop.permute.xlu0 %5742
  %v5744 = vsel %vm180, %v5661, %v5663
  %v5745 = vsel %vm180, %v5663, %v5665
  %v5746 = vsel %vm180, %v5665, %v5667
  %v5747 = vsel %vm180, %v5667, %v5669
  %v5748 = vsel %vm180, %v5669, %v5671
  %v5749 = vsel %vm180, %v5671, %v5673
  %v5750 = vsel %vm180, %v5675, %v5677
  %v5751 = vsel %vm180, %v5677, %v5679
  %v5752 = vsel %vm180, %v5679, %v5681
  %v5753 = vsel %vm180, %v5681, %v5683
  %v5754 = vsel %vm180, %v5683, %v5685
  %v5755 = vsel %vm180, %v5685, %v5687
  %v5756 = vsel %vm180, %v5689, %v5691
  %v5757 = vsel %vm180, %v5691, %v5693
  %v5758 = vsel %vm180, %v5693, %v5695
  %v5759 = vsel %vm180, %v5695, %v5697
  %v5760 = vsel %vm180, %v5697, %v5699
  %v5761 = vsel %vm180, %v5699, %v5701
  %v5762 = vsel %vm180, %v5703, %v5705
  %v5763 = vsel %vm180, %v5705, %v5707
  %v5764 = vsel %vm180, %v5707, %v5709
  %v5765 = vsel %vm180, %v5709, %v5711
  %v5766 = vsel %vm180, %v5711, %v5713
  %v5767 = vsel %vm180, %v5713, %v5715
  %v5768 = vsel %vm180, %v5717, %v5719
  %v5769 = vsel %vm180, %v5719, %v5721
  %v5770 = vsel %vm180, %v5721, %v5723
  %v5771 = vsel %vm180, %v5723, %v5725
  %v5772 = vsel %vm180, %v5725, %v5727
  %v5773 = vsel %vm180, %v5727, %v5729
  %v5774 = vsel %vm180, %v5731, %v5733
  %v5775 = vsel %vm180, %v5733, %v5735
  %v5776 = vsel %vm180, %v5735, %v5737
  %v5777 = vsel %vm180, %v5737, %v5739
  %v5778 = vsel %vm180, %v5739, %v5741
  %v5779 = vsel %vm180, %v5741, %v5743
  %v5822 = vmax.f32 %v5576, %v5744
  %v5823 = vmax.f32 %v5577, %v5745
  %v5824 = vmax.f32 %v5578, %v5746
  %v5825 = vmax.f32 %v5579, %v5747
  %v5826 = vmax.f32 %v5580, %v5748
  %v5827 = vmax.f32 %v5581, %v5749
  %v5828 = vmax.f32 %v5582, %v5673
  %v5829 = vmax.f32 %v5583, %v5750
  %v5830 = vmax.f32 %v5584, %v5751
  %v5831 = vmax.f32 %v5585, %v5752
  %v5832 = vmax.f32 %v5586, %v5753
  %v5833 = vmax.f32 %v5587, %v5754
  %v5834 = vmax.f32 %v5588, %v5755
  %v5835 = vmax.f32 %v5589, %v5687
  %v5836 = vmax.f32 %v5590, %v5756
  %v5837 = vmax.f32 %v5591, %v5757
  %v5838 = vmax.f32 %v5592, %v5758
  %v5839 = vmax.f32 %v5593, %v5759
  %v5840 = vmax.f32 %v5594, %v5760
  %v5841 = vmax.f32 %v5595, %v5761
  %v5842 = vmax.f32 %v5596, %v5701
  %v5843 = vmax.f32 %v5597, %v5762
  %v5844 = vmax.f32 %v5598, %v5763
  %v5845 = vmax.f32 %v5599, %v5764
  %v5846 = vmax.f32 %v5600, %v5765
  %v5847 = vmax.f32 %v5601, %v5766
  %v5848 = vmax.f32 %v5602, %v5767
  %v5849 = vmax.f32 %v5603, %v5715
  %v5850 = vmax.f32 %v5604, %v5768
  %v5851 = vmax.f32 %v5605, %v5769
  %v5852 = vmax.f32 %v5606, %v5770
  %v5853 = vmax.f32 %v5607, %v5771
  %v5854 = vmax.f32 %v5608, %v5772
  %v5855 = vmax.f32 %v5609, %v5773
  %v5856 = vmax.f32 %v5610, %v5729
  %v5857 = vmax.f32 %v5611, %v5774
  %v5858 = vmax.f32 %v5612, %v5775
  %v5859 = vmax.f32 %v5613, %v5776
  %v5860 = vmax.f32 %v5614, %v5777
  %v5861 = vmax.f32 %v5615, %v5778
  %v5862 = vmax.f32 %v5616, %v5779
  %v5863 = vmax.f32 %v5617, %v5743
  %5906 = vrot.lane.b32.xlu0 %v5822, 96
  %v5907 = vpop.permute.xlu0 %5906
  %5908 = vrot.lane.b32.xlu0 %v5823, 96
  %v5909 = vpop.permute.xlu0 %5908
  %5910 = vrot.lane.b32.xlu0 %v5824, 96
  %v5911 = vpop.permute.xlu0 %5910
  %5912 = vrot.lane.b32.xlu0 %v5825, 96
  %v5913 = vpop.permute.xlu0 %5912
  %5914 = vrot.lane.b32.xlu0 %v5826, 96
  %v5915 = vpop.permute.xlu0 %5914
  %5916 = vrot.lane.b32.xlu0 %v5827, 96
  %v5917 = vpop.permute.xlu0 %5916
  %5918 = vrot.lane.b32.xlu0 %v5828, 96
  %v5919 = vpop.permute.xlu0 %5918
  %5920 = vrot.lane.b32.xlu0 %v5829, 96
  %v5921 = vpop.permute.xlu0 %5920
  %5922 = vrot.lane.b32.xlu0 %v5830, 96
  %v5923 = vpop.permute.xlu0 %5922
  %5924 = vrot.lane.b32.xlu0 %v5831, 96
  %v5925 = vpop.permute.xlu0 %5924
  %5926 = vrot.lane.b32.xlu0 %v5832, 96
  %v5927 = vpop.permute.xlu0 %5926
  %5928 = vrot.lane.b32.xlu0 %v5833, 96
  %v5929 = vpop.permute.xlu0 %5928
  %5930 = vrot.lane.b32.xlu0 %v5834, 96
  %v5931 = vpop.permute.xlu0 %5930
  %5932 = vrot.lane.b32.xlu0 %v5835, 96
  %v5933 = vpop.permute.xlu0 %5932
  %5934 = vrot.lane.b32.xlu0 %v5836, 96
  %v5935 = vpop.permute.xlu0 %5934
  %5936 = vrot.lane.b32.xlu0 %v5837, 96
  %v5937 = vpop.permute.xlu0 %5936
  %5938 = vrot.lane.b32.xlu0 %v5838, 96
  %v5939 = vpop.permute.xlu0 %5938
  %5940 = vrot.lane.b32.xlu0 %v5839, 96
  %v5941 = vpop.permute.xlu0 %5940
  %5942 = vrot.lane.b32.xlu0 %v5840, 96
  %v5943 = vpop.permute.xlu0 %5942
  %5944 = vrot.lane.b32.xlu0 %v5841, 96
  %v5945 = vpop.permute.xlu0 %5944
  %5946 = vrot.lane.b32.xlu0 %v5842, 96
  %v5947 = vpop.permute.xlu0 %5946
  %5948 = vrot.lane.b32.xlu0 %v5843, 96
  %v5949 = vpop.permute.xlu0 %5948
  %5950 = vrot.lane.b32.xlu0 %v5844, 96
  %v5951 = vpop.permute.xlu0 %5950
  %5952 = vrot.lane.b32.xlu0 %v5845, 96
  %v5953 = vpop.permute.xlu0 %5952
  %5954 = vrot.lane.b32.xlu0 %v5846, 96
  %v5955 = vpop.permute.xlu0 %5954
  %5956 = vrot.lane.b32.xlu0 %v5847, 96
  %v5957 = vpop.permute.xlu0 %5956
  %5958 = vrot.lane.b32.xlu0 %v5848, 96
  %v5959 = vpop.permute.xlu0 %5958
  %5960 = vrot.lane.b32.xlu0 %v5849, 96
  %v5961 = vpop.permute.xlu0 %5960
  %5962 = vrot.lane.b32.xlu0 %v5850, 96
  %v5963 = vpop.permute.xlu0 %5962
  %5964 = vrot.lane.b32.xlu0 %v5851, 96
  %v5965 = vpop.permute.xlu0 %5964
  %5966 = vrot.lane.b32.xlu0 %v5852, 96
  %v5967 = vpop.permute.xlu0 %5966
  %5968 = vrot.lane.b32.xlu0 %v5853, 96
  %v5969 = vpop.permute.xlu0 %5968
  %5970 = vrot.lane.b32.xlu0 %v5854, 96
  %v5971 = vpop.permute.xlu0 %5970
  %5972 = vrot.lane.b32.xlu0 %v5855, 96
  %v5973 = vpop.permute.xlu0 %5972
  %5974 = vrot.lane.b32.xlu0 %v5856, 96
  %v5975 = vpop.permute.xlu0 %5974
  %5976 = vrot.lane.b32.xlu0 %v5857, 96
  %v5977 = vpop.permute.xlu0 %5976
  %5978 = vrot.lane.b32.xlu0 %v5858, 96
  %v5979 = vpop.permute.xlu0 %5978
  %5980 = vrot.lane.b32.xlu0 %v5859, 96
  %v5981 = vpop.permute.xlu0 %5980
  %5982 = vrot.lane.b32.xlu0 %v5860, 96
  %v5983 = vpop.permute.xlu0 %5982
  %5984 = vrot.lane.b32.xlu0 %v5861, 96
  %v5985 = vpop.permute.xlu0 %5984
  %5986 = vrot.lane.b32.xlu0 %v5862, 96
  %v5987 = vpop.permute.xlu0 %5986
  %5988 = vrot.lane.b32.xlu0 %v5863, 96
  %v5989 = vpop.permute.xlu0 %5988
  %v5990 = vsel %vm820, %v5907, %v5909
  %v5991 = vsel %vm820, %v5909, %v5911
  %v5992 = vsel %vm820, %v5911, %v5913
  %v5993 = vsel %vm820, %v5913, %v5915
  %v5994 = vsel %vm820, %v5915, %v5917
  %v5995 = vsel %vm820, %v5917, %v5919
  %v5996 = vsel %vm820, %v5921, %v5923
  %v5997 = vsel %vm820, %v5923, %v5925
  %v5998 = vsel %vm820, %v5925, %v5927
  %v5999 = vsel %vm820, %v5927, %v5929
  %v6000 = vsel %vm820, %v5929, %v5931
  %v6001 = vsel %vm820, %v5931, %v5933
  %v6002 = vsel %vm820, %v5935, %v5937
  %v6003 = vsel %vm820, %v5937, %v5939
  %v6004 = vsel %vm820, %v5939, %v5941
  %v6005 = vsel %vm820, %v5941, %v5943
  %v6006 = vsel %vm820, %v5943, %v5945
  %v6007 = vsel %vm820, %v5945, %v5947
  %v6008 = vsel %vm820, %v5949, %v5951
  %v6009 = vsel %vm820, %v5951, %v5953
  %v6010 = vsel %vm820, %v5953, %v5955
  %v6011 = vsel %vm820, %v5955, %v5957
  %v6012 = vsel %vm820, %v5957, %v5959
  %v6013 = vsel %vm820, %v5959, %v5961
  %v6014 = vsel %vm820, %v5963, %v5965
  %v6015 = vsel %vm820, %v5965, %v5967
  %v6016 = vsel %vm820, %v5967, %v5969
  %v6017 = vsel %vm820, %v5969, %v5971
  %v6018 = vsel %vm820, %v5971, %v5973
  %v6019 = vsel %vm820, %v5973, %v5975
  %v6020 = vsel %vm820, %v5977, %v5979
  %v6021 = vsel %vm820, %v5979, %v5981
  %v6022 = vsel %vm820, %v5981, %v5983
  %v6023 = vsel %vm820, %v5983, %v5985
  %v6024 = vsel %vm820, %v5985, %v5987
  %v6025 = vsel %vm820, %v5987, %v5989
  %v6068 = vmax.f32 %v5822, %v5990
  %v6069 = vmax.f32 %v5823, %v5991
  %v6070 = vmax.f32 %v5824, %v5992
  %v6071 = vmax.f32 %v5825, %v5993
  %v6072 = vmax.f32 %v5826, %v5994
  %v6073 = vmax.f32 %v5827, %v5995
  %v6074 = vmax.f32 %v5828, %v5919
  %v6075 = vmax.f32 %v5829, %v5996
  %v6076 = vmax.f32 %v5830, %v5997
  %v6077 = vmax.f32 %v5831, %v5998
  %v6078 = vmax.f32 %v5832, %v5999
  %v6079 = vmax.f32 %v5833, %v6000
  %v6080 = vmax.f32 %v5834, %v6001
  %v6081 = vmax.f32 %v5835, %v5933
  %v6082 = vmax.f32 %v5836, %v6002
  %v6083 = vmax.f32 %v5837, %v6003
  %v6084 = vmax.f32 %v5838, %v6004
  %v6085 = vmax.f32 %v5839, %v6005
  %v6086 = vmax.f32 %v5840, %v6006
  %v6087 = vmax.f32 %v5841, %v6007
  %v6088 = vmax.f32 %v5842, %v5947
  %v6089 = vmax.f32 %v5843, %v6008
  %v6090 = vmax.f32 %v5844, %v6009
  %v6091 = vmax.f32 %v5845, %v6010
  %v6092 = vmax.f32 %v5846, %v6011
  %v6093 = vmax.f32 %v5847, %v6012
  %v6094 = vmax.f32 %v5848, %v6013
  %v6095 = vmax.f32 %v5849, %v5961
  %v6096 = vmax.f32 %v5850, %v6014
  %v6097 = vmax.f32 %v5851, %v6015
  %v6098 = vmax.f32 %v5852, %v6016
  %v6099 = vmax.f32 %v5853, %v6017
  %v6100 = vmax.f32 %v5854, %v6018
  %v6101 = vmax.f32 %v5855, %v6019
  %v6102 = vmax.f32 %v5856, %v5975
  %v6103 = vmax.f32 %v5857, %v6020
  %v6104 = vmax.f32 %v5858, %v6021
  %v6105 = vmax.f32 %v5859, %v6022
  %v6106 = vmax.f32 %v5860, %v6023
  %v6107 = vmax.f32 %v5861, %v6024
  %v6108 = vmax.f32 %v5862, %v6025
  %v6109 = vmax.f32 %v5863, %v5989
  %v6110 = vpack.c.bf16 %v6075, %v6068
  %v6111 = vpack.c.bf16 %v6076, %v6069
  %v6112 = vpack.c.bf16 %v6077, %v6070
  %v6113 = vpack.c.bf16 %v6078, %v6071
  %v6114 = vpack.c.bf16 %v6079, %v6072
  %v6115 = vpack.c.bf16 %v6080, %v6073
  %v6116 = vpack.c.bf16 %v6081, %v6074
  %v6117 = vpack.c.bf16 %v6089, %v6082
  %v6118 = vpack.c.bf16 %v6090, %v6083
  %v6119 = vpack.c.bf16 %v6091, %v6084
  %v6120 = vpack.c.bf16 %v6092, %v6085
  %v6121 = vpack.c.bf16 %v6093, %v6086
  %v6122 = vpack.c.bf16 %v6094, %v6087
  %v6123 = vpack.c.bf16 %v6095, %v6088
  %v6124 = vpack.c.bf16 %v6103, %v6096
  %v6125 = vpack.c.bf16 %v6104, %v6097
  %v6126 = vpack.c.bf16 %v6105, %v6098
  %v6127 = vpack.c.bf16 %v6106, %v6099
  %v6128 = vpack.c.bf16 %v6107, %v6100
  %v6129 = vpack.c.bf16 %v6108, %v6101
  %v6130 = vpack.c.bf16 %v6109, %v6102
  %v6131 = vld [vmem:[%s3] sm:$0xff]
  %v6132 = vld [vmem:[%s3 + $0x8] sm:$0xff]
  %v6133 = vld [vmem:[%s3 + $0x10] sm:$0xff]
  %v6134 = vld [vmem:[%s3 + $0x18] sm:$0xff]
  %v6135 = vld [vmem:[%s3 + $0x20] sm:$0xff]
  %v6136 = vld [vmem:[%s3 + $0x28] sm:$0xff]
  %v6137 = vld [vmem:[%s3 + $0x30] sm:$0xff]
  %v6138 = vld [vmem:[%s3 + $0x38] sm:$0xff]
  %v6139 = vld [vmem:[%s3 + $0x40] sm:$0xff]
  %v6140 = vld [vmem:[%s3 + $0x48] sm:$0xff]
  %v6141 = vld [vmem:[%s3 + $0x50] sm:$0xff]
  %v6142 = vld [vmem:[%s3 + $0x58] sm:$0xff]
  %v6143 = vld [vmem:[%s3 + $0x60] sm:$0xff]
  %v6144 = vld [vmem:[%s3 + $0x68] sm:$0xff]
  %v6145 = vld [vmem:[%s3 + $0x70] sm:$0xff]
  %v6146 = vld [vmem:[%s3 + $0x78] sm:$0xff]
  %v6147 = vld [vmem:[%s3 + $0x80] sm:$0xff]
  %v6148 = vld [vmem:[%s3 + $0x88] sm:$0xff]
  %v6149 = vld [vmem:[%s3 + $0x90] sm:$0xff]
  %v6150 = vld [vmem:[%s3 + $0x98] sm:$0xff]
  %v6151 = vld [vmem:[%s3 + $0xa0] sm:$0xff]
  %v6152 = vld [vmem:[%s3 + $0xa8] sm:$0xff]
  %v6153 = vld [vmem:[%s3 + $0xb0] sm:$0xff]
  %v6154 = vld [vmem:[%s3 + $0xb8] sm:$0xff]
  %v6155 = vld [vmem:[%s3 + $0xc0] sm:$0xff]
  %v6156 = vld [vmem:[%s3 + $0xc8] sm:$0xff]
  %v6157 = vld [vmem:[%s3 + $0xd0] sm:$0xff]
  %v6158 = vld [vmem:[%s3 + $0xd8] sm:$0xff]
  %v6159 = vld [vmem:[%s3 + $0xe0] sm:$0xff]
  %v6160 = vld [vmem:[%s3 + $0xe8] sm:$0xff]
  %v6161 = vld [vmem:[%s3 + $0xf0] sm:$0xff]
  %v6162 = vld [vmem:[%s3 + $0xf8] sm:$0xff]
  %v6163 = vld [vmem:[%s3 + $0x100] sm:$0xff]
  %v6164 = vld [vmem:[%s3 + $0x108] sm:$0xff]
  %v6165 = vld [vmem:[%s3 + $0x110] sm:$0xff]
  %v6166 = vld [vmem:[%s3 + $0x118] sm:$0xff]
  %v6167 = vld [vmem:[%s3 + $0x120] sm:$0xff]
  %v6168 = vld [vmem:[%s3 + $0x128] sm:$0xff]
  %v6169 = vld [vmem:[%s3 + $0x130] sm:$0xff]
  %v6170 = vld [vmem:[%s3 + $0x138] sm:$0xff]
  %v6171 = vld [vmem:[%s3 + $0x140] sm:$0xff]
  %v6172 = vld [vmem:[%s3 + $0x148] sm:$0xff]
  %v6173 = vld [vmem:[%s3 + $0x150] sm:$0xff]
  %v6174 = vld [vmem:[%s3 + $0x158] sm:$0xff]
  %v6175 = vld [vmem:[%s3 + $0x160] sm:$0xff]
  %v6176 = vld [vmem:[%s3 + $0x168] sm:$0xff]
  %v6177 = vld [vmem:[%s3 + $0x170] sm:$0xff]
  %v6178 = vld [vmem:[%s3 + $0x178] sm:$0xff]
  %v6179 = vld [vmem:[%s3 + $0x180] sm:$0xff]
  %v6180 = vld [vmem:[%s3 + $0x188] sm:$0xff]
  %v6181 = vld [vmem:[%s3 + $0x190] sm:$0xff]
  %v6182 = vld [vmem:[%s3 + $0x198] sm:$0xff]
  %v6183 = vld [vmem:[%s3 + $0x1a0] sm:$0xff]
  %v6184 = vld [vmem:[%s3 + $0x1a8] sm:$0xff]
  %v6185 = vld [vmem:[%s3 + $0x1b0] sm:$0xff]
  %v6186 = vld [vmem:[%s3 + $0x1b8] sm:$0xff]
  %v6187 = vld [vmem:[%s3 + $0x1c0] sm:$0xff]
  %v6188 = vld [vmem:[%s3 + $0x1c8] sm:$0xff]
  %v6189 = vld [vmem:[%s3 + $0x1d0] sm:$0xff]
  %v6190 = vld [vmem:[%s3 + $0x1d8] sm:$0xff]
  %v6191 = vld [vmem:[%s3 + $0x1e0] sm:$0xff]
  %v6192 = vld [vmem:[%s3 + $0x1e8] sm:$0xff]
  %v6193 = vld [vmem:[%s3 + $0x1f0] sm:$0xff]
  %v6194 = vld [vmem:[%s3 + $0x1f8] sm:$0xff]
  %v6195 = vld [vmem:[%s3 + $0x200] sm:$0xff]
  %v6196 = vld [vmem:[%s3 + $0x208] sm:$0xff]
  %v6197 = vld [vmem:[%s3 + $0x210] sm:$0xff]
  %v6198 = vld [vmem:[%s3 + $0x218] sm:$0xff]
  %v6199 = vld [vmem:[%s3 + $0x220] sm:$0xff]
  %v6200 = vld [vmem:[%s3 + $0x228] sm:$0xff]
  %v6201 = vld [vmem:[%s3 + $0x230] sm:$0xff]
  %v6202 = vld [vmem:[%s3 + $0x238] sm:$0xff]
  %v6203 = vld [vmem:[%s3 + $0x240] sm:$0xff]
  %v6204 = vld [vmem:[%s3 + $0x248] sm:$0xff]
  %v6205 = vld [vmem:[%s3 + $0x250] sm:$0xff]
  %v6206 = vld [vmem:[%s3 + $0x258] sm:$0xff]
  %v6207 = vld [vmem:[%s3 + $0x260] sm:$0xff]
  %v6208 = vld [vmem:[%s3 + $0x268] sm:$0xff]
  %v6209 = vld [vmem:[%s3 + $0x270] sm:$0xff]
  %v6210 = vld [vmem:[%s3 + $0x278] sm:$0xff]
  %v6211 = vld [vmem:[%s3 + $0x280] sm:$0xff]
  %v6212 = vld [vmem:[%s3 + $0x288] sm:$0xff]
  %v6213 = vld [vmem:[%s3 + $0x290] sm:$0xff]
  %v6214 = vld [vmem:[%s3 + $0x298] sm:$0xff]
  %v6215 = vld [vmem:[%s3 + $0x2a0] sm:$0xff]
  %v6216 = vld [vmem:[%s3 + $0x2a8] sm:$0xff]
  %v6217 = vld [vmem:[%s3 + $0x2b0] sm:$0xff]
  %v6218 = vld [vmem:[%s3 + $0x2b8] sm:$0xff]
  %v6219 = vld [vmem:[%s3 + $0x2c0] sm:$0xff]
  %v6220 = vld [vmem:[%s3 + $0x2c8] sm:$0xff]
  %v6221 = vld [vmem:[%s3 + $0x2d0] sm:$0xff]
  %v6222 = vld [vmem:[%s3 + $0x2d8] sm:$0xff]
  %v6223 = vld [vmem:[%s3 + $0x2e0] sm:$0xff]
  %v6224 = vld [vmem:[%s3 + $0x2e8] sm:$0xff]
  %v6225 = vld [vmem:[%s3 + $0x2f0] sm:$0xff]
  %v6226 = vld [vmem:[%s3 + $0x2f8] sm:$0xff]
  %v6227 = vld [vmem:[%s3 + $0x300] sm:$0xff]
  %v6228 = vld [vmem:[%s3 + $0x308] sm:$0xff]
  %v6229 = vld [vmem:[%s3 + $0x310] sm:$0xff]
  %v6230 = vld [vmem:[%s3 + $0x318] sm:$0xff]
  %v6231 = vld [vmem:[%s3 + $0x320] sm:$0xff]
  %v6232 = vld [vmem:[%s3 + $0x328] sm:$0xff]
  %v6233 = vld [vmem:[%s3 + $0x330] sm:$0xff]
  %v6234 = vld [vmem:[%s3 + $0x338] sm:$0xff]
  %v6235 = vld [vmem:[%s3 + $0x340] sm:$0xff]
  %v6236 = vld [vmem:[%s3 + $0x348] sm:$0xff]
  %v6237 = vld [vmem:[%s3 + $0x350] sm:$0xff]
  %v6238 = vld [vmem:[%s3 + $0x358] sm:$0xff]
  %v6347 = vunpack.c.l.b16 %v6131
  %v6348 = vunpack.c.h.b16 %v6131
  %v6349 = vunpack.c.l.b16 %v6132
  %v6350 = vunpack.c.h.b16 %v6132
  %v6351 = vunpack.c.l.b16 %v6133
  %v6352 = vunpack.c.h.b16 %v6133
  %v6353 = vunpack.c.l.b16 %v6134
  %v6354 = vunpack.c.h.b16 %v6134
  %v6355 = vunpack.c.l.b16 %v6135
  %v6356 = vunpack.c.h.b16 %v6135
  %v6357 = vunpack.c.l.b16 %v6136
  %v6358 = vunpack.c.h.b16 %v6136
  %v6359 = vunpack.c.l.b16 %v6137
  %v6360 = vunpack.c.h.b16 %v6137
  %v6361 = vunpack.c.l.b16 %v6138
  %v6362 = vunpack.c.h.b16 %v6138
  %v6363 = vunpack.c.l.b16 %v6139
  %v6364 = vunpack.c.h.b16 %v6139
  %v6365 = vunpack.c.l.b16 %v6140
  %v6366 = vunpack.c.h.b16 %v6140
  %v6367 = vunpack.c.l.b16 %v6141
  %v6368 = vunpack.c.h.b16 %v6141
  %v6369 = vunpack.c.l.b16 %v6142
  %v6370 = vunpack.c.h.b16 %v6142
  %v6371 = vunpack.c.l.b16 %v6143
  %v6372 = vunpack.c.h.b16 %v6143
  %v6373 = vunpack.c.l.b16 %v6144
  %v6374 = vunpack.c.h.b16 %v6144
  %v6375 = vunpack.c.l.b16 %v6145
  %v6376 = vunpack.c.h.b16 %v6145
  %v6377 = vunpack.c.l.b16 %v6146
  %v6378 = vunpack.c.h.b16 %v6146
  %v6379 = vunpack.c.l.b16 %v6147
  %v6380 = vunpack.c.h.b16 %v6147
  %v6381 = vunpack.c.l.b16 %v6148
  %v6382 = vunpack.c.h.b16 %v6148
  %v6383 = vunpack.c.l.b16 %v6149
  %v6384 = vunpack.c.h.b16 %v6149
  %v6385 = vunpack.c.l.b16 %v6150
  %v6386 = vunpack.c.h.b16 %v6150
  %v6387 = vunpack.c.l.b16 %v6151
  %v6388 = vunpack.c.h.b16 %v6151
  %v6389 = vunpack.c.l.b16 %v6152
  %v6390 = vunpack.c.h.b16 %v6152
  %v6391 = vunpack.c.l.b16 %v6153
  %v6392 = vunpack.c.h.b16 %v6153
  %v6393 = vunpack.c.l.b16 %v6154
  %v6394 = vunpack.c.h.b16 %v6154
  %v6395 = vunpack.c.l.b16 %v6155
  %v6396 = vunpack.c.h.b16 %v6155
  %v6397 = vunpack.c.l.b16 %v6156
  %v6398 = vunpack.c.h.b16 %v6156
  %v6399 = vunpack.c.l.b16 %v6157
  %v6400 = vunpack.c.h.b16 %v6157
  %v6401 = vunpack.c.l.b16 %v6158
  %v6402 = vunpack.c.h.b16 %v6158
  %v6403 = vunpack.c.l.b16 %v6159
  %v6404 = vunpack.c.h.b16 %v6159
  %v6405 = vunpack.c.l.b16 %v6160
  %v6406 = vunpack.c.h.b16 %v6160
  %v6407 = vunpack.c.l.b16 %v6161
  %v6408 = vunpack.c.h.b16 %v6161
  %v6409 = vunpack.c.l.b16 %v6162
  %v6410 = vunpack.c.h.b16 %v6162
  %v6411 = vunpack.c.l.b16 %v6163
  %v6412 = vunpack.c.h.b16 %v6163
  %v6413 = vunpack.c.l.b16 %v6164
  %v6414 = vunpack.c.h.b16 %v6164
  %v6415 = vunpack.c.l.b16 %v6165
  %v6416 = vunpack.c.h.b16 %v6165
  %v6417 = vunpack.c.l.b16 %v6166
  %v6418 = vunpack.c.h.b16 %v6166
  %v6419 = vunpack.c.l.b16 %v6167
  %v6420 = vunpack.c.h.b16 %v6167
  %v6421 = vunpack.c.l.b16 %v6168
  %v6422 = vunpack.c.h.b16 %v6168
  %v6423 = vunpack.c.l.b16 %v6169
  %v6424 = vunpack.c.h.b16 %v6169
  %v6425 = vunpack.c.l.b16 %v6170
  %v6426 = vunpack.c.h.b16 %v6170
  %v6427 = vunpack.c.l.b16 %v6171
  %v6428 = vunpack.c.h.b16 %v6171
  %v6429 = vunpack.c.l.b16 %v6172
  %v6430 = vunpack.c.h.b16 %v6172
  %v6431 = vunpack.c.l.b16 %v6173
  %v6432 = vunpack.c.h.b16 %v6173
  %v6433 = vunpack.c.l.b16 %v6174
  %v6434 = vunpack.c.h.b16 %v6174
  %v6435 = vunpack.c.l.b16 %v6175
  %v6436 = vunpack.c.h.b16 %v6175
  %v6437 = vunpack.c.l.b16 %v6176
  %v6438 = vunpack.c.h.b16 %v6176
  %v6439 = vunpack.c.l.b16 %v6177
  %v6440 = vunpack.c.h.b16 %v6177
  %v6441 = vunpack.c.l.b16 %v6178
  %v6442 = vunpack.c.h.b16 %v6178
  %v6443 = vunpack.c.l.b16 %v6179
  %v6444 = vunpack.c.h.b16 %v6179
  %v6445 = vunpack.c.l.b16 %v6180
  %v6446 = vunpack.c.h.b16 %v6180
  %v6447 = vunpack.c.l.b16 %v6181
  %v6448 = vunpack.c.h.b16 %v6181
  %v6449 = vunpack.c.l.b16 %v6182
  %v6450 = vunpack.c.h.b16 %v6182
  %v6451 = vunpack.c.l.b16 %v6183
  %v6452 = vunpack.c.h.b16 %v6183
  %v6453 = vunpack.c.l.b16 %v6184
  %v6454 = vunpack.c.h.b16 %v6184
  %v6455 = vunpack.c.l.b16 %v6185
  %v6456 = vunpack.c.h.b16 %v6185
  %v6457 = vunpack.c.l.b16 %v6186
  %v6458 = vunpack.c.h.b16 %v6186
  %v6459 = vunpack.c.l.b16 %v6187
  %v6460 = vunpack.c.h.b16 %v6187
  %v6461 = vunpack.c.l.b16 %v6188
  %v6462 = vunpack.c.h.b16 %v6188
  %v6463 = vunpack.c.l.b16 %v6189
  %v6464 = vunpack.c.h.b16 %v6189
  %v6465 = vunpack.c.l.b16 %v6190
  %v6466 = vunpack.c.h.b16 %v6190
  %v6467 = vunpack.c.l.b16 %v6191
  %v6468 = vunpack.c.h.b16 %v6191
  %v6469 = vunpack.c.l.b16 %v6192
  %v6470 = vunpack.c.h.b16 %v6192
  %v6471 = vunpack.c.l.b16 %v6193
  %v6472 = vunpack.c.h.b16 %v6193
  %v6473 = vunpack.c.l.b16 %v6194
  %v6474 = vunpack.c.h.b16 %v6194
  %v6475 = vunpack.c.l.b16 %v6195
  %v6476 = vunpack.c.h.b16 %v6195
  %v6477 = vunpack.c.l.b16 %v6196
  %v6478 = vunpack.c.h.b16 %v6196
  %v6479 = vunpack.c.l.b16 %v6197
  %v6480 = vunpack.c.h.b16 %v6197
  %v6481 = vunpack.c.l.b16 %v6198
  %v6482 = vunpack.c.h.b16 %v6198
  %v6483 = vunpack.c.l.b16 %v6199
  %v6484 = vunpack.c.h.b16 %v6199
  %v6485 = vunpack.c.l.b16 %v6200
  %v6486 = vunpack.c.h.b16 %v6200
  %v6487 = vunpack.c.l.b16 %v6201
  %v6488 = vunpack.c.h.b16 %v6201
  %v6489 = vunpack.c.l.b16 %v6202
  %v6490 = vunpack.c.h.b16 %v6202
  %v6491 = vunpack.c.l.b16 %v6203
  %v6492 = vunpack.c.h.b16 %v6203
  %v6493 = vunpack.c.l.b16 %v6204
  %v6494 = vunpack.c.h.b16 %v6204
  %v6495 = vunpack.c.l.b16 %v6205
  %v6496 = vunpack.c.h.b16 %v6205
  %v6497 = vunpack.c.l.b16 %v6206
  %v6498 = vunpack.c.h.b16 %v6206
  %v6499 = vunpack.c.l.b16 %v6207
  %v6500 = vunpack.c.h.b16 %v6207
  %v6501 = vunpack.c.l.b16 %v6208
  %v6502 = vunpack.c.h.b16 %v6208
  %v6503 = vunpack.c.l.b16 %v6209
  %v6504 = vunpack.c.h.b16 %v6209
  %v6505 = vunpack.c.l.b16 %v6210
  %v6506 = vunpack.c.h.b16 %v6210
  %v6507 = vunpack.c.l.b16 %v6211
  %v6508 = vunpack.c.h.b16 %v6211
  %v6509 = vunpack.c.l.b16 %v6212
  %v6510 = vunpack.c.h.b16 %v6212
  %v6511 = vunpack.c.l.b16 %v6213
  %v6512 = vunpack.c.h.b16 %v6213
  %v6513 = vunpack.c.l.b16 %v6214
  %v6514 = vunpack.c.h.b16 %v6214
  %v6515 = vunpack.c.l.b16 %v6215
  %v6516 = vunpack.c.h.b16 %v6215
  %v6517 = vunpack.c.l.b16 %v6216
  %v6518 = vunpack.c.h.b16 %v6216
  %v6519 = vunpack.c.l.b16 %v6217
  %v6520 = vunpack.c.h.b16 %v6217
  %v6521 = vunpack.c.l.b16 %v6218
  %v6522 = vunpack.c.h.b16 %v6218
  %v6523 = vunpack.c.l.b16 %v6219
  %v6524 = vunpack.c.h.b16 %v6219
  %v6525 = vunpack.c.l.b16 %v6220
  %v6526 = vunpack.c.h.b16 %v6220
  %v6527 = vunpack.c.l.b16 %v6221
  %v6528 = vunpack.c.h.b16 %v6221
  %v6529 = vunpack.c.l.b16 %v6222
  %v6530 = vunpack.c.h.b16 %v6222
  %v6531 = vunpack.c.l.b16 %v6223
  %v6532 = vunpack.c.h.b16 %v6223
  %v6533 = vunpack.c.l.b16 %v6224
  %v6534 = vunpack.c.h.b16 %v6224
  %v6535 = vunpack.c.l.b16 %v6225
  %v6536 = vunpack.c.h.b16 %v6225
  %v6537 = vunpack.c.l.b16 %v6226
  %v6538 = vunpack.c.h.b16 %v6226
  %v6539 = vunpack.c.l.b16 %v6227
  %v6540 = vunpack.c.h.b16 %v6227
  %v6541 = vunpack.c.l.b16 %v6228
  %v6542 = vunpack.c.h.b16 %v6228
  %v6543 = vunpack.c.l.b16 %v6229
  %v6544 = vunpack.c.h.b16 %v6229
  %v6545 = vunpack.c.l.b16 %v6230
  %v6546 = vunpack.c.h.b16 %v6230
  %v6547 = vunpack.c.l.b16 %v6231
  %v6548 = vunpack.c.h.b16 %v6231
  %v6549 = vunpack.c.l.b16 %v6232
  %v6550 = vunpack.c.h.b16 %v6232
  %v6551 = vunpack.c.l.b16 %v6233
  %v6552 = vunpack.c.h.b16 %v6233
  %v6553 = vunpack.c.l.b16 %v6234
  %v6554 = vunpack.c.h.b16 %v6234
  %v6555 = vunpack.c.l.b16 %v6235
  %v6556 = vunpack.c.h.b16 %v6235
  %v6557 = vunpack.c.l.b16 %v6236
  %v6558 = vunpack.c.h.b16 %v6236
  %v6559 = vunpack.c.l.b16 %v6237
  %v6560 = vunpack.c.h.b16 %v6237
  %v6561 = vunpack.c.l.b16 %v6238
  %v6562 = vunpack.c.h.b16 %v6238
  %v6563 = vpack.c.b16 %v6349, %v6347
  %v6564 = vpack.c.b16 %v6350, %v6348
  %v6565 = vpack.c.b16 %v6353, %v6351
  %v6566 = vpack.c.b16 %v6354, %v6352
  %v6567 = vpack.c.b16 %v6357, %v6355
  %v6568 = vpack.c.b16 %v6358, %v6356
  %v6569 = vpack.c.b16 %v6361, %v6359
  %v6570 = vpack.c.b16 %v6362, %v6360
  %v6571 = vpack.c.b16 %v6365, %v6363
  %v6572 = vpack.c.b16 %v6366, %v6364
  %v6573 = vpack.c.b16 %v6369, %v6367
  %v6574 = vpack.c.b16 %v6370, %v6368
  %v6575 = vpack.c.b16 %v6373, %v6371
  %v6576 = vpack.c.b16 %v6374, %v6372
  %v6577 = vpack.c.b16 %v6377, %v6375
  %v6578 = vpack.c.b16 %v6378, %v6376
  %v6579 = vpack.c.b16 %v6381, %v6379
  %v6580 = vpack.c.b16 %v6382, %v6380
  %v6581 = vpack.c.b16 %v6385, %v6383
  %v6582 = vpack.c.b16 %v6386, %v6384
  %v6583 = vpack.c.b16 %v6389, %v6387
  %v6584 = vpack.c.b16 %v6390, %v6388
  %v6585 = vpack.c.b16 %v6393, %v6391
  %v6586 = vpack.c.b16 %v6394, %v6392
  %v6587 = vpack.c.b16 %v6397, %v6395
  %v6588 = vpack.c.b16 %v6398, %v6396
  %v6589 = vpack.c.b16 %v6401, %v6399
  %v6590 = vpack.c.b16 %v6402, %v6400
  %v6591 = vpack.c.b16 %v6405, %v6403
  %v6592 = vpack.c.b16 %v6406, %v6404
  %v6593 = vpack.c.b16 %v6409, %v6407
  %v6594 = vpack.c.b16 %v6410, %v6408
  %v6595 = vpack.c.b16 %v6413, %v6411
  %v6596 = vpack.c.b16 %v6414, %v6412
  %v6597 = vpack.c.b16 %v6417, %v6415
  %v6598 = vpack.c.b16 %v6418, %v6416
  %v6599 = vpack.c.b16 %v6421, %v6419
  %v6600 = vpack.c.b16 %v6422, %v6420
  %v6601 = vpack.c.b16 %v6425, %v6423
  %v6602 = vpack.c.b16 %v6426, %v6424
  %v6603 = vpack.c.b16 %v6429, %v6427
  %v6604 = vpack.c.b16 %v6430, %v6428
  %v6605 = vpack.c.b16 %v6433, %v6431
  %v6606 = vpack.c.b16 %v6434, %v6432
  %v6607 = vpack.c.b16 %v6437, %v6435
  %v6608 = vpack.c.b16 %v6438, %v6436
  %v6609 = vpack.c.b16 %v6441, %v6439
  %v6610 = vpack.c.b16 %v6442, %v6440
  %v6611 = vpack.c.b16 %v6445, %v6443
  %v6612 = vpack.c.b16 %v6446, %v6444
  %v6613 = vpack.c.b16 %v6449, %v6447
  %v6614 = vpack.c.b16 %v6450, %v6448
  %v6615 = vpack.c.b16 %v6453, %v6451
  %v6616 = vpack.c.b16 %v6454, %v6452
  %v6617 = vpack.c.b16 %v6457, %v6455
  %v6618 = vpack.c.b16 %v6458, %v6456
  %v6619 = vpack.c.b16 %v6461, %v6459
  %v6620 = vpack.c.b16 %v6462, %v6460
  %v6621 = vpack.c.b16 %v6465, %v6463
  %v6622 = vpack.c.b16 %v6466, %v6464
  %v6623 = vpack.c.b16 %v6469, %v6467
  %v6624 = vpack.c.b16 %v6470, %v6468
  %v6625 = vpack.c.b16 %v6473, %v6471
  %v6626 = vpack.c.b16 %v6474, %v6472
  %v6627 = vpack.c.b16 %v6477, %v6475
  %v6628 = vpack.c.b16 %v6478, %v6476
  %v6629 = vpack.c.b16 %v6481, %v6479
  %v6630 = vpack.c.b16 %v6482, %v6480
  %v6631 = vpack.c.b16 %v6485, %v6483
  %v6632 = vpack.c.b16 %v6486, %v6484
  %v6633 = vpack.c.b16 %v6489, %v6487
  %v6634 = vpack.c.b16 %v6490, %v6488
  %v6635 = vpack.c.b16 %v6493, %v6491
  %v6636 = vpack.c.b16 %v6494, %v6492
  %v6637 = vpack.c.b16 %v6497, %v6495
  %v6638 = vpack.c.b16 %v6498, %v6496
  %v6639 = vpack.c.b16 %v6501, %v6499
  %v6640 = vpack.c.b16 %v6502, %v6500
  %v6641 = vpack.c.b16 %v6505, %v6503
  %v6642 = vpack.c.b16 %v6506, %v6504
  %v6643 = vpack.c.b16 %v6509, %v6507
  %v6644 = vpack.c.b16 %v6510, %v6508
  %v6645 = vpack.c.b16 %v6513, %v6511
  %v6646 = vpack.c.b16 %v6514, %v6512
  %v6647 = vpack.c.b16 %v6517, %v6515
  %v6648 = vpack.c.b16 %v6518, %v6516
  %v6649 = vpack.c.b16 %v6521, %v6519
  %v6650 = vpack.c.b16 %v6522, %v6520
  %v6651 = vpack.c.b16 %v6525, %v6523
  %v6652 = vpack.c.b16 %v6526, %v6524
  %v6653 = vpack.c.b16 %v6529, %v6527
  %v6654 = vpack.c.b16 %v6530, %v6528
  %v6655 = vpack.c.b16 %v6533, %v6531
  %v6656 = vpack.c.b16 %v6534, %v6532
  %v6657 = vpack.c.b16 %v6537, %v6535
  %v6658 = vpack.c.b16 %v6538, %v6536
  %v6659 = vpack.c.b16 %v6541, %v6539
  %v6660 = vpack.c.b16 %v6542, %v6540
  %v6661 = vpack.c.b16 %v6545, %v6543
  %v6662 = vpack.c.b16 %v6546, %v6544
  %v6663 = vpack.c.b16 %v6549, %v6547
  %v6664 = vpack.c.b16 %v6550, %v6548
  %v6665 = vpack.c.b16 %v6553, %v6551
  %v6666 = vpack.c.b16 %v6554, %v6552
  %v6667 = vpack.c.b16 %v6557, %v6555
  %v6668 = vpack.c.b16 %v6558, %v6556
  %v6669 = vpack.c.b16 %v6561, %v6559
  %v6670 = vpack.c.b16 %v6562, %v6560
  %v6778 = vsel %vm980, %v6116, 0
  %v6781 = vsel %vm980, %v6123, 0
  %v6784 = vsel %vm980, %v6130, 0
  %vm6786 = vcmask 1046528
  %vm6787 = vcmask 1047552
  %v6788 = vsel %vm6786, 4294967295, 65535
  %v6789 = vsel %vm6787, %v6788, 0
  %v6791 = vand.u32 %v6669, %v6789
  %v6794 = vand.u32 %v6670, %v6789
  %6796 = vmatprep.subr.bf16.mxu0 %v6564
  %6797 = vmatpush1.bf16.msra.mxu0 %v6563
  %6798 = vmatprep.subr.bf16.mxu0 %v6566
  %6799 = vmatpush1.bf16.msra.mxu0 %v6565
  %6800 = vmatprep.subr.bf16.mxu0 %v6568
  %6801 = vmatpush1.bf16.msra.mxu0 %v6567
  %6802 = vmatprep.subr.bf16.mxu0 %v6570
  %6803 = vmatpush1.bf16.msra.mxu0 %v6569
  %6804 = vmatprep.subr.bf16.mxu0 %v6572
  %6805 = vmatpush1.bf16.msra.mxu0 %v6571
  %6806 = vmatprep.subr.bf16.mxu0 %v6574
  %6807 = vmatpush1.bf16.msra.mxu0 %v6573
  %6808 = vmatprep.subr.bf16.mxu0 %v6576
  %6809 = vmatpush1.bf16.msra.mxu0 %v6575
  %6810 = vmatprep.subr.bf16.mxu0 %v6578
  %6811 = vmatpush1.bf16.msra.mxu0 %v6577
  %6812 = vmatprep.subr.bf16.mxu0 %v6580
  %6813 = vmatpush1.bf16.msra.mxu0 %v6579
  %6814 = vmatprep.subr.bf16.mxu0 %v6582
  %6815 = vmatpush1.bf16.msra.mxu0 %v6581
  %6816 = vmatprep.subr.bf16.mxu0 %v6584
  %6817 = vmatpush1.bf16.msra.mxu0 %v6583
  %6818 = vmatprep.subr.bf16.mxu0 %v6586
  %6819 = vmatpush1.bf16.msra.mxu0 %v6585
  %6820 = vmatprep.subr.bf16.mxu0 %v6588
  %6821 = vmatpush1.bf16.msra.mxu0 %v6587
  %6822 = vmatprep.subr.bf16.mxu0 %v6590
  %6823 = vmatpush1.bf16.msra.mxu0 %v6589
  %6824 = vmatprep.subr.bf16.mxu0 %v6592
  %6825 = vmatpush1.bf16.msra.mxu0 %v6591
  %6826 = vmatprep.subr.bf16.mxu0 %v6594
  %6827 = vmatpush1.bf16.msra.mxu0 %v6593
  %6828 = vmatprep.mubr.bf16.mxu0 %v6111
  %6829 = vmatmul.mubr.bf16.gmra.mrb[0].mxu0 %v6110
  %v6830 = vpop.f32.mrb[0].mxu0
  %v6831 = vadd.f32 0.0, %v6830
  %v6832 = vpop.f32.mrb[0].mxu0
  %v6833 = vadd.f32 0.0, %v6832
  %v6834 = vpop.f32.mrb[0].mxu0
  %v6835 = vadd.f32 0.0, %v6834
  %v6836 = vpop.f32.mrb[0].mxu0
  %v6837 = vadd.f32 0.0, %v6836
  %6838 = vmatprep.mubr.bf16.mxu0 %v6118
  %6839 = vmatmul.mubr.bf16.gmra.mrb[0].mxu0 %v6117
  %v6840 = vpop.f32.mrb[0].mxu0
  %v6841 = vadd.f32 0.0, %v6840
  %v6842 = vpop.f32.mrb[0].mxu0
  %v6843 = vadd.f32 0.0, %v6842
  %v6844 = vpop.f32.mrb[0].mxu0
  %v6845 = vadd.f32 0.0, %v6844
  %v6846 = vpop.f32.mrb[0].mxu0
  %v6847 = vadd.f32 0.0, %v6846
  %6848 = vmatprep.mubr.bf16.mxu0 %v6125
  %6849 = vmatmul.mubr.bf16.gmra.mrb[0].mxu0 %v6124
  %v6850 = vpop.f32.mrb[0].mxu0
  %v6851 = vadd.f32 0.0, %v6850
  %v6852 = vpop.f32.mrb[0].mxu0
  %v6853 = vadd.f32 0.0, %v6852
  %v6854 = vpop.f32.mrb[0].mxu0
  %v6855 = vadd.f32 0.0, %v6854
  %v6856 = vpop.f32.mrb[0].mxu0
  %v6857 = vadd.f32 0.0, %v6856
  %6858 = vdwg.mxu0
  %6859 = vmatprep.subr.bf16.mxu0 %v6596
  %6860 = vmatpush1.bf16.msra.mxu0 %v6595
  %6861 = vmatprep.subr.bf16.mxu0 %v6598
  %6862 = vmatpush1.bf16.msra.mxu0 %v6597
  %6863 = vmatprep.subr.bf16.mxu0 %v6600
  %6864 = vmatpush1.bf16.msra.mxu0 %v6599
  %6865 = vmatprep.subr.bf16.mxu0 %v6602
  %6866 = vmatpush1.bf16.msra.mxu0 %v6601
  %6867 = vmatprep.subr.bf16.mxu0 %v6604
  %6868 = vmatpush1.bf16.msra.mxu0 %v6603
  %6869 = vmatprep.subr.bf16.mxu0 %v6606
  %6870 = vmatpush1.bf16.msra.mxu0 %v6605
  %6871 = vmatprep.subr.bf16.mxu0 %v6608
  %6872 = vmatpush1.bf16.msra.mxu0 %v6607
  %6873 = vmatprep.subr.bf16.mxu0 %v6610
  %6874 = vmatpush1.bf16.msra.mxu0 %v6609
  %6875 = vmatprep.subr.bf16.mxu0 %v6612
  %6876 = vmatpush1.bf16.msra.mxu0 %v6611
  %6877 = vmatprep.subr.bf16.mxu0 %v6614
  %6878 = vmatpush1.bf16.msra.mxu0 %v6613
  %6879 = vmatprep.subr.bf16.mxu0 %v6616
  %6880 = vmatpush1.bf16.msra.mxu0 %v6615
  %6881 = vmatprep.subr.bf16.mxu0 %v6618
  %6882 = vmatpush1.bf16.msra.mxu0 %v6617
  %6883 = vmatprep.subr.bf16.mxu0 %v6620
  %6884 = vmatpush1.bf16.msra.mxu0 %v6619
  %6885 = vmatprep.subr.bf16.mxu0 %v6622
  %6886 = vmatpush1.bf16.msra.mxu0 %v6621
  %6887 = vmatprep.subr.bf16.mxu0 %v6624
  %6888 = vmatpush1.bf16.msra.mxu0 %v6623
  %6889 = vmatprep.subr.bf16.mxu0 %v6626
  %6890 = vmatpush1.bf16.msra.mxu0 %v6625
  %6891 = vmatprep.mubr.bf16.mxu0 %v6113
  %6892 = vmatmul.mubr.bf16.gmra.mrb[0].mxu0 %v6112
  %v6893 = vpop.f32.mrb[0].mxu0
  %v6894 = vadd.f32 %v6831, %v6893
  %v6895 = vpop.f32.mrb[0].mxu0
  %v6896 = vadd.f32 %v6833, %v6895
  %v6897 = vpop.f32.mrb[0].mxu0
  %v6898 = vadd.f32 %v6835, %v6897
  %v6899 = vpop.f32.mrb[0].mxu0
  %v6900 = vadd.f32 %v6837, %v6899
  %6901 = vmatprep.mubr.bf16.mxu0 %v6120
  %6902 = vmatmul.mubr.bf16.gmra.mrb[0].mxu0 %v6119
  %v6903 = vpop.f32.mrb[0].mxu0
  %v6904 = vadd.f32 %v6841, %v6903
  %v6905 = vpop.f32.mrb[0].mxu0
  %v6906 = vadd.f32 %v6843, %v6905
  %v6907 = vpop.f32.mrb[0].mxu0
  %v6908 = vadd.f32 %v6845, %v6907
  %v6909 = vpop.f32.mrb[0].mxu0
  %v6910 = vadd.f32 %v6847, %v6909
  %6911 = vmatprep.mubr.bf16.mxu0 %v6127
  %6912 = vmatmul.mubr.bf16.gmra.mrb[0].mxu0 %v6126
  %v6913 = vpop.f32.mrb[0].mxu0
  %v6914 = vadd.f32 %v6851, %v6913
  %v6915 = vpop.f32.mrb[0].mxu0
  %v6916 = vadd.f32 %v6853, %v6915
  %v6917 = vpop.f32.mrb[0].mxu0
  %v6918 = vadd.f32 %v6855, %v6917
  %v6919 = vpop.f32.mrb[0].mxu0
  %v6920 = vadd.f32 %v6857, %v6919
  %6921 = vdwg.mxu0
  %6922 = vmatprep.subr.bf16.mxu0 %v6628
  %6923 = vmatpush1.bf16.msra.mxu0 %v6627
  %6924 = vmatprep.subr.bf16.mxu0 %v6630
  %6925 = vmatpush1.bf16.msra.mxu0 %v6629
  %6926 = vmatprep.subr.bf16.mxu0 %v6632
  %6927 = vmatpush1.bf16.msra.mxu0 %v6631
  %6928 = vmatprep.subr.bf16.mxu0 %v6634
  %6929 = vmatpush1.bf16.msra.mxu0 %v6633
  %6930 = vmatprep.subr.bf16.mxu0 %v6636
  %6931 = vmatpush1.bf16.msra.mxu0 %v6635
  %6932 = vmatprep.subr.bf16.mxu0 %v6638
  %6933 = vmatpush1.bf16.msra.mxu0 %v6637
  %6934 = vmatprep.subr.bf16.mxu0 %v6640
  %6935 = vmatpush1.bf16.msra.mxu0 %v6639
  %6936 = vmatprep.subr.bf16.mxu0 %v6642
  %6937 = vmatpush1.bf16.msra.mxu0 %v6641
  %6938 = vmatprep.subr.bf16.mxu0 %v6644
  %6939 = vmatpush1.bf16.msra.mxu0 %v6643
  %6940 = vmatprep.subr.bf16.mxu0 %v6646
  %6941 = vmatpush1.bf16.msra.mxu0 %v6645
  %6942 = vmatprep.subr.bf16.mxu0 %v6648
  %6943 = vmatpush1.bf16.msra.mxu0 %v6647
  %6944 = vmatprep.subr.bf16.mxu0 %v6650
  %6945 = vmatpush1.bf16.msra.mxu0 %v6649
  %6946 = vmatprep.subr.bf16.mxu0 %v6652
  %6947 = vmatpush1.bf16.msra.mxu0 %v6651
  %6948 = vmatprep.subr.bf16.mxu0 %v6654
  %6949 = vmatpush1.bf16.msra.mxu0 %v6653
  %6950 = vmatprep.subr.bf16.mxu0 %v6656
  %6951 = vmatpush1.bf16.msra.mxu0 %v6655
  %6952 = vmatprep.subr.bf16.mxu0 %v6658
  %6953 = vmatpush1.bf16.msra.mxu0 %v6657
  %6954 = vmatprep.mubr.bf16.mxu0 %v6115
  %6955 = vmatmul.mubr.bf16.gmra.mrb[0].mxu0 %v6114
  %v6956 = vpop.f32.mrb[0].mxu0
  %v6957 = vadd.f32 %v6894, %v6956
  %v6958 = vpop.f32.mrb[0].mxu0
  %v6959 = vadd.f32 %v6896, %v6958
  %v6960 = vpop.f32.mrb[0].mxu0
  %v6961 = vadd.f32 %v6898, %v6960
  %v6962 = vpop.f32.mrb[0].mxu0
  %v6963 = vadd.f32 %v6900, %v6962
  %6964 = vmatprep.mubr.bf16.mxu0 %v6122
  %6965 = vmatmul.mubr.bf16.gmra.mrb[0].mxu0 %v6121
  %v6966 = vpop.f32.mrb[0].mxu0
  %v6967 = vadd.f32 %v6904, %v6966
  %v6968 = vpop.f32.mrb[0].mxu0
  %v6969 = vadd.f32 %v6906, %v6968
  %v6970 = vpop.f32.mrb[0].mxu0
  %v6971 = vadd.f32 %v6908, %v6970
  %v6972 = vpop.f32.mrb[0].mxu0
  %v6973 = vadd.f32 %v6910, %v6972
  %6974 = vmatprep.mubr.bf16.mxu0 %v6129
  %6975 = vmatmul.mubr.bf16.gmra.mrb[0].mxu0 %v6128
  %v6976 = vpop.f32.mrb[0].mxu0
  %v6977 = vadd.f32 %v6914, %v6976
  %v6978 = vpop.f32.mrb[0].mxu0
  %v6979 = vadd.f32 %v6916, %v6978
  %v6980 = vpop.f32.mrb[0].mxu0
  %v6981 = vadd.f32 %v6918, %v6980
  %v6982 = vpop.f32.mrb[0].mxu0
  %v6983 = vadd.f32 %v6920, %v6982
  %6984 = vdwg.mxu0
  %6985 = vmatprep.subr.bf16.mxu0 %v6660
  %6986 = vmatpush1.bf16.msra.mxu0 %v6659
  %6987 = vmatprep.subr.bf16.mxu0 %v6662
  %6988 = vmatpush1.bf16.msra.mxu0 %v6661
  %6989 = vmatprep.subr.bf16.mxu0 %v6664
  %6990 = vmatpush1.bf16.msra.mxu0 %v6663
  %6991 = vmatprep.subr.bf16.mxu0 %v6666
  %6992 = vmatpush1.bf16.msra.mxu0 %v6665
  %6993 = vmatprep.subr.bf16.mxu0 %v6668
  %6994 = vmatpush1.bf16.msra.mxu0 %v6667
  %6995 = vmatprep.subr.bf16.mxu0 %v6794
  %6996 = vmatpush1.bf16.msra.mxu0 %v6791
  %6997 = vmatprep.subr.bf16.mxu0 0
  %6998 = vmatpush1.bf16.msra.mxu0 0
  %6999 = vmatprep.subr.bf16.mxu0 0
  %7000 = vmatpush1.bf16.msra.mxu0 0
  %7001 = vmatprep.subr.bf16.mxu0 0
  %7002 = vmatpush1.bf16.msra.mxu0 0
  %7003 = vmatprep.subr.bf16.mxu0 0
  %7004 = vmatpush1.bf16.msra.mxu0 0
  %7005 = vmatprep.subr.bf16.mxu0 0
  %7006 = vmatpush1.bf16.msra.mxu0 0
  %7007 = vmatprep.subr.bf16.mxu0 0
  %7008 = vmatpush1.bf16.msra.mxu0 0
  %7009 = vmatprep.subr.bf16.mxu0 0
  %7010 = vmatpush1.bf16.msra.mxu0 0
  %7011 = vmatprep.subr.bf16.mxu0 0
  %7012 = vmatpush1.bf16.msra.mxu0 0
  %7013 = vmatprep.subr.bf16.mxu0 0
  %7014 = vmatpush1.bf16.msra.mxu0 0
  %7015 = vmatprep.subr.bf16.mxu0 0
  %7016 = vmatpush1.bf16.msra.mxu0 0
  %7017 = vmatprep.mubr.bf16.mxu0 0
  %7018 = vmatmul.mubr.bf16.gmra.mrb[0].mxu0 %v6778
  %v7019 = vpop.f32.mrb[0].mxu0
  %v7020 = vadd.f32 %v6957, %v7019
  %v7021 = vpop.f32.mrb[0].mxu0
  %v7022 = vadd.f32 %v6959, %v7021
  %v7023 = vpop.f32.mrb[0].mxu0
  %v7024 = vadd.f32 %v6961, %v7023
  %v7025 = vpop.f32.mrb[0].mxu0
  %v7026 = vadd.f32 %v6963, %v7025
  %7027 = vmatprep.mubr.bf16.mxu0 0
  %7028 = vmatmul.mubr.bf16.gmra.mrb[0].mxu0 %v6781
  %v7029 = vpop.f32.mrb[0].mxu0
  %v7030 = vadd.f32 %v6967, %v7029
  %v7031 = vpop.f32.mrb[0].mxu0
  %v7032 = vadd.f32 %v6969, %v7031
  %v7033 = vpop.f32.mrb[0].mxu0
  %v7034 = vadd.f32 %v6971, %v7033
  %v7035 = vpop.f32.mrb[0].mxu0
  %v7036 = vadd.f32 %v6973, %v7035
  %7037 = vmatprep.mubr.bf16.mxu0 0
  %7038 = vmatmul.mubr.bf16.gmra.mrb[0].mxu0 %v6784
  %v7039 = vpop.f32.mrb[0].mxu0
  %v7040 = vadd.f32 %v6977, %v7039
  %v7041 = vpop.f32.mrb[0].mxu0
  %v7042 = vadd.f32 %v6979, %v7041
  %v7043 = vpop.f32.mrb[0].mxu0
  %v7044 = vadd.f32 %v6981, %v7043
  %v7045 = vpop.f32.mrb[0].mxu0
  %v7046 = vadd.f32 %v6983, %v7045
  %7047 = vdwg.mxu0
  %v7048 = vpack.c.bf16 %v7024, %v7020
  %v7049 = vpack.c.bf16 %v7026, %v7022
  %v7050 = vpack.c.bf16 %v7034, %v7030
  %v7051 = vpack.c.bf16 %v7036, %v7032
  %v7052 = vpack.c.bf16 %v7044, %v7040
  %v7053 = vpack.c.bf16 %v7046, %v7042
  %7054 = vst [vmem:[#allocation4] sm:$0xff] %v7048
  %7055 = vst [vmem:[#allocation4 + $0x8] sm:$0xff] %v7049
  %7056 = vst [vmem:[#allocation4 + $0x10] sm:$0xff] %v7050
  %7057 = vst [vmem:[#allocation4 + $0x18] sm:$0xff] %v7051
  %7058 = vst [vmem:[#allocation4 + $0x20] sm:$0xff] %v7052
  %7059 = vst [vmem:[#allocation4 + $0x28] sm:$0xff] %v7053
  %v7060 = vld [vmem:[#allocation4] sm:$0xff]
  %v7061 = vld [vmem:[#allocation4 + $0x8] sm:$0xff]
  %v7062 = vld [vmem:[#allocation4 + $0x10] sm:$0xff]
  %v7063 = vld [vmem:[#allocation4 + $0x18] sm:$0xff]
  %v7064 = vld [vmem:[#allocation4 + $0x20] sm:$0xff]
  %v7065 = vld [vmem:[#allocation4 + $0x28] sm:$0xff]
  %7066 = vst [vmem:[#allocation5] sm:$0xff] %v7060
  %7067 = vst.msk [vmem:[#allocation5 + $0x8] sm:$0xff] %vm2420, %v7061
  %7068 = vst [vmem:[#allocation5 + $0x10] sm:$0xff] %v7062
  %7069 = vst.msk [vmem:[#allocation5 + $0x18] sm:$0xff] %vm2420, %v7063
  %7070 = vst [vmem:[#allocation5 + $0x20] sm:$0xff] %v7064
  %7071 = vst.msk [vmem:[#allocation5 + $0x28] sm:$0xff] %vm2420, %v7065
  %v7072 = vld [vmem:[#allocation4] sm:$0xff]
  %v7073 = vld [vmem:[#allocation4 + $0x8] sm:$0xff]
  %v7074 = vld [vmem:[#allocation4 + $0x10] sm:$0xff]
  %v7075 = vld [vmem:[#allocation4 + $0x18] sm:$0xff]
  %v7076 = vld [vmem:[#allocation4 + $0x20] sm:$0xff]
  %v7077 = vld [vmem:[#allocation4 + $0x28] sm:$0xff]
  %7084 = vrot.lane.b32.xlu0 %v7072, 127
  %v7085 = vpop.permute.xlu0 %7084
  %7086 = vrot.lane.b32.xlu0 %v7073, 127
  %v7087 = vpop.permute.xlu0 %7086
  %7088 = vrot.lane.b32.xlu0 %v7074, 127
  %v7089 = vpop.permute.xlu0 %7088
  %7090 = vrot.lane.b32.xlu0 %v7075, 127
  %v7091 = vpop.permute.xlu0 %7090
  %7092 = vrot.lane.b32.xlu0 %v7076, 127
  %v7093 = vpop.permute.xlu0 %7092
  %7094 = vrot.lane.b32.xlu0 %v7077, 127
  %v7095 = vpop.permute.xlu0 %7094
  %vm7096 = vcmask 1039360
  %v7097 = vsel %vm7096, %v7085, %v7087
  %v7098 = vsel %vm7096, %v7089, %v7091
  %v7099 = vsel %vm7096, %v7093, %v7095
  %7106 = vst [vmem:[#allocation5 + $0x30] sm:$0xff] %v7097
  %7107 = vst.msk [vmem:[#allocation5 + $0x38] sm:$0xff] %vm2420, %v7087
  %7108 = vst [vmem:[#allocation5 + $0x40] sm:$0xff] %v7098
  %7109 = vst.msk [vmem:[#allocation5 + $0x48] sm:$0xff] %vm2420, %v7091
  %7110 = vst [vmem:[#allocation5 + $0x50] sm:$0xff] %v7099
  %7111 = vst.msk [vmem:[#allocation5 + $0x58] sm:$0xff] %vm2420, %v7095
  %v7112 = vld [vmem:[#allocation4] sm:$0xff]
  %v7113 = vld [vmem:[#allocation4 + $0x8] sm:$0xff]
  %v7114 = vld [vmem:[#allocation4 + $0x10] sm:$0xff]
  %v7115 = vld [vmem:[#allocation4 + $0x18] sm:$0xff]
  %v7116 = vld [vmem:[#allocation4 + $0x20] sm:$0xff]
  %v7117 = vld [vmem:[#allocation4 + $0x28] sm:$0xff]
  %7124 = vrot.lane.b32.xlu0 %v7112, 126
  %v7125 = vpop.permute.xlu0 %7124
  %7126 = vrot.lane.b32.xlu0 %v7113, 126
  %v7127 = vpop.permute.xlu0 %7126
  %7128 = vrot.lane.b32.xlu0 %v7114, 126
  %v7129 = vpop.permute.xlu0 %7128
  %7130 = vrot.lane.b32.xlu0 %v7115, 126
  %v7131 = vpop.permute.xlu0 %7130
  %7132 = vrot.lane.b32.xlu0 %v7116, 126
  %v7133 = vpop.permute.xlu0 %7132
  %7134 = vrot.lane.b32.xlu0 %v7117, 126
  %v7135 = vpop.permute.xlu0 %7134
  %vm7136 = vcmask 1031168
  %v7137 = vsel %vm7136, %v7125, %v7127
  %v7138 = vsel %vm7136, %v7129, %v7131
  %v7139 = vsel %vm7136, %v7133, %v7135
  %7146 = vst [vmem:[#allocation5 + $0x60] sm:$0xff] %v7137
  %7147 = vst.msk [vmem:[#allocation5 + $0x68] sm:$0xff] %vm2420, %v7127
  %7148 = vst [vmem:[#allocation5 + $0x70] sm:$0xff] %v7138
  %7149 = vst.msk [vmem:[#allocation5 + $0x78] sm:$0xff] %vm2420, %v7131
  %7150 = vst [vmem:[#allocation5 + $0x80] sm:$0xff] %v7139
  %7151 = vst.msk [vmem:[#allocation5 + $0x88] sm:$0xff] %vm2420, %v7135
  %v7152 = vld [vmem:[#allocation4] sm:$0xff]
  %v7153 = vld [vmem:[#allocation4 + $0x8] sm:$0xff]
  %v7154 = vld [vmem:[#allocation4 + $0x10] sm:$0xff]
  %v7155 = vld [vmem:[#allocation4 + $0x18] sm:$0xff]
  %v7156 = vld [vmem:[#allocation4 + $0x20] sm:$0xff]
  %v7157 = vld [vmem:[#allocation4 + $0x28] sm:$0xff]
  %7164 = vrot.lane.b32.xlu0 %v7152, 125
  %v7165 = vpop.permute.xlu0 %7164
  %7166 = vrot.lane.b32.xlu0 %v7153, 125
  %v7167 = vpop.permute.xlu0 %7166
  %7168 = vrot.lane.b32.xlu0 %v7154, 125
  %v7169 = vpop.permute.xlu0 %7168
  %7170 = vrot.lane.b32.xlu0 %v7155, 125
  %v7171 = vpop.permute.xlu0 %7170
  %7172 = vrot.lane.b32.xlu0 %v7156, 125
  %v7173 = vpop.permute.xlu0 %7172
  %7174 = vrot.lane.b32.xlu0 %v7157, 125
  %v7175 = vpop.permute.xlu0 %7174
  %vm7176 = vcmask 1022976
  %v7177 = vsel %vm7176, %v7165, %v7167
  %v7178 = vsel %vm7176, %v7169, %v7171
  %v7179 = vsel %vm7176, %v7173, %v7175
  %7186 = vst [vmem:[#allocation5 + $0x90] sm:$0xff] %v7177
  %7187 = vst.msk [vmem:[#allocation5 + $0x98] sm:$0xff] %vm2420, %v7167
  %7188 = vst [vmem:[#allocation5 + $0xa0] sm:$0xff] %v7178
  %7189 = vst.msk [vmem:[#allocation5 + $0xa8] sm:$0xff] %vm2420, %v7171
  %7190 = vst [vmem:[#allocation5 + $0xb0] sm:$0xff] %v7179
  %7191 = vst.msk [vmem:[#allocation5 + $0xb8] sm:$0xff] %vm2420, %v7175
  %v7192 = vld [vmem:[#allocation4] sm:$0xff]
  %v7193 = vld [vmem:[#allocation4 + $0x8] sm:$0xff]
  %v7194 = vld [vmem:[#allocation4 + $0x10] sm:$0xff]
  %v7195 = vld [vmem:[#allocation4 + $0x18] sm:$0xff]
  %v7196 = vld [vmem:[#allocation4 + $0x20] sm:$0xff]
  %v7197 = vld [vmem:[#allocation4 + $0x28] sm:$0xff]
  %7204 = vrot.lane.b32.xlu0 %v7192, 124
  %v7205 = vpop.permute.xlu0 %7204
  %7206 = vrot.lane.b32.xlu0 %v7193, 124
  %v7207 = vpop.permute.xlu0 %7206
  %7208 = vrot.lane.b32.xlu0 %v7194, 124
  %v7209 = vpop.permute.xlu0 %7208
  %7210 = vrot.lane.b32.xlu0 %v7195, 124
  %v7211 = vpop.permute.xlu0 %7210
  %7212 = vrot.lane.b32.xlu0 %v7196, 124
  %v7213 = vpop.permute.xlu0 %7212
  %7214 = vrot.lane.b32.xlu0 %v7197, 124
  %v7215 = vpop.permute.xlu0 %7214
  %vm7216 = vcmask 1014784
  %v7217 = vsel %vm7216, %v7205, %v7207
  %v7218 = vsel %vm7216, %v7209, %v7211
  %v7219 = vsel %vm7216, %v7213, %v7215
  %7226 = vst [vmem:[#allocation5 + $0xc0] sm:$0xff] %v7217
  %7227 = vst.msk [vmem:[#allocation5 + $0xc8] sm:$0xff] %vm2420, %v7207
  %7228 = vst [vmem:[#allocation5 + $0xd0] sm:$0xff] %v7218
  %7229 = vst.msk [vmem:[#allocation5 + $0xd8] sm:$0xff] %vm2420, %v7211
  %7230 = vst [vmem:[#allocation5 + $0xe0] sm:$0xff] %v7219
  %7231 = vst.msk [vmem:[#allocation5 + $0xe8] sm:$0xff] %vm2420, %v7215
  %v7232 = vld [vmem:[#allocation4] sm:$0xff]
  %v7233 = vld [vmem:[#allocation4 + $0x8] sm:$0xff]
  %v7234 = vld [vmem:[#allocation4 + $0x10] sm:$0xff]
  %v7235 = vld [vmem:[#allocation4 + $0x18] sm:$0xff]
  %v7236 = vld [vmem:[#allocation4 + $0x20] sm:$0xff]
  %v7237 = vld [vmem:[#allocation4 + $0x28] sm:$0xff]
  %7244 = vrot.lane.b32.xlu0 %v7232, 112
  %v7245 = vpop.permute.xlu0 %7244
  %7246 = vrot.lane.b32.xlu0 %v7233, 112
  %v7247 = vpop.permute.xlu0 %7246
  %7248 = vrot.lane.b32.xlu0 %v7234, 112
  %v7249 = vpop.permute.xlu0 %7248
  %7250 = vrot.lane.b32.xlu0 %v7235, 112
  %v7251 = vpop.permute.xlu0 %7250
  %7252 = vrot.lane.b32.xlu0 %v7236, 112
  %v7253 = vpop.permute.xlu0 %7252
  %7254 = vrot.lane.b32.xlu0 %v7237, 112
  %v7255 = vpop.permute.xlu0 %7254
  %vm7256 = vcmask 916480
  %v7257 = vsel %vm7256, %v7245, %v7247
  %v7258 = vsel %vm7256, %v7249, %v7251
  %v7259 = vsel %vm7256, %v7253, %v7255
  %7266 = vst [vmem:[#allocation5 + $0xf0] sm:$0xff] %v7257
  %7267 = vst.msk [vmem:[#allocation5 + $0xf8] sm:$0xff] %vm2420, %v7247
  %7268 = vst [vmem:[#allocation5 + $0x100] sm:$0xff] %v7258
  %7269 = vst.msk [vmem:[#allocation5 + $0x108] sm:$0xff] %vm2420, %v7251
  %7270 = vst [vmem:[#allocation5 + $0x110] sm:$0xff] %v7259
  %7271 = vst.msk [vmem:[#allocation5 + $0x118] sm:$0xff] %vm2420, %v7255
  %v7272 = vld [vmem:[#allocation4] sm:$0xff]
  %v7273 = vld [vmem:[#allocation4 + $0x8] sm:$0xff]
  %v7274 = vld [vmem:[#allocation4 + $0x10] sm:$0xff]
  %v7275 = vld [vmem:[#allocation4 + $0x18] sm:$0xff]
  %v7276 = vld [vmem:[#allocation4 + $0x20] sm:$0xff]
  %v7277 = vld [vmem:[#allocation4 + $0x28] sm:$0xff]
  %7284 = vrot.lane.b32.xlu0 %v7272, 111
  %v7285 = vpop.permute.xlu0 %7284
  %7286 = vrot.lane.b32.xlu0 %v7273, 111
  %v7287 = vpop.permute.xlu0 %7286
  %7288 = vrot.lane.b32.xlu0 %v7274, 111
  %v7289 = vpop.permute.xlu0 %7288
  %7290 = vrot.lane.b32.xlu0 %v7275, 111
  %v7291 = vpop.permute.xlu0 %7290
  %7292 = vrot.lane.b32.xlu0 %v7276, 111
  %v7293 = vpop.permute.xlu0 %7292
  %7294 = vrot.lane.b32.xlu0 %v7277, 111
  %v7295 = vpop.permute.xlu0 %7294
  %vm7296 = vcmask 908288
  %v7297 = vsel %vm7296, %v7285, %v7287
  %v7298 = vsel %vm7296, %v7289, %v7291
  %v7299 = vsel %vm7296, %v7293, %v7295
  %7306 = vst [vmem:[#allocation5 + $0x120] sm:$0xff] %v7297
  %7307 = vst.msk [vmem:[#allocation5 + $0x128] sm:$0xff] %vm2420, %v7287
  %7308 = vst [vmem:[#allocation5 + $0x130] sm:$0xff] %v7298
  %7309 = vst.msk [vmem:[#allocation5 + $0x138] sm:$0xff] %vm2420, %v7291
  %7310 = vst [vmem:[#allocation5 + $0x140] sm:$0xff] %v7299
  %7311 = vst.msk [vmem:[#allocation5 + $0x148] sm:$0xff] %vm2420, %v7295
  %v7312 = vld [vmem:[#allocation4] sm:$0xff]
  %v7313 = vld [vmem:[#allocation4 + $0x8] sm:$0xff]
  %v7314 = vld [vmem:[#allocation4 + $0x10] sm:$0xff]
  %v7315 = vld [vmem:[#allocation4 + $0x18] sm:$0xff]
  %v7316 = vld [vmem:[#allocation4 + $0x20] sm:$0xff]
  %v7317 = vld [vmem:[#allocation4 + $0x28] sm:$0xff]
  %7324 = vrot.lane.b32.xlu0 %v7312, 110
  %v7325 = vpop.permute.xlu0 %7324
  %7326 = vrot.lane.b32.xlu0 %v7313, 110
  %v7327 = vpop.permute.xlu0 %7326
  %7328 = vrot.lane.b32.xlu0 %v7314, 110
  %v7329 = vpop.permute.xlu0 %7328
  %7330 = vrot.lane.b32.xlu0 %v7315, 110
  %v7331 = vpop.permute.xlu0 %7330
  %7332 = vrot.lane.b32.xlu0 %v7316, 110
  %v7333 = vpop.permute.xlu0 %7332
  %7334 = vrot.lane.b32.xlu0 %v7317, 110
  %v7335 = vpop.permute.xlu0 %7334
  %vm7336 = vcmask 900096
  %v7337 = vsel %vm7336, %v7325, %v7327
  %v7338 = vsel %vm7336, %v7329, %v7331
  %v7339 = vsel %vm7336, %v7333, %v7335
  %7346 = vst [vmem:[#allocation5 + $0x150] sm:$0xff] %v7337
  %7347 = vst.msk [vmem:[#allocation5 + $0x158] sm:$0xff] %vm2420, %v7327
  %7348 = vst [vmem:[#allocation5 + $0x160] sm:$0xff] %v7338
  %7349 = vst.msk [vmem:[#allocation5 + $0x168] sm:$0xff] %vm2420, %v7331
  %7350 = vst [vmem:[#allocation5 + $0x170] sm:$0xff] %v7339
  %7351 = vst.msk [vmem:[#allocation5 + $0x178] sm:$0xff] %vm2420, %v7335
  %v7352 = vld [vmem:[#allocation4] sm:$0xff]
  %v7353 = vld [vmem:[#allocation4 + $0x8] sm:$0xff]
  %v7354 = vld [vmem:[#allocation4 + $0x10] sm:$0xff]
  %v7355 = vld [vmem:[#allocation4 + $0x18] sm:$0xff]
  %v7356 = vld [vmem:[#allocation4 + $0x20] sm:$0xff]
  %v7357 = vld [vmem:[#allocation4 + $0x28] sm:$0xff]
  %7364 = vrot.lane.b32.xlu0 %v7352, 109
  %v7365 = vpop.permute.xlu0 %7364
  %7366 = vrot.lane.b32.xlu0 %v7353, 109
  %v7367 = vpop.permute.xlu0 %7366
  %7368 = vrot.lane.b32.xlu0 %v7354, 109
  %v7369 = vpop.permute.xlu0 %7368
  %7370 = vrot.lane.b32.xlu0 %v7355, 109
  %v7371 = vpop.permute.xlu0 %7370
  %7372 = vrot.lane.b32.xlu0 %v7356, 109
  %v7373 = vpop.permute.xlu0 %7372
  %7374 = vrot.lane.b32.xlu0 %v7357, 109
  %v7375 = vpop.permute.xlu0 %7374
  %vm7376 = vcmask 891904
  %v7377 = vsel %vm7376, %v7365, %v7367
  %v7378 = vsel %vm7376, %v7369, %v7371
  %v7379 = vsel %vm7376, %v7373, %v7375
  %7386 = vst [vmem:[#allocation5 + $0x180] sm:$0xff] %v7377
  %7387 = vst.msk [vmem:[#allocation5 + $0x188] sm:$0xff] %vm2420, %v7367
  %7388 = vst [vmem:[#allocation5 + $0x190] sm:$0xff] %v7378
  %7389 = vst.msk [vmem:[#allocation5 + $0x198] sm:$0xff] %vm2420, %v7371
  %7390 = vst [vmem:[#allocation5 + $0x1a0] sm:$0xff] %v7379
  %7391 = vst.msk [vmem:[#allocation5 + $0x1a8] sm:$0xff] %vm2420, %v7375
  %v7392 = vld [vmem:[#allocation4] sm:$0xff]
  %v7393 = vld [vmem:[#allocation4 + $0x8] sm:$0xff]
  %v7394 = vld [vmem:[#allocation4 + $0x10] sm:$0xff]
  %v7395 = vld [vmem:[#allocation4 + $0x18] sm:$0xff]
  %v7396 = vld [vmem:[#allocation4 + $0x20] sm:$0xff]
  %v7397 = vld [vmem:[#allocation4 + $0x28] sm:$0xff]
  %7404 = vrot.lane.b32.xlu0 %v7392, 108
  %v7405 = vpop.permute.xlu0 %7404
  %7406 = vrot.lane.b32.xlu0 %v7393, 108
  %v7407 = vpop.permute.xlu0 %7406
  %7408 = vrot.lane.b32.xlu0 %v7394, 108
  %v7409 = vpop.permute.xlu0 %7408
  %7410 = vrot.lane.b32.xlu0 %v7395, 108
  %v7411 = vpop.permute.xlu0 %7410
  %7412 = vrot.lane.b32.xlu0 %v7396, 108
  %v7413 = vpop.permute.xlu0 %7412
  %7414 = vrot.lane.b32.xlu0 %v7397, 108
  %v7415 = vpop.permute.xlu0 %7414
  %vm7416 = vcmask 883712
  %v7417 = vsel %vm7416, %v7405, %v7407
  %v7418 = vsel %vm7416, %v7409, %v7411
  %v7419 = vsel %vm7416, %v7413, %v7415
  %7426 = vst [vmem:[#allocation5 + $0x1b0] sm:$0xff] %v7417
  %7427 = vst.msk [vmem:[#allocation5 + $0x1b8] sm:$0xff] %vm2420, %v7407
  %7428 = vst [vmem:[#allocation5 + $0x1c0] sm:$0xff] %v7418
  %7429 = vst.msk [vmem:[#allocation5 + $0x1c8] sm:$0xff] %vm2420, %v7411
  %7430 = vst [vmem:[#allocation5 + $0x1d0] sm:$0xff] %v7419
  %7431 = vst.msk [vmem:[#allocation5 + $0x1d8] sm:$0xff] %vm2420, %v7415
  %v7432 = vld [vmem:[#allocation4] sm:$0xff]
  %v7433 = vld [vmem:[#allocation4 + $0x8] sm:$0xff]
  %v7434 = vld [vmem:[#allocation4 + $0x10] sm:$0xff]
  %v7435 = vld [vmem:[#allocation4 + $0x18] sm:$0xff]
  %v7436 = vld [vmem:[#allocation4 + $0x20] sm:$0xff]
  %v7437 = vld [vmem:[#allocation4 + $0x28] sm:$0xff]
  %7444 = vrot.lane.b32.xlu0 %v7432, 96
  %v7445 = vpop.permute.xlu0 %7444
  %7446 = vrot.lane.b32.xlu0 %v7433, 96
  %v7447 = vpop.permute.xlu0 %7446
  %7448 = vrot.lane.b32.xlu0 %v7434, 96
  %v7449 = vpop.permute.xlu0 %7448
  %7450 = vrot.lane.b32.xlu0 %v7435, 96
  %v7451 = vpop.permute.xlu0 %7450
  %7452 = vrot.lane.b32.xlu0 %v7436, 96
  %v7453 = vpop.permute.xlu0 %7452
  %7454 = vrot.lane.b32.xlu0 %v7437, 96
  %v7455 = vpop.permute.xlu0 %7454
  %vm7456 = vcmask 785408
  %v7457 = vsel %vm7456, %v7445, %v7447
  %v7458 = vsel %vm7456, %v7449, %v7451
  %v7459 = vsel %vm7456, %v7453, %v7455
  %7466 = vst [vmem:[#allocation5 + $0x1e0] sm:$0xff] %v7457
  %7467 = vst.msk [vmem:[#allocation5 + $0x1e8] sm:$0xff] %vm2420, %v7447
  %7468 = vst [vmem:[#allocation5 + $0x1f0] sm:$0xff] %v7458
  %7469 = vst.msk [vmem:[#allocation5 + $0x1f8] sm:$0xff] %vm2420, %v7451
  %7470 = vst [vmem:[#allocation5 + $0x200] sm:$0xff] %v7459
  %7471 = vst.msk [vmem:[#allocation5 + $0x208] sm:$0xff] %vm2420, %v7455
  %v7472 = vld [vmem:[#allocation4] sm:$0xff]
  %v7473 = vld [vmem:[#allocation4 + $0x8] sm:$0xff]
  %v7474 = vld [vmem:[#allocation4 + $0x10] sm:$0xff]
  %v7475 = vld [vmem:[#allocation4 + $0x18] sm:$0xff]
  %v7476 = vld [vmem:[#allocation4 + $0x20] sm:$0xff]
  %v7477 = vld [vmem:[#allocation4 + $0x28] sm:$0xff]
  %7484 = vrot.lane.b32.xlu0 %v7472, 95
  %v7485 = vpop.permute.xlu0 %7484
  %7486 = vrot.lane.b32.xlu0 %v7473, 95
  %v7487 = vpop.permute.xlu0 %7486
  %7488 = vrot.lane.b32.xlu0 %v7474, 95
  %v7489 = vpop.permute.xlu0 %7488
  %7490 = vrot.lane.b32.xlu0 %v7475, 95
  %v7491 = vpop.permute.xlu0 %7490
  %7492 = vrot.lane.b32.xlu0 %v7476, 95
  %v7493 = vpop.permute.xlu0 %7492
  %7494 = vrot.lane.b32.xlu0 %v7477, 95
  %v7495 = vpop.permute.xlu0 %7494
  %vm7496 = vcmask 777216
  %v7497 = vsel %vm7496, %v7485, %v7487
  %v7498 = vsel %vm7496, %v7489, %v7491
  %v7499 = vsel %vm7496, %v7493, %v7495
  %7506 = vst [vmem:[#allocation5 + $0x210] sm:$0xff] %v7497
  %7507 = vst.msk [vmem:[#allocation5 + $0x218] sm:$0xff] %vm2420, %v7487
  %7508 = vst [vmem:[#allocation5 + $0x220] sm:$0xff] %v7498
  %7509 = vst.msk [vmem:[#allocation5 + $0x228] sm:$0xff] %vm2420, %v7491
  %7510 = vst [vmem:[#allocation5 + $0x230] sm:$0xff] %v7499
  %7511 = vst.msk [vmem:[#allocation5 + $0x238] sm:$0xff] %vm2420, %v7495
  %v7512 = vld [vmem:[#allocation4] sm:$0xff]
  %v7513 = vld [vmem:[#allocation4 + $0x8] sm:$0xff]
  %v7514 = vld [vmem:[#allocation4 + $0x10] sm:$0xff]
  %v7515 = vld [vmem:[#allocation4 + $0x18] sm:$0xff]
  %v7516 = vld [vmem:[#allocation4 + $0x20] sm:$0xff]
  %v7517 = vld [vmem:[#allocation4 + $0x28] sm:$0xff]
  %7524 = vrot.lane.b32.xlu0 %v7512, 94
  %v7525 = vpop.permute.xlu0 %7524
  %7526 = vrot.lane.b32.xlu0 %v7513, 94
  %v7527 = vpop.permute.xlu0 %7526
  %7528 = vrot.lane.b32.xlu0 %v7514, 94
  %v7529 = vpop.permute.xlu0 %7528
  %7530 = vrot.lane.b32.xlu0 %v7515, 94
  %v7531 = vpop.permute.xlu0 %7530
  %7532 = vrot.lane.b32.xlu0 %v7516, 94
  %v7533 = vpop.permute.xlu0 %7532
  %7534 = vrot.lane.b32.xlu0 %v7517, 94
  %v7535 = vpop.permute.xlu0 %7534
  %vm7536 = vcmask 769024
  %v7537 = vsel %vm7536, %v7525, %v7527
  %v7538 = vsel %vm7536, %v7529, %v7531
  %v7539 = vsel %vm7536, %v7533, %v7535
  %7546 = vst [vmem:[#allocation5 + $0x240] sm:$0xff] %v7537
  %7547 = vst.msk [vmem:[#allocation5 + $0x248] sm:$0xff] %vm2420, %v7527
  %7548 = vst [vmem:[#allocation5 + $0x250] sm:$0xff] %v7538
  %7549 = vst.msk [vmem:[#allocation5 + $0x258] sm:$0xff] %vm2420, %v7531
  %7550 = vst [vmem:[#allocation5 + $0x260] sm:$0xff] %v7539
  %7551 = vst.msk [vmem:[#allocation5 + $0x268] sm:$0xff] %vm2420, %v7535
  %v7552 = vld [vmem:[#allocation4] sm:$0xff]
  %v7553 = vld [vmem:[#allocation4 + $0x8] sm:$0xff]
  %v7554 = vld [vmem:[#allocation4 + $0x10] sm:$0xff]
  %v7555 = vld [vmem:[#allocation4 + $0x18] sm:$0xff]
  %v7556 = vld [vmem:[#allocation4 + $0x20] sm:$0xff]
  %v7557 = vld [vmem:[#allocation4 + $0x28] sm:$0xff]
  %7564 = vrot.lane.b32.xlu0 %v7552, 93
  %v7565 = vpop.permute.xlu0 %7564
  %7566 = vrot.lane.b32.xlu0 %v7553, 93
  %v7567 = vpop.permute.xlu0 %7566
  %7568 = vrot.lane.b32.xlu0 %v7554, 93
  %v7569 = vpop.permute.xlu0 %7568
  %7570 = vrot.lane.b32.xlu0 %v7555, 93
  %v7571 = vpop.permute.xlu0 %7570
  %7572 = vrot.lane.b32.xlu0 %v7556, 93
  %v7573 = vpop.permute.xlu0 %7572
  %7574 = vrot.lane.b32.xlu0 %v7557, 93
  %v7575 = vpop.permute.xlu0 %7574
  %vm7576 = vcmask 760832
  %v7577 = vsel %vm7576, %v7565, %v7567
  %v7578 = vsel %vm7576, %v7569, %v7571
  %v7579 = vsel %vm7576, %v7573, %v7575
  %7586 = vst [vmem:[#allocation5 + $0x270] sm:$0xff] %v7577
  %7587 = vst.msk [vmem:[#allocation5 + $0x278] sm:$0xff] %vm2420, %v7567
  %7588 = vst [vmem:[#allocation5 + $0x280] sm:$0xff] %v7578
  %7589 = vst.msk [vmem:[#allocation5 + $0x288] sm:$0xff] %vm2420, %v7571
  %7590 = vst [vmem:[#allocation5 + $0x290] sm:$0xff] %v7579
  %7591 = vst.msk [vmem:[#allocation5 + $0x298] sm:$0xff] %vm2420, %v7575
  %v7592 = vld [vmem:[#allocation4] sm:$0xff]
  %v7593 = vld [vmem:[#allocation4 + $0x8] sm:$0xff]
  %v7594 = vld [vmem:[#allocation4 + $0x10] sm:$0xff]
  %v7595 = vld [vmem:[#allocation4 + $0x18] sm:$0xff]
  %v7596 = vld [vmem:[#allocation4 + $0x20] sm:$0xff]
  %v7597 = vld [vmem:[#allocation4 + $0x28] sm:$0xff]
  %7604 = vrot.lane.b32.xlu0 %v7592, 92
  %v7605 = vpop.permute.xlu0 %7604
  %7606 = vrot.lane.b32.xlu0 %v7593, 92
  %v7607 = vpop.permute.xlu0 %7606
  %7608 = vrot.lane.b32.xlu0 %v7594, 92
  %v7609 = vpop.permute.xlu0 %7608
  %7610 = vrot.lane.b32.xlu0 %v7595, 92
  %v7611 = vpop.permute.xlu0 %7610
  %7612 = vrot.lane.b32.xlu0 %v7596, 92
  %v7613 = vpop.permute.xlu0 %7612
  %7614 = vrot.lane.b32.xlu0 %v7597, 92
  %v7615 = vpop.permute.xlu0 %7614
  %vm7616 = vcmask 752640
  %v7617 = vsel %vm7616, %v7605, %v7607
  %v7618 = vsel %vm7616, %v7609, %v7611
  %v7619 = vsel %vm7616, %v7613, %v7615
  %7626 = vst [vmem:[#allocation5 + $0x2a0] sm:$0xff] %v7617
  %7627 = vst.msk [vmem:[#allocation5 + $0x2a8] sm:$0xff] %vm2420, %v7607
  %7628 = vst [vmem:[#allocation5 + $0x2b0] sm:$0xff] %v7618
  %7629 = vst.msk [vmem:[#allocation5 + $0x2b8] sm:$0xff] %vm2420, %v7611
  %7630 = vst [vmem:[#allocation5 + $0x2c0] sm:$0xff] %v7619
  %7631 = vst.msk [vmem:[#allocation5 + $0x2c8] sm:$0xff] %vm2420, %v7615
  %v7632 = vld [vmem:[#allocation4] sm:$0xff]
  %v7633 = vld [vmem:[#allocation4 + $0x8] sm:$0xff]
  %v7634 = vld [vmem:[#allocation4 + $0x10] sm:$0xff]
  %v7635 = vld [vmem:[#allocation4 + $0x18] sm:$0xff]
  %v7636 = vld [vmem:[#allocation4 + $0x20] sm:$0xff]
  %v7637 = vld [vmem:[#allocation4 + $0x28] sm:$0xff]
  %7644 = vrot.lane.b32.xlu0 %v7632, 80
  %v7645 = vpop.permute.xlu0 %7644
  %7646 = vrot.lane.b32.xlu0 %v7633, 80
  %v7647 = vpop.permute.xlu0 %7646
  %7648 = vrot.lane.b32.xlu0 %v7634, 80
  %v7649 = vpop.permute.xlu0 %7648
  %7650 = vrot.lane.b32.xlu0 %v7635, 80
  %v7651 = vpop.permute.xlu0 %7650
  %7652 = vrot.lane.b32.xlu0 %v7636, 80
  %v7653 = vpop.permute.xlu0 %7652
  %7654 = vrot.lane.b32.xlu0 %v7637, 80
  %v7655 = vpop.permute.xlu0 %7654
  %vm7656 = vcmask 654336
  %v7657 = vsel %vm7656, %v7645, %v7647
  %v7658 = vsel %vm7656, %v7649, %v7651
  %v7659 = vsel %vm7656, %v7653, %v7655
  %7666 = vst [vmem:[#allocation5 + $0x2d0] sm:$0xff] %v7657
  %7667 = vst.msk [vmem:[#allocation5 + $0x2d8] sm:$0xff] %vm2420, %v7647
  %7668 = vst [vmem:[#allocation5 + $0x2e0] sm:$0xff] %v7658
  %7669 = vst.msk [vmem:[#allocation5 + $0x2e8] sm:$0xff] %vm2420, %v7651
  %7670 = vst [vmem:[#allocation5 + $0x2f0] sm:$0xff] %v7659
  %7671 = vst.msk [vmem:[#allocation5 + $0x2f8] sm:$0xff] %vm2420, %v7655
  %v7672 = vld [vmem:[#allocation4] sm:$0xff]
  %v7673 = vld [vmem:[#allocation4 + $0x8] sm:$0xff]
  %v7674 = vld [vmem:[#allocation4 + $0x10] sm:$0xff]
  %v7675 = vld [vmem:[#allocation4 + $0x18] sm:$0xff]
  %v7676 = vld [vmem:[#allocation4 + $0x20] sm:$0xff]
  %v7677 = vld [vmem:[#allocation4 + $0x28] sm:$0xff]
  %7684 = vrot.lane.b32.xlu0 %v7672, 79
  %v7685 = vpop.permute.xlu0 %7684
  %7686 = vrot.lane.b32.xlu0 %v7673, 79
  %v7687 = vpop.permute.xlu0 %7686
  %7688 = vrot.lane.b32.xlu0 %v7674, 79
  %v7689 = vpop.permute.xlu0 %7688
  %7690 = vrot.lane.b32.xlu0 %v7675, 79
  %v7691 = vpop.permute.xlu0 %7690
  %7692 = vrot.lane.b32.xlu0 %v7676, 79
  %v7693 = vpop.permute.xlu0 %7692
  %7694 = vrot.lane.b32.xlu0 %v7677, 79
  %v7695 = vpop.permute.xlu0 %7694
  %vm7696 = vcmask 646144
  %v7697 = vsel %vm7696, %v7685, %v7687
  %v7698 = vsel %vm7696, %v7689, %v7691
  %v7699 = vsel %vm7696, %v7693, %v7695
  %7706 = vst [vmem:[#allocation5 + $0x300] sm:$0xff] %v7697
  %7707 = vst.msk [vmem:[#allocation5 + $0x308] sm:$0xff] %vm2420, %v7687
  %7708 = vst [vmem:[#allocation5 + $0x310] sm:$0xff] %v7698
  %7709 = vst.msk [vmem:[#allocation5 + $0x318] sm:$0xff] %vm2420, %v7691
  %7710 = vst [vmem:[#allocation5 + $0x320] sm:$0xff] %v7699
  %7711 = vst.msk [vmem:[#allocation5 + $0x328] sm:$0xff] %vm2420, %v7695
  %v7712 = vld [vmem:[#allocation4] sm:$0xff]
  %v7713 = vld [vmem:[#allocation4 + $0x8] sm:$0xff]
  %v7714 = vld [vmem:[#allocation4 + $0x10] sm:$0xff]
  %v7715 = vld [vmem:[#allocation4 + $0x18] sm:$0xff]
  %v7716 = vld [vmem:[#allocation4 + $0x20] sm:$0xff]
  %v7717 = vld [vmem:[#allocation4 + $0x28] sm:$0xff]
  %7724 = vrot.lane.b32.xlu0 %v7712, 78
  %v7725 = vpop.permute.xlu0 %7724
  %7726 = vrot.lane.b32.xlu0 %v7713, 78
  %v7727 = vpop.permute.xlu0 %7726
  %7728 = vrot.lane.b32.xlu0 %v7714, 78
  %v7729 = vpop.permute.xlu0 %7728
  %7730 = vrot.lane.b32.xlu0 %v7715, 78
  %v7731 = vpop.permute.xlu0 %7730
  %7732 = vrot.lane.b32.xlu0 %v7716, 78
  %v7733 = vpop.permute.xlu0 %7732
  %7734 = vrot.lane.b32.xlu0 %v7717, 78
  %v7735 = vpop.permute.xlu0 %7734
  %vm7736 = vcmask 637952
  %v7737 = vsel %vm7736, %v7725, %v7727
  %v7738 = vsel %vm7736, %v7729, %v7731
  %v7739 = vsel %vm7736, %v7733, %v7735
  %7746 = vst [vmem:[#allocation5 + $0x330] sm:$0xff] %v7737
  %7747 = vst.msk [vmem:[#allocation5 + $0x338] sm:$0xff] %vm2420, %v7727
  %7748 = vst [vmem:[#allocation5 + $0x340] sm:$0xff] %v7738
  %7749 = vst.msk [vmem:[#allocation5 + $0x348] sm:$0xff] %vm2420, %v7731
  %7750 = vst [vmem:[#allocation5 + $0x350] sm:$0xff] %v7739
  %7751 = vst.msk [vmem:[#allocation5 + $0x358] sm:$0xff] %vm2420, %v7735
  %v7752 = vld [vmem:[#allocation4] sm:$0xff]
  %v7753 = vld [vmem:[#allocation4 + $0x8] sm:$0xff]
  %v7754 = vld [vmem:[#allocation4 + $0x10] sm:$0xff]
  %v7755 = vld [vmem:[#allocation4 + $0x18] sm:$0xff]
  %v7756 = vld [vmem:[#allocation4 + $0x20] sm:$0xff]
  %v7757 = vld [vmem:[#allocation4 + $0x28] sm:$0xff]
  %7764 = vrot.lane.b32.xlu0 %v7752, 77
  %v7765 = vpop.permute.xlu0 %7764
  %7766 = vrot.lane.b32.xlu0 %v7753, 77
  %v7767 = vpop.permute.xlu0 %7766
  %7768 = vrot.lane.b32.xlu0 %v7754, 77
  %v7769 = vpop.permute.xlu0 %7768
  %7770 = vrot.lane.b32.xlu0 %v7755, 77
  %v7771 = vpop.permute.xlu0 %7770
  %7772 = vrot.lane.b32.xlu0 %v7756, 77
  %v7773 = vpop.permute.xlu0 %7772
  %7774 = vrot.lane.b32.xlu0 %v7757, 77
  %v7775 = vpop.permute.xlu0 %7774
  %vm7776 = vcmask 629760
  %v7777 = vsel %vm7776, %v7765, %v7767
  %v7778 = vsel %vm7776, %v7769, %v7771
  %v7779 = vsel %vm7776, %v7773, %v7775
  %7786 = vst [vmem:[#allocation5 + $0x360] sm:$0xff] %v7777
  %7787 = vst.msk [vmem:[#allocation5 + $0x368] sm:$0xff] %vm2420, %v7767
  %7788 = vst [vmem:[#allocation5 + $0x370] sm:$0xff] %v7778
  %7789 = vst.msk [vmem:[#allocation5 + $0x378] sm:$0xff] %vm2420, %v7771
  %7790 = vst [vmem:[#allocation5 + $0x380] sm:$0xff] %v7779
  %7791 = vst.msk [vmem:[#allocation5 + $0x388] sm:$0xff] %vm2420, %v7775
  %v7792 = vld [vmem:[#allocation4] sm:$0xff]
  %v7793 = vld [vmem:[#allocation4 + $0x8] sm:$0xff]
  %v7794 = vld [vmem:[#allocation4 + $0x10] sm:$0xff]
  %v7795 = vld [vmem:[#allocation4 + $0x18] sm:$0xff]
  %v7796 = vld [vmem:[#allocation4 + $0x20] sm:$0xff]
  %v7797 = vld [vmem:[#allocation4 + $0x28] sm:$0xff]
  %7804 = vrot.lane.b32.xlu0 %v7792, 76
  %v7805 = vpop.permute.xlu0 %7804
  %7806 = vrot.lane.b32.xlu0 %v7793, 76
  %v7807 = vpop.permute.xlu0 %7806
  %7808 = vrot.lane.b32.xlu0 %v7794, 76
  %v7809 = vpop.permute.xlu0 %7808
  %7810 = vrot.lane.b32.xlu0 %v7795, 76
  %v7811 = vpop.permute.xlu0 %7810
  %7812 = vrot.lane.b32.xlu0 %v7796, 76
  %v7813 = vpop.permute.xlu0 %7812
  %7814 = vrot.lane.b32.xlu0 %v7797, 76
  %v7815 = vpop.permute.xlu0 %7814
  %vm7816 = vcmask 621568
  %v7817 = vsel %vm7816, %v7805, %v7807
  %v7818 = vsel %vm7816, %v7809, %v7811
  %v7819 = vsel %vm7816, %v7813, %v7815
  %7826 = vst [vmem:[#allocation5 + $0x390] sm:$0xff] %v7817
  %7827 = vst.msk [vmem:[#allocation5 + $0x398] sm:$0xff] %vm2420, %v7807
  %7828 = vst [vmem:[#allocation5 + $0x3a0] sm:$0xff] %v7818
  %7829 = vst.msk [vmem:[#allocation5 + $0x3a8] sm:$0xff] %vm2420, %v7811
  %7830 = vst [vmem:[#allocation5 + $0x3b0] sm:$0xff] %v7819
  %7831 = vst.msk [vmem:[#allocation5 + $0x3b8] sm:$0xff] %vm2420, %v7815
  %v7832 = vld [vmem:[#allocation4] sm:$0xff]
  %v7833 = vld [vmem:[#allocation4 + $0x8] sm:$0xff]
  %v7834 = vld [vmem:[#allocation4 + $0x10] sm:$0xff]
  %v7835 = vld [vmem:[#allocation4 + $0x18] sm:$0xff]
  %v7836 = vld [vmem:[#allocation4 + $0x20] sm:$0xff]
  %v7837 = vld [vmem:[#allocation4 + $0x28] sm:$0xff]
  %7844 = vrot.lane.b32.xlu0 %v7832, 64
  %v7845 = vpop.permute.xlu0 %7844
  %7846 = vrot.lane.b32.xlu0 %v7833, 64
  %v7847 = vpop.permute.xlu0 %7846
  %7848 = vrot.lane.b32.xlu0 %v7834, 64
  %v7849 = vpop.permute.xlu0 %7848
  %7850 = vrot.lane.b32.xlu0 %v7835, 64
  %v7851 = vpop.permute.xlu0 %7850
  %7852 = vrot.lane.b32.xlu0 %v7836, 64
  %v7853 = vpop.permute.xlu0 %7852
  %7854 = vrot.lane.b32.xlu0 %v7837, 64
  %v7855 = vpop.permute.xlu0 %7854
  %vm7856 = vcmask 523264
  %v7857 = vsel %vm7856, %v7845, %v7847
  %v7858 = vsel %vm7856, %v7849, %v7851
  %v7859 = vsel %vm7856, %v7853, %v7855
  %7866 = vst [vmem:[#allocation5 + $0x3c0] sm:$0xff] %v7857
  %7867 = vst.msk [vmem:[#allocation5 + $0x3c8] sm:$0xff] %vm2420, %v7847
  %7868 = vst [vmem:[#allocation5 + $0x3d0] sm:$0xff] %v7858
  %7869 = vst.msk [vmem:[#allocation5 + $0x3d8] sm:$0xff] %vm2420, %v7851
  %7870 = vst [vmem:[#allocation5 + $0x3e0] sm:$0xff] %v7859
  %7871 = vst.msk [vmem:[#allocation5 + $0x3e8] sm:$0xff] %vm2420, %v7855
  %v7872 = vld [vmem:[#allocation4] sm:$0xff]
  %v7873 = vld [vmem:[#allocation4 + $0x8] sm:$0xff]
  %v7874 = vld [vmem:[#allocation4 + $0x10] sm:$0xff]
  %v7875 = vld [vmem:[#allocation4 + $0x18] sm:$0xff]
  %v7876 = vld [vmem:[#allocation4 + $0x20] sm:$0xff]
  %v7877 = vld [vmem:[#allocation4 + $0x28] sm:$0xff]
  %7884 = vrot.lane.b32.xlu0 %v7872, 63
  %v7885 = vpop.permute.xlu0 %7884
  %7886 = vrot.lane.b32.xlu0 %v7873, 63
  %v7887 = vpop.permute.xlu0 %7886
  %7888 = vrot.lane.b32.xlu0 %v7874, 63
  %v7889 = vpop.permute.xlu0 %7888
  %7890 = vrot.lane.b32.xlu0 %v7875, 63
  %v7891 = vpop.permute.xlu0 %7890
  %7892 = vrot.lane.b32.xlu0 %v7876, 63
  %v7893 = vpop.permute.xlu0 %7892
  %7894 = vrot.lane.b32.xlu0 %v7877, 63
  %v7895 = vpop.permute.xlu0 %7894
  %vm7896 = vcmask 515072
  %v7897 = vsel %vm7896, %v7885, %v7887
  %v7898 = vsel %vm7896, %v7889, %v7891
  %v7899 = vsel %vm7896, %v7893, %v7895
  %7906 = vst [vmem:[#allocation5 + $0x3f0] sm:$0xff] %v7897
  %7907 = vst.msk [vmem:[#allocation5 + $0x3f8] sm:$0xff] %vm2420, %v7887
  %7908 = vst [vmem:[#allocation5 + $0x400] sm:$0xff] %v7898
  %7909 = vst.msk [vmem:[#allocation5 + $0x408] sm:$0xff] %vm2420, %v7891
  %7910 = vst [vmem:[#allocation5 + $0x410] sm:$0xff] %v7899
  %7911 = vst.msk [vmem:[#allocation5 + $0x418] sm:$0xff] %vm2420, %v7895
  %v7912 = vld [vmem:[#allocation4] sm:$0xff]
  %v7913 = vld [vmem:[#allocation4 + $0x8] sm:$0xff]
  %v7914 = vld [vmem:[#allocation4 + $0x10] sm:$0xff]
  %v7915 = vld [vmem:[#allocation4 + $0x18] sm:$0xff]
  %v7916 = vld [vmem:[#allocation4 + $0x20] sm:$0xff]
  %v7917 = vld [vmem:[#allocation4 + $0x28] sm:$0xff]
  %7924 = vrot.lane.b32.xlu0 %v7912, 62
  %v7925 = vpop.permute.xlu0 %7924
  %7926 = vrot.lane.b32.xlu0 %v7913, 62
  %v7927 = vpop.permute.xlu0 %7926
  %7928 = vrot.lane.b32.xlu0 %v7914, 62
  %v7929 = vpop.permute.xlu0 %7928
  %7930 = vrot.lane.b32.xlu0 %v7915, 62
  %v7931 = vpop.permute.xlu0 %7930
  %7932 = vrot.lane.b32.xlu0 %v7916, 62
  %v7933 = vpop.permute.xlu0 %7932
  %7934 = vrot.lane.b32.xlu0 %v7917, 62
  %v7935 = vpop.permute.xlu0 %7934
  %vm7936 = vcmask 506880
  %v7937 = vsel %vm7936, %v7925, %v7927
  %v7938 = vsel %vm7936, %v7929, %v7931
  %v7939 = vsel %vm7936, %v7933, %v7935
  %7946 = vst [vmem:[#allocation5 + $0x420] sm:$0xff] %v7937
  %7947 = vst.msk [vmem:[#allocation5 + $0x428] sm:$0xff] %vm2420, %v7927
  %7948 = vst [vmem:[#allocation5 + $0x430] sm:$0xff] %v7938
  %7949 = vst.msk [vmem:[#allocation5 + $0x438] sm:$0xff] %vm2420, %v7931
  %7950 = vst [vmem:[#allocation5 + $0x440] sm:$0xff] %v7939
  %7951 = vst.msk [vmem:[#allocation5 + $0x448] sm:$0xff] %vm2420, %v7935
  %v7952 = vld [vmem:[#allocation4] sm:$0xff]
  %v7953 = vld [vmem:[#allocation4 + $0x8] sm:$0xff]
  %v7954 = vld [vmem:[#allocation4 + $0x10] sm:$0xff]
  %v7955 = vld [vmem:[#allocation4 + $0x18] sm:$0xff]
  %v7956 = vld [vmem:[#allocation4 + $0x20] sm:$0xff]
  %v7957 = vld [vmem:[#allocation4 + $0x28] sm:$0xff]
  %7964 = vrot.lane.b32.xlu0 %v7952, 61
  %v7965 = vpop.permute.xlu0 %7964
  %7966 = vrot.lane.b32.xlu0 %v7953, 61
  %v7967 = vpop.permute.xlu0 %7966
  %7968 = vrot.lane.b32.xlu0 %v7954, 61
  %v7969 = vpop.permute.xlu0 %7968
  %7970 = vrot.lane.b32.xlu0 %v7955, 61
  %v7971 = vpop.permute.xlu0 %7970
  %7972 = vrot.lane.b32.xlu0 %v7956, 61
  %v7973 = vpop.permute.xlu0 %7972
  %7974 = vrot.lane.b32.xlu0 %v7957, 61
  %v7975 = vpop.permute.xlu0 %7974
  %vm7976 = vcmask 498688
  %v7977 = vsel %vm7976, %v7965, %v7967
  %v7978 = vsel %vm7976, %v7969, %v7971
  %v7979 = vsel %vm7976, %v7973, %v7975
  %7986 = vst [vmem:[#allocation5 + $0x450] sm:$0xff] %v7977
  %7987 = vst.msk [vmem:[#allocation5 + $0x458] sm:$0xff] %vm2420, %v7967
  %7988 = vst [vmem:[#allocation5 + $0x460] sm:$0xff] %v7978
  %7989 = vst.msk [vmem:[#allocation5 + $0x468] sm:$0xff] %vm2420, %v7971
  %7990 = vst [vmem:[#allocation5 + $0x470] sm:$0xff] %v7979
  %7991 = vst.msk [vmem:[#allocation5 + $0x478] sm:$0xff] %vm2420, %v7975
  %v7992 = vld [vmem:[#allocation4] sm:$0xff]
  %v7993 = vld [vmem:[#allocation4 + $0x8] sm:$0xff]
  %v7994 = vld [vmem:[#allocation4 + $0x10] sm:$0xff]
  %v7995 = vld [vmem:[#allocation4 + $0x18] sm:$0xff]
  %v7996 = vld [vmem:[#allocation4 + $0x20] sm:$0xff]
  %v7997 = vld [vmem:[#allocation4 + $0x28] sm:$0xff]
  %8004 = vrot.lane.b32.xlu0 %v7992, 60
  %v8005 = vpop.permute.xlu0 %8004
  %8006 = vrot.lane.b32.xlu0 %v7993, 60
  %v8007 = vpop.permute.xlu0 %8006
  %8008 = vrot.lane.b32.xlu0 %v7994, 60
  %v8009 = vpop.permute.xlu0 %8008
  %8010 = vrot.lane.b32.xlu0 %v7995, 60
  %v8011 = vpop.permute.xlu0 %8010
  %8012 = vrot.lane.b32.xlu0 %v7996, 60
  %v8013 = vpop.permute.xlu0 %8012
  %8014 = vrot.lane.b32.xlu0 %v7997, 60
  %v8015 = vpop.permute.xlu0 %8014
  %vm8016 = vcmask 490496
  %v8017 = vsel %vm8016, %v8005, %v8007
  %v8018 = vsel %vm8016, %v8009, %v8011
  %v8019 = vsel %vm8016, %v8013, %v8015
  %8026 = vst [vmem:[#allocation5 + $0x480] sm:$0xff] %v8017
  %8027 = vst.msk [vmem:[#allocation5 + $0x488] sm:$0xff] %vm2420, %v8007
  %8028 = vst [vmem:[#allocation5 + $0x490] sm:$0xff] %v8018
  %8029 = vst.msk [vmem:[#allocation5 + $0x498] sm:$0xff] %vm2420, %v8011
  %8030 = vst [vmem:[#allocation5 + $0x4a0] sm:$0xff] %v8019
  %8031 = vst.msk [vmem:[#allocation5 + $0x4a8] sm:$0xff] %vm2420, %v8015
  %v8032 = vld [vmem:[%s4] sm:$0xff]
  %v8033 = vld [vmem:[%s4 + $0x8] sm:$0xff]
  %v8034 = vld [vmem:[%s4 + $0x10] sm:$0xff]
  %v8035 = vld [vmem:[%s4 + $0x18] sm:$0xff]
  %v8036 = vld [vmem:[%s4 + $0x20] sm:$0xff]
  %v8037 = vld [vmem:[%s4 + $0x28] sm:$0xff]
  %v8038 = vld [vmem:[%s4 + $0x30] sm:$0xff]
  %v8039 = vld [vmem:[%s4 + $0x38] sm:$0xff]
  %v8040 = vld [vmem:[%s4 + $0x40] sm:$0xff]
  %v8041 = vld [vmem:[%s4 + $0x48] sm:$0xff]
  %v8042 = vld [vmem:[%s4 + $0x50] sm:$0xff]
  %v8043 = vld [vmem:[%s4 + $0x58] sm:$0xff]
  %v8044 = vld [vmem:[%s4 + $0x60] sm:$0xff]
  %v8045 = vld [vmem:[%s4 + $0x68] sm:$0xff]
  %v8046 = vld [vmem:[%s4 + $0x70] sm:$0xff]
  %v8047 = vld [vmem:[%s4 + $0x78] sm:$0xff]
  %v8048 = vld [vmem:[%s4 + $0x80] sm:$0xff]
  %v8049 = vld [vmem:[%s4 + $0x88] sm:$0xff]
  %v8050 = vld [vmem:[%s4 + $0x90] sm:$0xff]
  %v8051 = vld [vmem:[%s4 + $0x98] sm:$0xff]
  %v8052 = vld [vmem:[%s4 + $0xa0] sm:$0xff]
  %v8053 = vld [vmem:[%s4 + $0xa8] sm:$0xff]
  %v8054 = vld [vmem:[%s4 + $0xb0] sm:$0xff]
  %v8055 = vld [vmem:[%s4 + $0xb8] sm:$0xff]
  %v8056 = vld [vmem:[%s4 + $0xc0] sm:$0xff]
  %v8057 = vld [vmem:[%s4 + $0xc8] sm:$0xff]
  %v8058 = vld [vmem:[%s4 + $0xd0] sm:$0xff]
  %v8059 = vld [vmem:[%s4 + $0xd8] sm:$0xff]
  %v8060 = vld [vmem:[%s4 + $0xe0] sm:$0xff]
  %v8061 = vld [vmem:[%s4 + $0xe8] sm:$0xff]
  %v8062 = vld [vmem:[%s4 + $0xf0] sm:$0xff]
  %v8063 = vld [vmem:[%s4 + $0xf8] sm:$0xff]
  %v8064 = vld [vmem:[%s4 + $0x100] sm:$0xff]
  %v8065 = vld [vmem:[%s4 + $0x108] sm:$0xff]
  %v8066 = vld [vmem:[%s4 + $0x110] sm:$0xff]
  %v8067 = vld [vmem:[%s4 + $0x118] sm:$0xff]
  %v8068 = vld [vmem:[%s4 + $0x120] sm:$0xff]
  %v8069 = vld [vmem:[%s4 + $0x128] sm:$0xff]
  %v8070 = vld [vmem:[%s4 + $0x130] sm:$0xff]
  %v8071 = vld [vmem:[%s4 + $0x138] sm:$0xff]
  %v8072 = vld [vmem:[%s4 + $0x140] sm:$0xff]
  %v8073 = vld [vmem:[%s4 + $0x148] sm:$0xff]
  %v8074 = vld [vmem:[%s4 + $0x150] sm:$0xff]
  %v8075 = vld [vmem:[%s4 + $0x158] sm:$0xff]
  %v8076 = vld [vmem:[%s4 + $0x160] sm:$0xff]
  %v8077 = vld [vmem:[%s4 + $0x168] sm:$0xff]
  %v8078 = vld [vmem:[%s4 + $0x170] sm:$0xff]
  %v8079 = vld [vmem:[%s4 + $0x178] sm:$0xff]
  %v8080 = vld [vmem:[%s4 + $0x180] sm:$0xff]
  %v8081 = vld [vmem:[%s4 + $0x188] sm:$0xff]
  %v8082 = vld [vmem:[%s4 + $0x190] sm:$0xff]
  %v8083 = vld [vmem:[%s4 + $0x198] sm:$0xff]
  %v8084 = vld [vmem:[%s4 + $0x1a0] sm:$0xff]
  %v8085 = vld [vmem:[%s4 + $0x1a8] sm:$0xff]
  %v8086 = vld [vmem:[%s4 + $0x1b0] sm:$0xff]
  %v8087 = vld [vmem:[%s4 + $0x1b8] sm:$0xff]
  %v8088 = vld [vmem:[%s4 + $0x1c0] sm:$0xff]
  %v8089 = vld [vmem:[%s4 + $0x1c8] sm:$0xff]
  %v8090 = vld [vmem:[%s4 + $0x1d0] sm:$0xff]
  %v8091 = vld [vmem:[%s4 + $0x1d8] sm:$0xff]
  %v8092 = vld [vmem:[%s4 + $0x1e0] sm:$0xff]
  %v8093 = vld [vmem:[%s4 + $0x1e8] sm:$0xff]
  %v8094 = vld [vmem:[%s4 + $0x1f0] sm:$0xff]
  %v8095 = vld [vmem:[%s4 + $0x1f8] sm:$0xff]
  %v8096 = vld [vmem:[%s4 + $0x200] sm:$0xff]
  %v8097 = vld [vmem:[%s4 + $0x208] sm:$0xff]
  %v8098 = vld [vmem:[%s4 + $0x210] sm:$0xff]
  %v8099 = vld [vmem:[%s4 + $0x218] sm:$0xff]
  %v8100 = vld [vmem:[%s4 + $0x220] sm:$0xff]
  %v8101 = vld [vmem:[%s4 + $0x228] sm:$0xff]
  %v8102 = vld [vmem:[%s4 + $0x230] sm:$0xff]
  %v8103 = vld [vmem:[%s4 + $0x238] sm:$0xff]
  %v8104 = vld [vmem:[%s4 + $0x240] sm:$0xff]
  %v8105 = vld [vmem:[%s4 + $0x248] sm:$0xff]
  %v8106 = vld [vmem:[%s4 + $0x250] sm:$0xff]
  %v8107 = vld [vmem:[%s4 + $0x258] sm:$0xff]
  %v8108 = vld [vmem:[%s4 + $0x260] sm:$0xff]
  %v8109 = vld [vmem:[%s4 + $0x268] sm:$0xff]
  %v8110 = vld [vmem:[%s4 + $0x270] sm:$0xff]
  %v8111 = vld [vmem:[%s4 + $0x278] sm:$0xff]
  %v8112 = vld [vmem:[#allocation5] sm:$0xff]
  %v8113 = vld [vmem:[#allocation5 + $0x8] sm:$0xff]
  %v8114 = vld [vmem:[#allocation5 + $0x10] sm:$0xff]
  %v8115 = vld [vmem:[#allocation5 + $0x18] sm:$0xff]
  %v8116 = vld [vmem:[#allocation5 + $0x20] sm:$0xff]
  %v8117 = vld [vmem:[#allocation5 + $0x28] sm:$0xff]
  %v8118 = vld [vmem:[#allocation5 + $0x30] sm:$0xff]
  %v8119 = vld [vmem:[#allocation5 + $0x38] sm:$0xff]
  %v8120 = vld [vmem:[#allocation5 + $0x40] sm:$0xff]
  %v8121 = vld [vmem:[#allocation5 + $0x48] sm:$0xff]
  %v8122 = vld [vmem:[#allocation5 + $0x50] sm:$0xff]
  %v8123 = vld [vmem:[#allocation5 + $0x58] sm:$0xff]
  %v8124 = vld [vmem:[#allocation5 + $0x60] sm:$0xff]
  %v8125 = vld [vmem:[#allocation5 + $0x68] sm:$0xff]
  %v8126 = vld [vmem:[#allocation5 + $0x70] sm:$0xff]
  %v8127 = vld [vmem:[#allocation5 + $0x78] sm:$0xff]
  %v8128 = vld [vmem:[#allocation5 + $0x80] sm:$0xff]
  %v8129 = vld [vmem:[#allocation5 + $0x88] sm:$0xff]
  %v8130 = vld [vmem:[#allocation5 + $0x90] sm:$0xff]
  %v8131 = vld [vmem:[#allocation5 + $0x98] sm:$0xff]
  %v8132 = vld [vmem:[#allocation5 + $0xa0] sm:$0xff]
  %v8133 = vld [vmem:[#allocation5 + $0xa8] sm:$0xff]
  %v8134 = vld [vmem:[#allocation5 + $0xb0] sm:$0xff]
  %v8135 = vld [vmem:[#allocation5 + $0xb8] sm:$0xff]
  %v8136 = vld [vmem:[#allocation5 + $0xc0] sm:$0xff]
  %v8137 = vld [vmem:[#allocation5 + $0xc8] sm:$0xff]
  %v8138 = vld [vmem:[#allocation5 + $0xd0] sm:$0xff]
  %v8139 = vld [vmem:[#allocation5 + $0xd8] sm:$0xff]
  %v8140 = vld [vmem:[#allocation5 + $0xe0] sm:$0xff]
  %v8141 = vld [vmem:[#allocation5 + $0xe8] sm:$0xff]
  %v8142 = vld [vmem:[#allocation5 + $0xf0] sm:$0xff]
  %v8143 = vld [vmem:[#allocation5 + $0xf8] sm:$0xff]
  %v8144 = vld [vmem:[#allocation5 + $0x100] sm:$0xff]
  %v8145 = vld [vmem:[#allocation5 + $0x108] sm:$0xff]
  %v8146 = vld [vmem:[#allocation5 + $0x110] sm:$0xff]
  %v8147 = vld [vmem:[#allocation5 + $0x118] sm:$0xff]
  %v8148 = vld [vmem:[#allocation5 + $0x120] sm:$0xff]
  %v8149 = vld [vmem:[#allocation5 + $0x128] sm:$0xff]
  %v8150 = vld [vmem:[#allocation5 + $0x130] sm:$0xff]
  %v8151 = vld [vmem:[#allocation5 + $0x138] sm:$0xff]
  %v8152 = vld [vmem:[#allocation5 + $0x140] sm:$0xff]
  %v8153 = vld [vmem:[#allocation5 + $0x148] sm:$0xff]
  %v8154 = vld [vmem:[#allocation5 + $0x150] sm:$0xff]
  %v8155 = vld [vmem:[#allocation5 + $0x158] sm:$0xff]
  %v8156 = vld [vmem:[#allocation5 + $0x160] sm:$0xff]
  %v8157 = vld [vmem:[#allocation5 + $0x168] sm:$0xff]
  %v8158 = vld [vmem:[#allocation5 + $0x170] sm:$0xff]
  %v8159 = vld [vmem:[#allocation5 + $0x178] sm:$0xff]
  %v8160 = vld [vmem:[#allocation5 + $0x180] sm:$0xff]
  %v8161 = vld [vmem:[#allocation5 + $0x188] sm:$0xff]
  %v8162 = vld [vmem:[#allocation5 + $0x190] sm:$0xff]
  %v8163 = vld [vmem:[#allocation5 + $0x198] sm:$0xff]
  %v8164 = vld [vmem:[#allocation5 + $0x1a0] sm:$0xff]
  %v8165 = vld [vmem:[#allocation5 + $0x1a8] sm:$0xff]
  %v8166 = vld [vmem:[#allocation5 + $0x1b0] sm:$0xff]
  %v8167 = vld [vmem:[#allocation5 + $0x1b8] sm:$0xff]
  %v8168 = vld [vmem:[#allocation5 + $0x1c0] sm:$0xff]
  %v8169 = vld [vmem:[#allocation5 + $0x1c8] sm:$0xff]
  %v8170 = vld [vmem:[#allocation5 + $0x1d0] sm:$0xff]
  %v8171 = vld [vmem:[#allocation5 + $0x1d8] sm:$0xff]
  %v8172 = vld [vmem:[#allocation5 + $0x1e0] sm:$0xff]
  %v8173 = vld [vmem:[#allocation5 + $0x1e8] sm:$0xff]
  %v8174 = vld [vmem:[#allocation5 + $0x1f0] sm:$0xff]
  %v8175 = vld [vmem:[#allocation5 + $0x1f8] sm:$0xff]
  %v8176 = vld [vmem:[#allocation5 + $0x200] sm:$0xff]
  %v8177 = vld [vmem:[#allocation5 + $0x208] sm:$0xff]
  %v8178 = vld [vmem:[#allocation5 + $0x210] sm:$0xff]
  %v8179 = vld [vmem:[#allocation5 + $0x218] sm:$0xff]
  %v8180 = vld [vmem:[#allocation5 + $0x220] sm:$0xff]
  %v8181 = vld [vmem:[#allocation5 + $0x228] sm:$0xff]
  %v8182 = vld [vmem:[#allocation5 + $0x230] sm:$0xff]
  %v8183 = vld [vmem:[#allocation5 + $0x238] sm:$0xff]
  %v8184 = vld [vmem:[#allocation5 + $0x240] sm:$0xff]
  %v8185 = vld [vmem:[#allocation5 + $0x248] sm:$0xff]
  %v8186 = vld [vmem:[#allocation5 + $0x250] sm:$0xff]
  %v8187 = vld [vmem:[#allocation5 + $0x258] sm:$0xff]
  %v8188 = vld [vmem:[#allocation5 + $0x260] sm:$0xff]
  %v8189 = vld [vmem:[#allocation5 + $0x268] sm:$0xff]
  %v8190 = vld [vmem:[#allocation5 + $0x270] sm:$0xff]
  %v8191 = vld [vmem:[#allocation5 + $0x278] sm:$0xff]
  %v8192 = vld [vmem:[#allocation5 + $0x280] sm:$0xff]
  %v8193 = vld [vmem:[#allocation5 + $0x288] sm:$0xff]
  %v8194 = vld [vmem:[#allocation5 + $0x290] sm:$0xff]
  %v8195 = vld [vmem:[#allocation5 + $0x298] sm:$0xff]
  %v8196 = vld [vmem:[#allocation5 + $0x2a0] sm:$0xff]
  %v8197 = vld [vmem:[#allocation5 + $0x2a8] sm:$0xff]
  %v8198 = vld [vmem:[#allocation5 + $0x2b0] sm:$0xff]
  %v8199 = vld [vmem:[#allocation5 + $0x2b8] sm:$0xff]
  %v8200 = vld [vmem:[#allocation5 + $0x2c0] sm:$0xff]
  %v8201 = vld [vmem:[#allocation5 + $0x2c8] sm:$0xff]
  %v8202 = vld [vmem:[#allocation5 + $0x2d0] sm:$0xff]
  %v8203 = vld [vmem:[#allocation5 + $0x2d8] sm:$0xff]
  %v8204 = vld [vmem:[#allocation5 + $0x2e0] sm:$0xff]
  %v8205 = vld [vmem:[#allocation5 + $0x2e8] sm:$0xff]
  %v8206 = vld [vmem:[#allocation5 + $0x2f0] sm:$0xff]
  %v8207 = vld [vmem:[#allocation5 + $0x2f8] sm:$0xff]
  %v8208 = vld [vmem:[#allocation5 + $0x300] sm:$0xff]
  %v8209 = vld [vmem:[#allocation5 + $0x308] sm:$0xff]
  %v8210 = vld [vmem:[#allocation5 + $0x310] sm:$0xff]
  %v8211 = vld [vmem:[#allocation5 + $0x318] sm:$0xff]
  %v8212 = vld [vmem:[#allocation5 + $0x320] sm:$0xff]
  %v8213 = vld [vmem:[#allocation5 + $0x328] sm:$0xff]
  %v8214 = vld [vmem:[#allocation5 + $0x330] sm:$0xff]
  %v8215 = vld [vmem:[#allocation5 + $0x338] sm:$0xff]
  %v8216 = vld [vmem:[#allocation5 + $0x340] sm:$0xff]
  %v8217 = vld [vmem:[#allocation5 + $0x348] sm:$0xff]
  %v8218 = vld [vmem:[#allocation5 + $0x350] sm:$0xff]
  %v8219 = vld [vmem:[#allocation5 + $0x358] sm:$0xff]
  %v8220 = vld [vmem:[#allocation5 + $0x360] sm:$0xff]
  %v8221 = vld [vmem:[#allocation5 + $0x368] sm:$0xff]
  %v8222 = vld [vmem:[#allocation5 + $0x370] sm:$0xff]
  %v8223 = vld [vmem:[#allocation5 + $0x378] sm:$0xff]
  %v8224 = vld [vmem:[#allocation5 + $0x380] sm:$0xff]
  %v8225 = vld [vmem:[#allocation5 + $0x388] sm:$0xff]
  %v8226 = vld [vmem:[#allocation5 + $0x390] sm:$0xff]
  %v8227 = vld [vmem:[#allocation5 + $0x398] sm:$0xff]
  %v8228 = vld [vmem:[#allocation5 + $0x3a0] sm:$0xff]
  %v8229 = vld [vmem:[#allocation5 + $0x3a8] sm:$0xff]
  %v8230 = vld [vmem:[#allocation5 + $0x3b0] sm:$0xff]
  %v8231 = vld [vmem:[#allocation5 + $0x3b8] sm:$0xff]
  %v8232 = vld [vmem:[#allocation5 + $0x3c0] sm:$0xff]
  %v8233 = vld [vmem:[#allocation5 + $0x3c8] sm:$0xff]
  %v8234 = vld [vmem:[#allocation5 + $0x3d0] sm:$0xff]
  %v8235 = vld [vmem:[#allocation5 + $0x3d8] sm:$0xff]
  %v8236 = vld [vmem:[#allocation5 + $0x3e0] sm:$0xff]
  %v8237 = vld [vmem:[#allocation5 + $0x3e8] sm:$0xff]
  %v8238 = vld [vmem:[#allocation5 + $0x3f0] sm:$0xff]
  %v8239 = vld [vmem:[#allocation5 + $0x3f8] sm:$0xff]
  %v8240 = vld [vmem:[#allocation5 + $0x400] sm:$0xff]
  %v8241 = vld [vmem:[#allocation5 + $0x408] sm:$0xff]
  %v8242 = vld [vmem:[#allocation5 + $0x410] sm:$0xff]
  %v8243 = vld [vmem:[#allocation5 + $0x418] sm:$0xff]
  %v8244 = vld [vmem:[#allocation5 + $0x420] sm:$0xff]
  %v8245 = vld [vmem:[#allocation5 + $0x428] sm:$0xff]
  %v8246 = vld [vmem:[#allocation5 + $0x430] sm:$0xff]
  %v8247 = vld [vmem:[#allocation5 + $0x438] sm:$0xff]
  %v8248 = vld [vmem:[#allocation5 + $0x440] sm:$0xff]
  %v8249 = vld [vmem:[#allocation5 + $0x448] sm:$0xff]
  %v8250 = vld [vmem:[#allocation5 + $0x450] sm:$0xff]
  %v8251 = vld [vmem:[#allocation5 + $0x458] sm:$0xff]
  %v8252 = vld [vmem:[#allocation5 + $0x460] sm:$0xff]
  %v8253 = vld [vmem:[#allocation5 + $0x468] sm:$0xff]
  %v8254 = vld [vmem:[#allocation5 + $0x470] sm:$0xff]
  %v8255 = vld [vmem:[#allocation5 + $0x478] sm:$0xff]
  %v8256 = vld [vmem:[#allocation5 + $0x480] sm:$0xff]
  %v8257 = vld [vmem:[#allocation5 + $0x488] sm:$0xff]
  %v8258 = vld [vmem:[#allocation5 + $0x490] sm:$0xff]
  %v8259 = vld [vmem:[#allocation5 + $0x498] sm:$0xff]
  %v8260 = vld [vmem:[#allocation5 + $0x4a0] sm:$0xff]
  %v8261 = vld [vmem:[#allocation5 + $0x4a8] sm:$0xff]
  %v8262 = vld [vmem:[%s5] sm:$0xff]
  %v8263 = vld [vmem:[%s5 + $0x8] sm:$0xff]
  %v8264 = vld [vmem:[%s5 + $0x10] sm:$0xff]
  %v8265 = vld [vmem:[%s5 + $0x18] sm:$0xff]
  %v8266 = vld [vmem:[%s5 + $0x20] sm:$0xff]
  %v8267 = vld [vmem:[%s5 + $0x28] sm:$0xff]
  %v8268 = vld [vmem:[%s5 + $0x30] sm:$0xff]
  %v8269 = vld [vmem:[%s5 + $0x38] sm:$0xff]
  %v8270 = vld [vmem:[%s5 + $0x40] sm:$0xff]
  %v8271 = vld [vmem:[%s5 + $0x48] sm:$0xff]
  %v8272 = vld [vmem:[%s5 + $0x50] sm:$0xff]
  %v8273 = vld [vmem:[%s5 + $0x58] sm:$0xff]
  %v8274 = vld [vmem:[%s5 + $0x60] sm:$0xff]
  %v8275 = vld [vmem:[%s5 + $0x68] sm:$0xff]
  %v8276 = vld [vmem:[%s5 + $0x70] sm:$0xff]
  %v8277 = vld [vmem:[%s5 + $0x78] sm:$0xff]
  %8279 = vset.pattern.permute.xlu0 0
  %8280 = vperm.xlu0 %8279, %v8262
  %v8281 = vpop.permute.xlu0 %8280
  %8284 = vset.pattern.permute.xlu0 0
  %8285 = vperm.xlu0 %8284, %v8263
  %v8286 = vpop.permute.xlu0 %8285
  %8289 = vset.pattern.permute.xlu0 0
  %8290 = vperm.xlu0 %8289, %v8264
  %v8291 = vpop.permute.xlu0 %8290
  %8294 = vset.pattern.permute.xlu0 0
  %8295 = vperm.xlu0 %8294, %v8265
  %v8296 = vpop.permute.xlu0 %8295
  %8299 = vset.pattern.permute.xlu0 0
  %8300 = vperm.xlu0 %8299, %v8266
  %v8301 = vpop.permute.xlu0 %8300
  %8304 = vset.pattern.permute.xlu0 0
  %8305 = vperm.xlu0 %8304, %v8267
  %v8306 = vpop.permute.xlu0 %8305
  %8309 = vset.pattern.permute.xlu0 0
  %8310 = vperm.xlu0 %8309, %v8268
  %v8311 = vpop.permute.xlu0 %8310
  %8314 = vset.pattern.permute.xlu0 0
  %8315 = vperm.xlu0 %8314, %v8269
  %v8316 = vpop.permute.xlu0 %8315
  %8319 = vset.pattern.permute.xlu0 0
  %8320 = vperm.xlu0 %8319, %v8270
  %v8321 = vpop.permute.xlu0 %8320
  %8324 = vset.pattern.permute.xlu0 0
  %8325 = vperm.xlu0 %8324, %v8271
  %v8326 = vpop.permute.xlu0 %8325
  %8329 = vset.pattern.permute.xlu0 0
  %8330 = vperm.xlu0 %8329, %v8272
  %v8331 = vpop.permute.xlu0 %8330
  %8334 = vset.pattern.permute.xlu0 0
  %8335 = vperm.xlu0 %8334, %v8273
  %v8336 = vpop.permute.xlu0 %8335
  %8339 = vset.pattern.permute.xlu0 0
  %8340 = vperm.xlu0 %8339, %v8274
  %v8341 = vpop.permute.xlu0 %8340
  %8344 = vset.pattern.permute.xlu0 0
  %8345 = vperm.xlu0 %8344, %v8275
  %v8346 = vpop.permute.xlu0 %8345
  %8349 = vset.pattern.permute.xlu0 0
  %8350 = vperm.xlu0 %8349, %v8276
  %v8351 = vpop.permute.xlu0 %8350
  %8354 = vset.pattern.permute.xlu0 0
  %8355 = vperm.xlu0 %8354, %v8277
  %v8356 = vpop.permute.xlu0 %8355
  %v8438 = vunpack.c.l.b16 %v8032
  %v8439 = vunpack.c.h.b16 %v8032
  %v8440 = vunpack.c.l.b16 %v8033
  %v8441 = vunpack.c.h.b16 %v8033
  %v8442 = vunpack.c.l.b16 %v8034
  %v8443 = vunpack.c.h.b16 %v8034
  %v8444 = vunpack.c.l.b16 %v8035
  %v8445 = vunpack.c.h.b16 %v8035
  %v8446 = vunpack.c.l.b16 %v8036
  %v8447 = vunpack.c.h.b16 %v8036
  %v8448 = vunpack.c.l.b16 %v8037
  %v8449 = vunpack.c.h.b16 %v8037
  %v8450 = vunpack.c.l.b16 %v8038
  %v8451 = vunpack.c.h.b16 %v8038
  %v8452 = vunpack.c.l.b16 %v8039
  %v8453 = vunpack.c.h.b16 %v8039
  %v8454 = vunpack.c.l.b16 %v8040
  %v8455 = vunpack.c.h.b16 %v8040
  %v8456 = vunpack.c.l.b16 %v8041
  %v8457 = vunpack.c.h.b16 %v8041
  %v8458 = vunpack.c.l.b16 %v8042
  %v8459 = vunpack.c.h.b16 %v8042
  %v8460 = vunpack.c.l.b16 %v8043
  %v8461 = vunpack.c.h.b16 %v8043
  %v8462 = vunpack.c.l.b16 %v8044
  %v8463 = vunpack.c.h.b16 %v8044
  %v8464 = vunpack.c.l.b16 %v8045
  %v8465 = vunpack.c.h.b16 %v8045
  %v8466 = vunpack.c.l.b16 %v8046
  %v8467 = vunpack.c.h.b16 %v8046
  %v8468 = vunpack.c.l.b16 %v8047
  %v8469 = vunpack.c.h.b16 %v8047
  %v8470 = vunpack.c.l.b16 %v8048
  %v8471 = vunpack.c.h.b16 %v8048
  %v8472 = vunpack.c.l.b16 %v8049
  %v8473 = vunpack.c.h.b16 %v8049
  %v8474 = vunpack.c.l.b16 %v8050
  %v8475 = vunpack.c.h.b16 %v8050
  %v8476 = vunpack.c.l.b16 %v8051
  %v8477 = vunpack.c.h.b16 %v8051
  %v8478 = vunpack.c.l.b16 %v8052
  %v8479 = vunpack.c.h.b16 %v8052
  %v8480 = vunpack.c.l.b16 %v8053
  %v8481 = vunpack.c.h.b16 %v8053
  %v8482 = vunpack.c.l.b16 %v8054
  %v8483 = vunpack.c.h.b16 %v8054
  %v8484 = vunpack.c.l.b16 %v8055
  %v8485 = vunpack.c.h.b16 %v8055
  %v8486 = vunpack.c.l.b16 %v8056
  %v8487 = vunpack.c.h.b16 %v8056
  %v8488 = vunpack.c.l.b16 %v8057
  %v8489 = vunpack.c.h.b16 %v8057
  %v8490 = vunpack.c.l.b16 %v8058
  %v8491 = vunpack.c.h.b16 %v8058
  %v8492 = vunpack.c.l.b16 %v8059
  %v8493 = vunpack.c.h.b16 %v8059
  %v8494 = vunpack.c.l.b16 %v8060
  %v8495 = vunpack.c.h.b16 %v8060
  %v8496 = vunpack.c.l.b16 %v8061
  %v8497 = vunpack.c.h.b16 %v8061
  %v8498 = vunpack.c.l.b16 %v8062
  %v8499 = vunpack.c.h.b16 %v8062
  %v8500 = vunpack.c.l.b16 %v8063
  %v8501 = vunpack.c.h.b16 %v8063
  %v8502 = vunpack.c.l.b16 %v8064
  %v8503 = vunpack.c.h.b16 %v8064
  %v8504 = vunpack.c.l.b16 %v8065
  %v8505 = vunpack.c.h.b16 %v8065
  %v8506 = vunpack.c.l.b16 %v8066
  %v8507 = vunpack.c.h.b16 %v8066
  %v8508 = vunpack.c.l.b16 %v8067
  %v8509 = vunpack.c.h.b16 %v8067
  %v8510 = vunpack.c.l.b16 %v8068
  %v8511 = vunpack.c.h.b16 %v8068
  %v8512 = vunpack.c.l.b16 %v8069
  %v8513 = vunpack.c.h.b16 %v8069
  %v8514 = vunpack.c.l.b16 %v8070
  %v8515 = vunpack.c.h.b16 %v8070
  %v8516 = vunpack.c.l.b16 %v8071
  %v8517 = vunpack.c.h.b16 %v8071
  %v8518 = vunpack.c.l.b16 %v8072
  %v8519 = vunpack.c.h.b16 %v8072
  %v8520 = vunpack.c.l.b16 %v8073
  %v8521 = vunpack.c.h.b16 %v8073
  %v8522 = vunpack.c.l.b16 %v8074
  %v8523 = vunpack.c.h.b16 %v8074
  %v8524 = vunpack.c.l.b16 %v8075
  %v8525 = vunpack.c.h.b16 %v8075
  %v8526 = vunpack.c.l.b16 %v8076
  %v8527 = vunpack.c.h.b16 %v8076
  %v8528 = vunpack.c.l.b16 %v8077
  %v8529 = vunpack.c.h.b16 %v8077
  %v8530 = vunpack.c.l.b16 %v8078
  %v8531 = vunpack.c.h.b16 %v8078
  %v8532 = vunpack.c.l.b16 %v8079
  %v8533 = vunpack.c.h.b16 %v8079
  %v8534 = vunpack.c.l.b16 %v8080
  %v8535 = vunpack.c.h.b16 %v8080
  %v8536 = vunpack.c.l.b16 %v8081
  %v8537 = vunpack.c.h.b16 %v8081
  %v8538 = vunpack.c.l.b16 %v8082
  %v8539 = vunpack.c.h.b16 %v8082
  %v8540 = vunpack.c.l.b16 %v8083
  %v8541 = vunpack.c.h.b16 %v8083
  %v8542 = vunpack.c.l.b16 %v8084
  %v8543 = vunpack.c.h.b16 %v8084
  %v8544 = vunpack.c.l.b16 %v8085
  %v8545 = vunpack.c.h.b16 %v8085
  %v8546 = vunpack.c.l.b16 %v8086
  %v8547 = vunpack.c.h.b16 %v8086
  %v8548 = vunpack.c.l.b16 %v8087
  %v8549 = vunpack.c.h.b16 %v8087
  %v8550 = vunpack.c.l.b16 %v8088
  %v8551 = vunpack.c.h.b16 %v8088
  %v8552 = vunpack.c.l.b16 %v8089
  %v8553 = vunpack.c.h.b16 %v8089
  %v8554 = vunpack.c.l.b16 %v8090
  %v8555 = vunpack.c.h.b16 %v8090
  %v8556 = vunpack.c.l.b16 %v8091
  %v8557 = vunpack.c.h.b16 %v8091
  %v8558 = vunpack.c.l.b16 %v8092
  %v8559 = vunpack.c.h.b16 %v8092
  %v8560 = vunpack.c.l.b16 %v8093
  %v8561 = vunpack.c.h.b16 %v8093
  %v8562 = vunpack.c.l.b16 %v8094
  %v8563 = vunpack.c.h.b16 %v8094
  %v8564 = vunpack.c.l.b16 %v8095
  %v8565 = vunpack.c.h.b16 %v8095
  %v8566 = vunpack.c.l.b16 %v8096
  %v8567 = vunpack.c.h.b16 %v8096
  %v8568 = vunpack.c.l.b16 %v8097
  %v8569 = vunpack.c.h.b16 %v8097
  %v8570 = vunpack.c.l.b16 %v8098
  %v8571 = vunpack.c.h.b16 %v8098
  %v8572 = vunpack.c.l.b16 %v8099
  %v8573 = vunpack.c.h.b16 %v8099
  %v8574 = vunpack.c.l.b16 %v8100
  %v8575 = vunpack.c.h.b16 %v8100
  %v8576 = vunpack.c.l.b16 %v8101
  %v8577 = vunpack.c.h.b16 %v8101
  %v8578 = vunpack.c.l.b16 %v8102
  %v8579 = vunpack.c.h.b16 %v8102
  %v8580 = vunpack.c.l.b16 %v8103
  %v8581 = vunpack.c.h.b16 %v8103
  %v8582 = vunpack.c.l.b16 %v8104
  %v8583 = vunpack.c.h.b16 %v8104
  %v8584 = vunpack.c.l.b16 %v8105
  %v8585 = vunpack.c.h.b16 %v8105
  %v8586 = vunpack.c.l.b16 %v8106
  %v8587 = vunpack.c.h.b16 %v8106
  %v8588 = vunpack.c.l.b16 %v8107
  %v8589 = vunpack.c.h.b16 %v8107
  %v8590 = vunpack.c.l.b16 %v8108
  %v8591 = vunpack.c.h.b16 %v8108
  %v8592 = vunpack.c.l.b16 %v8109
  %v8593 = vunpack.c.h.b16 %v8109
  %v8594 = vunpack.c.l.b16 %v8110
  %v8595 = vunpack.c.h.b16 %v8110
  %v8596 = vunpack.c.l.b16 %v8111
  %v8597 = vunpack.c.h.b16 %v8111
  %v8598 = vpack.c.b16 %v8448, %v8438
  %v8599 = vpack.c.b16 %v8449, %v8439
  %v8600 = vpack.c.b16 %v8450, %v8440
  %v8601 = vpack.c.b16 %v8451, %v8441
  %v8602 = vpack.c.b16 %v8452, %v8442
  %v8603 = vpack.c.b16 %v8453, %v8443
  %v8604 = vpack.c.b16 %v8454, %v8444
  %v8605 = vpack.c.b16 %v8455, %v8445
  %v8606 = vpack.c.b16 %v8456, %v8446
  %v8607 = vpack.c.b16 %v8457, %v8447
  %v8608 = vpack.c.b16 %v8468, %v8458
  %v8609 = vpack.c.b16 %v8469, %v8459
  %v8610 = vpack.c.b16 %v8470, %v8460
  %v8611 = vpack.c.b16 %v8471, %v8461
  %v8612 = vpack.c.b16 %v8472, %v8462
  %v8613 = vpack.c.b16 %v8473, %v8463
  %v8614 = vpack.c.b16 %v8474, %v8464
  %v8615 = vpack.c.b16 %v8475, %v8465
  %v8616 = vpack.c.b16 %v8476, %v8466
  %v8617 = vpack.c.b16 %v8477, %v8467
  %v8618 = vpack.c.b16 %v8488, %v8478
  %v8619 = vpack.c.b16 %v8489, %v8479
  %v8620 = vpack.c.b16 %v8490, %v8480
  %v8621 = vpack.c.b16 %v8491, %v8481
  %v8622 = vpack.c.b16 %v8492, %v8482
  %v8623 = vpack.c.b16 %v8493, %v8483
  %v8624 = vpack.c.b16 %v8494, %v8484
  %v8625 = vpack.c.b16 %v8495, %v8485
  %v8626 = vpack.c.b16 %v8496, %v8486
  %v8627 = vpack.c.b16 %v8497, %v8487
  %v8628 = vpack.c.b16 %v8508, %v8498
  %v8629 = vpack.c.b16 %v8509, %v8499
  %v8630 = vpack.c.b16 %v8510, %v8500
  %v8631 = vpack.c.b16 %v8511, %v8501
  %v8632 = vpack.c.b16 %v8512, %v8502
  %v8633 = vpack.c.b16 %v8513, %v8503
  %v8634 = vpack.c.b16 %v8514, %v8504
  %v8635 = vpack.c.b16 %v8515, %v8505
  %v8636 = vpack.c.b16 %v8516, %v8506
  %v8637 = vpack.c.b16 %v8517, %v8507
  %v8638 = vpack.c.b16 %v8528, %v8518
  %v8639 = vpack.c.b16 %v8529, %v8519
  %v8640 = vpack.c.b16 %v8530, %v8520
  %v8641 = vpack.c.b16 %v8531, %v8521
  %v8642 = vpack.c.b16 %v8532, %v8522
  %v8643 = vpack.c.b16 %v8533, %v8523
  %v8644 = vpack.c.b16 %v8534, %v8524
  %v8645 = vpack.c.b16 %v8535, %v8525
  %v8646 = vpack.c.b16 %v8536, %v8526
  %v8647 = vpack.c.b16 %v8537, %v8527
  %v8648 = vpack.c.b16 %v8548, %v8538
  %v8649 = vpack.c.b16 %v8549, %v8539
  %v8650 = vpack.c.b16 %v8550, %v8540
  %v8651 = vpack.c.b16 %v8551, %v8541
  %v8652 = vpack.c.b16 %v8552, %v8542
  %v8653 = vpack.c.b16 %v8553, %v8543
  %v8654 = vpack.c.b16 %v8554, %v8544
  %v8655 = vpack.c.b16 %v8555, %v8545
  %v8656 = vpack.c.b16 %v8556, %v8546
  %v8657 = vpack.c.b16 %v8557, %v8547
  %v8658 = vpack.c.b16 %v8568, %v8558
  %v8659 = vpack.c.b16 %v8569, %v8559
  %v8660 = vpack.c.b16 %v8570, %v8560
  %v8661 = vpack.c.b16 %v8571, %v8561
  %v8662 = vpack.c.b16 %v8572, %v8562
  %v8663 = vpack.c.b16 %v8573, %v8563
  %v8664 = vpack.c.b16 %v8574, %v8564
  %v8665 = vpack.c.b16 %v8575, %v8565
  %v8666 = vpack.c.b16 %v8576, %v8566
  %v8667 = vpack.c.b16 %v8577, %v8567
  %v8668 = vpack.c.b16 %v8588, %v8578
  %v8669 = vpack.c.b16 %v8589, %v8579
  %v8670 = vpack.c.b16 %v8590, %v8580
  %v8671 = vpack.c.b16 %v8591, %v8581
  %v8672 = vpack.c.b16 %v8592, %v8582
  %v8673 = vpack.c.b16 %v8593, %v8583
  %v8674 = vpack.c.b16 %v8594, %v8584
  %v8675 = vpack.c.b16 %v8595, %v8585
  %v8676 = vpack.c.b16 %v8596, %v8586
  %v8677 = vpack.c.b16 %v8597, %v8587
  %vm8750 = vcmask 392192
  %v8752 = vsel %vm8750, %v8607, 0
  %v8755 = vsel %vm8750, %v8617, 0
  %v8758 = vsel %vm8750, %v8627, 0
  %v8761 = vsel %vm8750, %v8637, 0
  %v8764 = vsel %vm8750, %v8647, 0
  %v8767 = vsel %vm8750, %v8657, 0
  %v8770 = vsel %vm8750, %v8667, 0
  %v8773 = vsel %vm8750, %v8677, 0
  %8775 = vmatprep.subr.bf16.mxu0 %v8113
  %8776 = vmatpush1.bf16.msra.mxu0 %v8112
  %8777 = vmatprep.subr.bf16.mxu0 %v8115
  %8778 = vmatpush1.bf16.msra.mxu0 %v8114
  %8779 = vmatprep.subr.bf16.mxu0 %v8117
  %8780 = vmatpush1.bf16.msra.mxu0 %v8116
  %8781 = vmatprep.subr.bf16.mxu0 %v8119
  %8782 = vmatpush1.bf16.msra.mxu0 %v8118
  %8783 = vmatprep.subr.bf16.mxu0 %v8121
  %8784 = vmatpush1.bf16.msra.mxu0 %v8120
  %8785 = vmatprep.subr.bf16.mxu0 %v8123
  %8786 = vmatpush1.bf16.msra.mxu0 %v8122
  %8787 = vmatprep.subr.bf16.mxu0 %v8125
  %8788 = vmatpush1.bf16.msra.mxu0 %v8124
  %8789 = vmatprep.subr.bf16.mxu0 %v8127
  %8790 = vmatpush1.bf16.msra.mxu0 %v8126
  %8791 = vmatprep.subr.bf16.mxu0 %v8129
  %8792 = vmatpush1.bf16.msra.mxu0 %v8128
  %8793 = vmatprep.subr.bf16.mxu0 %v8131
  %8794 = vmatpush1.bf16.msra.mxu0 %v8130
  %8795 = vmatprep.subr.bf16.mxu0 %v8133
  %8796 = vmatpush1.bf16.msra.mxu0 %v8132
  %8797 = vmatprep.subr.bf16.mxu0 %v8135
  %8798 = vmatpush1.bf16.msra.mxu0 %v8134
  %8799 = vmatprep.subr.bf16.mxu0 %v8137
  %8800 = vmatpush1.bf16.msra.mxu0 %v8136
  %8801 = vmatprep.subr.bf16.mxu0 %v8139
  %8802 = vmatpush1.bf16.msra.mxu0 %v8138
  %8803 = vmatprep.subr.bf16.mxu0 %v8141
  %8804 = vmatpush1.bf16.msra.mxu0 %v8140
  %8805 = vmatprep.subr.bf16.mxu0 %v8143
  %8806 = vmatpush1.bf16.msra.mxu0 %v8142
  %8807 = vmatprep.mubr.bf16.mxu0 %v8599
  %8808 = vmatmul.mubr.bf16.gmra.mrb[0].mxu0 %v8598
  %v8809 = vpop.f32.mrb[0].mxu0
  %v8810 = vadd.f32 %v8281, %v8809
  %v8811 = vpop.f32.mrb[0].mxu0
  %v8812 = vadd.f32 %v8281, %v8811
  %v8813 = vpop.f32.mrb[0].mxu0
  %v8814 = vadd.f32 %v8286, %v8813
  %v8815 = vpop.f32.mrb[0].mxu0
  %v8816 = vadd.f32 %v8286, %v8815
  %8817 = vmatprep.mubr.bf16.mxu0 %v8609
  %8818 = vmatmul.mubr.bf16.gmra.mrb[0].mxu0 %v8608
  %v8819 = vpop.f32.mrb[0].mxu0
  %v8820 = vadd.f32 %v8291, %v8819
  %v8821 = vpop.f32.mrb[0].mxu0
  %v8822 = vadd.f32 %v8291, %v8821
  %v8823 = vpop.f32.mrb[0].mxu0
  %v8824 = vadd.f32 %v8296, %v8823
  %v8825 = vpop.f32.mrb[0].mxu0
  %v8826 = vadd.f32 %v8296, %v8825
  %8827 = vmatprep.mubr.bf16.mxu0 %v8619
  %8828 = vmatmul.mubr.bf16.gmra.mrb[0].mxu0 %v8618
  %v8829 = vpop.f32.mrb[0].mxu0
  %v8830 = vadd.f32 %v8301, %v8829
  %v8831 = vpop.f32.mrb[0].mxu0
  %v8832 = vadd.f32 %v8301, %v8831
  %v8833 = vpop.f32.mrb[0].mxu0
  %v8834 = vadd.f32 %v8306, %v8833
  %v8835 = vpop.f32.mrb[0].mxu0
  %v8836 = vadd.f32 %v8306, %v8835
  %8837 = vmatprep.mubr.bf16.mxu0 %v8629
  %8838 = vmatmul.mubr.bf16.gmra.mrb[0].mxu0 %v8628
  %v8839 = vpop.f32.mrb[0].mxu0
  %v8840 = vadd.f32 %v8311, %v8839
  %v8841 = vpop.f32.mrb[0].mxu0
  %v8842 = vadd.f32 %v8311, %v8841
  %v8843 = vpop.f32.mrb[0].mxu0
  %v8844 = vadd.f32 %v8316, %v8843
  %v8845 = vpop.f32.mrb[0].mxu0
  %v8846 = vadd.f32 %v8316, %v8845
  %8847 = vmatprep.mubr.bf16.mxu0 %v8639
  %8848 = vmatmul.mubr.bf16.gmra.mrb[0].mxu0 %v8638
  %v8849 = vpop.f32.mrb[0].mxu0
  %v8850 = vadd.f32 %v8321, %v8849
  %v8851 = vpop.f32.mrb[0].mxu0
  %v8852 = vadd.f32 %v8321, %v8851
  %v8853 = vpop.f32.mrb[0].mxu0
  %v8854 = vadd.f32 %v8326, %v8853
  %v8855 = vpop.f32.mrb[0].mxu0
  %v8856 = vadd.f32 %v8326, %v8855
  %8857 = vmatprep.mubr.bf16.mxu0 %v8649
  %8858 = vmatmul.mubr.bf16.gmra.mrb[0].mxu0 %v8648
  %v8859 = vpop.f32.mrb[0].mxu0
  %v8860 = vadd.f32 %v8331, %v8859
  %v8861 = vpop.f32.mrb[0].mxu0
  %v8862 = vadd.f32 %v8331, %v8861
  %v8863 = vpop.f32.mrb[0].mxu0
  %v8864 = vadd.f32 %v8336, %v8863
  %v8865 = vpop.f32.mrb[0].mxu0
  %v8866 = vadd.f32 %v8336, %v8865
  %8867 = vmatprep.mubr.bf16.mxu0 %v8659
  %8868 = vmatmul.mubr.bf16.gmra.mrb[0].mxu0 %v8658
  %v8869 = vpop.f32.mrb[0].mxu0
  %v8870 = vadd.f32 %v8341, %v8869
  %v8871 = vpop.f32.mrb[0].mxu0
  %v8872 = vadd.f32 %v8341, %v8871
  %v8873 = vpop.f32.mrb[0].mxu0
  %v8874 = vadd.f32 %v8346, %v8873
  %v8875 = vpop.f32.mrb[0].mxu0
  %v8876 = vadd.f32 %v8346, %v8875
  %8877 = vmatprep.mubr.bf16.mxu0 %v8669
  %8878 = vmatmul.mubr.bf16.gmra.mrb[0].mxu0 %v8668
  %v8879 = vpop.f32.mrb[0].mxu0
  %v8880 = vadd.f32 %v8351, %v8879
  %v8881 = vpop.f32.mrb[0].mxu0
  %v8882 = vadd.f32 %v8351, %v8881
  %v8883 = vpop.f32.mrb[0].mxu0
  %v8884 = vadd.f32 %v8356, %v8883
  %v8885 = vpop.f32.mrb[0].mxu0
  %v8886 = vadd.f32 %v8356, %v8885
  %8887 = vdwg.mxu0
  %8888 = vmatprep.subr.bf16.mxu0 %v8145
  %8889 = vmatpush1.bf16.msra.mxu0 %v8144
  %8890 = vmatprep.subr.bf16.mxu0 %v8147
  %8891 = vmatpush1.bf16.msra.mxu0 %v8146
  %8892 = vmatprep.subr.bf16.mxu0 %v8149
  %8893 = vmatpush1.bf16.msra.mxu0 %v8148
  %8894 = vmatprep.subr.bf16.mxu0 %v8151
  %8895 = vmatpush1.bf16.msra.mxu0 %v8150
  %8896 = vmatprep.subr.bf16.mxu0 %v8153
  %8897 = vmatpush1.bf16.msra.mxu0 %v8152
  %8898 = vmatprep.subr.bf16.mxu0 %v8155
  %8899 = vmatpush1.bf16.msra.mxu0 %v8154
  %8900 = vmatprep.subr.bf16.mxu0 %v8157
  %8901 = vmatpush1.bf16.msra.mxu0 %v8156
  %8902 = vmatprep.subr.bf16.mxu0 %v8159
  %8903 = vmatpush1.bf16.msra.mxu0 %v8158
  %8904 = vmatprep.subr.bf16.mxu0 %v8161
  %8905 = vmatpush1.bf16.msra.mxu0 %v8160
  %8906 = vmatprep.subr.bf16.mxu0 %v8163
  %8907 = vmatpush1.bf16.msra.mxu0 %v8162
  %8908 = vmatprep.subr.bf16.mxu0 %v8165
  %8909 = vmatpush1.bf16.msra.mxu0 %v8164
  %8910 = vmatprep.subr.bf16.mxu0 %v8167
  %8911 = vmatpush1.bf16.msra.mxu0 %v8166
  %8912 = vmatprep.subr.bf16.mxu0 %v8169
  %8913 = vmatpush1.bf16.msra.mxu0 %v8168
  %8914 = vmatprep.subr.bf16.mxu0 %v8171
  %8915 = vmatpush1.bf16.msra.mxu0 %v8170
  %8916 = vmatprep.subr.bf16.mxu0 %v8173
  %8917 = vmatpush1.bf16.msra.mxu0 %v8172
  %8918 = vmatprep.subr.bf16.mxu0 %v8175
  %8919 = vmatpush1.bf16.msra.mxu0 %v8174
  %8920 = vmatprep.mubr.bf16.mxu0 %v8601
  %8921 = vmatmul.mubr.bf16.gmra.mrb[0].mxu0 %v8600
  %v8922 = vpop.f32.mrb[0].mxu0
  %v8923 = vadd.f32 %v8810, %v8922
  %v8924 = vpop.f32.mrb[0].mxu0
  %v8925 = vadd.f32 %v8812, %v8924
  %v8926 = vpop.f32.mrb[0].mxu0
  %v8927 = vadd.f32 %v8814, %v8926
  %v8928 = vpop.f32.mrb[0].mxu0
  %v8929 = vadd.f32 %v8816, %v8928
  %8930 = vmatprep.mubr.bf16.mxu0 %v8611
  %8931 = vmatmul.mubr.bf16.gmra.mrb[0].mxu0 %v8610
  %v8932 = vpop.f32.mrb[0].mxu0
  %v8933 = vadd.f32 %v8820, %v8932
  %v8934 = vpop.f32.mrb[0].mxu0
  %v8935 = vadd.f32 %v8822, %v8934
  %v8936 = vpop.f32.mrb[0].mxu0
  %v8937 = vadd.f32 %v8824, %v8936
  %v8938 = vpop.f32.mrb[0].mxu0
  %v8939 = vadd.f32 %v8826, %v8938
  %8940 = vmatprep.mubr.bf16.mxu0 %v8621
  %8941 = vmatmul.mubr.bf16.gmra.mrb[0].mxu0 %v8620
  %v8942 = vpop.f32.mrb[0].mxu0
  %v8943 = vadd.f32 %v8830, %v8942
  %v8944 = vpop.f32.mrb[0].mxu0
  %v8945 = vadd.f32 %v8832, %v8944
  %v8946 = vpop.f32.mrb[0].mxu0
  %v8947 = vadd.f32 %v8834, %v8946
  %v8948 = vpop.f32.mrb[0].mxu0
  %v8949 = vadd.f32 %v8836, %v8948
  %8950 = vmatprep.mubr.bf16.mxu0 %v8631
  %8951 = vmatmul.mubr.bf16.gmra.mrb[0].mxu0 %v8630
  %v8952 = vpop.f32.mrb[0].mxu0
  %v8953 = vadd.f32 %v8840, %v8952
  %v8954 = vpop.f32.mrb[0].mxu0
  %v8955 = vadd.f32 %v8842, %v8954
  %v8956 = vpop.f32.mrb[0].mxu0
  %v8957 = vadd.f32 %v8844, %v8956
  %v8958 = vpop.f32.mrb[0].mxu0
  %v8959 = vadd.f32 %v8846, %v8958
  %8960 = vmatprep.mubr.bf16.mxu0 %v8641
  %8961 = vmatmul.mubr.bf16.gmra.mrb[0].mxu0 %v8640
  %v8962 = vpop.f32.mrb[0].mxu0
  %v8963 = vadd.f32 %v8850, %v8962
  %v8964 = vpop.f32.mrb[0].mxu0
  %v8965 = vadd.f32 %v8852, %v8964
  %v8966 = vpop.f32.mrb[0].mxu0
  %v8967 = vadd.f32 %v8854, %v8966
  %v8968 = vpop.f32.mrb[0].mxu0
  %v8969 = vadd.f32 %v8856, %v8968
  %8970 = vmatprep.mubr.bf16.mxu0 %v8651
  %8971 = vmatmul.mubr.bf16.gmra.mrb[0].mxu0 %v8650
  %v8972 = vpop.f32.mrb[0].mxu0
  %v8973 = vadd.f32 %v8860, %v8972
  %v8974 = vpop.f32.mrb[0].mxu0
  %v8975 = vadd.f32 %v8862, %v8974
  %v8976 = vpop.f32.mrb[0].mxu0
  %v8977 = vadd.f32 %v8864, %v8976
  %v8978 = vpop.f32.mrb[0].mxu0
  %v8979 = vadd.f32 %v8866, %v8978
  %8980 = vmatprep.mubr.bf16.mxu0 %v8661
  %8981 = vmatmul.mubr.bf16.gmra.mrb[0].mxu0 %v8660
  %v8982 = vpop.f32.mrb[0].mxu0
  %v8983 = vadd.f32 %v8870, %v8982
  %v8984 = vpop.f32.mrb[0].mxu0
  %v8985 = vadd.f32 %v8872, %v8984
  %v8986 = vpop.f32.mrb[0].mxu0
  %v8987 = vadd.f32 %v8874, %v8986
  %v8988 = vpop.f32.mrb[0].mxu0
  %v8989 = vadd.f32 %v8876, %v8988
  %8990 = vmatprep.mubr.bf16.mxu0 %v8671
  %8991 = vmatmul.mubr.bf16.gmra.mrb[0].mxu0 %v8670
  %v8992 = vpop.f32.mrb[0].mxu0
  %v8993 = vadd.f32 %v8880, %v8992
  %v8994 = vpop.f32.mrb[0].mxu0
  %v8995 = vadd.f32 %v8882, %v8994
  %v8996 = vpop.f32.mrb[0].mxu0
  %v8997 = vadd.f32 %v8884, %v8996
  %v8998 = vpop.f32.mrb[0].mxu0
  %v8999 = vadd.f32 %v8886, %v8998
  %9000 = vdwg.mxu0
  %9001 = vmatprep.subr.bf16.mxu0 %v8177
  %9002 = vmatpush1.bf16.msra.mxu0 %v8176
  %9003 = vmatprep.subr.bf16.mxu0 %v8179
  %9004 = vmatpush1.bf16.msra.mxu0 %v8178
  %9005 = vmatprep.subr.bf16.mxu0 %v8181
  %9006 = vmatpush1.bf16.msra.mxu0 %v8180
  %9007 = vmatprep.subr.bf16.mxu0 %v8183
  %9008 = vmatpush1.bf16.msra.mxu0 %v8182
  %9009 = vmatprep.subr.bf16.mxu0 %v8185
  %9010 = vmatpush1.bf16.msra.mxu0 %v8184
  %9011 = vmatprep.subr.bf16.mxu0 %v8187
  %9012 = vmatpush1.bf16.msra.mxu0 %v8186
  %9013 = vmatprep.subr.bf16.mxu0 %v8189
  %9014 = vmatpush1.bf16.msra.mxu0 %v8188
  %9015 = vmatprep.subr.bf16.mxu0 %v8191
  %9016 = vmatpush1.bf16.msra.mxu0 %v8190
  %9017 = vmatprep.subr.bf16.mxu0 %v8193
  %9018 = vmatpush1.bf16.msra.mxu0 %v8192
  %9019 = vmatprep.subr.bf16.mxu0 %v8195
  %9020 = vmatpush1.bf16.msra.mxu0 %v8194
  %9021 = vmatprep.subr.bf16.mxu0 %v8197
  %9022 = vmatpush1.bf16.msra.mxu0 %v8196
  %9023 = vmatprep.subr.bf16.mxu0 %v8199
  %9024 = vmatpush1.bf16.msra.mxu0 %v8198
  %9025 = vmatprep.subr.bf16.mxu0 %v8201
  %9026 = vmatpush1.bf16.msra.mxu0 %v8200
  %9027 = vmatprep.subr.bf16.mxu0 %v8203
  %9028 = vmatpush1.bf16.msra.mxu0 %v8202
  %9029 = vmatprep.subr.bf16.mxu0 %v8205
  %9030 = vmatpush1.bf16.msra.mxu0 %v8204
  %9031 = vmatprep.subr.bf16.mxu0 %v8207
  %9032 = vmatpush1.bf16.msra.mxu0 %v8206
  %9033 = vmatprep.mubr.bf16.mxu0 %v8603
  %9034 = vmatmul.mubr.bf16.gmra.mrb[0].mxu0 %v8602
  %v9035 = vpop.f32.mrb[0].mxu0
  %v9036 = vadd.f32 %v8923, %v9035
  %v9037 = vpop.f32.mrb[0].mxu0
  %v9038 = vadd.f32 %v8925, %v9037
  %v9039 = vpop.f32.mrb[0].mxu0
  %v9040 = vadd.f32 %v8927, %v9039
  %v9041 = vpop.f32.mrb[0].mxu0
  %v9042 = vadd.f32 %v8929, %v9041
  %9043 = vmatprep.mubr.bf16.mxu0 %v8613
  %9044 = vmatmul.mubr.bf16.gmra.mrb[0].mxu0 %v8612
  %v9045 = vpop.f32.mrb[0].mxu0
  %v9046 = vadd.f32 %v8933, %v9045
  %v9047 = vpop.f32.mrb[0].mxu0
  %v9048 = vadd.f32 %v8935, %v9047
  %v9049 = vpop.f32.mrb[0].mxu0
  %v9050 = vadd.f32 %v8937, %v9049
  %v9051 = vpop.f32.mrb[0].mxu0
  %v9052 = vadd.f32 %v8939, %v9051
  %9053 = vmatprep.mubr.bf16.mxu0 %v8623
  %9054 = vmatmul.mubr.bf16.gmra.mrb[0].mxu0 %v8622
  %v9055 = vpop.f32.mrb[0].mxu0
  %v9056 = vadd.f32 %v8943, %v9055
  %v9057 = vpop.f32.mrb[0].mxu0
  %v9058 = vadd.f32 %v8945, %v9057
  %v9059 = vpop.f32.mrb[0].mxu0
  %v9060 = vadd.f32 %v8947, %v9059
  %v9061 = vpop.f32.mrb[0].mxu0
  %v9062 = vadd.f32 %v8949, %v9061
  %9063 = vmatprep.mubr.bf16.mxu0 %v8633
  %9064 = vmatmul.mubr.bf16.gmra.mrb[0].mxu0 %v8632
  %v9065 = vpop.f32.mrb[0].mxu0
  %v9066 = vadd.f32 %v8953, %v9065
  %v9067 = vpop.f32.mrb[0].mxu0
  %v9068 = vadd.f32 %v8955, %v9067
  %v9069 = vpop.f32.mrb[0].mxu0
  %v9070 = vadd.f32 %v8957, %v9069
  %v9071 = vpop.f32.mrb[0].mxu0
  %v9072 = vadd.f32 %v8959, %v9071
  %9073 = vmatprep.mubr.bf16.mxu0 %v8643
  %9074 = vmatmul.mubr.bf16.gmra.mrb[0].mxu0 %v8642
  %v9075 = vpop.f32.mrb[0].mxu0
  %v9076 = vadd.f32 %v8963, %v9075
  %v9077 = vpop.f32.mrb[0].mxu0
  %v9078 = vadd.f32 %v8965, %v9077
  %v9079 = vpop.f32.mrb[0].mxu0
  %v9080 = vadd.f32 %v8967, %v9079
  %v9081 = vpop.f32.mrb[0].mxu0
  %v9082 = vadd.f32 %v8969, %v9081
  %9083 = vmatprep.mubr.bf16.mxu0 %v8653
  %9084 = vmatmul.mubr.bf16.gmra.mrb[0].mxu0 %v8652
  %v9085 = vpop.f32.mrb[0].mxu0
  %v9086 = vadd.f32 %v8973, %v9085
  %v9087 = vpop.f32.mrb[0].mxu0
  %v9088 = vadd.f32 %v8975, %v9087
  %v9089 = vpop.f32.mrb[0].mxu0
  %v9090 = vadd.f32 %v8977, %v9089
  %v9091 = vpop.f32.mrb[0].mxu0
  %v9092 = vadd.f32 %v8979, %v9091
  %9093 = vmatprep.mubr.bf16.mxu0 %v8663
  %9094 = vmatmul.mubr.bf16.gmra.mrb[0].mxu0 %v8662
  %v9095 = vpop.f32.mrb[0].mxu0
  %v9096 = vadd.f32 %v8983, %v9095
  %v9097 = vpop.f32.mrb[0].mxu0
  %v9098 = vadd.f32 %v8985, %v9097
  %v9099 = vpop.f32.mrb[0].mxu0
  %v9100 = vadd.f32 %v8987, %v9099
  %v9101 = vpop.f32.mrb[0].mxu0
  %v9102 = vadd.f32 %v8989, %v9101
  %9103 = vmatprep.mubr.bf16.mxu0 %v8673
  %9104 = vmatmul.mubr.bf16.gmra.mrb[0].mxu0 %v8672
  %v9105 = vpop.f32.mrb[0].mxu0
  %v9106 = vadd.f32 %v8993, %v9105
  %v9107 = vpop.f32.mrb[0].mxu0
  %v9108 = vadd.f32 %v8995, %v9107
  %v9109 = vpop.f32.mrb[0].mxu0
  %v9110 = vadd.f32 %v8997, %v9109
  %v9111 = vpop.f32.mrb[0].mxu0
  %v9112 = vadd.f32 %v8999, %v9111
  %9113 = vdwg.mxu0
  %9114 = vmatprep.subr.bf16.mxu0 %v8209
  %9115 = vmatpush1.bf16.msra.mxu0 %v8208
  %9116 = vmatprep.subr.bf16.mxu0 %v8211
  %9117 = vmatpush1.bf16.msra.mxu0 %v8210
  %9118 = vmatprep.subr.bf16.mxu0 %v8213
  %9119 = vmatpush1.bf16.msra.mxu0 %v8212
  %9120 = vmatprep.subr.bf16.mxu0 %v8215
  %9121 = vmatpush1.bf16.msra.mxu0 %v8214
  %9122 = vmatprep.subr.bf16.mxu0 %v8217
  %9123 = vmatpush1.bf16.msra.mxu0 %v8216
  %9124 = vmatprep.subr.bf16.mxu0 %v8219
  %9125 = vmatpush1.bf16.msra.mxu0 %v8218
  %9126 = vmatprep.subr.bf16.mxu0 %v8221
  %9127 = vmatpush1.bf16.msra.mxu0 %v8220
  %9128 = vmatprep.subr.bf16.mxu0 %v8223
  %9129 = vmatpush1.bf16.msra.mxu0 %v8222
  %9130 = vmatprep.subr.bf16.mxu0 %v8225
  %9131 = vmatpush1.bf16.msra.mxu0 %v8224
  %9132 = vmatprep.subr.bf16.mxu0 %v8227
  %9133 = vmatpush1.bf16.msra.mxu0 %v8226
  %9134 = vmatprep.subr.bf16.mxu0 %v8229
  %9135 = vmatpush1.bf16.msra.mxu0 %v8228
  %9136 = vmatprep.subr.bf16.mxu0 %v8231
  %9137 = vmatpush1.bf16.msra.mxu0 %v8230
  %9138 = vmatprep.subr.bf16.mxu0 %v8233
  %9139 = vmatpush1.bf16.msra.mxu0 %v8232
  %9140 = vmatprep.subr.bf16.mxu0 %v8235
  %9141 = vmatpush1.bf16.msra.mxu0 %v8234
  %9142 = vmatprep.subr.bf16.mxu0 %v8237
  %9143 = vmatpush1.bf16.msra.mxu0 %v8236
  %9144 = vmatprep.subr.bf16.mxu0 %v8239
  %9145 = vmatpush1.bf16.msra.mxu0 %v8238
  %9146 = vmatprep.mubr.bf16.mxu0 %v8605
  %9147 = vmatmul.mubr.bf16.gmra.mrb[0].mxu0 %v8604
  %v9148 = vpop.f32.mrb[0].mxu0
  %v9149 = vadd.f32 %v9036, %v9148
  %v9150 = vpop.f32.mrb[0].mxu0
  %v9151 = vadd.f32 %v9038, %v9150
  %v9152 = vpop.f32.mrb[0].mxu0
  %v9153 = vadd.f32 %v9040, %v9152
  %v9154 = vpop.f32.mrb[0].mxu0
  %v9155 = vadd.f32 %v9042, %v9154
  %9156 = vmatprep.mubr.bf16.mxu0 %v8615
  %9157 = vmatmul.mubr.bf16.gmra.mrb[0].mxu0 %v8614
  %v9158 = vpop.f32.mrb[0].mxu0
  %v9159 = vadd.f32 %v9046, %v9158
  %v9160 = vpop.f32.mrb[0].mxu0
  %v9161 = vadd.f32 %v9048, %v9160
  %v9162 = vpop.f32.mrb[0].mxu0
  %v9163 = vadd.f32 %v9050, %v9162
  %v9164 = vpop.f32.mrb[0].mxu0
  %v9165 = vadd.f32 %v9052, %v9164
  %9166 = vmatprep.mubr.bf16.mxu0 %v8625
  %9167 = vmatmul.mubr.bf16.gmra.mrb[0].mxu0 %v8624
  %v9168 = vpop.f32.mrb[0].mxu0
  %v9169 = vadd.f32 %v9056, %v9168
  %v9170 = vpop.f32.mrb[0].mxu0
  %v9171 = vadd.f32 %v9058, %v9170
  %v9172 = vpop.f32.mrb[0].mxu0
  %v9173 = vadd.f32 %v9060, %v9172
  %v9174 = vpop.f32.mrb[0].mxu0
  %v9175 = vadd.f32 %v9062, %v9174
  %9176 = vmatprep.mubr.bf16.mxu0 %v8635
  %9177 = vmatmul.mubr.bf16.gmra.mrb[0].mxu0 %v8634
  %v9178 = vpop.f32.mrb[0].mxu0
  %v9179 = vadd.f32 %v9066, %v9178
  %v9180 = vpop.f32.mrb[0].mxu0
  %v9181 = vadd.f32 %v9068, %v9180
  %v9182 = vpop.f32.mrb[0].mxu0
  %v9183 = vadd.f32 %v9070, %v9182
  %v9184 = vpop.f32.mrb[0].mxu0
  %v9185 = vadd.f32 %v9072, %v9184
  %9186 = vmatprep.mubr.bf16.mxu0 %v8645
  %9187 = vmatmul.mubr.bf16.gmra.mrb[0].mxu0 %v8644
  %v9188 = vpop.f32.mrb[0].mxu0
  %v9189 = vadd.f32 %v9076, %v9188
  %v9190 = vpop.f32.mrb[0].mxu0
  %v9191 = vadd.f32 %v9078, %v9190
  %v9192 = vpop.f32.mrb[0].mxu0
  %v9193 = vadd.f32 %v9080, %v9192
  %v9194 = vpop.f32.mrb[0].mxu0
  %v9195 = vadd.f32 %v9082, %v9194
  %9196 = vmatprep.mubr.bf16.mxu0 %v8655
  %9197 = vmatmul.mubr.bf16.gmra.mrb[0].mxu0 %v8654
  %v9198 = vpop.f32.mrb[0].mxu0
  %v9199 = vadd.f32 %v9086, %v9198
  %v9200 = vpop.f32.mrb[0].mxu0
  %v9201 = vadd.f32 %v9088, %v9200
  %v9202 = vpop.f32.mrb[0].mxu0
  %v9203 = vadd.f32 %v9090, %v9202
  %v9204 = vpop.f32.mrb[0].mxu0
  %v9205 = vadd.f32 %v9092, %v9204
  %9206 = vmatprep.mubr.bf16.mxu0 %v8665
  %9207 = vmatmul.mubr.bf16.gmra.mrb[0].mxu0 %v8664
  %v9208 = vpop.f32.mrb[0].mxu0
  %v9209 = vadd.f32 %v9096, %v9208
  %v9210 = vpop.f32.mrb[0].mxu0
  %v9211 = vadd.f32 %v9098, %v9210
  %v9212 = vpop.f32.mrb[0].mxu0
  %v9213 = vadd.f32 %v9100, %v9212
  %v9214 = vpop.f32.mrb[0].mxu0
  %v9215 = vadd.f32 %v9102, %v9214
  %9216 = vmatprep.mubr.bf16.mxu0 %v8675
  %9217 = vmatmul.mubr.bf16.gmra.mrb[0].mxu0 %v8674
  %v9218 = vpop.f32.mrb[0].mxu0
  %v9219 = vadd.f32 %v9106, %v9218
  %v9220 = vpop.f32.mrb[0].mxu0
  %v9221 = vadd.f32 %v9108, %v9220
  %v9222 = vpop.f32.mrb[0].mxu0
  %v9223 = vadd.f32 %v9110, %v9222
  %v9224 = vpop.f32.mrb[0].mxu0
  %v9225 = vadd.f32 %v9112, %v9224
  %9226 = vdwg.mxu0
  %9227 = vmatprep.subr.bf16.mxu0 %v8241
  %9228 = vmatpush1.bf16.msra.mxu0 %v8240
  %9229 = vmatprep.subr.bf16.mxu0 %v8243
  %9230 = vmatpush1.bf16.msra.mxu0 %v8242
  %9231 = vmatprep.subr.bf16.mxu0 %v8245
  %9232 = vmatpush1.bf16.msra.mxu0 %v8244
  %9233 = vmatprep.subr.bf16.mxu0 %v8247
  %9234 = vmatpush1.bf16.msra.mxu0 %v8246
  %9235 = vmatprep.subr.bf16.mxu0 %v8249
  %9236 = vmatpush1.bf16.msra.mxu0 %v8248
  %9237 = vmatprep.subr.bf16.mxu0 %v8251
  %9238 = vmatpush1.bf16.msra.mxu0 %v8250
  %9239 = vmatprep.subr.bf16.mxu0 %v8253
  %9240 = vmatpush1.bf16.msra.mxu0 %v8252
  %9241 = vmatprep.subr.bf16.mxu0 %v8255
  %9242 = vmatpush1.bf16.msra.mxu0 %v8254
  %9243 = vmatprep.subr.bf16.mxu0 %v8257
  %9244 = vmatpush1.bf16.msra.mxu0 %v8256
  %9245 = vmatprep.subr.bf16.mxu0 %v8259
  %9246 = vmatpush1.bf16.msra.mxu0 %v8258
  %9247 = vmatprep.subr.bf16.mxu0 %v8261
  %9248 = vmatpush1.bf16.msra.mxu0 %v8260
  %9249 = vmatprep.subr.bf16.mxu0 0
  %9250 = vmatpush1.bf16.msra.mxu0 0
  %9251 = vmatprep.subr.bf16.mxu0 0
  %9252 = vmatpush1.bf16.msra.mxu0 0
  %9253 = vmatprep.subr.bf16.mxu0 0
  %9254 = vmatpush1.bf16.msra.mxu0 0
  %9255 = vmatprep.subr.bf16.mxu0 0
  %9256 = vmatpush1.bf16.msra.mxu0 0
  %9257 = vmatprep.subr.bf16.mxu0 0
  %9258 = vmatpush1.bf16.msra.mxu0 0
  %9259 = vmatprep.mubr.bf16.mxu0 %v8752
  %9260 = vmatmul.mubr.bf16.gmra.mrb[0].mxu0 %v8606
  %v9261 = vpop.f32.mrb[0].mxu0
  %v9262 = vadd.f32 %v9149, %v9261
  %v9263 = vpop.f32.mrb[0].mxu0
  %v9264 = vadd.f32 %v9151, %v9263
  %v9265 = vpop.f32.mrb[0].mxu0
  %v9266 = vadd.f32 %v9153, %v9265
  %v9267 = vpop.f32.mrb[0].mxu0
  %v9268 = vadd.f32 %v9155, %v9267
  %9269 = vmatprep.mubr.bf16.mxu0 %v8755
  %9270 = vmatmul.mubr.bf16.gmra.mrb[0].mxu0 %v8616
  %v9271 = vpop.f32.mrb[0].mxu0
  %v9272 = vadd.f32 %v9159, %v9271
  %v9273 = vpop.f32.mrb[0].mxu0
  %v9274 = vadd.f32 %v9161, %v9273
  %v9275 = vpop.f32.mrb[0].mxu0
  %v9276 = vadd.f32 %v9163, %v9275
  %v9277 = vpop.f32.mrb[0].mxu0
  %v9278 = vadd.f32 %v9165, %v9277
  %9279 = vmatprep.mubr.bf16.mxu0 %v8758
  %9280 = vmatmul.mubr.bf16.gmra.mrb[0].mxu0 %v8626
  %v9281 = vpop.f32.mrb[0].mxu0
  %v9282 = vadd.f32 %v9169, %v9281
  %v9283 = vpop.f32.mrb[0].mxu0
  %v9284 = vadd.f32 %v9171, %v9283
  %v9285 = vpop.f32.mrb[0].mxu0
  %v9286 = vadd.f32 %v9173, %v9285
  %v9287 = vpop.f32.mrb[0].mxu0
  %v9288 = vadd.f32 %v9175, %v9287
  %9289 = vmatprep.mubr.bf16.mxu0 %v8761
  %9290 = vmatmul.mubr.bf16.gmra.mrb[0].mxu0 %v8636
  %v9291 = vpop.f32.mrb[0].mxu0
  %v9292 = vadd.f32 %v9179, %v9291
  %v9293 = vpop.f32.mrb[0].mxu0
  %v9294 = vadd.f32 %v9181, %v9293
  %v9295 = vpop.f32.mrb[0].mxu0
  %v9296 = vadd.f32 %v9183, %v9295
  %v9297 = vpop.f32.mrb[0].mxu0
  %v9298 = vadd.f32 %v9185, %v9297
  %9299 = vmatprep.mubr.bf16.mxu0 %v8764
  %9300 = vmatmul.mubr.bf16.gmra.mrb[0].mxu0 %v8646
  %v9301 = vpop.f32.mrb[0].mxu0
  %v9302 = vadd.f32 %v9189, %v9301
  %v9303 = vpop.f32.mrb[0].mxu0
  %v9304 = vadd.f32 %v9191, %v9303
  %v9305 = vpop.f32.mrb[0].mxu0
  %v9306 = vadd.f32 %v9193, %v9305
  %v9307 = vpop.f32.mrb[0].mxu0
  %v9308 = vadd.f32 %v9195, %v9307
  %9309 = vmatprep.mubr.bf16.mxu0 %v8767
  %9310 = vmatmul.mubr.bf16.gmra.mrb[0].mxu0 %v8656
  %v9311 = vpop.f32.mrb[0].mxu0
  %v9312 = vadd.f32 %v9199, %v9311
  %v9313 = vpop.f32.mrb[0].mxu0
  %v9314 = vadd.f32 %v9201, %v9313
  %v9315 = vpop.f32.mrb[0].mxu0
  %v9316 = vadd.f32 %v9203, %v9315
  %v9317 = vpop.f32.mrb[0].mxu0
  %v9318 = vadd.f32 %v9205, %v9317
  %9319 = vmatprep.mubr.bf16.mxu0 %v8770
  %9320 = vmatmul.mubr.bf16.gmra.mrb[0].mxu0 %v8666
  %v9321 = vpop.f32.mrb[0].mxu0
  %v9322 = vadd.f32 %v9209, %v9321
  %v9323 = vpop.f32.mrb[0].mxu0
  %v9324 = vadd.f32 %v9211, %v9323
  %v9325 = vpop.f32.mrb[0].mxu0
  %v9326 = vadd.f32 %v9213, %v9325
  %v9327 = vpop.f32.mrb[0].mxu0
  %v9328 = vadd.f32 %v9215, %v9327
  %9329 = vmatprep.mubr.bf16.mxu0 %v8773
  %9330 = vmatmul.mubr.bf16.gmra.mrb[0].mxu0 %v8676
  %v9331 = vpop.f32.mrb[0].mxu0
  %v9332 = vadd.f32 %v9219, %v9331
  %v9333 = vpop.f32.mrb[0].mxu0
  %v9334 = vadd.f32 %v9221, %v9333
  %v9335 = vpop.f32.mrb[0].mxu0
  %v9336 = vadd.f32 %v9223, %v9335
  %v9337 = vpop.f32.mrb[0].mxu0
  %v9338 = vadd.f32 %v9225, %v9337
  %9339 = vdwg.mxu0
  %v9340 = vmax.f32 %v9262, 0.0
  %v9341 = vmax.f32 %v9264, 0.0
  %v9342 = vmax.f32 %v9266, 0.0
  %v9343 = vmax.f32 %v9268, 0.0
  %v9344 = vmax.f32 %v9272, 0.0
  %v9345 = vmax.f32 %v9274, 0.0
  %v9346 = vmax.f32 %v9276, 0.0
  %v9347 = vmax.f32 %v9278, 0.0
  %v9348 = vmax.f32 %v9282, 0.0
  %v9349 = vmax.f32 %v9284, 0.0
  %v9350 = vmax.f32 %v9286, 0.0
  %v9351 = vmax.f32 %v9288, 0.0
  %v9352 = vmax.f32 %v9292, 0.0
  %v9353 = vmax.f32 %v9294, 0.0
  %v9354 = vmax.f32 %v9296, 0.0
  %v9355 = vmax.f32 %v9298, 0.0
  %v9356 = vmax.f32 %v9302, 0.0
  %v9357 = vmax.f32 %v9304, 0.0
  %v9358 = vmax.f32 %v9306, 0.0
  %v9359 = vmax.f32 %v9308, 0.0
  %v9360 = vmax.f32 %v9312, 0.0
  %v9361 = vmax.f32 %v9314, 0.0
  %v9362 = vmax.f32 %v9316, 0.0
  %v9363 = vmax.f32 %v9318, 0.0
  %v9364 = vmax.f32 %v9322, 0.0
  %v9365 = vmax.f32 %v9324, 0.0
  %v9366 = vmax.f32 %v9326, 0.0
  %v9367 = vmax.f32 %v9328, 0.0
  %v9368 = vmax.f32 %v9332, 0.0
  %v9369 = vmax.f32 %v9334, 0.0
  %v9370 = vmax.f32 %v9336, 0.0
  %v9371 = vmax.f32 %v9338, 0.0
  %9372 = vst [vmem:[#allocation6] sm:$0xff] %v9340
  %9373 = vst.msk [vmem:[#allocation6 + $0x8] sm:$0xff] %vm2420, %v9341
  %9374 = vst [vmem:[#allocation6 + $0x10] sm:$0xff] %v9342
  %9375 = vst.msk [vmem:[#allocation6 + $0x18] sm:$0xff] %vm2420, %v9343
  %9376 = vst [vmem:[#allocation6 + $0x20] sm:$0xff] %v9344
  %9377 = vst.msk [vmem:[#allocation6 + $0x28] sm:$0xff] %vm2420, %v9345
  %9378 = vst [vmem:[#allocation6 + $0x30] sm:$0xff] %v9346
  %9379 = vst.msk [vmem:[#allocation6 + $0x38] sm:$0xff] %vm2420, %v9347
  %9380 = vst [vmem:[#allocation6 + $0x40] sm:$0xff] %v9348
  %9381 = vst.msk [vmem:[#allocation6 + $0x48] sm:$0xff] %vm2420, %v9349
  %9382 = vst [vmem:[#allocation6 + $0x50] sm:$0xff] %v9350
  %9383 = vst.msk [vmem:[#allocation6 + $0x58] sm:$0xff] %vm2420, %v9351
  %9384 = vst [vmem:[#allocation6 + $0x60] sm:$0xff] %v9352
  %9385 = vst.msk [vmem:[#allocation6 + $0x68] sm:$0xff] %vm2420, %v9353
  %9386 = vst [vmem:[#allocation6 + $0x70] sm:$0xff] %v9354
  %9387 = vst.msk [vmem:[#allocation6 + $0x78] sm:$0xff] %vm2420, %v9355
  %9388 = vst [vmem:[#allocation6 + $0x80] sm:$0xff] %v9356
  %9389 = vst.msk [vmem:[#allocation6 + $0x88] sm:$0xff] %vm2420, %v9357
  %9390 = vst [vmem:[#allocation6 + $0x90] sm:$0xff] %v9358
  %9391 = vst.msk [vmem:[#allocation6 + $0x98] sm:$0xff] %vm2420, %v9359
  %9392 = vst [vmem:[#allocation6 + $0xa0] sm:$0xff] %v9360
  %9393 = vst.msk [vmem:[#allocation6 + $0xa8] sm:$0xff] %vm2420, %v9361
  %9394 = vst [vmem:[#allocation6 + $0xb0] sm:$0xff] %v9362
  %9395 = vst.msk [vmem:[#allocation6 + $0xb8] sm:$0xff] %vm2420, %v9363
  %9396 = vst [vmem:[#allocation6 + $0xc0] sm:$0xff] %v9364
  %9397 = vst.msk [vmem:[#allocation6 + $0xc8] sm:$0xff] %vm2420, %v9365
  %9398 = vst [vmem:[#allocation6 + $0xd0] sm:$0xff] %v9366
  %9399 = vst.msk [vmem:[#allocation6 + $0xd8] sm:$0xff] %vm2420, %v9367
  %9400 = vst [vmem:[#allocation6 + $0xe0] sm:$0xff] %v9368
  %9401 = vst.msk [vmem:[#allocation6 + $0xe8] sm:$0xff] %vm2420, %v9369
  %9402 = vst [vmem:[#allocation6 + $0xf0] sm:$0xff] %v9370
  %9403 = vst.msk [vmem:[#allocation6 + $0xf8] sm:$0xff] %vm2420, %v9371
  %v9404 = vld [vmem:[#allocation6] sm:$0xff]
  %v9405 = vld [vmem:[#allocation6 + $0x8] sm:$0xff]
  %v9406 = vld [vmem:[#allocation6 + $0x10] sm:$0xff]
  %v9407 = vld [vmem:[#allocation6 + $0x18] sm:$0xff]
  %v9408 = vld [vmem:[#allocation6 + $0x20] sm:$0xff]
  %v9409 = vld [vmem:[#allocation6 + $0x28] sm:$0xff]
  %v9410 = vld [vmem:[#allocation6 + $0x30] sm:$0xff]
  %v9411 = vld [vmem:[#allocation6 + $0x38] sm:$0xff]
  %v9412 = vld [vmem:[#allocation6 + $0x40] sm:$0xff]
  %v9413 = vld [vmem:[#allocation6 + $0x48] sm:$0xff]
  %v9414 = vld [vmem:[#allocation6 + $0x50] sm:$0xff]
  %v9415 = vld [vmem:[#allocation6 + $0x58] sm:$0xff]
  %v9416 = vld [vmem:[#allocation6 + $0x60] sm:$0xff]
  %v9417 = vld [vmem:[#allocation6 + $0x68] sm:$0xff]
  %v9418 = vld [vmem:[#allocation6 + $0x70] sm:$0xff]
  %v9419 = vld [vmem:[#allocation6 + $0x78] sm:$0xff]
  %v9420 = vld [vmem:[#allocation6 + $0x80] sm:$0xff]
  %v9421 = vld [vmem:[#allocation6 + $0x88] sm:$0xff]
  %v9422 = vld [vmem:[#allocation6 + $0x90] sm:$0xff]
  %v9423 = vld [vmem:[#allocation6 + $0x98] sm:$0xff]
  %v9424 = vld [vmem:[#allocation6 + $0xa0] sm:$0xff]
  %v9425 = vld [vmem:[#allocation6 + $0xa8] sm:$0xff]
  %v9426 = vld [vmem:[#allocation6 + $0xb0] sm:$0xff]
  %v9427 = vld [vmem:[#allocation6 + $0xb8] sm:$0xff]
  %v9428 = vld [vmem:[#allocation6 + $0xc0] sm:$0xff]
  %v9429 = vld [vmem:[#allocation6 + $0xc8] sm:$0xff]
  %v9430 = vld [vmem:[#allocation6 + $0xd0] sm:$0xff]
  %v9431 = vld [vmem:[#allocation6 + $0xd8] sm:$0xff]
  %v9432 = vld [vmem:[#allocation6 + $0xe0] sm:$0xff]
  %v9433 = vld [vmem:[#allocation6 + $0xe8] sm:$0xff]
  %v9434 = vld [vmem:[#allocation6 + $0xf0] sm:$0xff]
  %v9435 = vld [vmem:[#allocation6 + $0xf8] sm:$0xff]
  %9468 = vrot.lane.b32.xlu0 %v9404, 127
  %v9469 = vpop.permute.xlu0 %9468
  %9470 = vrot.lane.b32.xlu0 %v9405, 127
  %v9471 = vpop.permute.xlu0 %9470
  %9472 = vrot.lane.b32.xlu0 %v9406, 127
  %v9473 = vpop.permute.xlu0 %9472
  %9474 = vrot.lane.b32.xlu0 %v9407, 127
  %v9475 = vpop.permute.xlu0 %9474
  %9476 = vrot.lane.b32.xlu0 %v9408, 127
  %v9477 = vpop.permute.xlu0 %9476
  %9478 = vrot.lane.b32.xlu0 %v9409, 127
  %v9479 = vpop.permute.xlu0 %9478
  %9480 = vrot.lane.b32.xlu0 %v9410, 127
  %v9481 = vpop.permute.xlu0 %9480
  %9482 = vrot.lane.b32.xlu0 %v9411, 127
  %v9483 = vpop.permute.xlu0 %9482
  %9484 = vrot.lane.b32.xlu0 %v9412, 127
  %v9485 = vpop.permute.xlu0 %9484
  %9486 = vrot.lane.b32.xlu0 %v9413, 127
  %v9487 = vpop.permute.xlu0 %9486
  %9488 = vrot.lane.b32.xlu0 %v9414, 127
  %v9489 = vpop.permute.xlu0 %9488
  %9490 = vrot.lane.b32.xlu0 %v9415, 127
  %v9491 = vpop.permute.xlu0 %9490
  %9492 = vrot.lane.b32.xlu0 %v9416, 127
  %v9493 = vpop.permute.xlu0 %9492
  %9494 = vrot.lane.b32.xlu0 %v9417, 127
  %v9495 = vpop.permute.xlu0 %9494
  %9496 = vrot.lane.b32.xlu0 %v9418, 127
  %v9497 = vpop.permute.xlu0 %9496
  %9498 = vrot.lane.b32.xlu0 %v9419, 127
  %v9499 = vpop.permute.xlu0 %9498
  %9500 = vrot.lane.b32.xlu0 %v9420, 127
  %v9501 = vpop.permute.xlu0 %9500
  %9502 = vrot.lane.b32.xlu0 %v9421, 127
  %v9503 = vpop.permute.xlu0 %9502
  %9504 = vrot.lane.b32.xlu0 %v9422, 127
  %v9505 = vpop.permute.xlu0 %9504
  %9506 = vrot.lane.b32.xlu0 %v9423, 127
  %v9507 = vpop.permute.xlu0 %9506
  %9508 = vrot.lane.b32.xlu0 %v9424, 127
  %v9509 = vpop.permute.xlu0 %9508
  %9510 = vrot.lane.b32.xlu0 %v9425, 127
  %v9511 = vpop.permute.xlu0 %9510
  %9512 = vrot.lane.b32.xlu0 %v9426, 127
  %v9513 = vpop.permute.xlu0 %9512
  %9514 = vrot.lane.b32.xlu0 %v9427, 127
  %v9515 = vpop.permute.xlu0 %9514
  %9516 = vrot.lane.b32.xlu0 %v9428, 127
  %v9517 = vpop.permute.xlu0 %9516
  %9518 = vrot.lane.b32.xlu0 %v9429, 127
  %v9519 = vpop.permute.xlu0 %9518
  %9520 = vrot.lane.b32.xlu0 %v9430, 127
  %v9521 = vpop.permute.xlu0 %9520
  %9522 = vrot.lane.b32.xlu0 %v9431, 127
  %v9523 = vpop.permute.xlu0 %9522
  %9524 = vrot.lane.b32.xlu0 %v9432, 127
  %v9525 = vpop.permute.xlu0 %9524
  %9526 = vrot.lane.b32.xlu0 %v9433, 127
  %v9527 = vpop.permute.xlu0 %9526
  %9528 = vrot.lane.b32.xlu0 %v9434, 127
  %v9529 = vpop.permute.xlu0 %9528
  %9530 = vrot.lane.b32.xlu0 %v9435, 127
  %v9531 = vpop.permute.xlu0 %9530
  %v9532 = vsel %vm180, %v9469, %v9471
  %v9533 = vsel %vm180, %v9473, %v9475
  %v9534 = vsel %vm180, %v9477, %v9479
  %v9535 = vsel %vm180, %v9481, %v9483
  %v9536 = vsel %vm180, %v9485, %v9487
  %v9537 = vsel %vm180, %v9489, %v9491
  %v9538 = vsel %vm180, %v9493, %v9495
  %v9539 = vsel %vm180, %v9497, %v9499
  %v9540 = vsel %vm180, %v9501, %v9503
  %v9541 = vsel %vm180, %v9505, %v9507
  %v9542 = vsel %vm180, %v9509, %v9511
  %v9543 = vsel %vm180, %v9513, %v9515
  %v9544 = vsel %vm180, %v9517, %v9519
  %v9545 = vsel %vm180, %v9521, %v9523
  %v9546 = vsel %vm180, %v9525, %v9527
  %v9547 = vsel %vm180, %v9529, %v9531
  %v9580 = vmax.f32 %v9404, %v9532
  %v9581 = vmax.f32 %v9405, %v9471
  %v9582 = vmax.f32 %v9406, %v9533
  %v9583 = vmax.f32 %v9407, %v9475
  %v9584 = vmax.f32 %v9408, %v9534
  %v9585 = vmax.f32 %v9409, %v9479
  %v9586 = vmax.f32 %v9410, %v9535
  %v9587 = vmax.f32 %v9411, %v9483
  %v9588 = vmax.f32 %v9412, %v9536
  %v9589 = vmax.f32 %v9413, %v9487
  %v9590 = vmax.f32 %v9414, %v9537
  %v9591 = vmax.f32 %v9415, %v9491
  %v9592 = vmax.f32 %v9416, %v9538
  %v9593 = vmax.f32 %v9417, %v9495
  %v9594 = vmax.f32 %v9418, %v9539
  %v9595 = vmax.f32 %v9419, %v9499
  %v9596 = vmax.f32 %v9420, %v9540
  %v9597 = vmax.f32 %v9421, %v9503
  %v9598 = vmax.f32 %v9422, %v9541
  %v9599 = vmax.f32 %v9423, %v9507
  %v9600 = vmax.f32 %v9424, %v9542
  %v9601 = vmax.f32 %v9425, %v9511
  %v9602 = vmax.f32 %v9426, %v9543
  %v9603 = vmax.f32 %v9427, %v9515
  %v9604 = vmax.f32 %v9428, %v9544
  %v9605 = vmax.f32 %v9429, %v9519
  %v9606 = vmax.f32 %v9430, %v9545
  %v9607 = vmax.f32 %v9431, %v9523
  %v9608 = vmax.f32 %v9432, %v9546
  %v9609 = vmax.f32 %v9433, %v9527
  %v9610 = vmax.f32 %v9434, %v9547
  %v9611 = vmax.f32 %v9435, %v9531
  %9644 = vrot.lane.b32.xlu0 %v9580, 112
  %v9645 = vpop.permute.xlu0 %9644
  %9646 = vrot.lane.b32.xlu0 %v9581, 112
  %v9647 = vpop.permute.xlu0 %9646
  %9648 = vrot.lane.b32.xlu0 %v9582, 112
  %v9649 = vpop.permute.xlu0 %9648
  %9650 = vrot.lane.b32.xlu0 %v9583, 112
  %v9651 = vpop.permute.xlu0 %9650
  %9652 = vrot.lane.b32.xlu0 %v9584, 112
  %v9653 = vpop.permute.xlu0 %9652
  %9654 = vrot.lane.b32.xlu0 %v9585, 112
  %v9655 = vpop.permute.xlu0 %9654
  %9656 = vrot.lane.b32.xlu0 %v9586, 112
  %v9657 = vpop.permute.xlu0 %9656
  %9658 = vrot.lane.b32.xlu0 %v9587, 112
  %v9659 = vpop.permute.xlu0 %9658
  %9660 = vrot.lane.b32.xlu0 %v9588, 112
  %v9661 = vpop.permute.xlu0 %9660
  %9662 = vrot.lane.b32.xlu0 %v9589, 112
  %v9663 = vpop.permute.xlu0 %9662
  %9664 = vrot.lane.b32.xlu0 %v9590, 112
  %v9665 = vpop.permute.xlu0 %9664
  %9666 = vrot.lane.b32.xlu0 %v9591, 112
  %v9667 = vpop.permute.xlu0 %9666
  %9668 = vrot.lane.b32.xlu0 %v9592, 112
  %v9669 = vpop.permute.xlu0 %9668
  %9670 = vrot.lane.b32.xlu0 %v9593, 112
  %v9671 = vpop.permute.xlu0 %9670
  %9672 = vrot.lane.b32.xlu0 %v9594, 112
  %v9673 = vpop.permute.xlu0 %9672
  %9674 = vrot.lane.b32.xlu0 %v9595, 112
  %v9675 = vpop.permute.xlu0 %9674
  %9676 = vrot.lane.b32.xlu0 %v9596, 112
  %v9677 = vpop.permute.xlu0 %9676
  %9678 = vrot.lane.b32.xlu0 %v9597, 112
  %v9679 = vpop.permute.xlu0 %9678
  %9680 = vrot.lane.b32.xlu0 %v9598, 112
  %v9681 = vpop.permute.xlu0 %9680
  %9682 = vrot.lane.b32.xlu0 %v9599, 112
  %v9683 = vpop.permute.xlu0 %9682
  %9684 = vrot.lane.b32.xlu0 %v9600, 112
  %v9685 = vpop.permute.xlu0 %9684
  %9686 = vrot.lane.b32.xlu0 %v9601, 112
  %v9687 = vpop.permute.xlu0 %9686
  %9688 = vrot.lane.b32.xlu0 %v9602, 112
  %v9689 = vpop.permute.xlu0 %9688
  %9690 = vrot.lane.b32.xlu0 %v9603, 112
  %v9691 = vpop.permute.xlu0 %9690
  %9692 = vrot.lane.b32.xlu0 %v9604, 112
  %v9693 = vpop.permute.xlu0 %9692
  %9694 = vrot.lane.b32.xlu0 %v9605, 112
  %v9695 = vpop.permute.xlu0 %9694
  %9696 = vrot.lane.b32.xlu0 %v9606, 112
  %v9697 = vpop.permute.xlu0 %9696
  %9698 = vrot.lane.b32.xlu0 %v9607, 112
  %v9699 = vpop.permute.xlu0 %9698
  %9700 = vrot.lane.b32.xlu0 %v9608, 112
  %v9701 = vpop.permute.xlu0 %9700
  %9702 = vrot.lane.b32.xlu0 %v9609, 112
  %v9703 = vpop.permute.xlu0 %9702
  %9704 = vrot.lane.b32.xlu0 %v9610, 112
  %v9705 = vpop.permute.xlu0 %9704
  %9706 = vrot.lane.b32.xlu0 %v9611, 112
  %v9707 = vpop.permute.xlu0 %9706
  %vm9708 = vcmask 916480
  %v9709 = vsel %vm9708, %v9645, %v9647
  %v9710 = vsel %vm9708, %v9649, %v9651
  %v9711 = vsel %vm9708, %v9653, %v9655
  %v9712 = vsel %vm9708, %v9657, %v9659
  %v9713 = vsel %vm9708, %v9661, %v9663
  %v9714 = vsel %vm9708, %v9665, %v9667
  %v9715 = vsel %vm9708, %v9669, %v9671
  %v9716 = vsel %vm9708, %v9673, %v9675
  %v9717 = vsel %vm9708, %v9677, %v9679
  %v9718 = vsel %vm9708, %v9681, %v9683
  %v9719 = vsel %vm9708, %v9685, %v9687
  %v9720 = vsel %vm9708, %v9689, %v9691
  %v9721 = vsel %vm9708, %v9693, %v9695
  %v9722 = vsel %vm9708, %v9697, %v9699
  %v9723 = vsel %vm9708, %v9701, %v9703
  %v9724 = vsel %vm9708, %v9705, %v9707
  %v9757 = vmax.f32 %v9580, %v9709
  %v9758 = vmax.f32 %v9581, %v9647
  %v9759 = vmax.f32 %v9582, %v9710
  %v9760 = vmax.f32 %v9583, %v9651
  %v9761 = vmax.f32 %v9584, %v9711
  %v9762 = vmax.f32 %v9585, %v9655
  %v9763 = vmax.f32 %v9586, %v9712
  %v9764 = vmax.f32 %v9587, %v9659
  %v9765 = vmax.f32 %v9588, %v9713
  %v9766 = vmax.f32 %v9589, %v9663
  %v9767 = vmax.f32 %v9590, %v9714
  %v9768 = vmax.f32 %v9591, %v9667
  %v9769 = vmax.f32 %v9592, %v9715
  %v9770 = vmax.f32 %v9593, %v9671
  %v9771 = vmax.f32 %v9594, %v9716
  %v9772 = vmax.f32 %v9595, %v9675
  %v9773 = vmax.f32 %v9596, %v9717
  %v9774 = vmax.f32 %v9597, %v9679
  %v9775 = vmax.f32 %v9598, %v9718
  %v9776 = vmax.f32 %v9599, %v9683
  %v9777 = vmax.f32 %v9600, %v9719
  %v9778 = vmax.f32 %v9601, %v9687
  %v9779 = vmax.f32 %v9602, %v9720
  %v9780 = vmax.f32 %v9603, %v9691
  %v9781 = vmax.f32 %v9604, %v9721
  %v9782 = vmax.f32 %v9605, %v9695
  %v9783 = vmax.f32 %v9606, %v9722
  %v9784 = vmax.f32 %v9607, %v9699
  %v9785 = vmax.f32 %v9608, %v9723
  %v9786 = vmax.f32 %v9609, %v9703
  %v9787 = vmax.f32 %v9610, %v9724
  %v9788 = vmax.f32 %v9611, %v9707
  %v9789 = vpack.c.bf16 %v9757, %v9757
  %v9790 = vpack.c.bf16 %v9758, %v9758
  %v9791 = vld [vmem:[%s6] sm:$0xf]
  %v9792 = vld [vmem:[%s6 + $0x4] sm:$0xf]
  %v9793 = vld [vmem:[%s6 + $0x8] sm:$0xf]
  %v9794 = vld [vmem:[%s6 + $0xc] sm:$0xf]
  %v9795 = vld [vmem:[%s6 + $0x10] sm:$0xf]
  %v9796 = vld [vmem:[%s6 + $0x14] sm:$0xf]
  %v9797 = vld [vmem:[%s6 + $0x18] sm:$0xf]
  %v9798 = vld [vmem:[%s6 + $0x1c] sm:$0xf]
  %v9799 = vld [vmem:[%s6 + $0x20] sm:$0xf]
  %v9800 = vld [vmem:[%s6 + $0x24] sm:$0xf]
  %v9801 = vld [vmem:[%s6 + $0x28] sm:$0xf]
  %v9802 = vld [vmem:[%s6 + $0x2c] sm:$0xf]
  %v9803 = vld [vmem:[%s6 + $0x30] sm:$0xf]
  %v9804 = vld [vmem:[%s6 + $0x34] sm:$0xf]
  %v9805 = vld [vmem:[%s6 + $0x38] sm:$0xf]
  %v9806 = vld [vmem:[%s6 + $0x3c] sm:$0xf]
  %v9807 = vld [vmem:[%s6 + $0x40] sm:$0xf]
  %v9808 = vld [vmem:[%s6 + $0x44] sm:$0x3]
  %v9809 = vpack.c.bf16 %v9759, %v9759
  %v9810 = vpack.c.bf16 %v9760, %v9760
  %s9811 = scalar_lea.vmem %s6, 72
  %v9812 = vld [vmem:[%s9811] sm:$0xf]
  %v9813 = vld [vmem:[%s9811 + $0x4] sm:$0xf]
  %v9814 = vld [vmem:[%s9811 + $0x8] sm:$0xf]
  %v9815 = vld [vmem:[%s9811 + $0xc] sm:$0xf]
  %v9816 = vld [vmem:[%s9811 + $0x10] sm:$0xf]
  %v9817 = vld [vmem:[%s9811 + $0x14] sm:$0xf]
  %v9818 = vld [vmem:[%s9811 + $0x18] sm:$0xf]
  %v9819 = vld [vmem:[%s9811 + $0x1c] sm:$0xf]
  %v9820 = vld [vmem:[%s9811 + $0x20] sm:$0xf]
  %v9821 = vld [vmem:[%s9811 + $0x24] sm:$0xf]
  %v9822 = vld [vmem:[%s9811 + $0x28] sm:$0xf]
  %v9823 = vld [vmem:[%s9811 + $0x2c] sm:$0xf]
  %v9824 = vld [vmem:[%s9811 + $0x30] sm:$0xf]
  %v9825 = vld [vmem:[%s9811 + $0x34] sm:$0xf]
  %v9826 = vld [vmem:[%s9811 + $0x38] sm:$0xf]
  %v9827 = vld [vmem:[%s9811 + $0x3c] sm:$0xf]
  %v9828 = vld [vmem:[%s9811 + $0x40] sm:$0xf]
  %v9829 = vld [vmem:[%s9811 + $0x44] sm:$0x3]
  %v9848 = vunpack.c.l.b16 %v9812
  %v9849 = vunpack.c.l.b16 %v9813
  %v9850 = vunpack.c.l.b16 %v9814
  %v9851 = vunpack.c.l.b16 %v9815
  %v9852 = vunpack.c.l.b16 %v9816
  %v9853 = vunpack.c.l.b16 %v9817
  %v9854 = vunpack.c.l.b16 %v9818
  %v9855 = vunpack.c.l.b16 %v9819
  %v9856 = vunpack.c.l.b16 %v9820
  %v9857 = vunpack.c.l.b16 %v9821
  %v9858 = vunpack.c.l.b16 %v9822
  %v9859 = vunpack.c.l.b16 %v9823
  %v9860 = vunpack.c.l.b16 %v9824
  %v9861 = vunpack.c.l.b16 %v9825
  %v9862 = vunpack.c.l.b16 %v9826
  %v9863 = vunpack.c.l.b16 %v9827
  %v9864 = vunpack.c.l.b16 %v9828
  %v9865 = vunpack.c.l.b16 %v9829
  %v9866 = vpack.c.b16 %v9849, %v9848
  %v9867 = vpack.c.b16 %v9851, %v9850
  %v9868 = vpack.c.b16 %v9853, %v9852
  %v9869 = vpack.c.b16 %v9855, %v9854
  %v9870 = vpack.c.b16 %v9857, %v9856
  %v9871 = vpack.c.b16 %v9859, %v9858
  %v9872 = vpack.c.b16 %v9861, %v9860
  %v9873 = vpack.c.b16 %v9863, %v9862
  %v9874 = vpack.c.b16 %v9865, %v9864
  %vm9883 = vcmask 89088
  %v9885 = vsel %vm9883, %v9810, 0
  %vm9887 = vcmask 1044480
  %vm9888 = vcmask 1045504
  %v9889 = vsel %vm9887, 4294967295, 65535
  %v9890 = vsel %vm9888, %v9889, 0
  %v9892 = vand.u32 %v9874, %v9890
  %9894 = vmatprep.subr.bf16.mxu0 0
  %9895 = vmatpush1.bf16.msra.mxu0 %v9866
  %9896 = vmatprep.subr.bf16.mxu0 0
  %9897 = vmatpush1.bf16.msra.mxu0 %v9867
  %9898 = vmatprep.subr.bf16.mxu0 0
  %9899 = vmatpush1.bf16.msra.mxu0 %v9868
  %9900 = vmatprep.subr.bf16.mxu0 0
  %9901 = vmatpush1.bf16.msra.mxu0 %v9869
  %9902 = vmatprep.subr.bf16.mxu0 0
  %9903 = vmatpush1.bf16.msra.mxu0 %v9870
  %9904 = vmatprep.subr.bf16.mxu0 0
  %9905 = vmatpush1.bf16.msra.mxu0 %v9871
  %9906 = vmatprep.subr.bf16.mxu0 0
  %9907 = vmatpush1.bf16.msra.mxu0 %v9872
  %9908 = vmatprep.subr.bf16.mxu0 0
  %9909 = vmatpush1.bf16.msra.mxu0 %v9873
  %9910 = vmatprep.subr.bf16.mxu0 0
  %9911 = vmatpush1.bf16.msra.mxu0 %v9892
  %9912 = vmatprep.subr.bf16.mxu0 0
  %9913 = vmatpush1.bf16.msra.mxu0 0
  %9914 = vmatprep.subr.bf16.mxu0 0
  %9915 = vmatpush1.bf16.msra.mxu0 0
  %9916 = vmatprep.subr.bf16.mxu0 0
  %9917 = vmatpush1.bf16.msra.mxu0 0
  %9918 = vmatprep.subr.bf16.mxu0 0
  %9919 = vmatpush1.bf16.msra.mxu0 0
  %9920 = vmatprep.subr.bf16.mxu0 0
  %9921 = vmatpush1.bf16.msra.mxu0 0
  %9922 = vmatprep.subr.bf16.mxu0 0
  %9923 = vmatpush1.bf16.msra.mxu0 0
  %9924 = vmatprep.subr.bf16.mxu0 0
  %9925 = vmatpush1.bf16.msra.mxu0 0
  %9926 = vmatprep.mubr.bf16.mxu0 %v9885
  %9927 = vmatmul.mubr.bf16.gmra.mrb[0].mxu0 %v9809
  %v9928 = vpop.f32.mrb[0].mxu0
  %v9929 = vadd.f32 0.0, %v9928
  %v9930 = vpop.f32.mrb[0].mxu0
  %v9931 = vpop.f32.mrb[0].mxu0
  %v9932 = vpop.f32.mrb[0].mxu0
  %9933 = vdwg.mxu0
  %v9952 = vunpack.c.l.b16 %v9791
  %v9953 = vunpack.c.l.b16 %v9792
  %v9954 = vunpack.c.l.b16 %v9793
  %v9955 = vunpack.c.l.b16 %v9794
  %v9956 = vunpack.c.l.b16 %v9795
  %v9957 = vunpack.c.l.b16 %v9796
  %v9958 = vunpack.c.l.b16 %v9797
  %v9959 = vunpack.c.l.b16 %v9798
  %v9960 = vunpack.c.l.b16 %v9799
  %v9961 = vunpack.c.l.b16 %v9800
  %v9962 = vunpack.c.l.b16 %v9801
  %v9963 = vunpack.c.l.b16 %v9802
  %v9964 = vunpack.c.l.b16 %v9803
  %v9965 = vunpack.c.l.b16 %v9804
  %v9966 = vunpack.c.l.b16 %v9805
  %v9967 = vunpack.c.l.b16 %v9806
  %v9968 = vunpack.c.l.b16 %v9807
  %v9969 = vunpack.c.l.b16 %v9808
  %v9970 = vpack.c.b16 %v9953, %v9952
  %v9971 = vpack.c.b16 %v9955, %v9954
  %v9972 = vpack.c.b16 %v9957, %v9956
  %v9973 = vpack.c.b16 %v9959, %v9958
  %v9974 = vpack.c.b16 %v9961, %v9960
  %v9975 = vpack.c.b16 %v9963, %v9962
  %v9976 = vpack.c.b16 %v9965, %v9964
  %v9977 = vpack.c.b16 %v9967, %v9966
  %v9978 = vpack.c.b16 %v9969, %v9968
  %v9988 = vsel %vm9883, %v9790, 0
  %v9991 = vand.u32 %v9978, %v9890
  %9993 = vmatprep.subr.bf16.mxu0 0
  %9994 = vmatpush1.bf16.msra.mxu0 %v9970
  %9995 = vmatprep.subr.bf16.mxu0 0
  %9996 = vmatpush1.bf16.msra.mxu0 %v9971
  %9997 = vmatprep.subr.bf16.mxu0 0
  %9998 = vmatpush1.bf16.msra.mxu0 %v9972
  %9999 = vmatprep.subr.bf16.mxu0 0
  %10000 = vmatpush1.bf16.msra.mxu0 %v9973
  %10001 = vmatprep.subr.bf16.mxu0 0
  %10002 = vmatpush1.bf16.msra.mxu0 %v9974
  %10003 = vmatprep.subr.bf16.mxu0 0
  %10004 = vmatpush1.bf16.msra.mxu0 %v9975
  %10005 = vmatprep.subr.bf16.mxu0 0
  %10006 = vmatpush1.bf16.msra.mxu0 %v9976
  %10007 = vmatprep.subr.bf16.mxu0 0
  %10008 = vmatpush1.bf16.msra.mxu0 %v9977
  %10009 = vmatprep.subr.bf16.mxu0 0
  %10010 = vmatpush1.bf16.msra.mxu0 %v9991
  %10011 = vmatprep.subr.bf16.mxu0 0
  %10012 = vmatpush1.bf16.msra.mxu0 0
  %10013 = vmatprep.subr.bf16.mxu0 0
  %10014 = vmatpush1.bf16.msra.mxu0 0
  %10015 = vmatprep.subr.bf16.mxu0 0
  %10016 = vmatpush1.bf16.msra.mxu0 0
  %10017 = vmatprep.subr.bf16.mxu0 0
  %10018 = vmatpush1.bf16.msra.mxu0 0
  %10019 = vmatprep.subr.bf16.mxu0 0
  %10020 = vmatpush1.bf16.msra.mxu0 0
  %10021 = vmatprep.subr.bf16.mxu0 0
  %10022 = vmatpush1.bf16.msra.mxu0 0
  %10023 = vmatprep.subr.bf16.mxu0 0
  %10024 = vmatpush1.bf16.msra.mxu0 0
  %10025 = vmatprep.mubr.bf16.mxu0 %v9988
  %10026 = vmatmul.mubr.bf16.gmra.mrb[0].mxu0 %v9789
  %v10027 = vpop.f32.mrb[0].mxu0
  %v10028 = vadd.f32 %v9929, %v10027
  %v10029 = vpop.f32.mrb[0].mxu0
  %v10030 = vpop.f32.mrb[0].mxu0
  %v10031 = vpop.f32.mrb[0].mxu0
  %10032 = vdwg.mxu0
  %v10033 = vpack.c.bf16 %v9761, %v9761
  %v10034 = vpack.c.bf16 %v9762, %v9762
  %s10035 = scalar_lea.vmem %s6, 144
  %v10036 = vld [vmem:[%s10035] sm:$0xf]
  %v10037 = vld [vmem:[%s10035 + $0x4] sm:$0xf]
  %v10038 = vld [vmem:[%s10035 + $0x8] sm:$0xf]
  %v10039 = vld [vmem:[%s10035 + $0xc] sm:$0xf]
  %v10040 = vld [vmem:[%s10035 + $0x10] sm:$0xf]
  %v10041 = vld [vmem:[%s10035 + $0x14] sm:$0xf]
  %v10042 = vld [vmem:[%s10035 + $0x18] sm:$0xf]
  %v10043 = vld [vmem:[%s10035 + $0x1c] sm:$0xf]
  %v10044 = vld [vmem:[%s10035 + $0x20] sm:$0xf]
  %v10045 = vld [vmem:[%s10035 + $0x24] sm:$0xf]
  %v10046 = vld [vmem:[%s10035 + $0x28] sm:$0xf]
  %v10047 = vld [vmem:[%s10035 + $0x2c] sm:$0xf]
  %v10048 = vld [vmem:[%s10035 + $0x30] sm:$0xf]
  %v10049 = vld [vmem:[%s10035 + $0x34] sm:$0xf]
  %v10050 = vld [vmem:[%s10035 + $0x38] sm:$0xf]
  %v10051 = vld [vmem:[%s10035 + $0x3c] sm:$0xf]
  %v10052 = vld [vmem:[%s10035 + $0x40] sm:$0xf]
  %v10053 = vld [vmem:[%s10035 + $0x44] sm:$0x3]
  %v10072 = vunpack.c.l.b16 %v10036
  %v10073 = vunpack.c.l.b16 %v10037
  %v10074 = vunpack.c.l.b16 %v10038
  %v10075 = vunpack.c.l.b16 %v10039
  %v10076 = vunpack.c.l.b16 %v10040
  %v10077 = vunpack.c.l.b16 %v10041
  %v10078 = vunpack.c.l.b16 %v10042
  %v10079 = vunpack.c.l.b16 %v10043
  %v10080 = vunpack.c.l.b16 %v10044
  %v10081 = vunpack.c.l.b16 %v10045
  %v10082 = vunpack.c.l.b16 %v10046
  %v10083 = vunpack.c.l.b16 %v10047
  %v10084 = vunpack.c.l.b16 %v10048
  %v10085 = vunpack.c.l.b16 %v10049
  %v10086 = vunpack.c.l.b16 %v10050
  %v10087 = vunpack.c.l.b16 %v10051
  %v10088 = vunpack.c.l.b16 %v10052
  %v10089 = vunpack.c.l.b16 %v10053
  %v10090 = vpack.c.b16 %v10073, %v10072
  %v10091 = vpack.c.b16 %v10075, %v10074
  %v10092 = vpack.c.b16 %v10077, %v10076
  %v10093 = vpack.c.b16 %v10079, %v10078
  %v10094 = vpack.c.b16 %v10081, %v10080
  %v10095 = vpack.c.b16 %v10083, %v10082
  %v10096 = vpack.c.b16 %v10085, %v10084
  %v10097 = vpack.c.b16 %v10087, %v10086
  %v10098 = vpack.c.b16 %v10089, %v10088
  %v10108 = vsel %vm9883, %v10034, 0
  %v10111 = vand.u32 %v10098, %v9890
  %10113 = vmatprep.subr.bf16.mxu0 0
  %10114 = vmatpush1.bf16.msra.mxu0 %v10090
  %10115 = vmatprep.subr.bf16.mxu0 0
  %10116 = vmatpush1.bf16.msra.mxu0 %v10091
  %10117 = vmatprep.subr.bf16.mxu0 0
  %10118 = vmatpush1.bf16.msra.mxu0 %v10092
  %10119 = vmatprep.subr.bf16.mxu0 0
  %10120 = vmatpush1.bf16.msra.mxu0 %v10093
  %10121 = vmatprep.subr.bf16.mxu0 0
  %10122 = vmatpush1.bf16.msra.mxu0 %v10094
  %10123 = vmatprep.subr.bf16.mxu0 0
  %10124 = vmatpush1.bf16.msra.mxu0 %v10095
  %10125 = vmatprep.subr.bf16.mxu0 0
  %10126 = vmatpush1.bf16.msra.mxu0 %v10096
  %10127 = vmatprep.subr.bf16.mxu0 0
  %10128 = vmatpush1.bf16.msra.mxu0 %v10097
  %10129 = vmatprep.subr.bf16.mxu0 0
  %10130 = vmatpush1.bf16.msra.mxu0 %v10111
  %10131 = vmatprep.subr.bf16.mxu0 0
  %10132 = vmatpush1.bf16.msra.mxu0 0
  %10133 = vmatprep.subr.bf16.mxu0 0
  %10134 = vmatpush1.bf16.msra.mxu0 0
  %10135 = vmatprep.subr.bf16.mxu0 0
  %10136 = vmatpush1.bf16.msra.mxu0 0
  %10137 = vmatprep.subr.bf16.mxu0 0
  %10138 = vmatpush1.bf16.msra.mxu0 0
  %10139 = vmatprep.subr.bf16.mxu0 0
  %10140 = vmatpush1.bf16.msra.mxu0 0
  %10141 = vmatprep.subr.bf16.mxu0 0
  %10142 = vmatpush1.bf16.msra.mxu0 0
  %10143 = vmatprep.subr.bf16.mxu0 0
  %10144 = vmatpush1.bf16.msra.mxu0 0
  %10145 = vmatprep.mubr.bf16.mxu0 %v10108
  %10146 = vmatmul.mubr.bf16.gmra.mrb[0].mxu0 %v10033
  %v10147 = vpop.f32.mrb[0].mxu0
  %v10148 = vadd.f32 0.0, %v10147
  %v10149 = vpop.f32.mrb[0].mxu0
  %v10150 = vpop.f32.mrb[0].mxu0
  %v10151 = vpop.f32.mrb[0].mxu0
  %10152 = vdwg.mxu0
  %v10153 = vadd.f32 %v10028, %v10148
  %v10154 = vpack.c.bf16 %v9763, %v9763
  %v10155 = vpack.c.bf16 %v9764, %v9764
  %s10156 = scalar_lea.vmem %s6, 216
  %v10157 = vld [vmem:[%s10156] sm:$0xf]
  %v10158 = vld [vmem:[%s10156 + $0x4] sm:$0xf]
  %v10159 = vld [vmem:[%s10156 + $0x8] sm:$0xf]
  %v10160 = vld [vmem:[%s10156 + $0xc] sm:$0xf]
  %v10161 = vld [vmem:[%s10156 + $0x10] sm:$0xf]
  %v10162 = vld [vmem:[%s10156 + $0x14] sm:$0xf]
  %v10163 = vld [vmem:[%s10156 + $0x18] sm:$0xf]
  %v10164 = vld [vmem:[%s10156 + $0x1c] sm:$0xf]
  %v10165 = vld [vmem:[%s10156 + $0x20] sm:$0xf]
  %v10166 = vld [vmem:[%s10156 + $0x24] sm:$0xf]
  %v10167 = vld [vmem:[%s10156 + $0x28] sm:$0xf]
  %v10168 = vld [vmem:[%s10156 + $0x2c] sm:$0xf]
  %v10169 = vld [vmem:[%s10156 + $0x30] sm:$0xf]
  %v10170 = vld [vmem:[%s10156 + $0x34] sm:$0xf]
  %v10171 = vld [vmem:[%s10156 + $0x38] sm:$0xf]
  %v10172 = vld [vmem:[%s10156 + $0x3c] sm:$0xf]
  %v10173 = vld [vmem:[%s10156 + $0x40] sm:$0xf]
  %v10174 = vld [vmem:[%s10156 + $0x44] sm:$0x3]
  %v10193 = vunpack.c.l.b16 %v10157
  %v10194 = vunpack.c.l.b16 %v10158
  %v10195 = vunpack.c.l.b16 %v10159
  %v10196 = vunpack.c.l.b16 %v10160
  %v10197 = vunpack.c.l.b16 %v10161
  %v10198 = vunpack.c.l.b16 %v10162
  %v10199 = vunpack.c.l.b16 %v10163
  %v10200 = vunpack.c.l.b16 %v10164
  %v10201 = vunpack.c.l.b16 %v10165
  %v10202 = vunpack.c.l.b16 %v10166
  %v10203 = vunpack.c.l.b16 %v10167
  %v10204 = vunpack.c.l.b16 %v10168
  %v10205 = vunpack.c.l.b16 %v10169
  %v10206 = vunpack.c.l.b16 %v10170
  %v10207 = vunpack.c.l.b16 %v10171
  %v10208 = vunpack.c.l.b16 %v10172
  %v10209 = vunpack.c.l.b16 %v10173
  %v10210 = vunpack.c.l.b16 %v10174
  %v10211 = vpack.c.b16 %v10194, %v10193
  %v10212 = vpack.c.b16 %v10196, %v10195
  %v10213 = vpack.c.b16 %v10198, %v10197
  %v10214 = vpack.c.b16 %v10200, %v10199
  %v10215 = vpack.c.b16 %v10202, %v10201
  %v10216 = vpack.c.b16 %v10204, %v10203
  %v10217 = vpack.c.b16 %v10206, %v10205
  %v10218 = vpack.c.b16 %v10208, %v10207
  %v10219 = vpack.c.b16 %v10210, %v10209
  %v10229 = vsel %vm9883, %v10155, 0
  %v10232 = vand.u32 %v10219, %v9890
  %10234 = vmatprep.subr.bf16.mxu0 0
  %10235 = vmatpush1.bf16.msra.mxu0 %v10211
  %10236 = vmatprep.subr.bf16.mxu0 0
  %10237 = vmatpush1.bf16.msra.mxu0 %v10212
  %10238 = vmatprep.subr.bf16.mxu0 0
  %10239 = vmatpush1.bf16.msra.mxu0 %v10213
  %10240 = vmatprep.subr.bf16.mxu0 0
  %10241 = vmatpush1.bf16.msra.mxu0 %v10214
  %10242 = vmatprep.subr.bf16.mxu0 0
  %10243 = vmatpush1.bf16.msra.mxu0 %v10215
  %10244 = vmatprep.subr.bf16.mxu0 0
  %10245 = vmatpush1.bf16.msra.mxu0 %v10216
  %10246 = vmatprep.subr.bf16.mxu0 0
  %10247 = vmatpush1.bf16.msra.mxu0 %v10217
  %10248 = vmatprep.subr.bf16.mxu0 0
  %10249 = vmatpush1.bf16.msra.mxu0 %v10218
  %10250 = vmatprep.subr.bf16.mxu0 0
  %10251 = vmatpush1.bf16.msra.mxu0 %v10232
  %10252 = vmatprep.subr.bf16.mxu0 0
  %10253 = vmatpush1.bf16.msra.mxu0 0
  %10254 = vmatprep.subr.bf16.mxu0 0
  %10255 = vmatpush1.bf16.msra.mxu0 0
  %10256 = vmatprep.subr.bf16.mxu0 0
  %10257 = vmatpush1.bf16.msra.mxu0 0
  %10258 = vmatprep.subr.bf16.mxu0 0
  %10259 = vmatpush1.bf16.msra.mxu0 0
  %10260 = vmatprep.subr.bf16.mxu0 0
  %10261 = vmatpush1.bf16.msra.mxu0 0
  %10262 = vmatprep.subr.bf16.mxu0 0
  %10263 = vmatpush1.bf16.msra.mxu0 0
  %10264 = vmatprep.subr.bf16.mxu0 0
  %10265 = vmatpush1.bf16.msra.mxu0 0
  %10266 = vmatprep.mubr.bf16.mxu0 %v10229
  %10267 = vmatmul.mubr.bf16.gmra.mrb[0].mxu0 %v10154
  %v10268 = vpop.f32.mrb[0].mxu0
  %v10269 = vadd.f32 0.0, %v10268
  %v10270 = vpop.f32.mrb[0].mxu0
  %v10271 = vpop.f32.mrb[0].mxu0
  %v10272 = vpop.f32.mrb[0].mxu0
  %10273 = vdwg.mxu0
  %v10274 = vadd.f32 %v10153, %v10269
  %v10275 = vpack.c.bf16 %v9765, %v9765
  %v10276 = vpack.c.bf16 %v9766, %v9766
  %s10277 = scalar_lea.vmem %s6, 288
  %v10278 = vld [vmem:[%s10277] sm:$0xf]
  %v10279 = vld [vmem:[%s10277 + $0x4] sm:$0xf]
  %v10280 = vld [vmem:[%s10277 + $0x8] sm:$0xf]
  %v10281 = vld [vmem:[%s10277 + $0xc] sm:$0xf]
  %v10282 = vld [vmem:[%s10277 + $0x10] sm:$0xf]
  %v10283 = vld [vmem:[%s10277 + $0x14] sm:$0xf]
  %v10284 = vld [vmem:[%s10277 + $0x18] sm:$0xf]
  %v10285 = vld [vmem:[%s10277 + $0x1c] sm:$0xf]
  %v10286 = vld [vmem:[%s10277 + $0x20] sm:$0xf]
  %v10287 = vld [vmem:[%s10277 + $0x24] sm:$0xf]
  %v10288 = vld [vmem:[%s10277 + $0x28] sm:$0xf]
  %v10289 = vld [vmem:[%s10277 + $0x2c] sm:$0xf]
  %v10290 = vld [vmem:[%s10277 + $0x30] sm:$0xf]
  %v10291 = vld [vmem:[%s10277 + $0x34] sm:$0xf]
  %v10292 = vld [vmem:[%s10277 + $0x38] sm:$0xf]
  %v10293 = vld [vmem:[%s10277 + $0x3c] sm:$0xf]
  %v10294 = vld [vmem:[%s10277 + $0x40] sm:$0xf]
  %v10295 = vld [vmem:[%s10277 + $0x44] sm:$0x3]
  %v10314 = vunpack.c.l.b16 %v10278
  %v10315 = vunpack.c.l.b16 %v10279
  %v10316 = vunpack.c.l.b16 %v10280
  %v10317 = vunpack.c.l.b16 %v10281
  %v10318 = vunpack.c.l.b16 %v10282
  %v10319 = vunpack.c.l.b16 %v10283
  %v10320 = vunpack.c.l.b16 %v10284
  %v10321 = vunpack.c.l.b16 %v10285
  %v10322 = vunpack.c.l.b16 %v10286
  %v10323 = vunpack.c.l.b16 %v10287
  %v10324 = vunpack.c.l.b16 %v10288
  %v10325 = vunpack.c.l.b16 %v10289
  %v10326 = vunpack.c.l.b16 %v10290
  %v10327 = vunpack.c.l.b16 %v10291
  %v10328 = vunpack.c.l.b16 %v10292
  %v10329 = vunpack.c.l.b16 %v10293
  %v10330 = vunpack.c.l.b16 %v10294
  %v10331 = vunpack.c.l.b16 %v10295
  %v10332 = vpack.c.b16 %v10315, %v10314
  %v10333 = vpack.c.b16 %v10317, %v10316
  %v10334 = vpack.c.b16 %v10319, %v10318
  %v10335 = vpack.c.b16 %v10321, %v10320
  %v10336 = vpack.c.b16 %v10323, %v10322
  %v10337 = vpack.c.b16 %v10325, %v10324
  %v10338 = vpack.c.b16 %v10327, %v10326
  %v10339 = vpack.c.b16 %v10329, %v10328
  %v10340 = vpack.c.b16 %v10331, %v10330
  %v10350 = vsel %vm9883, %v10276, 0
  %v10353 = vand.u32 %v10340, %v9890
  %10355 = vmatprep.subr.bf16.mxu0 0
  %10356 = vmatpush1.bf16.msra.mxu0 %v10332
  %10357 = vmatprep.subr.bf16.mxu0 0
  %10358 = vmatpush1.bf16.msra.mxu0 %v10333
  %10359 = vmatprep.subr.bf16.mxu0 0
  %10360 = vmatpush1.bf16.msra.mxu0 %v10334
  %10361 = vmatprep.subr.bf16.mxu0 0
  %10362 = vmatpush1.bf16.msra.mxu0 %v10335
  %10363 = vmatprep.subr.bf16.mxu0 0
  %10364 = vmatpush1.bf16.msra.mxu0 %v10336
  %10365 = vmatprep.subr.bf16.mxu0 0
  %10366 = vmatpush1.bf16.msra.mxu0 %v10337
  %10367 = vmatprep.subr.bf16.mxu0 0
  %10368 = vmatpush1.bf16.msra.mxu0 %v10338
  %10369 = vmatprep.subr.bf16.mxu0 0
  %10370 = vmatpush1.bf16.msra.mxu0 %v10339
  %10371 = vmatprep.subr.bf16.mxu0 0
  %10372 = vmatpush1.bf16.msra.mxu0 %v10353
  %10373 = vmatprep.subr.bf16.mxu0 0
  %10374 = vmatpush1.bf16.msra.mxu0 0
  %10375 = vmatprep.subr.bf16.mxu0 0
  %10376 = vmatpush1.bf16.msra.mxu0 0
  %10377 = vmatprep.subr.bf16.mxu0 0
  %10378 = vmatpush1.bf16.msra.mxu0 0
  %10379 = vmatprep.subr.bf16.mxu0 0
  %10380 = vmatpush1.bf16.msra.mxu0 0
  %10381 = vmatprep.subr.bf16.mxu0 0
  %10382 = vmatpush1.bf16.msra.mxu0 0
  %10383 = vmatprep.subr.bf16.mxu0 0
  %10384 = vmatpush1.bf16.msra.mxu0 0
  %10385 = vmatprep.subr.bf16.mxu0 0
  %10386 = vmatpush1.bf16.msra.mxu0 0
  %10387 = vmatprep.mubr.bf16.mxu0 %v10350
  %10388 = vmatmul.mubr.bf16.gmra.mrb[0].mxu0 %v10275
  %v10389 = vpop.f32.mrb[0].mxu0
  %v10390 = vadd.f32 0.0, %v10389
  %v10391 = vpop.f32.mrb[0].mxu0
  %v10392 = vpop.f32.mrb[0].mxu0
  %v10393 = vpop.f32.mrb[0].mxu0
  %10394 = vdwg.mxu0
  %v10395 = vadd.f32 %v10274, %v10390
  %v10396 = vpack.c.bf16 %v9767, %v9767
  %v10397 = vpack.c.bf16 %v9768, %v9768
  %s10398 = scalar_lea.vmem %s6, 360
  %v10399 = vld [vmem:[%s10398] sm:$0xf]
  %v10400 = vld [vmem:[%s10398 + $0x4] sm:$0xf]
  %v10401 = vld [vmem:[%s10398 + $0x8] sm:$0xf]
  %v10402 = vld [vmem:[%s10398 + $0xc] sm:$0xf]
  %v10403 = vld [vmem:[%s10398 + $0x10] sm:$0xf]
  %v10404 = vld [vmem:[%s10398 + $0x14] sm:$0xf]
  %v10405 = vld [vmem:[%s10398 + $0x18] sm:$0xf]
  %v10406 = vld [vmem:[%s10398 + $0x1c] sm:$0xf]
  %v10407 = vld [vmem:[%s10398 + $0x20] sm:$0xf]
  %v10408 = vld [vmem:[%s10398 + $0x24] sm:$0xf]
  %v10409 = vld [vmem:[%s10398 + $0x28] sm:$0xf]
  %v10410 = vld [vmem:[%s10398 + $0x2c] sm:$0xf]
  %v10411 = vld [vmem:[%s10398 + $0x30] sm:$0xf]
  %v10412 = vld [vmem:[%s10398 + $0x34] sm:$0xf]
  %v10413 = vld [vmem:[%s10398 + $0x38] sm:$0xf]
  %v10414 = vld [vmem:[%s10398 + $0x3c] sm:$0xf]
  %v10415 = vld [vmem:[%s10398 + $0x40] sm:$0xf]
  %v10416 = vld [vmem:[%s10398 + $0x44] sm:$0x3]
  %v10435 = vunpack.c.l.b16 %v10399
  %v10436 = vunpack.c.l.b16 %v10400
  %v10437 = vunpack.c.l.b16 %v10401
  %v10438 = vunpack.c.l.b16 %v10402
  %v10439 = vunpack.c.l.b16 %v10403
  %v10440 = vunpack.c.l.b16 %v10404
  %v10441 = vunpack.c.l.b16 %v10405
  %v10442 = vunpack.c.l.b16 %v10406
  %v10443 = vunpack.c.l.b16 %v10407
  %v10444 = vunpack.c.l.b16 %v10408
  %v10445 = vunpack.c.l.b16 %v10409
  %v10446 = vunpack.c.l.b16 %v10410
  %v10447 = vunpack.c.l.b16 %v10411
  %v10448 = vunpack.c.l.b16 %v10412
  %v10449 = vunpack.c.l.b16 %v10413
  %v10450 = vunpack.c.l.b16 %v10414
  %v10451 = vunpack.c.l.b16 %v10415
  %v10452 = vunpack.c.l.b16 %v10416
  %v10453 = vpack.c.b16 %v10436, %v10435
  %v10454 = vpack.c.b16 %v10438, %v10437
  %v10455 = vpack.c.b16 %v10440, %v10439
  %v10456 = vpack.c.b16 %v10442, %v10441
  %v10457 = vpack.c.b16 %v10444, %v10443
  %v10458 = vpack.c.b16 %v10446, %v10445
  %v10459 = vpack.c.b16 %v10448, %v10447
  %v10460 = vpack.c.b16 %v10450, %v10449
  %v10461 = vpack.c.b16 %v10452, %v10451
  %v10471 = vsel %vm9883, %v10397, 0
  %v10474 = vand.u32 %v10461, %v9890
  %10476 = vmatprep.subr.bf16.mxu0 0
  %10477 = vmatpush1.bf16.msra.mxu0 %v10453
  %10478 = vmatprep.subr.bf16.mxu0 0
  %10479 = vmatpush1.bf16.msra.mxu0 %v10454
  %10480 = vmatprep.subr.bf16.mxu0 0
  %10481 = vmatpush1.bf16.msra.mxu0 %v10455
  %10482 = vmatprep.subr.bf16.mxu0 0
  %10483 = vmatpush1.bf16.msra.mxu0 %v10456
  %10484 = vmatprep.subr.bf16.mxu0 0
  %10485 = vmatpush1.bf16.msra.mxu0 %v10457
  %10486 = vmatprep.subr.bf16.mxu0 0
  %10487 = vmatpush1.bf16.msra.mxu0 %v10458
  %10488 = vmatprep.subr.bf16.mxu0 0
  %10489 = vmatpush1.bf16.msra.mxu0 %v10459
  %10490 = vmatprep.subr.bf16.mxu0 0
  %10491 = vmatpush1.bf16.msra.mxu0 %v10460
  %10492 = vmatprep.subr.bf16.mxu0 0
  %10493 = vmatpush1.bf16.msra.mxu0 %v10474
  %10494 = vmatprep.subr.bf16.mxu0 0
  %10495 = vmatpush1.bf16.msra.mxu0 0
  %10496 = vmatprep.subr.bf16.mxu0 0
  %10497 = vmatpush1.bf16.msra.mxu0 0
  %10498 = vmatprep.subr.bf16.mxu0 0
  %10499 = vmatpush1.bf16.msra.mxu0 0
  %10500 = vmatprep.subr.bf16.mxu0 0
  %10501 = vmatpush1.bf16.msra.mxu0 0
  %10502 = vmatprep.subr.bf16.mxu0 0
  %10503 = vmatpush1.bf16.msra.mxu0 0
  %10504 = vmatprep.subr.bf16.mxu0 0
  %10505 = vmatpush1.bf16.msra.mxu0 0
  %10506 = vmatprep.subr.bf16.mxu0 0
  %10507 = vmatpush1.bf16.msra.mxu0 0
  %10508 = vmatprep.mubr.bf16.mxu0 %v10471
  %10509 = vmatmul.mubr.bf16.gmra.mrb[0].mxu0 %v10396
  %v10510 = vpop.f32.mrb[0].mxu0
  %v10511 = vadd.f32 0.0, %v10510
  %v10512 = vpop.f32.mrb[0].mxu0
  %v10513 = vpop.f32.mrb[0].mxu0
  %v10514 = vpop.f32.mrb[0].mxu0
  %10515 = vdwg.mxu0
  %v10516 = vadd.f32 %v10395, %v10511
  %v10517 = vpack.c.bf16 %v9769, %v9769
  %v10518 = vpack.c.bf16 %v9770, %v9770
  %s10519 = scalar_lea.vmem %s6, 432
  %v10520 = vld [vmem:[%s10519] sm:$0xf]
  %v10521 = vld [vmem:[%s10519 + $0x4] sm:$0xf]
  %v10522 = vld [vmem:[%s10519 + $0x8] sm:$0xf]
  %v10523 = vld [vmem:[%s10519 + $0xc] sm:$0xf]
  %v10524 = vld [vmem:[%s10519 + $0x10] sm:$0xf]
  %v10525 = vld [vmem:[%s10519 + $0x14] sm:$0xf]
  %v10526 = vld [vmem:[%s10519 + $0x18] sm:$0xf]
  %v10527 = vld [vmem:[%s10519 + $0x1c] sm:$0xf]
  %v10528 = vld [vmem:[%s10519 + $0x20] sm:$0xf]
  %v10529 = vld [vmem:[%s10519 + $0x24] sm:$0xf]
  %v10530 = vld [vmem:[%s10519 + $0x28] sm:$0xf]
  %v10531 = vld [vmem:[%s10519 + $0x2c] sm:$0xf]
  %v10532 = vld [vmem:[%s10519 + $0x30] sm:$0xf]
  %v10533 = vld [vmem:[%s10519 + $0x34] sm:$0xf]
  %v10534 = vld [vmem:[%s10519 + $0x38] sm:$0xf]
  %v10535 = vld [vmem:[%s10519 + $0x3c] sm:$0xf]
  %v10536 = vld [vmem:[%s10519 + $0x40] sm:$0xf]
  %v10537 = vld [vmem:[%s10519 + $0x44] sm:$0x3]
  %v10556 = vunpack.c.l.b16 %v10520
  %v10557 = vunpack.c.l.b16 %v10521
  %v10558 = vunpack.c.l.b16 %v10522
  %v10559 = vunpack.c.l.b16 %v10523
  %v10560 = vunpack.c.l.b16 %v10524
  %v10561 = vunpack.c.l.b16 %v10525
  %v10562 = vunpack.c.l.b16 %v10526
  %v10563 = vunpack.c.l.b16 %v10527
  %v10564 = vunpack.c.l.b16 %v10528
  %v10565 = vunpack.c.l.b16 %v10529
  %v10566 = vunpack.c.l.b16 %v10530
  %v10567 = vunpack.c.l.b16 %v10531
  %v10568 = vunpack.c.l.b16 %v10532
  %v10569 = vunpack.c.l.b16 %v10533
  %v10570 = vunpack.c.l.b16 %v10534
  %v10571 = vunpack.c.l.b16 %v10535
  %v10572 = vunpack.c.l.b16 %v10536
  %v10573 = vunpack.c.l.b16 %v10537
  %v10574 = vpack.c.b16 %v10557, %v10556
  %v10575 = vpack.c.b16 %v10559, %v10558
  %v10576 = vpack.c.b16 %v10561, %v10560
  %v10577 = vpack.c.b16 %v10563, %v10562
  %v10578 = vpack.c.b16 %v10565, %v10564
  %v10579 = vpack.c.b16 %v10567, %v10566
  %v10580 = vpack.c.b16 %v10569, %v10568
  %v10581 = vpack.c.b16 %v10571, %v10570
  %v10582 = vpack.c.b16 %v10573, %v10572
  %v10592 = vsel %vm9883, %v10518, 0
  %v10595 = vand.u32 %v10582, %v9890
  %10597 = vmatprep.subr.bf16.mxu0 0
  %10598 = vmatpush1.bf16.msra.mxu0 %v10574
  %10599 = vmatprep.subr.bf16.mxu0 0
  %10600 = vmatpush1.bf16.msra.mxu0 %v10575
  %10601 = vmatprep.subr.bf16.mxu0 0
  %10602 = vmatpush1.bf16.msra.mxu0 %v10576
  %10603 = vmatprep.subr.bf16.mxu0 0
  %10604 = vmatpush1.bf16.msra.mxu0 %v10577
  %10605 = vmatprep.subr.bf16.mxu0 0
  %10606 = vmatpush1.bf16.msra.mxu0 %v10578
  %10607 = vmatprep.subr.bf16.mxu0 0
  %10608 = vmatpush1.bf16.msra.mxu0 %v10579
  %10609 = vmatprep.subr.bf16.mxu0 0
  %10610 = vmatpush1.bf16.msra.mxu0 %v10580
  %10611 = vmatprep.subr.bf16.mxu0 0
  %10612 = vmatpush1.bf16.msra.mxu0 %v10581
  %10613 = vmatprep.subr.bf16.mxu0 0
  %10614 = vmatpush1.bf16.msra.mxu0 %v10595
  %10615 = vmatprep.subr.bf16.mxu0 0
  %10616 = vmatpush1.bf16.msra.mxu0 0
  %10617 = vmatprep.subr.bf16.mxu0 0
  %10618 = vmatpush1.bf16.msra.mxu0 0
  %10619 = vmatprep.subr.bf16.mxu0 0
  %10620 = vmatpush1.bf16.msra.mxu0 0
  %10621 = vmatprep.subr.bf16.mxu0 0
  %10622 = vmatpush1.bf16.msra.mxu0 0
  %10623 = vmatprep.subr.bf16.mxu0 0
  %10624 = vmatpush1.bf16.msra.mxu0 0
  %10625 = vmatprep.subr.bf16.mxu0 0
  %10626 = vmatpush1.bf16.msra.mxu0 0
  %10627 = vmatprep.subr.bf16.mxu0 0
  %10628 = vmatpush1.bf16.msra.mxu0 0
  %10629 = vmatprep.mubr.bf16.mxu0 %v10592
  %10630 = vmatmul.mubr.bf16.gmra.mrb[0].mxu0 %v10517
  %v10631 = vpop.f32.mrb[0].mxu0
  %v10632 = vadd.f32 0.0, %v10631
  %v10633 = vpop.f32.mrb[0].mxu0
  %v10634 = vpop.f32.mrb[0].mxu0
  %v10635 = vpop.f32.mrb[0].mxu0
  %10636 = vdwg.mxu0
  %v10637 = vadd.f32 %v10516, %v10632
  %v10638 = vpack.c.bf16 %v9771, %v9771
  %v10639 = vpack.c.bf16 %v9772, %v9772
  %s10640 = scalar_lea.vmem %s6, 504
  %v10641 = vld [vmem:[%s10640] sm:$0xf]
  %v10642 = vld [vmem:[%s10640 + $0x4] sm:$0xf]
  %v10643 = vld [vmem:[%s10640 + $0x8] sm:$0xf]
  %v10644 = vld [vmem:[%s10640 + $0xc] sm:$0xf]
  %v10645 = vld [vmem:[%s10640 + $0x10] sm:$0xf]
  %v10646 = vld [vmem:[%s10640 + $0x14] sm:$0xf]
  %v10647 = vld [vmem:[%s10640 + $0x18] sm:$0xf]
  %v10648 = vld [vmem:[%s10640 + $0x1c] sm:$0xf]
  %v10649 = vld [vmem:[%s10640 + $0x20] sm:$0xf]
  %v10650 = vld [vmem:[%s10640 + $0x24] sm:$0xf]
  %v10651 = vld [vmem:[%s10640 + $0x28] sm:$0xf]
  %v10652 = vld [vmem:[%s10640 + $0x2c] sm:$0xf]
  %v10653 = vld [vmem:[%s10640 + $0x30] sm:$0xf]
  %v10654 = vld [vmem:[%s10640 + $0x34] sm:$0xf]
  %v10655 = vld [vmem:[%s10640 + $0x38] sm:$0xf]
  %v10656 = vld [vmem:[%s10640 + $0x3c] sm:$0xf]
  %v10657 = vld [vmem:[%s10640 + $0x40] sm:$0xf]
  %v10658 = vld [vmem:[%s10640 + $0x44] sm:$0x3]
  %v10677 = vunpack.c.l.b16 %v10641
  %v10678 = vunpack.c.l.b16 %v10642
  %v10679 = vunpack.c.l.b16 %v10643
  %v10680 = vunpack.c.l.b16 %v10644
  %v10681 = vunpack.c.l.b16 %v10645
  %v10682 = vunpack.c.l.b16 %v10646
  %v10683 = vunpack.c.l.b16 %v10647
  %v10684 = vunpack.c.l.b16 %v10648
  %v10685 = vunpack.c.l.b16 %v10649
  %v10686 = vunpack.c.l.b16 %v10650
  %v10687 = vunpack.c.l.b16 %v10651
  %v10688 = vunpack.c.l.b16 %v10652
  %v10689 = vunpack.c.l.b16 %v10653
  %v10690 = vunpack.c.l.b16 %v10654
  %v10691 = vunpack.c.l.b16 %v10655
  %v10692 = vunpack.c.l.b16 %v10656
  %v10693 = vunpack.c.l.b16 %v10657
  %v10694 = vunpack.c.l.b16 %v10658
  %v10695 = vpack.c.b16 %v10678, %v10677
  %v10696 = vpack.c.b16 %v10680, %v10679
  %v10697 = vpack.c.b16 %v10682, %v10681
  %v10698 = vpack.c.b16 %v10684, %v10683
  %v10699 = vpack.c.b16 %v10686, %v10685
  %v10700 = vpack.c.b16 %v10688, %v10687
  %v10701 = vpack.c.b16 %v10690, %v10689
  %v10702 = vpack.c.b16 %v10692, %v10691
  %v10703 = vpack.c.b16 %v10694, %v10693
  %v10713 = vsel %vm9883, %v10639, 0
  %v10716 = vand.u32 %v10703, %v9890
  %10718 = vmatprep.subr.bf16.mxu0 0
  %10719 = vmatpush1.bf16.msra.mxu0 %v10695
  %10720 = vmatprep.subr.bf16.mxu0 0
  %10721 = vmatpush1.bf16.msra.mxu0 %v10696
  %10722 = vmatprep.subr.bf16.mxu0 0
  %10723 = vmatpush1.bf16.msra.mxu0 %v10697
  %10724 = vmatprep.subr.bf16.mxu0 0
  %10725 = vmatpush1.bf16.msra.mxu0 %v10698
  %10726 = vmatprep.subr.bf16.mxu0 0
  %10727 = vmatpush1.bf16.msra.mxu0 %v10699
  %10728 = vmatprep.subr.bf16.mxu0 0
  %10729 = vmatpush1.bf16.msra.mxu0 %v10700
  %10730 = vmatprep.subr.bf16.mxu0 0
  %10731 = vmatpush1.bf16.msra.mxu0 %v10701
  %10732 = vmatprep.subr.bf16.mxu0 0
  %10733 = vmatpush1.bf16.msra.mxu0 %v10702
  %10734 = vmatprep.subr.bf16.mxu0 0
  %10735 = vmatpush1.bf16.msra.mxu0 %v10716
  %10736 = vmatprep.subr.bf16.mxu0 0
  %10737 = vmatpush1.bf16.msra.mxu0 0
  %10738 = vmatprep.subr.bf16.mxu0 0
  %10739 = vmatpush1.bf16.msra.mxu0 0
  %10740 = vmatprep.subr.bf16.mxu0 0
  %10741 = vmatpush1.bf16.msra.mxu0 0
  %10742 = vmatprep.subr.bf16.mxu0 0
  %10743 = vmatpush1.bf16.msra.mxu0 0
  %10744 = vmatprep.subr.bf16.mxu0 0
  %10745 = vmatpush1.bf16.msra.mxu0 0
  %10746 = vmatprep.subr.bf16.mxu0 0
  %10747 = vmatpush1.bf16.msra.mxu0 0
  %10748 = vmatprep.subr.bf16.mxu0 0
  %10749 = vmatpush1.bf16.msra.mxu0 0
  %10750 = vmatprep.mubr.bf16.mxu0 %v10713
  %10751 = vmatmul.mubr.bf16.gmra.mrb[0].mxu0 %v10638
  %v10752 = vpop.f32.mrb[0].mxu0
  %v10753 = vadd.f32 0.0, %v10752
  %v10754 = vpop.f32.mrb[0].mxu0
  %v10755 = vpop.f32.mrb[0].mxu0
  %v10756 = vpop.f32.mrb[0].mxu0
  %10757 = vdwg.mxu0
  %v10758 = vadd.f32 %v10637, %v10753
  %v10759 = vpack.c.bf16 %v9773, %v9773
  %v10760 = vpack.c.bf16 %v9774, %v9774
  %s10761 = scalar_lea.vmem %s6, 576
  %v10762 = vld [vmem:[%s10761] sm:$0xf]
  %v10763 = vld [vmem:[%s10761 + $0x4] sm:$0xf]
  %v10764 = vld [vmem:[%s10761 + $0x8] sm:$0xf]
  %v10765 = vld [vmem:[%s10761 + $0xc] sm:$0xf]
  %v10766 = vld [vmem:[%s10761 + $0x10] sm:$0xf]
  %v10767 = vld [vmem:[%s10761 + $0x14] sm:$0xf]
  %v10768 = vld [vmem:[%s10761 + $0x18] sm:$0xf]
  %v10769 = vld [vmem:[%s10761 + $0x1c] sm:$0xf]
  %v10770 = vld [vmem:[%s10761 + $0x20] sm:$0xf]
  %v10771 = vld [vmem:[%s10761 + $0x24] sm:$0xf]
  %v10772 = vld [vmem:[%s10761 + $0x28] sm:$0xf]
  %v10773 = vld [vmem:[%s10761 + $0x2c] sm:$0xf]
  %v10774 = vld [vmem:[%s10761 + $0x30] sm:$0xf]
  %v10775 = vld [vmem:[%s10761 + $0x34] sm:$0xf]
  %v10776 = vld [vmem:[%s10761 + $0x38] sm:$0xf]
  %v10777 = vld [vmem:[%s10761 + $0x3c] sm:$0xf]
  %v10778 = vld [vmem:[%s10761 + $0x40] sm:$0xf]
  %v10779 = vld [vmem:[%s10761 + $0x44] sm:$0x3]
  %v10798 = vunpack.c.l.b16 %v10762
  %v10799 = vunpack.c.l.b16 %v10763
  %v10800 = vunpack.c.l.b16 %v10764
  %v10801 = vunpack.c.l.b16 %v10765
  %v10802 = vunpack.c.l.b16 %v10766
  %v10803 = vunpack.c.l.b16 %v10767
  %v10804 = vunpack.c.l.b16 %v10768
  %v10805 = vunpack.c.l.b16 %v10769
  %v10806 = vunpack.c.l.b16 %v10770
  %v10807 = vunpack.c.l.b16 %v10771
  %v10808 = vunpack.c.l.b16 %v10772
  %v10809 = vunpack.c.l.b16 %v10773
  %v10810 = vunpack.c.l.b16 %v10774
  %v10811 = vunpack.c.l.b16 %v10775
  %v10812 = vunpack.c.l.b16 %v10776
  %v10813 = vunpack.c.l.b16 %v10777
  %v10814 = vunpack.c.l.b16 %v10778
  %v10815 = vunpack.c.l.b16 %v10779
  %v10816 = vpack.c.b16 %v10799, %v10798
  %v10817 = vpack.c.b16 %v10801, %v10800
  %v10818 = vpack.c.b16 %v10803, %v10802
  %v10819 = vpack.c.b16 %v10805, %v10804
  %v10820 = vpack.c.b16 %v10807, %v10806
  %v10821 = vpack.c.b16 %v10809, %v10808
  %v10822 = vpack.c.b16 %v10811, %v10810
  %v10823 = vpack.c.b16 %v10813, %v10812
  %v10824 = vpack.c.b16 %v10815, %v10814
  %v10834 = vsel %vm9883, %v10760, 0
  %v10837 = vand.u32 %v10824, %v9890
  %10839 = vmatprep.subr.bf16.mxu0 0
  %10840 = vmatpush1.bf16.msra.mxu0 %v10816
  %10841 = vmatprep.subr.bf16.mxu0 0
  %10842 = vmatpush1.bf16.msra.mxu0 %v10817
  %10843 = vmatprep.subr.bf16.mxu0 0
  %10844 = vmatpush1.bf16.msra.mxu0 %v10818
  %10845 = vmatprep.subr.bf16.mxu0 0
  %10846 = vmatpush1.bf16.msra.mxu0 %v10819
  %10847 = vmatprep.subr.bf16.mxu0 0
  %10848 = vmatpush1.bf16.msra.mxu0 %v10820
  %10849 = vmatprep.subr.bf16.mxu0 0
  %10850 = vmatpush1.bf16.msra.mxu0 %v10821
  %10851 = vmatprep.subr.bf16.mxu0 0
  %10852 = vmatpush1.bf16.msra.mxu0 %v10822
  %10853 = vmatprep.subr.bf16.mxu0 0
  %10854 = vmatpush1.bf16.msra.mxu0 %v10823
  %10855 = vmatprep.subr.bf16.mxu0 0
  %10856 = vmatpush1.bf16.msra.mxu0 %v10837
  %10857 = vmatprep.subr.bf16.mxu0 0
  %10858 = vmatpush1.bf16.msra.mxu0 0
  %10859 = vmatprep.subr.bf16.mxu0 0
  %10860 = vmatpush1.bf16.msra.mxu0 0
  %10861 = vmatprep.subr.bf16.mxu0 0
  %10862 = vmatpush1.bf16.msra.mxu0 0
  %10863 = vmatprep.subr.bf16.mxu0 0
  %10864 = vmatpush1.bf16.msra.mxu0 0
  %10865 = vmatprep.subr.bf16.mxu0 0
  %10866 = vmatpush1.bf16.msra.mxu0 0
  %10867 = vmatprep.subr.bf16.mxu0 0
  %10868 = vmatpush1.bf16.msra.mxu0 0
  %10869 = vmatprep.subr.bf16.mxu0 0
  %10870 = vmatpush1.bf16.msra.mxu0 0
  %10871 = vmatprep.mubr.bf16.mxu0 %v10834
  %10872 = vmatmul.mubr.bf16.gmra.mrb[0].mxu0 %v10759
  %v10873 = vpop.f32.mrb[0].mxu0
  %v10874 = vadd.f32 0.0, %v10873
  %v10875 = vpop.f32.mrb[0].mxu0
  %v10876 = vpop.f32.mrb[0].mxu0
  %v10877 = vpop.f32.mrb[0].mxu0
  %10878 = vdwg.mxu0
  %v10879 = vadd.f32 %v10758, %v10874
  %v10880 = vpack.c.bf16 %v9775, %v9775
  %v10881 = vpack.c.bf16 %v9776, %v9776
  %s10882 = scalar_lea.vmem %s6, 648
  %v10883 = vld [vmem:[%s10882] sm:$0xf]
  %v10884 = vld [vmem:[%s10882 + $0x4] sm:$0xf]
  %v10885 = vld [vmem:[%s10882 + $0x8] sm:$0xf]
  %v10886 = vld [vmem:[%s10882 + $0xc] sm:$0xf]
  %v10887 = vld [vmem:[%s10882 + $0x10] sm:$0xf]
  %v10888 = vld [vmem:[%s10882 + $0x14] sm:$0xf]
  %v10889 = vld [vmem:[%s10882 + $0x18] sm:$0xf]
  %v10890 = vld [vmem:[%s10882 + $0x1c] sm:$0xf]
  %v10891 = vld [vmem:[%s10882 + $0x20] sm:$0xf]
  %v10892 = vld [vmem:[%s10882 + $0x24] sm:$0xf]
  %v10893 = vld [vmem:[%s10882 + $0x28] sm:$0xf]
  %v10894 = vld [vmem:[%s10882 + $0x2c] sm:$0xf]
  %v10895 = vld [vmem:[%s10882 + $0x30] sm:$0xf]
  %v10896 = vld [vmem:[%s10882 + $0x34] sm:$0xf]
  %v10897 = vld [vmem:[%s10882 + $0x38] sm:$0xf]
  %v10898 = vld [vmem:[%s10882 + $0x3c] sm:$0xf]
  %v10899 = vld [vmem:[%s10882 + $0x40] sm:$0xf]
  %v10900 = vld [vmem:[%s10882 + $0x44] sm:$0x3]
  %v10919 = vunpack.c.l.b16 %v10883
  %v10920 = vunpack.c.l.b16 %v10884
  %v10921 = vunpack.c.l.b16 %v10885
  %v10922 = vunpack.c.l.b16 %v10886
  %v10923 = vunpack.c.l.b16 %v10887
  %v10924 = vunpack.c.l.b16 %v10888
  %v10925 = vunpack.c.l.b16 %v10889
  %v10926 = vunpack.c.l.b16 %v10890
  %v10927 = vunpack.c.l.b16 %v10891
  %v10928 = vunpack.c.l.b16 %v10892
  %v10929 = vunpack.c.l.b16 %v10893
  %v10930 = vunpack.c.l.b16 %v10894
  %v10931 = vunpack.c.l.b16 %v10895
  %v10932 = vunpack.c.l.b16 %v10896
  %v10933 = vunpack.c.l.b16 %v10897
  %v10934 = vunpack.c.l.b16 %v10898
  %v10935 = vunpack.c.l.b16 %v10899
  %v10936 = vunpack.c.l.b16 %v10900
  %v10937 = vpack.c.b16 %v10920, %v10919
  %v10938 = vpack.c.b16 %v10922, %v10921
  %v10939 = vpack.c.b16 %v10924, %v10923
  %v10940 = vpack.c.b16 %v10926, %v10925
  %v10941 = vpack.c.b16 %v10928, %v10927
  %v10942 = vpack.c.b16 %v10930, %v10929
  %v10943 = vpack.c.b16 %v10932, %v10931
  %v10944 = vpack.c.b16 %v10934, %v10933
  %v10945 = vpack.c.b16 %v10936, %v10935
  %v10955 = vsel %vm9883, %v10881, 0
  %v10958 = vand.u32 %v10945, %v9890
  %10960 = vmatprep.subr.bf16.mxu0 0
  %10961 = vmatpush1.bf16.msra.mxu0 %v10937
  %10962 = vmatprep.subr.bf16.mxu0 0
  %10963 = vmatpush1.bf16.msra.mxu0 %v10938
  %10964 = vmatprep.subr.bf16.mxu0 0
  %10965 = vmatpush1.bf16.msra.mxu0 %v10939
  %10966 = vmatprep.subr.bf16.mxu0 0
  %10967 = vmatpush1.bf16.msra.mxu0 %v10940
  %10968 = vmatprep.subr.bf16.mxu0 0
  %10969 = vmatpush1.bf16.msra.mxu0 %v10941
  %10970 = vmatprep.subr.bf16.mxu0 0
  %10971 = vmatpush1.bf16.msra.mxu0 %v10942
  %10972 = vmatprep.subr.bf16.mxu0 0
  %10973 = vmatpush1.bf16.msra.mxu0 %v10943
  %10974 = vmatprep.subr.bf16.mxu0 0
  %10975 = vmatpush1.bf16.msra.mxu0 %v10944
  %10976 = vmatprep.subr.bf16.mxu0 0
  %10977 = vmatpush1.bf16.msra.mxu0 %v10958
  %10978 = vmatprep.subr.bf16.mxu0 0
  %10979 = vmatpush1.bf16.msra.mxu0 0
  %10980 = vmatprep.subr.bf16.mxu0 0
  %10981 = vmatpush1.bf16.msra.mxu0 0
  %10982 = vmatprep.subr.bf16.mxu0 0
  %10983 = vmatpush1.bf16.msra.mxu0 0
  %10984 = vmatprep.subr.bf16.mxu0 0
  %10985 = vmatpush1.bf16.msra.mxu0 0
  %10986 = vmatprep.subr.bf16.mxu0 0
  %10987 = vmatpush1.bf16.msra.mxu0 0
  %10988 = vmatprep.subr.bf16.mxu0 0
  %10989 = vmatpush1.bf16.msra.mxu0 0
  %10990 = vmatprep.subr.bf16.mxu0 0
  %10991 = vmatpush1.bf16.msra.mxu0 0
  %10992 = vmatprep.mubr.bf16.mxu0 %v10955
  %10993 = vmatmul.mubr.bf16.gmra.mrb[0].mxu0 %v10880
  %v10994 = vpop.f32.mrb[0].mxu0
  %v10995 = vadd.f32 0.0, %v10994
  %v10996 = vpop.f32.mrb[0].mxu0
  %v10997 = vpop.f32.mrb[0].mxu0
  %v10998 = vpop.f32.mrb[0].mxu0
  %10999 = vdwg.mxu0
  %v11000 = vadd.f32 %v10879, %v10995
  %v11001 = vpack.c.bf16 %v9777, %v9777
  %v11002 = vpack.c.bf16 %v9778, %v9778
  %s11003 = scalar_lea.vmem %s6, 720
  %v11004 = vld [vmem:[%s11003] sm:$0xf]
  %v11005 = vld [vmem:[%s11003 + $0x4] sm:$0xf]
  %v11006 = vld [vmem:[%s11003 + $0x8] sm:$0xf]
  %v11007 = vld [vmem:[%s11003 + $0xc] sm:$0xf]
  %v11008 = vld [vmem:[%s11003 + $0x10] sm:$0xf]
  %v11009 = vld [vmem:[%s11003 + $0x14] sm:$0xf]
  %v11010 = vld [vmem:[%s11003 + $0x18] sm:$0xf]
  %v11011 = vld [vmem:[%s11003 + $0x1c] sm:$0xf]
  %v11012 = vld [vmem:[%s11003 + $0x20] sm:$0xf]
  %v11013 = vld [vmem:[%s11003 + $0x24] sm:$0xf]
  %v11014 = vld [vmem:[%s11003 + $0x28] sm:$0xf]
  %v11015 = vld [vmem:[%s11003 + $0x2c] sm:$0xf]
  %v11016 = vld [vmem:[%s11003 + $0x30] sm:$0xf]
  %v11017 = vld [vmem:[%s11003 + $0x34] sm:$0xf]
  %v11018 = vld [vmem:[%s11003 + $0x38] sm:$0xf]
  %v11019 = vld [vmem:[%s11003 + $0x3c] sm:$0xf]
  %v11020 = vld [vmem:[%s11003 + $0x40] sm:$0xf]
  %v11021 = vld [vmem:[%s11003 + $0x44] sm:$0x3]
  %v11040 = vunpack.c.l.b16 %v11004
  %v11041 = vunpack.c.l.b16 %v11005
  %v11042 = vunpack.c.l.b16 %v11006
  %v11043 = vunpack.c.l.b16 %v11007
  %v11044 = vunpack.c.l.b16 %v11008
  %v11045 = vunpack.c.l.b16 %v11009
  %v11046 = vunpack.c.l.b16 %v11010
  %v11047 = vunpack.c.l.b16 %v11011
  %v11048 = vunpack.c.l.b16 %v11012
  %v11049 = vunpack.c.l.b16 %v11013
  %v11050 = vunpack.c.l.b16 %v11014
  %v11051 = vunpack.c.l.b16 %v11015
  %v11052 = vunpack.c.l.b16 %v11016
  %v11053 = vunpack.c.l.b16 %v11017
  %v11054 = vunpack.c.l.b16 %v11018
  %v11055 = vunpack.c.l.b16 %v11019
  %v11056 = vunpack.c.l.b16 %v11020
  %v11057 = vunpack.c.l.b16 %v11021
  %v11058 = vpack.c.b16 %v11041, %v11040
  %v11059 = vpack.c.b16 %v11043, %v11042
  %v11060 = vpack.c.b16 %v11045, %v11044
  %v11061 = vpack.c.b16 %v11047, %v11046
  %v11062 = vpack.c.b16 %v11049, %v11048
  %v11063 = vpack.c.b16 %v11051, %v11050
  %v11064 = vpack.c.b16 %v11053, %v11052
  %v11065 = vpack.c.b16 %v11055, %v11054
  %v11066 = vpack.c.b16 %v11057, %v11056
  %v11076 = vsel %vm9883, %v11002, 0
  %v11079 = vand.u32 %v11066, %v9890
  %11081 = vmatprep.subr.bf16.mxu0 0
  %11082 = vmatpush1.bf16.msra.mxu0 %v11058
  %11083 = vmatprep.subr.bf16.mxu0 0
  %11084 = vmatpush1.bf16.msra.mxu0 %v11059
  %11085 = vmatprep.subr.bf16.mxu0 0
  %11086 = vmatpush1.bf16.msra.mxu0 %v11060
  %11087 = vmatprep.subr.bf16.mxu0 0
  %11088 = vmatpush1.bf16.msra.mxu0 %v11061
  %11089 = vmatprep.subr.bf16.mxu0 0
  %11090 = vmatpush1.bf16.msra.mxu0 %v11062
  %11091 = vmatprep.subr.bf16.mxu0 0
  %11092 = vmatpush1.bf16.msra.mxu0 %v11063
  %11093 = vmatprep.subr.bf16.mxu0 0
  %11094 = vmatpush1.bf16.msra.mxu0 %v11064
  %11095 = vmatprep.subr.bf16.mxu0 0
  %11096 = vmatpush1.bf16.msra.mxu0 %v11065
  %11097 = vmatprep.subr.bf16.mxu0 0
  %11098 = vmatpush1.bf16.msra.mxu0 %v11079
  %11099 = vmatprep.subr.bf16.mxu0 0
  %11100 = vmatpush1.bf16.msra.mxu0 0
  %11101 = vmatprep.subr.bf16.mxu0 0
  %11102 = vmatpush1.bf16.msra.mxu0 0
  %11103 = vmatprep.subr.bf16.mxu0 0
  %11104 = vmatpush1.bf16.msra.mxu0 0
  %11105 = vmatprep.subr.bf16.mxu0 0
  %11106 = vmatpush1.bf16.msra.mxu0 0
  %11107 = vmatprep.subr.bf16.mxu0 0
  %11108 = vmatpush1.bf16.msra.mxu0 0
  %11109 = vmatprep.subr.bf16.mxu0 0
  %11110 = vmatpush1.bf16.msra.mxu0 0
  %11111 = vmatprep.subr.bf16.mxu0 0
  %11112 = vmatpush1.bf16.msra.mxu0 0
  %11113 = vmatprep.mubr.bf16.mxu0 %v11076
  %11114 = vmatmul.mubr.bf16.gmra.mrb[0].mxu0 %v11001
  %v11115 = vpop.f32.mrb[0].mxu0
  %v11116 = vadd.f32 0.0, %v11115
  %v11117 = vpop.f32.mrb[0].mxu0
  %v11118 = vpop.f32.mrb[0].mxu0
  %v11119 = vpop.f32.mrb[0].mxu0
  %11120 = vdwg.mxu0
  %v11121 = vadd.f32 %v11000, %v11116
  %v11122 = vpack.c.bf16 %v9779, %v9779
  %v11123 = vpack.c.bf16 %v9780, %v9780
  %s11124 = scalar_lea.vmem %s6, 792
  %v11125 = vld [vmem:[%s11124] sm:$0xf]
  %v11126 = vld [vmem:[%s11124 + $0x4] sm:$0xf]
  %v11127 = vld [vmem:[%s11124 + $0x8] sm:$0xf]
  %v11128 = vld [vmem:[%s11124 + $0xc] sm:$0xf]
  %v11129 = vld [vmem:[%s11124 + $0x10] sm:$0xf]
  %v11130 = vld [vmem:[%s11124 + $0x14] sm:$0xf]
  %v11131 = vld [vmem:[%s11124 + $0x18] sm:$0xf]
  %v11132 = vld [vmem:[%s11124 + $0x1c] sm:$0xf]
  %v11133 = vld [vmem:[%s11124 + $0x20] sm:$0xf]
  %v11134 = vld [vmem:[%s11124 + $0x24] sm:$0xf]
  %v11135 = vld [vmem:[%s11124 + $0x28] sm:$0xf]
  %v11136 = vld [vmem:[%s11124 + $0x2c] sm:$0xf]
  %v11137 = vld [vmem:[%s11124 + $0x30] sm:$0xf]
  %v11138 = vld [vmem:[%s11124 + $0x34] sm:$0xf]
  %v11139 = vld [vmem:[%s11124 + $0x38] sm:$0xf]
  %v11140 = vld [vmem:[%s11124 + $0x3c] sm:$0xf]
  %v11141 = vld [vmem:[%s11124 + $0x40] sm:$0xf]
  %v11142 = vld [vmem:[%s11124 + $0x44] sm:$0x3]
  %v11161 = vunpack.c.l.b16 %v11125
  %v11162 = vunpack.c.l.b16 %v11126
  %v11163 = vunpack.c.l.b16 %v11127
  %v11164 = vunpack.c.l.b16 %v11128
  %v11165 = vunpack.c.l.b16 %v11129
  %v11166 = vunpack.c.l.b16 %v11130
  %v11167 = vunpack.c.l.b16 %v11131
  %v11168 = vunpack.c.l.b16 %v11132
  %v11169 = vunpack.c.l.b16 %v11133
  %v11170 = vunpack.c.l.b16 %v11134
  %v11171 = vunpack.c.l.b16 %v11135
  %v11172 = vunpack.c.l.b16 %v11136
  %v11173 = vunpack.c.l.b16 %v11137
  %v11174 = vunpack.c.l.b16 %v11138
  %v11175 = vunpack.c.l.b16 %v11139
  %v11176 = vunpack.c.l.b16 %v11140
  %v11177 = vunpack.c.l.b16 %v11141
  %v11178 = vunpack.c.l.b16 %v11142
  %v11179 = vpack.c.b16 %v11162, %v11161
  %v11180 = vpack.c.b16 %v11164, %v11163
  %v11181 = vpack.c.b16 %v11166, %v11165
  %v11182 = vpack.c.b16 %v11168, %v11167
  %v11183 = vpack.c.b16 %v11170, %v11169
  %v11184 = vpack.c.b16 %v11172, %v11171
  %v11185 = vpack.c.b16 %v11174, %v11173
  %v11186 = vpack.c.b16 %v11176, %v11175
  %v11187 = vpack.c.b16 %v11178, %v11177
  %v11197 = vsel %vm9883, %v11123, 0
  %v11200 = vand.u32 %v11187, %v9890
  %11202 = vmatprep.subr.bf16.mxu0 0
  %11203 = vmatpush1.bf16.msra.mxu0 %v11179
  %11204 = vmatprep.subr.bf16.mxu0 0
  %11205 = vmatpush1.bf16.msra.mxu0 %v11180
  %11206 = vmatprep.subr.bf16.mxu0 0
  %11207 = vmatpush1.bf16.msra.mxu0 %v11181
  %11208 = vmatprep.subr.bf16.mxu0 0
  %11209 = vmatpush1.bf16.msra.mxu0 %v11182
  %11210 = vmatprep.subr.bf16.mxu0 0
  %11211 = vmatpush1.bf16.msra.mxu0 %v11183
  %11212 = vmatprep.subr.bf16.mxu0 0
  %11213 = vmatpush1.bf16.msra.mxu0 %v11184
  %11214 = vmatprep.subr.bf16.mxu0 0
  %11215 = vmatpush1.bf16.msra.mxu0 %v11185
  %11216 = vmatprep.subr.bf16.mxu0 0
  %11217 = vmatpush1.bf16.msra.mxu0 %v11186
  %11218 = vmatprep.subr.bf16.mxu0 0
  %11219 = vmatpush1.bf16.msra.mxu0 %v11200
  %11220 = vmatprep.subr.bf16.mxu0 0
  %11221 = vmatpush1.bf16.msra.mxu0 0
  %11222 = vmatprep.subr.bf16.mxu0 0
  %11223 = vmatpush1.bf16.msra.mxu0 0
  %11224 = vmatprep.subr.bf16.mxu0 0
  %11225 = vmatpush1.bf16.msra.mxu0 0
  %11226 = vmatprep.subr.bf16.mxu0 0
  %11227 = vmatpush1.bf16.msra.mxu0 0
  %11228 = vmatprep.subr.bf16.mxu0 0
  %11229 = vmatpush1.bf16.msra.mxu0 0
  %11230 = vmatprep.subr.bf16.mxu0 0
  %11231 = vmatpush1.bf16.msra.mxu0 0
  %11232 = vmatprep.subr.bf16.mxu0 0
  %11233 = vmatpush1.bf16.msra.mxu0 0
  %11234 = vmatprep.mubr.bf16.mxu0 %v11197
  %11235 = vmatmul.mubr.bf16.gmra.mrb[0].mxu0 %v11122
  %v11236 = vpop.f32.mrb[0].mxu0
  %v11237 = vadd.f32 0.0, %v11236
  %v11238 = vpop.f32.mrb[0].mxu0
  %v11239 = vpop.f32.mrb[0].mxu0
  %v11240 = vpop.f32.mrb[0].mxu0
  %11241 = vdwg.mxu0
  %v11242 = vadd.f32 %v11121, %v11237
  %v11243 = vpack.c.bf16 %v9781, %v9781
  %v11244 = vpack.c.bf16 %v9782, %v9782
  %s11245 = scalar_lea.vmem %s6, 864
  %v11246 = vld [vmem:[%s11245] sm:$0xf]
  %v11247 = vld [vmem:[%s11245 + $0x4] sm:$0xf]
  %v11248 = vld [vmem:[%s11245 + $0x8] sm:$0xf]
  %v11249 = vld [vmem:[%s11245 + $0xc] sm:$0xf]
  %v11250 = vld [vmem:[%s11245 + $0x10] sm:$0xf]
  %v11251 = vld [vmem:[%s11245 + $0x14] sm:$0xf]
  %v11252 = vld [vmem:[%s11245 + $0x18] sm:$0xf]
  %v11253 = vld [vmem:[%s11245 + $0x1c] sm:$0xf]
  %v11254 = vld [vmem:[%s11245 + $0x20] sm:$0xf]
  %v11255 = vld [vmem:[%s11245 + $0x24] sm:$0xf]
  %v11256 = vld [vmem:[%s11245 + $0x28] sm:$0xf]
  %v11257 = vld [vmem:[%s11245 + $0x2c] sm:$0xf]
  %v11258 = vld [vmem:[%s11245 + $0x30] sm:$0xf]
  %v11259 = vld [vmem:[%s11245 + $0x34] sm:$0xf]
  %v11260 = vld [vmem:[%s11245 + $0x38] sm:$0xf]
  %v11261 = vld [vmem:[%s11245 + $0x3c] sm:$0xf]
  %v11262 = vld [vmem:[%s11245 + $0x40] sm:$0xf]
  %v11263 = vld [vmem:[%s11245 + $0x44] sm:$0x3]
  %v11282 = vunpack.c.l.b16 %v11246
  %v11283 = vunpack.c.l.b16 %v11247
  %v11284 = vunpack.c.l.b16 %v11248
  %v11285 = vunpack.c.l.b16 %v11249
  %v11286 = vunpack.c.l.b16 %v11250
  %v11287 = vunpack.c.l.b16 %v11251
  %v11288 = vunpack.c.l.b16 %v11252
  %v11289 = vunpack.c.l.b16 %v11253
  %v11290 = vunpack.c.l.b16 %v11254
  %v11291 = vunpack.c.l.b16 %v11255
  %v11292 = vunpack.c.l.b16 %v11256
  %v11293 = vunpack.c.l.b16 %v11257
  %v11294 = vunpack.c.l.b16 %v11258
  %v11295 = vunpack.c.l.b16 %v11259
  %v11296 = vunpack.c.l.b16 %v11260
  %v11297 = vunpack.c.l.b16 %v11261
  %v11298 = vunpack.c.l.b16 %v11262
  %v11299 = vunpack.c.l.b16 %v11263
  %v11300 = vpack.c.b16 %v11283, %v11282
  %v11301 = vpack.c.b16 %v11285, %v11284
  %v11302 = vpack.c.b16 %v11287, %v11286
  %v11303 = vpack.c.b16 %v11289, %v11288
  %v11304 = vpack.c.b16 %v11291, %v11290
  %v11305 = vpack.c.b16 %v11293, %v11292
  %v11306 = vpack.c.b16 %v11295, %v11294
  %v11307 = vpack.c.b16 %v11297, %v11296
  %v11308 = vpack.c.b16 %v11299, %v11298
  %v11318 = vsel %vm9883, %v11244, 0
  %v11321 = vand.u32 %v11308, %v9890
  %11323 = vmatprep.subr.bf16.mxu0 0
  %11324 = vmatpush1.bf16.msra.mxu0 %v11300
  %11325 = vmatprep.subr.bf16.mxu0 0
  %11326 = vmatpush1.bf16.msra.mxu0 %v11301
  %11327 = vmatprep.subr.bf16.mxu0 0
  %11328 = vmatpush1.bf16.msra.mxu0 %v11302
  %11329 = vmatprep.subr.bf16.mxu0 0
  %11330 = vmatpush1.bf16.msra.mxu0 %v11303
  %11331 = vmatprep.subr.bf16.mxu0 0
  %11332 = vmatpush1.bf16.msra.mxu0 %v11304
  %11333 = vmatprep.subr.bf16.mxu0 0
  %11334 = vmatpush1.bf16.msra.mxu0 %v11305
  %11335 = vmatprep.subr.bf16.mxu0 0
  %11336 = vmatpush1.bf16.msra.mxu0 %v11306
  %11337 = vmatprep.subr.bf16.mxu0 0
  %11338 = vmatpush1.bf16.msra.mxu0 %v11307
  %11339 = vmatprep.subr.bf16.mxu0 0
  %11340 = vmatpush1.bf16.msra.mxu0 %v11321
  %11341 = vmatprep.subr.bf16.mxu0 0
  %11342 = vmatpush1.bf16.msra.mxu0 0
  %11343 = vmatprep.subr.bf16.mxu0 0
  %11344 = vmatpush1.bf16.msra.mxu0 0
  %11345 = vmatprep.subr.bf16.mxu0 0
  %11346 = vmatpush1.bf16.msra.mxu0 0
  %11347 = vmatprep.subr.bf16.mxu0 0
  %11348 = vmatpush1.bf16.msra.mxu0 0
  %11349 = vmatprep.subr.bf16.mxu0 0
  %11350 = vmatpush1.bf16.msra.mxu0 0
  %11351 = vmatprep.subr.bf16.mxu0 0
  %11352 = vmatpush1.bf16.msra.mxu0 0
  %11353 = vmatprep.subr.bf16.mxu0 0
  %11354 = vmatpush1.bf16.msra.mxu0 0
  %11355 = vmatprep.mubr.bf16.mxu0 %v11318
  %11356 = vmatmul.mubr.bf16.gmra.mrb[0].mxu0 %v11243
  %v11357 = vpop.f32.mrb[0].mxu0
  %v11358 = vadd.f32 0.0, %v11357
  %v11359 = vpop.f32.mrb[0].mxu0
  %v11360 = vpop.f32.mrb[0].mxu0
  %v11361 = vpop.f32.mrb[0].mxu0
  %11362 = vdwg.mxu0
  %v11363 = vadd.f32 %v11242, %v11358
  %v11364 = vpack.c.bf16 %v9783, %v9783
  %v11365 = vpack.c.bf16 %v9784, %v9784
  %s11366 = scalar_lea.vmem %s6, 936
  %v11367 = vld [vmem:[%s11366] sm:$0xf]
  %v11368 = vld [vmem:[%s11366 + $0x4] sm:$0xf]
  %v11369 = vld [vmem:[%s11366 + $0x8] sm:$0xf]
  %v11370 = vld [vmem:[%s11366 + $0xc] sm:$0xf]
  %v11371 = vld [vmem:[%s11366 + $0x10] sm:$0xf]
  %v11372 = vld [vmem:[%s11366 + $0x14] sm:$0xf]
  %v11373 = vld [vmem:[%s11366 + $0x18] sm:$0xf]
  %v11374 = vld [vmem:[%s11366 + $0x1c] sm:$0xf]
  %v11375 = vld [vmem:[%s11366 + $0x20] sm:$0xf]
  %v11376 = vld [vmem:[%s11366 + $0x24] sm:$0xf]
  %v11377 = vld [vmem:[%s11366 + $0x28] sm:$0xf]
  %v11378 = vld [vmem:[%s11366 + $0x2c] sm:$0xf]
  %v11379 = vld [vmem:[%s11366 + $0x30] sm:$0xf]
  %v11380 = vld [vmem:[%s11366 + $0x34] sm:$0xf]
  %v11381 = vld [vmem:[%s11366 + $0x38] sm:$0xf]
  %v11382 = vld [vmem:[%s11366 + $0x3c] sm:$0xf]
  %v11383 = vld [vmem:[%s11366 + $0x40] sm:$0xf]
  %v11384 = vld [vmem:[%s11366 + $0x44] sm:$0x3]
  %v11403 = vunpack.c.l.b16 %v11367
  %v11404 = vunpack.c.l.b16 %v11368
  %v11405 = vunpack.c.l.b16 %v11369
  %v11406 = vunpack.c.l.b16 %v11370
  %v11407 = vunpack.c.l.b16 %v11371
  %v11408 = vunpack.c.l.b16 %v11372
  %v11409 = vunpack.c.l.b16 %v11373
  %v11410 = vunpack.c.l.b16 %v11374
  %v11411 = vunpack.c.l.b16 %v11375
  %v11412 = vunpack.c.l.b16 %v11376
  %v11413 = vunpack.c.l.b16 %v11377
  %v11414 = vunpack.c.l.b16 %v11378
  %v11415 = vunpack.c.l.b16 %v11379
  %v11416 = vunpack.c.l.b16 %v11380
  %v11417 = vunpack.c.l.b16 %v11381
  %v11418 = vunpack.c.l.b16 %v11382
  %v11419 = vunpack.c.l.b16 %v11383
  %v11420 = vunpack.c.l.b16 %v11384
  %v11421 = vpack.c.b16 %v11404, %v11403
  %v11422 = vpack.c.b16 %v11406, %v11405
  %v11423 = vpack.c.b16 %v11408, %v11407
  %v11424 = vpack.c.b16 %v11410, %v11409
  %v11425 = vpack.c.b16 %v11412, %v11411
  %v11426 = vpack.c.b16 %v11414, %v11413
  %v11427 = vpack.c.b16 %v11416, %v11415
  %v11428 = vpack.c.b16 %v11418, %v11417
  %v11429 = vpack.c.b16 %v11420, %v11419
  %v11439 = vsel %vm9883, %v11365, 0
  %v11442 = vand.u32 %v11429, %v9890
  %11444 = vmatprep.subr.bf16.mxu0 0
  %11445 = vmatpush1.bf16.msra.mxu0 %v11421
  %11446 = vmatprep.subr.bf16.mxu0 0
  %11447 = vmatpush1.bf16.msra.mxu0 %v11422
  %11448 = vmatprep.subr.bf16.mxu0 0
  %11449 = vmatpush1.bf16.msra.mxu0 %v11423
  %11450 = vmatprep.subr.bf16.mxu0 0
  %11451 = vmatpush1.bf16.msra.mxu0 %v11424
  %11452 = vmatprep.subr.bf16.mxu0 0
  %11453 = vmatpush1.bf16.msra.mxu0 %v11425
  %11454 = vmatprep.subr.bf16.mxu0 0
  %11455 = vmatpush1.bf16.msra.mxu0 %v11426
  %11456 = vmatprep.subr.bf16.mxu0 0
  %11457 = vmatpush1.bf16.msra.mxu0 %v11427
  %11458 = vmatprep.subr.bf16.mxu0 0
  %11459 = vmatpush1.bf16.msra.mxu0 %v11428
  %11460 = vmatprep.subr.bf16.mxu0 0
  %11461 = vmatpush1.bf16.msra.mxu0 %v11442
  %11462 = vmatprep.subr.bf16.mxu0 0
  %11463 = vmatpush1.bf16.msra.mxu0 0
  %11464 = vmatprep.subr.bf16.mxu0 0
  %11465 = vmatpush1.bf16.msra.mxu0 0
  %11466 = vmatprep.subr.bf16.mxu0 0
  %11467 = vmatpush1.bf16.msra.mxu0 0
  %11468 = vmatprep.subr.bf16.mxu0 0
  %11469 = vmatpush1.bf16.msra.mxu0 0
  %11470 = vmatprep.subr.bf16.mxu0 0
  %11471 = vmatpush1.bf16.msra.mxu0 0
  %11472 = vmatprep.subr.bf16.mxu0 0
  %11473 = vmatpush1.bf16.msra.mxu0 0
  %11474 = vmatprep.subr.bf16.mxu0 0
  %11475 = vmatpush1.bf16.msra.mxu0 0
  %11476 = vmatprep.mubr.bf16.mxu0 %v11439
  %11477 = vmatmul.mubr.bf16.gmra.mrb[0].mxu0 %v11364
  %v11478 = vpop.f32.mrb[0].mxu0
  %v11479 = vadd.f32 0.0, %v11478
  %v11480 = vpop.f32.mrb[0].mxu0
  %v11481 = vpop.f32.mrb[0].mxu0
  %v11482 = vpop.f32.mrb[0].mxu0
  %11483 = vdwg.mxu0
  %v11484 = vadd.f32 %v11363, %v11479
  %v11485 = vpack.c.bf16 %v9785, %v9785
  %v11486 = vpack.c.bf16 %v9786, %v9786
  %s11487 = scalar_lea.vmem %s6, 1008
  %v11488 = vld [vmem:[%s11487] sm:$0xf]
  %v11489 = vld [vmem:[%s11487 + $0x4] sm:$0xf]
  %v11490 = vld [vmem:[%s11487 + $0x8] sm:$0xf]
  %v11491 = vld [vmem:[%s11487 + $0xc] sm:$0xf]
  %v11492 = vld [vmem:[%s11487 + $0x10] sm:$0xf]
  %v11493 = vld [vmem:[%s11487 + $0x14] sm:$0xf]
  %v11494 = vld [vmem:[%s11487 + $0x18] sm:$0xf]
  %v11495 = vld [vmem:[%s11487 + $0x1c] sm:$0xf]
  %v11496 = vld [vmem:[%s11487 + $0x20] sm:$0xf]
  %v11497 = vld [vmem:[%s11487 + $0x24] sm:$0xf]
  %v11498 = vld [vmem:[%s11487 + $0x28] sm:$0xf]
  %v11499 = vld [vmem:[%s11487 + $0x2c] sm:$0xf]
  %v11500 = vld [vmem:[%s11487 + $0x30] sm:$0xf]
  %v11501 = vld [vmem:[%s11487 + $0x34] sm:$0xf]
  %v11502 = vld [vmem:[%s11487 + $0x38] sm:$0xf]
  %v11503 = vld [vmem:[%s11487 + $0x3c] sm:$0xf]
  %v11504 = vld [vmem:[%s11487 + $0x40] sm:$0xf]
  %v11505 = vld [vmem:[%s11487 + $0x44] sm:$0x3]
  %v11524 = vunpack.c.l.b16 %v11488
  %v11525 = vunpack.c.l.b16 %v11489
  %v11526 = vunpack.c.l.b16 %v11490
  %v11527 = vunpack.c.l.b16 %v11491
  %v11528 = vunpack.c.l.b16 %v11492
  %v11529 = vunpack.c.l.b16 %v11493
  %v11530 = vunpack.c.l.b16 %v11494
  %v11531 = vunpack.c.l.b16 %v11495
  %v11532 = vunpack.c.l.b16 %v11496
  %v11533 = vunpack.c.l.b16 %v11497
  %v11534 = vunpack.c.l.b16 %v11498
  %v11535 = vunpack.c.l.b16 %v11499
  %v11536 = vunpack.c.l.b16 %v11500
  %v11537 = vunpack.c.l.b16 %v11501
  %v11538 = vunpack.c.l.b16 %v11502
  %v11539 = vunpack.c.l.b16 %v11503
  %v11540 = vunpack.c.l.b16 %v11504
  %v11541 = vunpack.c.l.b16 %v11505
  %v11542 = vpack.c.b16 %v11525, %v11524
  %v11543 = vpack.c.b16 %v11527, %v11526
  %v11544 = vpack.c.b16 %v11529, %v11528
  %v11545 = vpack.c.b16 %v11531, %v11530
  %v11546 = vpack.c.b16 %v11533, %v11532
  %v11547 = vpack.c.b16 %v11535, %v11534
  %v11548 = vpack.c.b16 %v11537, %v11536
  %v11549 = vpack.c.b16 %v11539, %v11538
  %v11550 = vpack.c.b16 %v11541, %v11540
  %v11560 = vsel %vm9883, %v11486, 0
  %v11563 = vand.u32 %v11550, %v9890
  %11565 = vmatprep.subr.bf16.mxu0 0
  %11566 = vmatpush1.bf16.msra.mxu0 %v11542
  %11567 = vmatprep.subr.bf16.mxu0 0
  %11568 = vmatpush1.bf16.msra.mxu0 %v11543
  %11569 = vmatprep.subr.bf16.mxu0 0
  %11570 = vmatpush1.bf16.msra.mxu0 %v11544
  %11571 = vmatprep.subr.bf16.mxu0 0
  %11572 = vmatpush1.bf16.msra.mxu0 %v11545
  %11573 = vmatprep.subr.bf16.mxu0 0
  %11574 = vmatpush1.bf16.msra.mxu0 %v11546
  %11575 = vmatprep.subr.bf16.mxu0 0
  %11576 = vmatpush1.bf16.msra.mxu0 %v11547
  %11577 = vmatprep.subr.bf16.mxu0 0
  %11578 = vmatpush1.bf16.msra.mxu0 %v11548
  %11579 = vmatprep.subr.bf16.mxu0 0
  %11580 = vmatpush1.bf16.msra.mxu0 %v11549
  %11581 = vmatprep.subr.bf16.mxu0 0
  %11582 = vmatpush1.bf16.msra.mxu0 %v11563
  %11583 = vmatprep.subr.bf16.mxu0 0
  %11584 = vmatpush1.bf16.msra.mxu0 0
  %11585 = vmatprep.subr.bf16.mxu0 0
  %11586 = vmatpush1.bf16.msra.mxu0 0
  %11587 = vmatprep.subr.bf16.mxu0 0
  %11588 = vmatpush1.bf16.msra.mxu0 0
  %11589 = vmatprep.subr.bf16.mxu0 0
  %11590 = vmatpush1.bf16.msra.mxu0 0
  %11591 = vmatprep.subr.bf16.mxu0 0
  %11592 = vmatpush1.bf16.msra.mxu0 0
  %11593 = vmatprep.subr.bf16.mxu0 0
  %11594 = vmatpush1.bf16.msra.mxu0 0
  %11595 = vmatprep.subr.bf16.mxu0 0
  %11596 = vmatpush1.bf16.msra.mxu0 0
  %11597 = vmatprep.mubr.bf16.mxu0 %v11560
  %11598 = vmatmul.mubr.bf16.gmra.mrb[0].mxu0 %v11485
  %v11599 = vpop.f32.mrb[0].mxu0
  %v11600 = vadd.f32 0.0, %v11599
  %v11601 = vpop.f32.mrb[0].mxu0
  %v11602 = vpop.f32.mrb[0].mxu0
  %v11603 = vpop.f32.mrb[0].mxu0
  %11604 = vdwg.mxu0
  %v11605 = vadd.f32 %v11484, %v11600
  %v11606 = vpack.c.bf16 %v9787, %v9787
  %v11607 = vpack.c.bf16 %v9788, %v9788
  %s11608 = scalar_lea.vmem %s6, 1080
  %v11609 = vld [vmem:[%s11608] sm:$0xf]
  %v11610 = vld [vmem:[%s11608 + $0x4] sm:$0xf]
  %v11611 = vld [vmem:[%s11608 + $0x8] sm:$0xf]
  %v11612 = vld [vmem:[%s11608 + $0xc] sm:$0xf]
  %v11613 = vld [vmem:[%s11608 + $0x10] sm:$0xf]
  %v11614 = vld [vmem:[%s11608 + $0x14] sm:$0xf]
  %v11615 = vld [vmem:[%s11608 + $0x18] sm:$0xf]
  %v11616 = vld [vmem:[%s11608 + $0x1c] sm:$0xf]
  %v11617 = vld [vmem:[%s11608 + $0x20] sm:$0xf]
  %v11618 = vld [vmem:[%s11608 + $0x24] sm:$0xf]
  %v11619 = vld [vmem:[%s11608 + $0x28] sm:$0xf]
  %v11620 = vld [vmem:[%s11608 + $0x2c] sm:$0xf]
  %v11621 = vld [vmem:[%s11608 + $0x30] sm:$0xf]
  %v11622 = vld [vmem:[%s11608 + $0x34] sm:$0xf]
  %v11623 = vld [vmem:[%s11608 + $0x38] sm:$0xf]
  %v11624 = vld [vmem:[%s11608 + $0x3c] sm:$0xf]
  %v11625 = vld [vmem:[%s11608 + $0x40] sm:$0xf]
  %v11626 = vld [vmem:[%s11608 + $0x44] sm:$0x3]
  %v11645 = vunpack.c.l.b16 %v11609
  %v11646 = vunpack.c.l.b16 %v11610
  %v11647 = vunpack.c.l.b16 %v11611
  %v11648 = vunpack.c.l.b16 %v11612
  %v11649 = vunpack.c.l.b16 %v11613
  %v11650 = vunpack.c.l.b16 %v11614
  %v11651 = vunpack.c.l.b16 %v11615
  %v11652 = vunpack.c.l.b16 %v11616
  %v11653 = vunpack.c.l.b16 %v11617
  %v11654 = vunpack.c.l.b16 %v11618
  %v11655 = vunpack.c.l.b16 %v11619
  %v11656 = vunpack.c.l.b16 %v11620
  %v11657 = vunpack.c.l.b16 %v11621
  %v11658 = vunpack.c.l.b16 %v11622
  %v11659 = vunpack.c.l.b16 %v11623
  %v11660 = vunpack.c.l.b16 %v11624
  %v11661 = vunpack.c.l.b16 %v11625
  %v11662 = vunpack.c.l.b16 %v11626
  %v11663 = vpack.c.b16 %v11646, %v11645
  %v11664 = vpack.c.b16 %v11648, %v11647
  %v11665 = vpack.c.b16 %v11650, %v11649
  %v11666 = vpack.c.b16 %v11652, %v11651
  %v11667 = vpack.c.b16 %v11654, %v11653
  %v11668 = vpack.c.b16 %v11656, %v11655
  %v11669 = vpack.c.b16 %v11658, %v11657
  %v11670 = vpack.c.b16 %v11660, %v11659
  %v11671 = vpack.c.b16 %v11662, %v11661
  %v11681 = vsel %vm9883, %v11607, 0
  %v11684 = vand.u32 %v11671, %v9890
  %11686 = vmatprep.subr.bf16.mxu0 0
  %11687 = vmatpush1.bf16.msra.mxu0 %v11663
  %11688 = vmatprep.subr.bf16.mxu0 0
  %11689 = vmatpush1.bf16.msra.mxu0 %v11664
  %11690 = vmatprep.subr.bf16.mxu0 0
  %11691 = vmatpush1.bf16.msra.mxu0 %v11665
  %11692 = vmatprep.subr.bf16.mxu0 0
  %11693 = vmatpush1.bf16.msra.mxu0 %v11666
  %11694 = vmatprep.subr.bf16.mxu0 0
  %11695 = vmatpush1.bf16.msra.mxu0 %v11667
  %11696 = vmatprep.subr.bf16.mxu0 0
  %11697 = vmatpush1.bf16.msra.mxu0 %v11668
  %11698 = vmatprep.subr.bf16.mxu0 0
  %11699 = vmatpush1.bf16.msra.mxu0 %v11669
  %11700 = vmatprep.subr.bf16.mxu0 0
  %11701 = vmatpush1.bf16.msra.mxu0 %v11670
  %11702 = vmatprep.subr.bf16.mxu0 0
  %11703 = vmatpush1.bf16.msra.mxu0 %v11684
  %11704 = vmatprep.subr.bf16.mxu0 0
  %11705 = vmatpush1.bf16.msra.mxu0 0
  %11706 = vmatprep.subr.bf16.mxu0 0
  %11707 = vmatpush1.bf16.msra.mxu0 0
  %11708 = vmatprep.subr.bf16.mxu0 0
  %11709 = vmatpush1.bf16.msra.mxu0 0
  %11710 = vmatprep.subr.bf16.mxu0 0
  %11711 = vmatpush1.bf16.msra.mxu0 0
  %11712 = vmatprep.subr.bf16.mxu0 0
  %11713 = vmatpush1.bf16.msra.mxu0 0
  %11714 = vmatprep.subr.bf16.mxu0 0
  %11715 = vmatpush1.bf16.msra.mxu0 0
  %11716 = vmatprep.subr.bf16.mxu0 0
  %11717 = vmatpush1.bf16.msra.mxu0 0
  %11718 = vmatprep.mubr.bf16.mxu0 %v11681
  %11719 = vmatmul.mubr.bf16.gmra.mrb[0].mxu0 %v11606
  %v11720 = vpop.f32.mrb[0].mxu0
  %v11721 = vadd.f32 0.0, %v11720
  %v11722 = vpop.f32.mrb[0].mxu0
  %v11723 = vpop.f32.mrb[0].mxu0
  %v11724 = vpop.f32.mrb[0].mxu0
  %11725 = vdwg.mxu0
  %v11726 = vadd.f32 %v11605, %v11721
  %v11727 = vld [vmem:[%s7] sm:$0x1]
  %v11729 = vlaneseq
  %v11730 = vshrl.u32 %v11729, 7
  %v11731 = vsub.s32 0, %v11730
  %v11732 = vrot.slane %v11727, %v11731
  %v11734 = vadd.f32 %v11726, %v11732
  %v11735 = vmax.f32 %v11734, 0.0
  %v11736 = vpack.c.bf16 %v11735, %v11735
  %v11737 = vld [vmem:[%s8] sm:$0xf]
  %v11738 = vld [vmem:[%s8 + $0x4] sm:$0xf]
  %v11739 = vld [vmem:[%s8 + $0x8] sm:$0xf]
  %v11740 = vld [vmem:[%s8 + $0xc] sm:$0xf]
  %v11741 = vld [vmem:[%s8 + $0x10] sm:$0xf]
  %v11742 = vld [vmem:[%s8 + $0x14] sm:$0xf]
  %v11743 = vld [vmem:[%s8 + $0x18] sm:$0xf]
  %v11744 = vld [vmem:[%s8 + $0x1c] sm:$0xf]
  %v11745 = vld [vmem:[%s8 + $0x20] sm:$0xf]
  %v11746 = vld [vmem:[%s8 + $0x24] sm:$0xf]
  %v11747 = vld [vmem:[%s8 + $0x28] sm:$0xf]
  %v11748 = vld [vmem:[%s8 + $0x2c] sm:$0xf]
  %v11749 = vld [vmem:[%s8 + $0x30] sm:$0xf]
  %v11750 = vld [vmem:[%s8 + $0x34] sm:$0xf]
  %v11751 = vld [vmem:[%s8 + $0x38] sm:$0xf]
  %v11752 = vld [vmem:[%s9] sm:$0x1]
  %v11754 = vlaneseq
  %v11755 = vshrl.u32 %v11754, 7
  %v11756 = vsub.s32 0, %v11755
  %v11757 = vrot.slane %v11752, %v11756
  %v11774 = vunpack.c.l.b16 %v11737
  %v11775 = vunpack.c.l.b16 %v11738
  %v11776 = vunpack.c.l.b16 %v11739
  %v11777 = vunpack.c.l.b16 %v11740
  %v11778 = vunpack.c.l.b16 %v11741
  %v11779 = vunpack.c.l.b16 %v11742
  %v11780 = vunpack.c.l.b16 %v11743
  %v11781 = vunpack.c.l.b16 %v11744
  %v11782 = vunpack.c.l.b16 %v11745
  %v11783 = vunpack.c.l.b16 %v11746
  %v11784 = vunpack.c.l.b16 %v11747
  %v11785 = vunpack.c.l.b16 %v11748
  %v11786 = vunpack.c.l.b16 %v11749
  %v11787 = vunpack.c.l.b16 %v11750
  %v11788 = vunpack.c.l.b16 %v11751
  %v11789 = vpack.c.b16 %v11775, %v11774
  %v11790 = vpack.c.b16 %v11777, %v11776
  %v11791 = vpack.c.b16 %v11779, %v11778
  %v11792 = vpack.c.b16 %v11781, %v11780
  %v11793 = vpack.c.b16 %v11783, %v11782
  %v11794 = vpack.c.b16 %v11785, %v11784
  %v11795 = vpack.c.b16 %v11787, %v11786
  %v11796 = vpack.c.b16 %v11788, %v11788
  %vm11804 = vcmask 982016
  %v11806 = vsel %vm11804, %v11736, 0
  %v11809 = vsel %vm4732, %v11796, 0
  %11811 = vmatprep.subr.bf16.mxu0 0
  %11812 = vmatpush1.bf16.msra.mxu0 %v11789
  %11813 = vmatprep.subr.bf16.mxu0 0
  %11814 = vmatpush1.bf16.msra.mxu0 %v11790
  %11815 = vmatprep.subr.bf16.mxu0 0
  %11816 = vmatpush1.bf16.msra.mxu0 %v11791
  %11817 = vmatprep.subr.bf16.mxu0 0
  %11818 = vmatpush1.bf16.msra.mxu0 %v11792
  %11819 = vmatprep.subr.bf16.mxu0 0
  %11820 = vmatpush1.bf16.msra.mxu0 %v11793
  %11821 = vmatprep.subr.bf16.mxu0 0
  %11822 = vmatpush1.bf16.msra.mxu0 %v11794
  %11823 = vmatprep.subr.bf16.mxu0 0
  %11824 = vmatpush1.bf16.msra.mxu0 %v11795
  %11825 = vmatprep.subr.bf16.mxu0 0
  %11826 = vmatpush1.bf16.msra.mxu0 %v11809
  %11827 = vmatprep.subr.bf16.mxu0 0
  %11828 = vmatpush1.bf16.msra.mxu0 0
  %11829 = vmatprep.subr.bf16.mxu0 0
  %11830 = vmatpush1.bf16.msra.mxu0 0
  %11831 = vmatprep.subr.bf16.mxu0 0
  %11832 = vmatpush1.bf16.msra.mxu0 0
  %11833 = vmatprep.subr.bf16.mxu0 0
  %11834 = vmatpush1.bf16.msra.mxu0 0
  %11835 = vmatprep.subr.bf16.mxu0 0
  %11836 = vmatpush1.bf16.msra.mxu0 0
  %11837 = vmatprep.subr.bf16.mxu0 0
  %11838 = vmatpush1.bf16.msra.mxu0 0
  %11839 = vmatprep.subr.bf16.mxu0 0
  %11840 = vmatpush1.bf16.msra.mxu0 0
  %11841 = vmatprep.subr.bf16.mxu0 0
  %11842 = vmatpush1.bf16.msra.mxu0 0
  %11843 = vmatprep.mubr.bf16.mxu0 0
  %11844 = vmatmul.mubr.bf16.gmra.mrb[0].mxu0 %v11806
  %v11845 = vpop.f32.mrb[0].mxu0
  %v11846 = vadd.f32 %v11757, %v11845
  %v11847 = vpop.f32.mrb[0].mxu0
  %v11848 = vpop.f32.mrb[0].mxu0
  %v11849 = vpop.f32.mrb[0].mxu0
  %11850 = vdwg.mxu0
  %v11851 = vmax.f32 %v11846, 0.0
  %v11852 = vpack.c.bf16 %v11851, %v11851
  %v11853 = vld [vmem:[%s10] sm:$0xf]
  %v11854 = vld [vmem:[%s10 + $0x4] sm:$0xf]
  %v11855 = vld [vmem:[%s10 + $0x8] sm:$0xf]
  %v11856 = vld [vmem:[%s10 + $0xc] sm:$0xf]
  %v11857 = vld [vmem:[%s10 + $0x10] sm:$0xf]
  %v11858 = vld [vmem:[%s10 + $0x14] sm:$0xf]
  %v11859 = vld [vmem:[%s10 + $0x18] sm:$0xf]
  %v11860 = vld [vmem:[%s10 + $0x1c] sm:$0xf]
  %v11861 = vld [vmem:[%s10 + $0x20] sm:$0xf]
  %v11862 = vld [vmem:[%s10 + $0x24] sm:$0xf]
  %v11863 = vld [vmem:[%s10 + $0x28] sm:$0x3]
  %v11864 = vld [vmem:[%s11] sm:$0x1]
  %v11866 = vlaneseq
  %v11867 = vshrl.u32 %v11866, 7
  %v11868 = vsub.s32 0, %v11867
  %v11869 = vrot.slane %v11864, %v11868
  %v11882 = vunpack.c.l.b16 %v11853
  %v11883 = vunpack.c.l.b16 %v11854
  %v11884 = vunpack.c.l.b16 %v11855
  %v11885 = vunpack.c.l.b16 %v11856
  %v11886 = vunpack.c.l.b16 %v11857
  %v11887 = vunpack.c.l.b16 %v11858
  %v11888 = vunpack.c.l.b16 %v11859
  %v11889 = vunpack.c.l.b16 %v11860
  %v11890 = vunpack.c.l.b16 %v11861
  %v11891 = vunpack.c.l.b16 %v11862
  %v11892 = vunpack.c.l.b16 %v11863
  %v11893 = vpack.c.b16 %v11883, %v11882
  %v11894 = vpack.c.b16 %v11885, %v11884
  %v11895 = vpack.c.b16 %v11887, %v11886
  %v11896 = vpack.c.b16 %v11889, %v11888
  %v11897 = vpack.c.b16 %v11891, %v11890
  %v11898 = vpack.c.b16 %v11892, %v11892
  %vm11904 = vcmask 687104
  %v11906 = vsel %vm11904, %v11852, 0
  %vm11908 = vcmask 1041408
  %v11910 = vsel %vm11908, %v11898, 0
  %11912 = vmatprep.subr.bf16.mxu0 0
  %11913 = vmatpush1.bf16.msra.mxu0 %v11893
  %11914 = vmatprep.subr.bf16.mxu0 0
  %11915 = vmatpush1.bf16.msra.mxu0 %v11894
  %11916 = vmatprep.subr.bf16.mxu0 0
  %11917 = vmatpush1.bf16.msra.mxu0 %v11895
  %11918 = vmatprep.subr.bf16.mxu0 0
  %11919 = vmatpush1.bf16.msra.mxu0 %v11896
  %11920 = vmatprep.subr.bf16.mxu0 0
  %11921 = vmatpush1.bf16.msra.mxu0 %v11897
  %11922 = vmatprep.subr.bf16.mxu0 0
  %11923 = vmatpush1.bf16.msra.mxu0 %v11910
  %11924 = vmatprep.subr.bf16.mxu0 0
  %11925 = vmatpush1.bf16.msra.mxu0 0
  %11926 = vmatprep.subr.bf16.mxu0 0
  %11927 = vmatpush1.bf16.msra.mxu0 0
  %11928 = vmatprep.subr.bf16.mxu0 0
  %11929 = vmatpush1.bf16.msra.mxu0 0
  %11930 = vmatprep.subr.bf16.mxu0 0
  %11931 = vmatpush1.bf16.msra.mxu0 0
  %11932 = vmatprep.subr.bf16.mxu0 0
  %11933 = vmatpush1.bf16.msra.mxu0 0
  %11934 = vmatprep.subr.bf16.mxu0 0
  %11935 = vmatpush1.bf16.msra.mxu0 0
  %11936 = vmatprep.subr.bf16.mxu0 0
  %11937 = vmatpush1.bf16.msra.mxu0 0
  %11938 = vmatprep.subr.bf16.mxu0 0
  %11939 = vmatpush1.bf16.msra.mxu0 0
  %11940 = vmatprep.subr.bf16.mxu0 0
  %11941 = vmatpush1.bf16.msra.mxu0 0
  %11942 = vmatprep.subr.bf16.mxu0 0
  %11943 = vmatpush1.bf16.msra.mxu0 0
  %11944 = vmatprep.mubr.bf16.mxu0 0
  %11945 = vmatmul.mubr.bf16.gmra.mrb[0].mxu0 %v11906
  %v11946 = vpop.f32.mrb[0].mxu0
  %v11947 = vadd.f32 %v11869, %v11946
  %v11948 = vpop.f32.mrb[0].mxu0
  %v11949 = vpop.f32.mrb[0].mxu0
  %v11950 = vpop.f32.mrb[0].mxu0
  %11951 = vdwg.mxu0
  %11952 = vst [vmem:[%s12] sm:$0xff] %v11947
  // Predicated region
  $region50: #{cnn_cifar_forward.1} parent=0 // pred_check
    _
  $region51: #{cnn_cifar_forward.1} parent=0 // pred_check_branch
    %11954 = sbr.rel (0) target = $region53
  $region52: #{cnn_cifar_forward.1} parent=0 // pred_region
    _
  $region53: #{cnn_cifar_forward.1} parent=0 // pred_fallthru
    _
  // Predicated region
  $region54: #{cnn_cifar_forward.1} parent=0 // pred_check
    _
  $region55: #{cnn_cifar_forward.1} parent=0 // pred_check_branch
    %11956 = sbr.rel (0) target = $region57
  $region56: #{cnn_cifar_forward.1} parent=0 // pred_region
    _
  $region57: #{cnn_cifar_forward.1} parent=0 // pred_fallthru
    _

</llo_original>
